<compile_context>
chip_gen: v6e
topology: v6e:2x2x1
jax: 0.10.0
libtpu: 0.0.40
codegen_flags: <defaults>
</compile_context>

<pallas_src>
import functools

import jax
import jax.numpy as jnp
from jax.experimental import pallas as pl
from jax.experimental.pallas import tpu as pltpu


# ---------------------------------------------------------------------------
# Pallas kernels
# ---------------------------------------------------------------------------
def conv_lrelu_pool_kernel(p_ref, w_ref, b_ref, o_ref, *, slope):
    """Fused conv (transposed im2col matmul) + 2x2 max-pool + bias + LeakyReLU.

    p_ref: (4, K, TM) bf16 -- 4 pool-window members x K patch feats x TM positions
    w_ref: (Cout, K)  bf16
    b_ref: (Cout, 1)  f32
    o_ref: (Cout, TM) bf16  (TM is a multiple of 128 -> lane-dense stores)
    """
    w = w_ref[...]
    # Per-member matmuls share the small streamed LHS; pool-max on the VPU.
    acc = jnp.dot(w, p_ref[0], preferred_element_type=jnp.float32)
    for m in range(1, 4):
        acc = jnp.maximum(acc, jnp.dot(w, p_ref[m],
                                       preferred_element_type=jnp.float32))
    # Bias-add and LeakyReLU are monotone, so they commute with the max and
    # are applied once instead of per member.
    y = acc + b_ref[...]
    o_ref[...] = jnp.maximum(y, slope * y).astype(o_ref.dtype)


def tail_kernel(p_ref, w4_ref, b4_ref, w5_ref, b5_ref, w6_ref, b6_ref, o_ref,
                *, slope, n):
    """Fused tail: conv stage 4 + LeakyReLU + MaxPool + Flatten + fc1 + LeakyReLU + fc2.

    All matmuls keep the transposed (channels-as-rows) orientation; the batch
    (N) lives on the lane axis.

    p_ref : (K4, 4*N) bf16 -- columns = member-major pool patches of the 1x1 output
    w4_ref: (C4, K4)  bf16,  b4_ref: (C4, 1) f32
    w5_ref: (F1, C4)  f32,   b5_ref: (F1, 1) f32
    w6_ref: (F2, F1)  f32,   b6_ref: (F2, 1) f32
    o_ref : (F2, N)   f32
    """
    # One MXU staging for all 4 pool members.
    y = jnp.dot(w4_ref[...], p_ref[...], preferred_element_type=jnp.float32)  # (C4, 4N)
    m01 = jnp.maximum(y[:, 0 * n:1 * n], y[:, 1 * n:2 * n])
    m23 = jnp.maximum(y[:, 2 * n:3 * n], y[:, 3 * n:4 * n])
    feat = jnp.maximum(m01, m23) + b4_ref[...]
    feat = jnp.maximum(feat, slope * feat)       # (C4, N) == Flatten output (transposed)
    h = jnp.dot(w5_ref[...], feat, preferred_element_type=jnp.float32) + b5_ref[...]
    h = jnp.maximum(h, slope * h)
    # TODO(synk): Dropout(0.5) implemented as identity (eval mode); torch's
    # training-mode RNG mask is not reproducible here.
    o_ref[...] = jnp.dot(w6_ref[...], h, preferred_element_type=jnp.float32) + b6_ref[...]


# ---------------------------------------------------------------------------
# Glue (plain JAX): channel-major pool-grouped im2col + block-size selection
# ---------------------------------------------------------------------------
def _round_up(x, m):
    return (x + m - 1) // m * m


def _pool_grouped_patches_cm(x_cm, k=4, s=2, p=1):
    """im2col, channel-major, already grouped by 2x2 pool window.

    x_cm: (C, N, H, W) -> ((4, K, M), PH, PW) with K ordered (cin, kh, kw)
    (matches a plain reshape of the torch (Cout, Cin, kh, kw) weight) and
    M ordered (n, ph, pw).  Axis 0 enumerates the (a, b) member of each 2x2
    pool window.  Built purely from strided slices of the padded input ->
    a single XLA fusion, no extra transpose pass.
    """
    C, N, H, W = x_cm.shape
    xp = jnp.pad(x_cm, ((0, 0), (0, 0), (p, p), (p, p)))
    OH = (H + 2 * p - k) // s + 1
    OW = (W + 2 * p - k) // s + 1
    PH, PW = OH // 2, OW // 2
    K = C * k * k
    M = N * PH * PW
    step = 2 * s
    members = []
    for a in range(2):
        for b in range(2):
            taps = []
            for di in range(k):
                for dj in range(k):
                    r0 = s * a + di
                    c0 = s * b + dj
                    taps.append(
                        xp[:, :, r0:r0 + step * (PH - 1) + 1:step,
                                 c0:c0 + step * (PW - 1) + 1:step])
            t = jnp.stack(taps, axis=1)            # (C, k*k, N, PH, PW)
            members.append(t.reshape(K, M))
    return jnp.stack(members, axis=0), PH, PW      # (4, K, M)


def _pick_tm(m, k, cout, *, in_bytes=2, out_bytes=2, budget_bytes=24 << 20,
             tm_cap=8192, min_blocks=2, min_split_tm=256):
    """Pick the block width (pooled positions, lane axis of the output).

    Multiple of 128 (lane-dense stores), capped by a VMEM budget that accounts
    for the double-buffered patch block, double-buffered output block and the
    resident weights/bias (conservative for v7x's 64 MiB VMEM).  The problem
    is split into >= min_blocks blocks (so v7x's second TensorCore gets work)
    only when each block keeps >= min_split_tm columns.  Returns (TM, M_pad)
    with M_pad % TM == 0.
    """
    m128 = _round_up(m, 128)
    fixed = 2 * cout * _round_up(k, 128) * in_bytes + 4 * _round_up(cout, 8) * 128
    per_col = 2 * 4 * _round_up(k, 8) * in_bytes + 2 * cout * out_bytes
    tm_budget = max(128, ((budget_bytes - fixed) // per_col) // 128 * 128)
    tm = min(tm_cap, tm_budget, m128)
    if m128 // tm < min_blocks and tm // min_blocks >= min_split_tm:
        tm = max(128, _round_up(pl.cdiv(m128, min_blocks), 128))
    m_pad = _round_up(m128, tm)
    return tm, m_pad


def conv_lrelu_pool(x_cm, w, b, *, slope=0.2):
    """Conv2d(Cin,Cout,4,2,1) + LeakyReLU(slope) + MaxPool2d(2,2), channel-major.

    x_cm: (Cin, N, H, W).  w: (Cout, Cin, 4, 4) torch layout.  b: (Cout,).
    Returns (Cout, N, H//4, W//4) bfloat16.
    """
    Cin, N, H, W = x_cm.shape
    Cout = w.shape[0]
    K = 16 * Cin

    pw, PH, PW = _pool_grouped_patches_cm(x_cm.astype(jnp.bfloat16))  # (4, K, M) bf16
    M = N * PH * PW
    # Torch weight (Cout, Cin, kh, kw) reshapes directly to (Cout, K) with the
    # same (cin, kh, kw) ordering the patches use.
    w_lhs = w.reshape(Cout, K).astype(jnp.bfloat16)
    b_col = b.reshape(Cout, 1).astype(jnp.float32)

    TM, M_pad = _pick_tm(M, K, Cout)
    if M_pad != M:
        pw = jnp.pad(pw, ((0, 0), (0, 0), (0, M_pad - M)))

    out = pl.pallas_call(
        functools.partial(conv_lrelu_pool_kernel, slope=slope),
        out_shape=jax.ShapeDtypeStruct((Cout, M_pad), jnp.bfloat16),
        grid=(M_pad // TM,),
        in_specs=[
            pl.BlockSpec((4, K, TM), lambda i: (0, 0, i)),
            pl.BlockSpec((Cout, K), lambda i: (0, 0)),
            pl.BlockSpec((Cout, 1), lambda i: (0, 0)),
        ],
        out_specs=pl.BlockSpec((Cout, TM), lambda i: (0, i)),
        compiler_params=pltpu.CompilerParams(
            dimension_semantics=("parallel",),
            vmem_limit_bytes=48 * 1024 * 1024,
        ),
    )(pw, w_lhs, b_col)

    if M_pad != M:
        out = out[:, :M]
    return out.reshape(Cout, N, PH, PW)


def tail_forward(x_cm, conv4, fc1, fc2, *, slope=0.2):
    """Fused conv stage 4 + Flatten + Linear + LeakyReLU + Dropout(id) + Linear."""
    C3, N, H, W = x_cm.shape
    w4, b4 = conv4
    w5, b5 = fc1
    w6, b6 = fc2
    C4 = w4.shape[0]
    K4 = 16 * C3
    F2 = w6.shape[0]

    p4, PH, PW = _pool_grouped_patches_cm(x_cm.astype(jnp.bfloat16))  # (4, K4, N)
    assert PH == 1 and PW == 1, "architecture requires 1x1 spatial before Flatten"
    # Member-major columns so the kernel does ONE (C4,K4)@(K4,4N) matmul.
    p4 = jnp.transpose(p4, (1, 0, 2)).reshape(K4, 4 * N).astype(jnp.bfloat16)

    w4_m = w4.reshape(C4, K4).astype(jnp.bfloat16)
    b4_m = b4.reshape(C4, 1).astype(jnp.float32)
    w5_m = w5.astype(jnp.float32)
    b5_m = b5.reshape(-1, 1).astype(jnp.float32)
    w6_m = w6.astype(jnp.float32)
    b6_m = b6.reshape(-1, 1).astype(jnp.float32)

    out_t = pl.pallas_call(
        functools.partial(tail_kernel, slope=slope, n=N),
        out_shape=jax.ShapeDtypeStruct((F2, N), jnp.float32),
    )(p4, w4_m, b4_m, w5_m, b5_m, w6_m, b6_m)
    return jnp.transpose(out_t)                    # (N, F2)


# ---------------------------------------------------------------------------
# metric_net forward
# ---------------------------------------------------------------------------
def metric_net_forward(x_nchw, params):
    """x_nchw: (N, 3, 256, 256) float32 -> (N, df_dim) float32."""
    x = jnp.transpose(x_nchw, (1, 0, 2, 3)).astype(jnp.float32)   # NCHW -> CNHW
    for w, b in params["convs"][:3]:
        x = conv_lrelu_pool(x, w, b, slope=0.2)
    return tail_forward(x, params["convs"][3], params["fc1"], params["fc2"], slope=0.2)


def init_params(key, df_dim=8):
    """Deterministic synthetic parameters with the same shapes as the torch module."""
    ks = jax.random.split(key, 12)
    conv_dims = [(df_dim, 3), (df_dim * 2, df_dim),
                 (df_dim * 4, df_dim * 2), (df_dim * 8, df_dim * 4)]
    convs = []
    for li, (cout, cin) in enumerate(conv_dims):
        w = jax.random.normal(ks[2 * li], (cout, cin, 4, 4), jnp.float32) * 0.05
        b = jax.random.normal(ks[2 * li + 1], (cout,), jnp.float32) * 0.01
        convs.append((w, b))
    w1 = jax.random.normal(ks[8], (df_dim * 2, df_dim * 8), jnp.float32) * 0.05
    b1 = jax.random.normal(ks[9], (df_dim * 2,), jnp.float32) * 0.01
    w2 = jax.random.normal(ks[10], (df_dim, df_dim * 2), jnp.float32) * 0.05
    b2 = jax.random.normal(ks[11], (df_dim,), jnp.float32) * 0.01
    return {"convs": convs, "fc1": (w1, b1), "fc2": (w2, b2)}


if __name__ == "__main__":
    df_dim = 8  # small synthetic width (torch default is 64); shapes scale identically
    key = jax.random.PRNGKey(0)
    kx, kp = jax.random.split(key)
    # Architecture (4x conv(s=2)+pool(s=2) then Linear(df_dim*8, ...)) requires 256x256 input.
    x = jax.random.normal(kx, (2, 3, 256, 256), jnp.float32)
    params = init_params(kp, df_dim)

    fwd = jax.jit(lambda xx: metric_net_forward(xx, params))
    out = jax.block_until_ready(fwd(x))

    assert out.shape == (2, df_dim), out.shape
    assert out.dtype == jnp.float32
    assert bool(jnp.all(jnp.isfinite(out)))
    print("KERNEL_OK")
</pallas_src>

<mosaic_0001>
module attributes {stable_mosaic.version = 11 : i64} {
  func.func @conv_lrelu_pool_kernel(%arg0: i32, %arg1: memref<4x48x4096xbf16, #tpu.memory_space<vmem>>, %arg2: memref<8x48xbf16, #tpu.memory_space<vmem>>, %arg3: memref<8x1xf32, #tpu.memory_space<vmem>>, %arg4: memref<8x4096xbf16, #tpu.memory_space<vmem>>) attributes {dimension_semantics = [#tpu.dimension_semantics<parallel>], iteration_bounds = array<i64: 2>, scalar_prefetch = 0 : i64, scratch_operands = 0 : i64, tpu.core_type = #tpu.core_type<tc>, window_params = [{transform_indices = @transform_0, window_bounds = array<i64: 4, 48, 4096>}, {pipeline_mode = #tpu.pipeline_mode<synchronous>, transform_indices = @transform_1, window_bounds = array<i64: 8, 48>}, {pipeline_mode = #tpu.pipeline_mode<synchronous>, transform_indices = @transform_2, window_bounds = array<i64: 8, 1>}, {transform_indices = @transform_3, window_bounds = array<i64: 8, 4096>}]} {
    %c0 = arith.constant 0 : index
    %c0_0 = arith.constant 0 : index
    %0 = vector.load %arg2[%c0, %c0_0] : memref<8x48xbf16, #tpu.memory_space<vmem>>, vector<8x48xbf16>
    %c0_1 = arith.constant 0 : index
    %c0_2 = arith.constant 0 : index
    %c0_3 = arith.constant 0 : index
    %1 = vector.load %arg1[%c0_1, %c0_2, %c0_3] : memref<4x48x4096xbf16, #tpu.memory_space<vmem>>, vector<1x48x4096xbf16>
    %2 = vector.shape_cast %1 : vector<1x48x4096xbf16> to vector<48x4096xbf16>
    %cst = arith.constant dense<0.000000e+00> : vector<8x4096xf32>
    %3 = tpu.matmul %0, %2, %cst {dimension_numbers = #tpu.dot_dimension_numbers<[1], [0], [0], [1], [0, 0, 1, 1], [], []>} : vector<8x48xbf16>, vector<48x4096xbf16>, vector<8x4096xf32> -> vector<8x4096xf32>
    %c1 = arith.constant 1 : index
    %c0_4 = arith.constant 0 : index
    %c0_5 = arith.constant 0 : index
    %4 = vector.load %arg1[%c1, %c0_4, %c0_5] : memref<4x48x4096xbf16, #tpu.memory_space<vmem>>, vector<1x48x4096xbf16>
    %5 = vector.shape_cast %4 : vector<1x48x4096xbf16> to vector<48x4096xbf16>
    %cst_6 = arith.constant dense<0.000000e+00> : vector<8x4096xf32>
    %6 = tpu.matmul %0, %5, %cst_6 {dimension_numbers = #tpu.dot_dimension_numbers<[1], [0], [0], [1], [0, 0, 1, 1], [], []>} : vector<8x48xbf16>, vector<48x4096xbf16>, vector<8x4096xf32> -> vector<8x4096xf32>
    %7 = arith.maximumf %3, %6 : vector<8x4096xf32>
    %c2 = arith.constant 2 : index
    %c0_7 = arith.constant 0 : index
    %c0_8 = arith.constant 0 : index
    %8 = vector.load %arg1[%c2, %c0_7, %c0_8] : memref<4x48x4096xbf16, #tpu.memory_space<vmem>>, vector<1x48x4096xbf16>
    %9 = vector.shape_cast %8 : vector<1x48x4096xbf16> to vector<48x4096xbf16>
    %cst_9 = arith.constant dense<0.000000e+00> : vector<8x4096xf32>
    %10 = tpu.matmul %0, %9, %cst_9 {dimension_numbers = #tpu.dot_dimension_numbers<[1], [0], [0], [1], [0, 0, 1, 1], [], []>} : vector<8x48xbf16>, vector<48x4096xbf16>, vector<8x4096xf32> -> vector<8x4096xf32>
    %11 = arith.maximumf %7, %10 : vector<8x4096xf32>
    %c3 = arith.constant 3 : index
    %c0_10 = arith.constant 0 : index
    %c0_11 = arith.constant 0 : index
    %12 = vector.load %arg1[%c3, %c0_10, %c0_11] : memref<4x48x4096xbf16, #tpu.memory_space<vmem>>, vector<1x48x4096xbf16>
    %13 = vector.shape_cast %12 : vector<1x48x4096xbf16> to vector<48x4096xbf16>
    %cst_12 = arith.constant dense<0.000000e+00> : vector<8x4096xf32>
    %14 = tpu.matmul %0, %13, %cst_12 {dimension_numbers = #tpu.dot_dimension_numbers<[1], [0], [0], [1], [0, 0, 1, 1], [], []>} : vector<8x48xbf16>, vector<48x4096xbf16>, vector<8x4096xf32> -> vector<8x4096xf32>
    %15 = arith.maximumf %11, %14 : vector<8x4096xf32>
    %c0_13 = arith.constant 0 : index
    %c0_14 = arith.constant 0 : index
    %16 = vector.load %arg3[%c0_13, %c0_14] : memref<8x1xf32, #tpu.memory_space<vmem>>, vector<8x1xf32>
    %17 = vector.broadcast %16 : vector<8x1xf32> to vector<8x4096xf32>
    %18 = arith.addf %15, %17 : vector<8x4096xf32>
    %cst_15 = arith.constant 2.000000e-01 : f32
    %19 = vector.broadcast %cst_15 : f32 to vector<8x4096xf32>
    %20 = arith.mulf %19, %18 : vector<8x4096xf32>
    %21 = arith.maximumf %18, %20 : vector<8x4096xf32>
    %22 = arith.truncf %21 : vector<8x4096xf32> to vector<8x4096xbf16>
    %c0_16 = arith.constant 0 : index
    %c0_17 = arith.constant 0 : index
    %23 = vector.load %arg4[%c0_16, %c0_17] : memref<8x4096xbf16, #tpu.memory_space<vmem>>, vector<8x4096xbf16>
    tpu.vector_store %arg4[%c0_16, %c0_17], %22 {strides = array<i32>} : memref<8x4096xbf16, #tpu.memory_space<vmem>>, vector<8x4096xbf16>,
    return
  }
  func.func @transform_0(%arg0: i32) -> (i32, i32, i32) {
    %c0_i32 = arith.constant 0 : i32
    %c0_i32_0 = arith.constant 0 : i32
    %c0_i32_1 = arith.constant 0 : i32
    return %c0_i32, %c0_i32_0, %arg0 : i32, i32, i32
  }
  func.func @transform_1(%arg0: i32) -> (i32, i32) {
    %c0_i32 = arith.constant 0 : i32
    %c0_i32_0 = arith.constant 0 : i32
    %c0_i32_1 = arith.constant 0 : i32
    return %c0_i32, %c0_i32_0 : i32, i32
  }
  func.func @transform_2(%arg0: i32) -> (i32, i32) {
    %c0_i32 = arith.constant 0 : i32
    %c0_i32_0 = arith.constant 0 : i32
    %c0_i32_1 = arith.constant 0 : i32
    return %c0_i32, %c0_i32_0 : i32, i32
  }
  func.func @transform_3(%arg0: i32) -> (i32, i32) {
    %c0_i32 = arith.constant 0 : i32
    %c0_i32_0 = arith.constant 0 : i32
    return %c0_i32, %arg0 : i32, i32
  }
}

module attributes {stable_mosaic.version = 11 : i64} {
  func.func @conv_lrelu_pool_kernel(%arg0: i32, %arg1: memref<4x128x256xbf16, #tpu.memory_space<vmem>>, %arg2: memref<16x128xbf16, #tpu.memory_space<vmem>>, %arg3: memref<16x1xf32, #tpu.memory_space<vmem>>, %arg4: memref<16x256xbf16, #tpu.memory_space<vmem>>) attributes {dimension_semantics = [#tpu.dimension_semantics<parallel>], iteration_bounds = array<i64: 2>, scalar_prefetch = 0 : i64, scratch_operands = 0 : i64, tpu.core_type = #tpu.core_type<tc>, window_params = [{transform_indices = @transform_0, window_bounds = array<i64: 4, 128, 256>}, {pipeline_mode = #tpu.pipeline_mode<synchronous>, transform_indices = @transform_1, window_bounds = array<i64: 16, 128>}, {pipeline_mode = #tpu.pipeline_mode<synchronous>, transform_indices = @transform_2, window_bounds = array<i64: 16, 1>}, {transform_indices = @transform_3, window_bounds = array<i64: 16, 256>}]} {
    %c0 = arith.constant 0 : index
    %c0_0 = arith.constant 0 : index
    %0 = vector.load %arg2[%c0, %c0_0] : memref<16x128xbf16, #tpu.memory_space<vmem>>, vector<16x128xbf16>
    %c0_1 = arith.constant 0 : index
    %c0_2 = arith.constant 0 : index
    %c0_3 = arith.constant 0 : index
    %1 = vector.load %arg1[%c0_1, %c0_2, %c0_3] : memref<4x128x256xbf16, #tpu.memory_space<vmem>>, vector<1x128x256xbf16>
    %2 = vector.shape_cast %1 : vector<1x128x256xbf16> to vector<128x256xbf16>
    %cst = arith.constant dense<0.000000e+00> : vector<16x256xf32>
    %3 = tpu.matmul %0, %2, %cst {dimension_numbers = #tpu.dot_dimension_numbers<[1], [0], [0], [1], [0, 0, 1, 1], [], []>} : vector<16x128xbf16>, vector<128x256xbf16>, vector<16x256xf32> -> vector<16x256xf32>
    %c1 = arith.constant 1 : index
    %c0_4 = arith.constant 0 : index
    %c0_5 = arith.constant 0 : index
    %4 = vector.load %arg1[%c1, %c0_4, %c0_5] : memref<4x128x256xbf16, #tpu.memory_space<vmem>>, vector<1x128x256xbf16>
    %5 = vector.shape_cast %4 : vector<1x128x256xbf16> to vector<128x256xbf16>
    %cst_6 = arith.constant dense<0.000000e+00> : vector<16x256xf32>
    %6 = tpu.matmul %0, %5, %cst_6 {dimension_numbers = #tpu.dot_dimension_numbers<[1], [0], [0], [1], [0, 0, 1, 1], [], []>} : vector<16x128xbf16>, vector<128x256xbf16>, vector<16x256xf32> -> vector<16x256xf32>
    %7 = arith.maximumf %3, %6 : vector<16x256xf32>
    %c2 = arith.constant 2 : index
    %c0_7 = arith.constant 0 : index
    %c0_8 = arith.constant 0 : index
    %8 = vector.load %arg1[%c2, %c0_7, %c0_8] : memref<4x128x256xbf16, #tpu.memory_space<vmem>>, vector<1x128x256xbf16>
    %9 = vector.shape_cast %8 : vector<1x128x256xbf16> to vector<128x256xbf16>
    %cst_9 = arith.constant dense<0.000000e+00> : vector<16x256xf32>
    %10 = tpu.matmul %0, %9, %cst_9 {dimension_numbers = #tpu.dot_dimension_numbers<[1], [0], [0], [1], [0, 0, 1, 1], [], []>} : vector<16x128xbf16>, vector<128x256xbf16>, vector<16x256xf32> -> vector<16x256xf32>
    %11 = arith.maximumf %7, %10 : vector<16x256xf32>
    %c3 = arith.constant 3 : index
    %c0_10 = arith.constant 0 : index
    %c0_11 = arith.constant 0 : index
    %12 = vector.load %arg1[%c3, %c0_10, %c0_11] : memref<4x128x256xbf16, #tpu.memory_space<vmem>>, vector<1x128x256xbf16>
    %13 = vector.shape_cast %12 : vector<1x128x256xbf16> to vector<128x256xbf16>
    %cst_12 = arith.constant dense<0.000000e+00> : vector<16x256xf32>
    %14 = tpu.matmul %0, %13, %cst_12 {dimension_numbers = #tpu.dot_dimension_numbers<[1], [0], [0], [1], [0, 0, 1, 1], [], []>} : vector<16x128xbf16>, vector<128x256xbf16>, vector<16x256xf32> -> vector<16x256xf32>
    %15 = arith.maximumf %11, %14 : vector<16x256xf32>
    %c0_13 = arith.constant 0 : index
    %c0_14 = arith.constant 0 : index
    %16 = vector.load %arg3[%c0_13, %c0_14] : memref<16x1xf32, #tpu.memory_space<vmem>>, vector<16x1xf32>
    %17 = vector.broadcast %16 : vector<16x1xf32> to vector<16x256xf32>
    %18 = arith.addf %15, %17 : vector<16x256xf32>
    %cst_15 = arith.constant 2.000000e-01 : f32
    %19 = vector.broadcast %cst_15 : f32 to vector<16x256xf32>
    %20 = arith.mulf %19, %18 : vector<16x256xf32>
    %21 = arith.maximumf %18, %20 : vector<16x256xf32>
    %22 = arith.truncf %21 : vector<16x256xf32> to vector<16x256xbf16>
    %c0_16 = arith.constant 0 : index
    %c0_17 = arith.constant 0 : index
    %23 = vector.load %arg4[%c0_16, %c0_17] : memref<16x256xbf16, #tpu.memory_space<vmem>>, vector<16x256xbf16>
    tpu.vector_store %arg4[%c0_16, %c0_17], %22 {strides = array<i32>} : memref<16x256xbf16, #tpu.memory_space<vmem>>, vector<16x256xbf16>,
    return
  }
  func.func @transform_0(%arg0: i32) -> (i32, i32, i32) {
    %c0_i32 = arith.constant 0 : i32
    %c0_i32_0 = arith.constant 0 : i32
    %c0_i32_1 = arith.constant 0 : i32
    return %c0_i32, %c0_i32_0, %arg0 : i32, i32, i32
  }
  func.func @transform_1(%arg0: i32) -> (i32, i32) {
    %c0_i32 = arith.constant 0 : i32
    %c0_i32_0 = arith.constant 0 : i32
    %c0_i32_1 = arith.constant 0 : i32
    return %c0_i32, %c0_i32_0 : i32, i32
  }
  func.func @transform_2(%arg0: i32) -> (i32, i32) {
    %c0_i32 = arith.constant 0 : i32
    %c0_i32_0 = arith.constant 0 : i32
    %c0_i32_1 = arith.constant 0 : i32
    return %c0_i32, %c0_i32_0 : i32, i32
  }
  func.func @transform_3(%arg0: i32) -> (i32, i32) {
    %c0_i32 = arith.constant 0 : i32
    %c0_i32_0 = arith.constant 0 : i32
    return %c0_i32, %arg0 : i32, i32
  }
}

module attributes {stable_mosaic.version = 11 : i64} {
  func.func @conv_lrelu_pool_kernel(%arg0: i32, %arg1: memref<4x256x128xbf16, #tpu.memory_space<vmem>>, %arg2: memref<32x256xbf16, #tpu.memory_space<vmem>>, %arg3: memref<32x1xf32, #tpu.memory_space<vmem>>, %arg4: memref<32x128xbf16, #tpu.memory_space<vmem>>) attributes {dimension_semantics = [#tpu.dimension_semantics<parallel>], iteration_bounds = array<i64: 1>, scalar_prefetch = 0 : i64, scratch_operands = 0 : i64, tpu.core_type = #tpu.core_type<tc>, window_params = [{transform_indices = @transform_0, window_bounds = array<i64: 4, 256, 128>}, {pipeline_mode = #tpu.pipeline_mode<synchronous>, transform_indices = @transform_1, window_bounds = array<i64: 32, 256>}, {pipeline_mode = #tpu.pipeline_mode<synchronous>, transform_indices = @transform_2, window_bounds = array<i64: 32, 1>}, {transform_indices = @transform_3, window_bounds = array<i64: 32, 128>}]} {
    %c0 = arith.constant 0 : index
    %c0_0 = arith.constant 0 : index
    %0 = vector.load %arg2[%c0, %c0_0] : memref<32x256xbf16, #tpu.memory_space<vmem>>, vector<32x256xbf16>
    %c0_1 = arith.constant 0 : index
    %c0_2 = arith.constant 0 : index
    %c0_3 = arith.constant 0 : index
    %1 = vector.load %arg1[%c0_1, %c0_2, %c0_3] : memref<4x256x128xbf16, #tpu.memory_space<vmem>>, vector<1x256x128xbf16>
    %2 = vector.shape_cast %1 : vector<1x256x128xbf16> to vector<256x128xbf16>
    %cst = arith.constant dense<0.000000e+00> : vector<32x128xf32>
    %3 = tpu.matmul %0, %2, %cst {dimension_numbers = #tpu.dot_dimension_numbers<[1], [0], [0], [1], [0, 0, 1, 1], [], []>} : vector<32x256xbf16>, vector<256x128xbf16>, vector<32x128xf32> -> vector<32x128xf32>
    %c1 = arith.constant 1 : index
    %c0_4 = arith.constant 0 : index
    %c0_5 = arith.constant 0 : index
    %4 = vector.load %arg1[%c1, %c0_4, %c0_5] : memref<4x256x128xbf16, #tpu.memory_space<vmem>>, vector<1x256x128xbf16>
    %5 = vector.shape_cast %4 : vector<1x256x128xbf16> to vector<256x128xbf16>
    %cst_6 = arith.constant dense<0.000000e+00> : vector<32x128xf32>
    %6 = tpu.matmul %0, %5, %cst_6 {dimension_numbers = #tpu.dot_dimension_numbers<[1], [0], [0], [1], [0, 0, 1, 1], [], []>} : vector<32x256xbf16>, vector<256x128xbf16>, vector<32x128xf32> -> vector<32x128xf32>
    %7 = arith.maximumf %3, %6 : vector<32x128xf32>
    %c2 = arith.constant 2 : index
    %c0_7 = arith.constant 0 : index
    %c0_8 = arith.constant 0 : index
    %8 = vector.load %arg1[%c2, %c0_7, %c0_8] : memref<4x256x128xbf16, #tpu.memory_space<vmem>>, vector<1x256x128xbf16>
    %9 = vector.shape_cast %8 : vector<1x256x128xbf16> to vector<256x128xbf16>
    %cst_9 = arith.constant dense<0.000000e+00> : vector<32x128xf32>
    %10 = tpu.matmul %0, %9, %cst_9 {dimension_numbers = #tpu.dot_dimension_numbers<[1], [0], [0], [1], [0, 0, 1, 1], [], []>} : vector<32x256xbf16>, vector<256x128xbf16>, vector<32x128xf32> -> vector<32x128xf32>
    %11 = arith.maximumf %7, %10 : vector<32x128xf32>
    %c3 = arith.constant 3 : index
    %c0_10 = arith.constant 0 : index
    %c0_11 = arith.constant 0 : index
    %12 = vector.load %arg1[%c3, %c0_10, %c0_11] : memref<4x256x128xbf16, #tpu.memory_space<vmem>>, vector<1x256x128xbf16>
    %13 = vector.shape_cast %12 : vector<1x256x128xbf16> to vector<256x128xbf16>
    %cst_12 = arith.constant dense<0.000000e+00> : vector<32x128xf32>
    %14 = tpu.matmul %0, %13, %cst_12 {dimension_numbers = #tpu.dot_dimension_numbers<[1], [0], [0], [1], [0, 0, 1, 1], [], []>} : vector<32x256xbf16>, vector<256x128xbf16>, vector<32x128xf32> -> vector<32x128xf32>
    %15 = arith.maximumf %11, %14 : vector<32x128xf32>
    %c0_13 = arith.constant 0 : index
    %c0_14 = arith.constant 0 : index
    %16 = vector.load %arg3[%c0_13, %c0_14] : memref<32x1xf32, #tpu.memory_space<vmem>>, vector<32x1xf32>
    %17 = vector.broadcast %16 : vector<32x1xf32> to vector<32x128xf32>
    %18 = arith.addf %15, %17 : vector<32x128xf32>
    %cst_15 = arith.constant 2.000000e-01 : f32
    %19 = vector.broadcast %cst_15 : f32 to vector<32x128xf32>
    %20 = arith.mulf %19, %18 : vector<32x128xf32>
    %21 = arith.maximumf %18, %20 : vector<32x128xf32>
    %22 = arith.truncf %21 : vector<32x128xf32> to vector<32x128xbf16>
    %c0_16 = arith.constant 0 : index
    %c0_17 = arith.constant 0 : index
    %23 = vector.load %arg4[%c0_16, %c0_17] : memref<32x128xbf16, #tpu.memory_space<vmem>>, vector<32x128xbf16>
    tpu.vector_store %arg4[%c0_16, %c0_17], %22 {strides = array<i32>} : memref<32x128xbf16, #tpu.memory_space<vmem>>, vector<32x128xbf16>,
    return
  }
  func.func @transform_0(%arg0: i32) -> (i32, i32, i32) {
    %c0_i32 = arith.constant 0 : i32
    %c0_i32_0 = arith.constant 0 : i32
    %c0_i32_1 = arith.constant 0 : i32
    return %c0_i32, %c0_i32_0, %arg0 : i32, i32, i32
  }
  func.func @transform_1(%arg0: i32) -> (i32, i32) {
    %c0_i32 = arith.constant 0 : i32
    %c0_i32_0 = arith.constant 0 : i32
    %c0_i32_1 = arith.constant 0 : i32
    return %c0_i32, %c0_i32_0 : i32, i32
  }
  func.func @transform_2(%arg0: i32) -> (i32, i32) {
    %c0_i32 = arith.constant 0 : i32
    %c0_i32_0 = arith.constant 0 : i32
    %c0_i32_1 = arith.constant 0 : i32
    return %c0_i32, %c0_i32_0 : i32, i32
  }
  func.func @transform_3(%arg0: i32) -> (i32, i32) {
    %c0_i32 = arith.constant 0 : i32
    %c0_i32_0 = arith.constant 0 : i32
    return %c0_i32, %arg0 : i32, i32
  }
}

module attributes {stable_mosaic.version = 11 : i64} {
  func.func @tail_kernel(%arg0: memref<512x8xbf16, #tpu.memory_space<vmem>>, %arg1: memref<64x512xbf16, #tpu.memory_space<vmem>>, %arg2: memref<64x1xf32, #tpu.memory_space<vmem>>, %arg3: memref<16x64xf32, #tpu.memory_space<vmem>>, %arg4: memref<16x1xf32, #tpu.memory_space<vmem>>, %arg5: memref<8x16xf32, #tpu.memory_space<vmem>>, %arg6: memref<8x1xf32, #tpu.memory_space<vmem>>, %arg7: memref<8x2xf32, #tpu.memory_space<vmem>>) attributes {dimension_semantics = [], scalar_prefetch = 0 : i64, scratch_operands = 0 : i64, tpu.core_type = #tpu.core_type<tc>} {
    %c0 = arith.constant 0 : index
    %c0_0 = arith.constant 0 : index
    %0 = vector.load %arg1[%c0, %c0_0] : memref<64x512xbf16, #tpu.memory_space<vmem>>, vector<64x512xbf16>
    %c0_1 = arith.constant 0 : index
    %c0_2 = arith.constant 0 : index
    %1 = vector.load %arg0[%c0_1, %c0_2] : memref<512x8xbf16, #tpu.memory_space<vmem>>, vector<512x8xbf16>
    %cst = arith.constant dense<0.000000e+00> : vector<64x8xf32>
    %2 = tpu.matmul %0, %1, %cst {dimension_numbers = #tpu.dot_dimension_numbers<[1], [0], [0], [1], [0, 0, 1, 1], [], []>} : vector<64x512xbf16>, vector<512x8xbf16>, vector<64x8xf32> -> vector<64x8xf32>
    %3 = vector.extract_strided_slice %2 {offsets = [0, 0], sizes = [64, 2], strides = [1, 1]} : vector<64x8xf32> to vector<64x2xf32>
    %4 = vector.extract_strided_slice %2 {offsets = [0, 2], sizes = [64, 2], strides = [1, 1]} : vector<64x8xf32> to vector<64x2xf32>
    %5 = arith.maximumf %3, %4 : vector<64x2xf32>
    %6 = vector.extract_strided_slice %2 {offsets = [0, 4], sizes = [64, 2], strides = [1, 1]} : vector<64x8xf32> to vector<64x2xf32>
    %7 = vector.extract_strided_slice %2 {offsets = [0, 6], sizes = [64, 2], strides = [1, 1]} : vector<64x8xf32> to vector<64x2xf32>
    %8 = arith.maximumf %6, %7 : vector<64x2xf32>
    %9 = arith.maximumf %5, %8 : vector<64x2xf32>
    %c0_3 = arith.constant 0 : index
    %c0_4 = arith.constant 0 : index
    %10 = vector.load %arg2[%c0_3, %c0_4] : memref<64x1xf32, #tpu.memory_space<vmem>>, vector<64x1xf32>
    %11 = vector.broadcast %10 : vector<64x1xf32> to vector<64x2xf32>
    %12 = arith.addf %9, %11 : vector<64x2xf32>
    %cst_5 = arith.constant 2.000000e-01 : f32
    %13 = vector.broadcast %cst_5 : f32 to vector<64x2xf32>
    %14 = arith.mulf %13, %12 : vector<64x2xf32>
    %15 = arith.maximumf %12, %14 : vector<64x2xf32>
    %c0_6 = arith.constant 0 : index
    %c0_7 = arith.constant 0 : index
    %16 = vector.load %arg3[%c0_6, %c0_7] : memref<16x64xf32, #tpu.memory_space<vmem>>, vector<16x64xf32>
    %cst_8 = arith.constant dense<0.000000e+00> : vector<16x2xf32>
    %17 = tpu.matmul %16, %15, %cst_8 {dimension_numbers = #tpu.dot_dimension_numbers<[1], [0], [0], [1], [0, 0, 1, 1], [], []>} : vector<16x64xf32>, vector<64x2xf32>, vector<16x2xf32> -> vector<16x2xf32>
    %c0_9 = arith.constant 0 : index
    %c0_10 = arith.constant 0 : index
    %18 = vector.load %arg4[%c0_9, %c0_10] : memref<16x1xf32, #tpu.memory_space<vmem>>, vector<16x1xf32>
    %19 = vector.broadcast %18 : vector<16x1xf32> to vector<16x2xf32>
    %20 = arith.addf %17, %19 : vector<16x2xf32>
    %cst_11 = arith.constant 2.000000e-01 : f32
    %21 = vector.broadcast %cst_11 : f32 to vector<16x2xf32>
    %22 = arith.mulf %21, %20 : vector<16x2xf32>
    %23 = arith.maximumf %20, %22 : vector<16x2xf32>
    %c0_12 = arith.constant 0 : index
    %c0_13 = arith.constant 0 : index
    %24 = vector.load %arg5[%c0_12, %c0_13] : memref<8x16xf32, #tpu.memory_space<vmem>>, vector<8x16xf32>
    %cst_14 = arith.constant dense<0.000000e+00> : vector<8x2xf32>
    %25 = tpu.matmul %24, %23, %cst_14 {dimension_numbers = #tpu.dot_dimension_numbers<[1], [0], [0], [1], [0, 0, 1, 1], [], []>} : vector<8x16xf32>, vector<16x2xf32>, vector<8x2xf32> -> vector<8x2xf32>
    %c0_15 = arith.constant 0 : index
    %c0_16 = arith.constant 0 : index
    %26 = vector.load %arg6[%c0_15, %c0_16] : memref<8x1xf32, #tpu.memory_space<vmem>>, vector<8x1xf32>
    %27 = vector.broadcast %26 : vector<8x1xf32> to vector<8x2xf32>
    %28 = arith.addf %25, %27 : vector<8x2xf32>
    %c0_17 = arith.constant 0 : index
    %c0_18 = arith.constant 0 : index
    %29 = vector.load %arg7[%c0_17, %c0_18] : memref<8x2xf32, #tpu.memory_space<vmem>>, vector<8x2xf32>
    tpu.vector_store %arg7[%c0_17, %c0_18], %28 {strides = array<i32>} : memref<8x2xf32, #tpu.memory_space<vmem>>, vector<8x2xf32>,
    return
  }
}

</mosaic_0001>

<llo_original>
// kernel: _lambda_.4
$region0: #{_lambda_.4}
  #allocation0 [shape = 'u32[]', space=smem, size = 0x4, offset = 0x4, fixed_abs, tag = 'smem constant byte address 0x4 - core index']
  #allocation1 [shape = 'u32[144,128]{1,0:T(1,128)}', space=vmem, size = 0x12000, scoped, tag = 'internal scratch']
  %s0 = inlined_call_operand.vmem [shape: bf16[4,48,8192], index: 0, kind: input, shape index: {}]
  %s1 = inlined_call_operand.vmem [shape: bf16[8,48], index: 1, kind: input, shape index: {}]
  %s2 = inlined_call_operand.vmem [shape: f32[8,1], index: 2, kind: input, shape index: {}]
  %s3 = inlined_call_operand.vmem [shape: bf16[8,8192], index: 3, kind: output, shape index: {}]
  %s4 = sld [smem:[#allocation0]]
  $region68: #{_lambda_.4} parent=0
    _
  %s6 = ssub.s32 1, %s4
  %s7 = scalar_select 0, %s6, %s4
  $region1: #{_lambda_.4} parent=0
    #allocation2 [shape = 'u8[3145728]{0}', space=vmem, size = 0x300000, scoped, tag = 'input window, operand 0']
    loop: start=0, step=1, limit=4
    $region2: #{_lambda_.4} parent=1 // loop_pre_header
      _
    $region3: #{_lambda_.4} parent=1 // loop_header
      %s9 = sphi 0, %s13
      %p10 = scmp.ge.s32.totalorder %s9, 4
      %s19 = sphi 0, %s21
      %s22 = sphi 0, %s19
      %s23 = sphi 0, %s22
      %s39 = sphi 0, %s23
      %s43 = sphi 0, %s43
      %s45 = sphi 0, %s43
      %s46 = sphi 0, %s45
      %s60 = sphi 0, %s46
      %s64 = sphi 0, %s64
      %s66 = sphi 0, %s64
      %s67 = sphi 0, %s66
      %s81 = sphi 0, %s67
      %s87 = sphi 0, %s89
      %s90 = sphi 0, %s87
      %s91 = sphi 0, %s90
      %s107 = sphi 0, %s91
    $region4: #{_lambda_.4} parent=1 // loop_header_branch
      %12 = sbr.rel (%p10) target = $region8
    $region5: #{_lambda_.4} parent=1 // loop_body
      %s14 = ssub.s32 %s9, 1
      %s15 = ssub.s32 %s9, 2
      %s16 = sadd.s32 %s9, 1
      %s17 = ssub.s32 %s9, %s16
      %p18 = scmp.eq.s32.totalorder %s17, 0
      %s20 = sadd.s32 %s19, 1
      %s21 = scalar_select %p18, %s19, %s20
      %p24 = pneg %p18
      %p25 = scmp.eq.s32.totalorder %s9, 1
      %p26 = por %p24, %p25
      %p27 = scmp.ne.s32.totalorder %s19, %s22
      %p28 = scmp.eq.s32.totalorder %s9, 0
      %p29 = por %p27, %p28
      %p30 = scmp.ne.s32.totalorder %s19, %s22
      %p31 = scmp.eq.s32.totalorder %s14, 1
      %p32 = por %p30, %p31
      %p33 = scmp.ne.s32.totalorder %s22, %s23
      %p34 = scmp.eq.s32.totalorder %s14, 0
      %p35 = por %p33, %p34
      %p36 = scmp.ne.s32.totalorder %s22, %s23
      %p37 = scmp.eq.s32.totalorder %s15, 1
      %p38 = por %p36, %p37
      %p40 = scmp.ne.s32.totalorder %s23, %s39
      %p41 = scmp.eq.s32.totalorder %s15, 0
      %p42 = por %p40, %p41
      %s44 = sadd.s32 %s43, 1
      %p47 = scmp.eq.s32.totalorder %s9, 1
      %p48 = scmp.ne.s32.totalorder %s43, %s45
      %p49 = scmp.eq.s32.totalorder %s9, 0
      %p50 = por %p48, %p49
      %p51 = scmp.ne.s32.totalorder %s43, %s45
      %p52 = scmp.eq.s32.totalorder %s14, 1
      %p53 = por %p51, %p52
      %p54 = scmp.ne.s32.totalorder %s45, %s46
      %p55 = scmp.eq.s32.totalorder %s14, 0
      %p56 = por %p54, %p55
      %p57 = scmp.ne.s32.totalorder %s45, %s46
      %p58 = scmp.eq.s32.totalorder %s15, 1
      %p59 = por %p57, %p58
      %p61 = scmp.ne.s32.totalorder %s46, %s60
      %p62 = scmp.eq.s32.totalorder %s15, 0
      %p63 = por %p61, %p62
      %s65 = sadd.s32 %s64, 1
      %p68 = scmp.eq.s32.totalorder %s9, 1
      %p69 = scmp.ne.s32.totalorder %s64, %s66
      %p70 = scmp.eq.s32.totalorder %s9, 0
      %p71 = por %p69, %p70
      %p72 = scmp.ne.s32.totalorder %s64, %s66
      %p73 = scmp.eq.s32.totalorder %s14, 1
      %p74 = por %p72, %p73
      %p75 = scmp.ne.s32.totalorder %s66, %s67
      %p76 = scmp.eq.s32.totalorder %s14, 0
      %p77 = por %p75, %p76
      %p78 = scmp.ne.s32.totalorder %s66, %s67
      %p79 = scmp.eq.s32.totalorder %s15, 1
      %p80 = por %p78, %p79
      %p82 = scmp.ne.s32.totalorder %s67, %s81
      %p83 = scmp.eq.s32.totalorder %s15, 0
      %p84 = por %p82, %p83
      %s85 = ssub.s32 %s9, %s16
      %p86 = scmp.eq.s32.totalorder %s85, 0
      %s88 = sadd.s32 %s87, 1
      %s89 = scalar_select %p86, %s87, %s88
      %p92 = pneg %p86
      %p93 = scmp.eq.s32.totalorder %s9, 1
      %p94 = por %p92, %p93
      %p95 = scmp.ne.s32.totalorder %s87, %s90
      %p96 = scmp.eq.s32.totalorder %s9, 0
      %p97 = por %p95, %p96
      %p98 = scmp.ne.s32.totalorder %s87, %s90
      %p99 = scmp.eq.s32.totalorder %s14, 1
      %p100 = por %p98, %p99
      %p101 = scmp.ne.s32.totalorder %s90, %s91
      %p102 = scmp.eq.s32.totalorder %s14, 0
      %p103 = por %p101, %p102
      %p104 = scmp.ne.s32.totalorder %s90, %s91
      %p105 = scmp.eq.s32.totalorder %s15, 1
      %p106 = por %p104, %p105
      %p108 = scmp.ne.s32.totalorder %s91, %s107
      %p109 = scmp.eq.s32.totalorder %s15, 0
      %p110 = por %p108, %p109
      %p111 = scmp.le.s32.totalorder 1, %s9
      %p112 = scmp.lt.s32.totalorder %s9, 3
      %p113 = pnand %p111, %p112
      %p114 = pneg %p113
      // Predicated region
      $region9: #{_lambda_.4} parent=5 // pred_check
        _
      $region10: #{_lambda_.4} parent=5 // pred_check_branch
        %116 = sbr.rel (%p113) target = $region12
      $region11: #{_lambda_.4} parent=5 // pred_region
        %s117 = ssub.s32 %s9, 1
        // Predicated region
        $region13: #{_lambda_.4} parent=11 // pred_check
          %p118 = pneg %p56
        $region14: #{_lambda_.4} parent=11 // pred_check_branch
          %120 = sbr.rel (%p118) target = $region16
        $region15: #{_lambda_.4} parent=11 // pred_region
          _
        $region16: #{_lambda_.4} parent=11 // pred_fallthru
          _
        // Predicated region
        $region17: #{_lambda_.4} parent=11 // pred_check
          %p121 = pneg %p77
        $region18: #{_lambda_.4} parent=11 // pred_check_branch
          %123 = sbr.rel (%p121) target = $region20
        $region19: #{_lambda_.4} parent=11 // pred_region
          _
        $region20: #{_lambda_.4} parent=11 // pred_fallthru
          _
      $region12: #{_lambda_.4} parent=5 // pred_fallthru
        _
      %p124 = scmp.lt.s32.totalorder %s9, 2
      // Predicated region
      $region21: #{_lambda_.4} parent=5 // pred_check
        %p125 = pneg %p124
      $region22: #{_lambda_.4} parent=5 // pred_check_branch
        %127 = sbr.rel (%p125) target = $region24
      $region23: #{_lambda_.4} parent=5 // pred_region
        // Predicated region
        $region25: #{_lambda_.4} parent=23 // pred_check
          %p128 = pneg %p29
        $region26: #{_lambda_.4} parent=23 // pred_check_branch
          %130 = sbr.rel (%p128) target = $region28
        $region27: #{_lambda_.4} parent=23 // pred_region
          %s131 = sand.u32 %s19, 1
          %s132 = sand.u32 %s19, 1
          %s133 = smul.addr %s132, 3072
          %s134 = scalar_lea.vmem [#allocation2], %s133
          %s135 = smul.u32 32, %s9
          %s136 = smul.addr %s135, 4
          %s137 = scalar_lea.vmem %s0, %s136
          // Predicated region
          $region29: #{_lambda_.4} parent=27 // pred_check
            _
          $region30: #{_lambda_.4} parent=27 // pred_check_branch
            %139 = sbr.rel (0) target = $region32
          $region31: #{_lambda_.4} parent=27 // pred_region
            // Predicated region
            $region33: #{_lambda_.4} parent=31 // pred_check
              _
            $region34: #{_lambda_.4} parent=31 // pred_check_branch
              %141 = sbr.rel (0) target = $region36
            $region35: #{_lambda_.4} parent=31 // pred_region
              loop: start=0, step=1, limit=1
              $region37: #{_lambda_.4} parent=35 // loop_pre_header
                _
              $region38: #{_lambda_.4} parent=35 // loop_header
                %s143 = sphi 0, %s147
                %p144 = scmp.ge.s32.totalorder %s143, 1
                %s148 = sphi %s137, %s137
                %s149 = sphi %s134, %s134
              $region39: #{_lambda_.4} parent=35 // loop_header_branch
                %146 = sbr.rel (%p144) target = $region43
              $region40: #{_lambda_.4} parent=35 // loop_body
                %v150 = vld [vmem:[%s148] sm:$0xff]
                %151 = vst [vmem:[%s149] sm:$0xff] %v150
                %v152 = vld [vmem:[%s148 + $0x8] sm:$0xff]
                %153 = vst [vmem:[%s149 + $0x8] sm:$0xff] %v152
                %v154 = vld [vmem:[%s148 + $0x10] sm:$0xff]
                %155 = vst [vmem:[%s149 + $0x10] sm:$0xff] %v154
                %v156 = vld [vmem:[%s148 + $0x18] sm:$0xff]
                %157 = vst [vmem:[%s149 + $0x18] sm:$0xff] %v156
                %v158 = vld [vmem:[%s148 + $0x20] sm:$0xff]
                %159 = vst [vmem:[%s149 + $0x20] sm:$0xff] %v158
                %v160 = vld [vmem:[%s148 + $0x28] sm:$0xff]
                %161 = vst [vmem:[%s149 + $0x28] sm:$0xff] %v160
                %v162 = vld [vmem:[%s148 + $0x30] sm:$0xff]
                %163 = vst [vmem:[%s149 + $0x30] sm:$0xff] %v162
                %v164 = vld [vmem:[%s148 + $0x38] sm:$0xff]
                %165 = vst [vmem:[%s149 + $0x38] sm:$0xff] %v164
                %v166 = vld [vmem:[%s148 + $0x40] sm:$0xff]
                %167 = vst [vmem:[%s149 + $0x40] sm:$0xff] %v166
                %v168 = vld [vmem:[%s148 + $0x48] sm:$0xff]
                %169 = vst [vmem:[%s149 + $0x48] sm:$0xff] %v168
                %v170 = vld [vmem:[%s148 + $0x50] sm:$0xff]
                %171 = vst [vmem:[%s149 + $0x50] sm:$0xff] %v170
                %v172 = vld [vmem:[%s148 + $0x58] sm:$0xff]
                %173 = vst [vmem:[%s149 + $0x58] sm:$0xff] %v172
                %v174 = vld [vmem:[%s148 + $0x60] sm:$0xff]
                %175 = vst [vmem:[%s149 + $0x60] sm:$0xff] %v174
                %v176 = vld [vmem:[%s148 + $0x68] sm:$0xff]
                %177 = vst [vmem:[%s149 + $0x68] sm:$0xff] %v176
                %v178 = vld [vmem:[%s148 + $0x70] sm:$0xff]
                %179 = vst [vmem:[%s149 + $0x70] sm:$0xff] %v178
                %v180 = vld [vmem:[%s148 + $0x78] sm:$0xff]
                %181 = vst [vmem:[%s149 + $0x78] sm:$0xff] %v180
                %v182 = vld [vmem:[%s148 + $0x100] sm:$0xff]
                %183 = vst [vmem:[%s149 + $0x80] sm:$0xff] %v182
                %v184 = vld [vmem:[%s148 + $0x108] sm:$0xff]
                %185 = vst [vmem:[%s149 + $0x88] sm:$0xff] %v184
                %v186 = vld [vmem:[%s148 + $0x110] sm:$0xff]
                %187 = vst [vmem:[%s149 + $0x90] sm:$0xff] %v186
                %v188 = vld [vmem:[%s148 + $0x118] sm:$0xff]
                %189 = vst [vmem:[%s149 + $0x98] sm:$0xff] %v188
                %v190 = vld [vmem:[%s148 + $0x120] sm:$0xff]
                %191 = vst [vmem:[%s149 + $0xa0] sm:$0xff] %v190
                %v192 = vld [vmem:[%s148 + $0x128] sm:$0xff]
                %193 = vst [vmem:[%s149 + $0xa8] sm:$0xff] %v192
                %v194 = vld [vmem:[%s148 + $0x130] sm:$0xff]
                %195 = vst [vmem:[%s149 + $0xb0] sm:$0xff] %v194
                %v196 = vld [vmem:[%s148 + $0x138] sm:$0xff]
                %197 = vst [vmem:[%s149 + $0xb8] sm:$0xff] %v196
                %v198 = vld [vmem:[%s148 + $0x140] sm:$0xff]
                %199 = vst [vmem:[%s149 + $0xc0] sm:$0xff] %v198
                %v200 = vld [vmem:[%s148 + $0x148] sm:$0xff]
                %201 = vst [vmem:[%s149 + $0xc8] sm:$0xff] %v200
                %v202 = vld [vmem:[%s148 + $0x150] sm:$0xff]
                %203 = vst [vmem:[%s149 + $0xd0] sm:$0xff] %v202
                %v204 = vld [vmem:[%s148 + $0x158] sm:$0xff]
                %205 = vst [vmem:[%s149 + $0xd8] sm:$0xff] %v204
                %v206 = vld [vmem:[%s148 + $0x160] sm:$0xff]
                %207 = vst [vmem:[%s149 + $0xe0] sm:$0xff] %v206
                %v208 = vld [vmem:[%s148 + $0x168] sm:$0xff]
                %209 = vst [vmem:[%s149 + $0xe8] sm:$0xff] %v208
                %v210 = vld [vmem:[%s148 + $0x170] sm:$0xff]
                %211 = vst [vmem:[%s149 + $0xf0] sm:$0xff] %v210
                %v212 = vld [vmem:[%s148 + $0x178] sm:$0xff]
                %213 = vst [vmem:[%s149 + $0xf8] sm:$0xff] %v212
                %v214 = vld [vmem:[%s148 + $0x200] sm:$0xff]
                %215 = vst [vmem:[%s149 + $0x100] sm:$0xff] %v214
                %v216 = vld [vmem:[%s148 + $0x208] sm:$0xff]
                %217 = vst [vmem:[%s149 + $0x108] sm:$0xff] %v216
                %v218 = vld [vmem:[%s148 + $0x210] sm:$0xff]
                %219 = vst [vmem:[%s149 + $0x110] sm:$0xff] %v218
                %v220 = vld [vmem:[%s148 + $0x218] sm:$0xff]
                %221 = vst [vmem:[%s149 + $0x118] sm:$0xff] %v220
                %v222 = vld [vmem:[%s148 + $0x220] sm:$0xff]
                %223 = vst [vmem:[%s149 + $0x120] sm:$0xff] %v222
                %v224 = vld [vmem:[%s148 + $0x228] sm:$0xff]
                %225 = vst [vmem:[%s149 + $0x128] sm:$0xff] %v224
                %v226 = vld [vmem:[%s148 + $0x230] sm:$0xff]
                %227 = vst [vmem:[%s149 + $0x130] sm:$0xff] %v226
                %v228 = vld [vmem:[%s148 + $0x238] sm:$0xff]
                %229 = vst [vmem:[%s149 + $0x138] sm:$0xff] %v228
                %v230 = vld [vmem:[%s148 + $0x240] sm:$0xff]
                %231 = vst [vmem:[%s149 + $0x140] sm:$0xff] %v230
                %v232 = vld [vmem:[%s148 + $0x248] sm:$0xff]
                %233 = vst [vmem:[%s149 + $0x148] sm:$0xff] %v232
                %v234 = vld [vmem:[%s148 + $0x250] sm:$0xff]
                %235 = vst [vmem:[%s149 + $0x150] sm:$0xff] %v234
                %v236 = vld [vmem:[%s148 + $0x258] sm:$0xff]
                %237 = vst [vmem:[%s149 + $0x158] sm:$0xff] %v236
                %v238 = vld [vmem:[%s148 + $0x260] sm:$0xff]
                %239 = vst [vmem:[%s149 + $0x160] sm:$0xff] %v238
                %v240 = vld [vmem:[%s148 + $0x268] sm:$0xff]
                %241 = vst [vmem:[%s149 + $0x168] sm:$0xff] %v240
                %v242 = vld [vmem:[%s148 + $0x270] sm:$0xff]
                %243 = vst [vmem:[%s149 + $0x170] sm:$0xff] %v242
                %v244 = vld [vmem:[%s148 + $0x278] sm:$0xff]
                %245 = vst [vmem:[%s149 + $0x178] sm:$0xff] %v244
                %v246 = vld [vmem:[%s148 + $0x300] sm:$0xff]
                %247 = vst [vmem:[%s149 + $0x180] sm:$0xff] %v246
                %v248 = vld [vmem:[%s148 + $0x308] sm:$0xff]
                %249 = vst [vmem:[%s149 + $0x188] sm:$0xff] %v248
                %v250 = vld [vmem:[%s148 + $0x310] sm:$0xff]
                %251 = vst [vmem:[%s149 + $0x190] sm:$0xff] %v250
                %v252 = vld [vmem:[%s148 + $0x318] sm:$0xff]
                %253 = vst [vmem:[%s149 + $0x198] sm:$0xff] %v252
                %v254 = vld [vmem:[%s148 + $0x320] sm:$0xff]
                %255 = vst [vmem:[%s149 + $0x1a0] sm:$0xff] %v254
                %v256 = vld [vmem:[%s148 + $0x328] sm:$0xff]
                %257 = vst [vmem:[%s149 + $0x1a8] sm:$0xff] %v256
                %v258 = vld [vmem:[%s148 + $0x330] sm:$0xff]
                %259 = vst [vmem:[%s149 + $0x1b0] sm:$0xff] %v258
                %v260 = vld [vmem:[%s148 + $0x338] sm:$0xff]
                %261 = vst [vmem:[%s149 + $0x1b8] sm:$0xff] %v260
                %v262 = vld [vmem:[%s148 + $0x340] sm:$0xff]
                %263 = vst [vmem:[%s149 + $0x1c0] sm:$0xff] %v262
                %v264 = vld [vmem:[%s148 + $0x348] sm:$0xff]
                %265 = vst [vmem:[%s149 + $0x1c8] sm:$0xff] %v264
                %v266 = vld [vmem:[%s148 + $0x350] sm:$0xff]
                %267 = vst [vmem:[%s149 + $0x1d0] sm:$0xff] %v266
                %v268 = vld [vmem:[%s148 + $0x358] sm:$0xff]
                %269 = vst [vmem:[%s149 + $0x1d8] sm:$0xff] %v268
                %v270 = vld [vmem:[%s148 + $0x360] sm:$0xff]
                %271 = vst [vmem:[%s149 + $0x1e0] sm:$0xff] %v270
                %v272 = vld [vmem:[%s148 + $0x368] sm:$0xff]
                %273 = vst [vmem:[%s149 + $0x1e8] sm:$0xff] %v272
                %v274 = vld [vmem:[%s148 + $0x370] sm:$0xff]
                %275 = vst [vmem:[%s149 + $0x1f0] sm:$0xff] %v274
                %v276 = vld [vmem:[%s148 + $0x378] sm:$0xff]
                %277 = vst [vmem:[%s149 + $0x1f8] sm:$0xff] %v276
                %v278 = vld [vmem:[%s148 + $0x400] sm:$0xff]
                %279 = vst [vmem:[%s149 + $0x200] sm:$0xff] %v278
                %v280 = vld [vmem:[%s148 + $0x408] sm:$0xff]
                %281 = vst [vmem:[%s149 + $0x208] sm:$0xff] %v280
                %v282 = vld [vmem:[%s148 + $0x410] sm:$0xff]
                %283 = vst [vmem:[%s149 + $0x210] sm:$0xff] %v282
                %v284 = vld [vmem:[%s148 + $0x418] sm:$0xff]
                %285 = vst [vmem:[%s149 + $0x218] sm:$0xff] %v284
                %v286 = vld [vmem:[%s148 + $0x420] sm:$0xff]
                %287 = vst [vmem:[%s149 + $0x220] sm:$0xff] %v286
                %v288 = vld [vmem:[%s148 + $0x428] sm:$0xff]
                %289 = vst [vmem:[%s149 + $0x228] sm:$0xff] %v288
                %v290 = vld [vmem:[%s148 + $0x430] sm:$0xff]
                %291 = vst [vmem:[%s149 + $0x230] sm:$0xff] %v290
                %v292 = vld [vmem:[%s148 + $0x438] sm:$0xff]
                %293 = vst [vmem:[%s149 + $0x238] sm:$0xff] %v292
                %v294 = vld [vmem:[%s148 + $0x440] sm:$0xff]
                %295 = vst [vmem:[%s149 + $0x240] sm:$0xff] %v294
                %v296 = vld [vmem:[%s148 + $0x448] sm:$0xff]
                %297 = vst [vmem:[%s149 + $0x248] sm:$0xff] %v296
                %v298 = vld [vmem:[%s148 + $0x450] sm:$0xff]
                %299 = vst [vmem:[%s149 + $0x250] sm:$0xff] %v298
                %v300 = vld [vmem:[%s148 + $0x458] sm:$0xff]
                %301 = vst [vmem:[%s149 + $0x258] sm:$0xff] %v300
                %v302 = vld [vmem:[%s148 + $0x460] sm:$0xff]
                %303 = vst [vmem:[%s149 + $0x260] sm:$0xff] %v302
                %v304 = vld [vmem:[%s148 + $0x468] sm:$0xff]
                %305 = vst [vmem:[%s149 + $0x268] sm:$0xff] %v304
                %v306 = vld [vmem:[%s148 + $0x470] sm:$0xff]
                %307 = vst [vmem:[%s149 + $0x270] sm:$0xff] %v306
                %v308 = vld [vmem:[%s148 + $0x478] sm:$0xff]
                %309 = vst [vmem:[%s149 + $0x278] sm:$0xff] %v308
                %v310 = vld [vmem:[%s148 + $0x500] sm:$0xff]
                %311 = vst [vmem:[%s149 + $0x280] sm:$0xff] %v310
                %v312 = vld [vmem:[%s148 + $0x508] sm:$0xff]
                %313 = vst [vmem:[%s149 + $0x288] sm:$0xff] %v312
                %v314 = vld [vmem:[%s148 + $0x510] sm:$0xff]
                %315 = vst [vmem:[%s149 + $0x290] sm:$0xff] %v314
                %v316 = vld [vmem:[%s148 + $0x518] sm:$0xff]
                %317 = vst [vmem:[%s149 + $0x298] sm:$0xff] %v316
                %v318 = vld [vmem:[%s148 + $0x520] sm:$0xff]
                %319 = vst [vmem:[%s149 + $0x2a0] sm:$0xff] %v318
                %v320 = vld [vmem:[%s148 + $0x528] sm:$0xff]
                %321 = vst [vmem:[%s149 + $0x2a8] sm:$0xff] %v320
                %v322 = vld [vmem:[%s148 + $0x530] sm:$0xff]
                %323 = vst [vmem:[%s149 + $0x2b0] sm:$0xff] %v322
                %v324 = vld [vmem:[%s148 + $0x538] sm:$0xff]
                %325 = vst [vmem:[%s149 + $0x2b8] sm:$0xff] %v324
                %v326 = vld [vmem:[%s148 + $0x540] sm:$0xff]
                %327 = vst [vmem:[%s149 + $0x2c0] sm:$0xff] %v326
                %v328 = vld [vmem:[%s148 + $0x548] sm:$0xff]
                %329 = vst [vmem:[%s149 + $0x2c8] sm:$0xff] %v328
                %v330 = vld [vmem:[%s148 + $0x550] sm:$0xff]
                %331 = vst [vmem:[%s149 + $0x2d0] sm:$0xff] %v330
                %v332 = vld [vmem:[%s148 + $0x558] sm:$0xff]
                %333 = vst [vmem:[%s149 + $0x2d8] sm:$0xff] %v332
                %v334 = vld [vmem:[%s148 + $0x560] sm:$0xff]
                %335 = vst [vmem:[%s149 + $0x2e0] sm:$0xff] %v334
                %v336 = vld [vmem:[%s148 + $0x568] sm:$0xff]
                %337 = vst [vmem:[%s149 + $0x2e8] sm:$0xff] %v336
                %v338 = vld [vmem:[%s148 + $0x570] sm:$0xff]
                %339 = vst [vmem:[%s149 + $0x2f0] sm:$0xff] %v338
                %v340 = vld [vmem:[%s148 + $0x578] sm:$0xff]
                %341 = vst [vmem:[%s149 + $0x2f8] sm:$0xff] %v340
                %v342 = vld [vmem:[%s148 + $0x600] sm:$0xff]
                %343 = vst [vmem:[%s149 + $0x300] sm:$0xff] %v342
                %v344 = vld [vmem:[%s148 + $0x608] sm:$0xff]
                %345 = vst [vmem:[%s149 + $0x308] sm:$0xff] %v344
                %v346 = vld [vmem:[%s148 + $0x610] sm:$0xff]
                %347 = vst [vmem:[%s149 + $0x310] sm:$0xff] %v346
                %v348 = vld [vmem:[%s148 + $0x618] sm:$0xff]
                %349 = vst [vmem:[%s149 + $0x318] sm:$0xff] %v348
                %v350 = vld [vmem:[%s148 + $0x620] sm:$0xff]
                %351 = vst [vmem:[%s149 + $0x320] sm:$0xff] %v350
                %v352 = vld [vmem:[%s148 + $0x628] sm:$0xff]
                %353 = vst [vmem:[%s149 + $0x328] sm:$0xff] %v352
                %v354 = vld [vmem:[%s148 + $0x630] sm:$0xff]
                %355 = vst [vmem:[%s149 + $0x330] sm:$0xff] %v354
                %v356 = vld [vmem:[%s148 + $0x638] sm:$0xff]
                %357 = vst [vmem:[%s149 + $0x338] sm:$0xff] %v356
                %v358 = vld [vmem:[%s148 + $0x640] sm:$0xff]
                %359 = vst [vmem:[%s149 + $0x340] sm:$0xff] %v358
                %v360 = vld [vmem:[%s148 + $0x648] sm:$0xff]
                %361 = vst [vmem:[%s149 + $0x348] sm:$0xff] %v360
                %v362 = vld [vmem:[%s148 + $0x650] sm:$0xff]
                %363 = vst [vmem:[%s149 + $0x350] sm:$0xff] %v362
                %v364 = vld [vmem:[%s148 + $0x658] sm:$0xff]
                %365 = vst [vmem:[%s149 + $0x358] sm:$0xff] %v364
                %v366 = vld [vmem:[%s148 + $0x660] sm:$0xff]
                %367 = vst [vmem:[%s149 + $0x360] sm:$0xff] %v366
                %v368 = vld [vmem:[%s148 + $0x668] sm:$0xff]
                %369 = vst [vmem:[%s149 + $0x368] sm:$0xff] %v368
                %v370 = vld [vmem:[%s148 + $0x670] sm:$0xff]
                %371 = vst [vmem:[%s149 + $0x370] sm:$0xff] %v370
                %v372 = vld [vmem:[%s148 + $0x678] sm:$0xff]
                %373 = vst [vmem:[%s149 + $0x378] sm:$0xff] %v372
                %v374 = vld [vmem:[%s148 + $0x700] sm:$0xff]
                %375 = vst [vmem:[%s149 + $0x380] sm:$0xff] %v374
                %v376 = vld [vmem:[%s148 + $0x708] sm:$0xff]
                %377 = vst [vmem:[%s149 + $0x388] sm:$0xff] %v376
                %v378 = vld [vmem:[%s148 + $0x710] sm:$0xff]
                %379 = vst [vmem:[%s149 + $0x390] sm:$0xff] %v378
                %v380 = vld [vmem:[%s148 + $0x718] sm:$0xff]
                %381 = vst [vmem:[%s149 + $0x398] sm:$0xff] %v380
                %v382 = vld [vmem:[%s148 + $0x720] sm:$0xff]
                %383 = vst [vmem:[%s149 + $0x3a0] sm:$0xff] %v382
                %v384 = vld [vmem:[%s148 + $0x728] sm:$0xff]
                %385 = vst [vmem:[%s149 + $0x3a8] sm:$0xff] %v384
                %v386 = vld [vmem:[%s148 + $0x730] sm:$0xff]
                %387 = vst [vmem:[%s149 + $0x3b0] sm:$0xff] %v386
                %v388 = vld [vmem:[%s148 + $0x738] sm:$0xff]
                %389 = vst [vmem:[%s149 + $0x3b8] sm:$0xff] %v388
                %v390 = vld [vmem:[%s148 + $0x740] sm:$0xff]
                %391 = vst [vmem:[%s149 + $0x3c0] sm:$0xff] %v390
                %v392 = vld [vmem:[%s148 + $0x748] sm:$0xff]
                %393 = vst [vmem:[%s149 + $0x3c8] sm:$0xff] %v392
                %v394 = vld [vmem:[%s148 + $0x750] sm:$0xff]
                %395 = vst [vmem:[%s149 + $0x3d0] sm:$0xff] %v394
                %v396 = vld [vmem:[%s148 + $0x758] sm:$0xff]
                %397 = vst [vmem:[%s149 + $0x3d8] sm:$0xff] %v396
                %v398 = vld [vmem:[%s148 + $0x760] sm:$0xff]
                %399 = vst [vmem:[%s149 + $0x3e0] sm:$0xff] %v398
                %v400 = vld [vmem:[%s148 + $0x768] sm:$0xff]
                %401 = vst [vmem:[%s149 + $0x3e8] sm:$0xff] %v400
                %v402 = vld [vmem:[%s148 + $0x770] sm:$0xff]
                %403 = vst [vmem:[%s149 + $0x3f0] sm:$0xff] %v402
                %v404 = vld [vmem:[%s148 + $0x778] sm:$0xff]
                %405 = vst [vmem:[%s149 + $0x3f8] sm:$0xff] %v404
                %v406 = vld [vmem:[%s148 + $0x800] sm:$0xff]
                %407 = vst [vmem:[%s149 + $0x400] sm:$0xff] %v406
                %v408 = vld [vmem:[%s148 + $0x808] sm:$0xff]
                %409 = vst [vmem:[%s149 + $0x408] sm:$0xff] %v408
                %v410 = vld [vmem:[%s148 + $0x810] sm:$0xff]
                %411 = vst [vmem:[%s149 + $0x410] sm:$0xff] %v410
                %v412 = vld [vmem:[%s148 + $0x818] sm:$0xff]
                %413 = vst [vmem:[%s149 + $0x418] sm:$0xff] %v412
                %v414 = vld [vmem:[%s148 + $0x820] sm:$0xff]
                %415 = vst [vmem:[%s149 + $0x420] sm:$0xff] %v414
                %v416 = vld [vmem:[%s148 + $0x828] sm:$0xff]
                %417 = vst [vmem:[%s149 + $0x428] sm:$0xff] %v416
                %v418 = vld [vmem:[%s148 + $0x830] sm:$0xff]
                %419 = vst [vmem:[%s149 + $0x430] sm:$0xff] %v418
                %v420 = vld [vmem:[%s148 + $0x838] sm:$0xff]
                %421 = vst [vmem:[%s149 + $0x438] sm:$0xff] %v420
                %v422 = vld [vmem:[%s148 + $0x840] sm:$0xff]
                %423 = vst [vmem:[%s149 + $0x440] sm:$0xff] %v422
                %v424 = vld [vmem:[%s148 + $0x848] sm:$0xff]
                %425 = vst [vmem:[%s149 + $0x448] sm:$0xff] %v424
                %v426 = vld [vmem:[%s148 + $0x850] sm:$0xff]
                %427 = vst [vmem:[%s149 + $0x450] sm:$0xff] %v426
                %v428 = vld [vmem:[%s148 + $0x858] sm:$0xff]
                %429 = vst [vmem:[%s149 + $0x458] sm:$0xff] %v428
                %v430 = vld [vmem:[%s148 + $0x860] sm:$0xff]
                %431 = vst [vmem:[%s149 + $0x460] sm:$0xff] %v430
                %v432 = vld [vmem:[%s148 + $0x868] sm:$0xff]
                %433 = vst [vmem:[%s149 + $0x468] sm:$0xff] %v432
                %v434 = vld [vmem:[%s148 + $0x870] sm:$0xff]
                %435 = vst [vmem:[%s149 + $0x470] sm:$0xff] %v434
                %v436 = vld [vmem:[%s148 + $0x878] sm:$0xff]
                %437 = vst [vmem:[%s149 + $0x478] sm:$0xff] %v436
                %v438 = vld [vmem:[%s148 + $0x900] sm:$0xff]
                %439 = vst [vmem:[%s149 + $0x480] sm:$0xff] %v438
                %v440 = vld [vmem:[%s148 + $0x908] sm:$0xff]
                %441 = vst [vmem:[%s149 + $0x488] sm:$0xff] %v440
                %v442 = vld [vmem:[%s148 + $0x910] sm:$0xff]
                %443 = vst [vmem:[%s149 + $0x490] sm:$0xff] %v442
                %v444 = vld [vmem:[%s148 + $0x918] sm:$0xff]
                %445 = vst [vmem:[%s149 + $0x498] sm:$0xff] %v444
                %v446 = vld [vmem:[%s148 + $0x920] sm:$0xff]
                %447 = vst [vmem:[%s149 + $0x4a0] sm:$0xff] %v446
                %v448 = vld [vmem:[%s148 + $0x928] sm:$0xff]
                %449 = vst [vmem:[%s149 + $0x4a8] sm:$0xff] %v448
                %v450 = vld [vmem:[%s148 + $0x930] sm:$0xff]
                %451 = vst [vmem:[%s149 + $0x4b0] sm:$0xff] %v450
                %v452 = vld [vmem:[%s148 + $0x938] sm:$0xff]
                %453 = vst [vmem:[%s149 + $0x4b8] sm:$0xff] %v452
                %v454 = vld [vmem:[%s148 + $0x940] sm:$0xff]
                %455 = vst [vmem:[%s149 + $0x4c0] sm:$0xff] %v454
                %v456 = vld [vmem:[%s148 + $0x948] sm:$0xff]
                %457 = vst [vmem:[%s149 + $0x4c8] sm:$0xff] %v456
                %v458 = vld [vmem:[%s148 + $0x950] sm:$0xff]
                %459 = vst [vmem:[%s149 + $0x4d0] sm:$0xff] %v458
                %v460 = vld [vmem:[%s148 + $0x958] sm:$0xff]
                %461 = vst [vmem:[%s149 + $0x4d8] sm:$0xff] %v460
                %v462 = vld [vmem:[%s148 + $0x960] sm:$0xff]
                %463 = vst [vmem:[%s149 + $0x4e0] sm:$0xff] %v462
                %v464 = vld [vmem:[%s148 + $0x968] sm:$0xff]
                %465 = vst [vmem:[%s149 + $0x4e8] sm:$0xff] %v464
                %v466 = vld [vmem:[%s148 + $0x970] sm:$0xff]
                %467 = vst [vmem:[%s149 + $0x4f0] sm:$0xff] %v466
                %v468 = vld [vmem:[%s148 + $0x978] sm:$0xff]
                %469 = vst [vmem:[%s149 + $0x4f8] sm:$0xff] %v468
                %v470 = vld [vmem:[%s148 + $0xa00] sm:$0xff]
                %471 = vst [vmem:[%s149 + $0x500] sm:$0xff] %v470
                %v472 = vld [vmem:[%s148 + $0xa08] sm:$0xff]
                %473 = vst [vmem:[%s149 + $0x508] sm:$0xff] %v472
                %v474 = vld [vmem:[%s148 + $0xa10] sm:$0xff]
                %475 = vst [vmem:[%s149 + $0x510] sm:$0xff] %v474
                %v476 = vld [vmem:[%s148 + $0xa18] sm:$0xff]
                %477 = vst [vmem:[%s149 + $0x518] sm:$0xff] %v476
                %v478 = vld [vmem:[%s148 + $0xa20] sm:$0xff]
                %479 = vst [vmem:[%s149 + $0x520] sm:$0xff] %v478
                %v480 = vld [vmem:[%s148 + $0xa28] sm:$0xff]
                %481 = vst [vmem:[%s149 + $0x528] sm:$0xff] %v480
                %v482 = vld [vmem:[%s148 + $0xa30] sm:$0xff]
                %483 = vst [vmem:[%s149 + $0x530] sm:$0xff] %v482
                %v484 = vld [vmem:[%s148 + $0xa38] sm:$0xff]
                %485 = vst [vmem:[%s149 + $0x538] sm:$0xff] %v484
                %v486 = vld [vmem:[%s148 + $0xa40] sm:$0xff]
                %487 = vst [vmem:[%s149 + $0x540] sm:$0xff] %v486
                %v488 = vld [vmem:[%s148 + $0xa48] sm:$0xff]
                %489 = vst [vmem:[%s149 + $0x548] sm:$0xff] %v488
                %v490 = vld [vmem:[%s148 + $0xa50] sm:$0xff]
                %491 = vst [vmem:[%s149 + $0x550] sm:$0xff] %v490
                %v492 = vld [vmem:[%s148 + $0xa58] sm:$0xff]
                %493 = vst [vmem:[%s149 + $0x558] sm:$0xff] %v492
                %v494 = vld [vmem:[%s148 + $0xa60] sm:$0xff]
                %495 = vst [vmem:[%s149 + $0x560] sm:$0xff] %v494
                %v496 = vld [vmem:[%s148 + $0xa68] sm:$0xff]
                %497 = vst [vmem:[%s149 + $0x568] sm:$0xff] %v496
                %v498 = vld [vmem:[%s148 + $0xa70] sm:$0xff]
                %499 = vst [vmem:[%s149 + $0x570] sm:$0xff] %v498
                %v500 = vld [vmem:[%s148 + $0xa78] sm:$0xff]
                %501 = vst [vmem:[%s149 + $0x578] sm:$0xff] %v500
                %v502 = vld [vmem:[%s148 + $0xb00] sm:$0xff]
                %503 = vst [vmem:[%s149 + $0x580] sm:$0xff] %v502
                %v504 = vld [vmem:[%s148 + $0xb08] sm:$0xff]
                %505 = vst [vmem:[%s149 + $0x588] sm:$0xff] %v504
                %v506 = vld [vmem:[%s148 + $0xb10] sm:$0xff]
                %507 = vst [vmem:[%s149 + $0x590] sm:$0xff] %v506
                %v508 = vld [vmem:[%s148 + $0xb18] sm:$0xff]
                %509 = vst [vmem:[%s149 + $0x598] sm:$0xff] %v508
                %v510 = vld [vmem:[%s148 + $0xb20] sm:$0xff]
                %511 = vst [vmem:[%s149 + $0x5a0] sm:$0xff] %v510
                %v512 = vld [vmem:[%s148 + $0xb28] sm:$0xff]
                %513 = vst [vmem:[%s149 + $0x5a8] sm:$0xff] %v512
                %v514 = vld [vmem:[%s148 + $0xb30] sm:$0xff]
                %515 = vst [vmem:[%s149 + $0x5b0] sm:$0xff] %v514
                %v516 = vld [vmem:[%s148 + $0xb38] sm:$0xff]
                %517 = vst [vmem:[%s149 + $0x5b8] sm:$0xff] %v516
                %v518 = vld [vmem:[%s148 + $0xb40] sm:$0xff]
                %519 = vst [vmem:[%s149 + $0x5c0] sm:$0xff] %v518
                %v520 = vld [vmem:[%s148 + $0xb48] sm:$0xff]
                %521 = vst [vmem:[%s149 + $0x5c8] sm:$0xff] %v520
                %v522 = vld [vmem:[%s148 + $0xb50] sm:$0xff]
                %523 = vst [vmem:[%s149 + $0x5d0] sm:$0xff] %v522
                %v524 = vld [vmem:[%s148 + $0xb58] sm:$0xff]
                %525 = vst [vmem:[%s149 + $0x5d8] sm:$0xff] %v524
                %v526 = vld [vmem:[%s148 + $0xb60] sm:$0xff]
                %527 = vst [vmem:[%s149 + $0x5e0] sm:$0xff] %v526
                %v528 = vld [vmem:[%s148 + $0xb68] sm:$0xff]
                %529 = vst [vmem:[%s149 + $0x5e8] sm:$0xff] %v528
                %v530 = vld [vmem:[%s148 + $0xb70] sm:$0xff]
                %531 = vst [vmem:[%s149 + $0x5f0] sm:$0xff] %v530
                %v532 = vld [vmem:[%s148 + $0xb78] sm:$0xff]
                %533 = vst [vmem:[%s149 + $0x5f8] sm:$0xff] %v532
                %v534 = vld [vmem:[%s148 + $0xc00] sm:$0xff]
                %535 = vst [vmem:[%s149 + $0x600] sm:$0xff] %v534
                %v536 = vld [vmem:[%s148 + $0xc08] sm:$0xff]
                %537 = vst [vmem:[%s149 + $0x608] sm:$0xff] %v536
                %v538 = vld [vmem:[%s148 + $0xc10] sm:$0xff]
                %539 = vst [vmem:[%s149 + $0x610] sm:$0xff] %v538
                %v540 = vld [vmem:[%s148 + $0xc18] sm:$0xff]
                %541 = vst [vmem:[%s149 + $0x618] sm:$0xff] %v540
                %v542 = vld [vmem:[%s148 + $0xc20] sm:$0xff]
                %543 = vst [vmem:[%s149 + $0x620] sm:$0xff] %v542
                %v544 = vld [vmem:[%s148 + $0xc28] sm:$0xff]
                %545 = vst [vmem:[%s149 + $0x628] sm:$0xff] %v544
                %v546 = vld [vmem:[%s148 + $0xc30] sm:$0xff]
                %547 = vst [vmem:[%s149 + $0x630] sm:$0xff] %v546
                %v548 = vld [vmem:[%s148 + $0xc38] sm:$0xff]
                %549 = vst [vmem:[%s149 + $0x638] sm:$0xff] %v548
                %v550 = vld [vmem:[%s148 + $0xc40] sm:$0xff]
                %551 = vst [vmem:[%s149 + $0x640] sm:$0xff] %v550
                %v552 = vld [vmem:[%s148 + $0xc48] sm:$0xff]
                %553 = vst [vmem:[%s149 + $0x648] sm:$0xff] %v552
                %v554 = vld [vmem:[%s148 + $0xc50] sm:$0xff]
                %555 = vst [vmem:[%s149 + $0x650] sm:$0xff] %v554
                %v556 = vld [vmem:[%s148 + $0xc58] sm:$0xff]
                %557 = vst [vmem:[%s149 + $0x658] sm:$0xff] %v556
                %v558 = vld [vmem:[%s148 + $0xc60] sm:$0xff]
                %559 = vst [vmem:[%s149 + $0x660] sm:$0xff] %v558
                %v560 = vld [vmem:[%s148 + $0xc68] sm:$0xff]
                %561 = vst [vmem:[%s149 + $0x668] sm:$0xff] %v560
                %v562 = vld [vmem:[%s148 + $0xc70] sm:$0xff]
                %563 = vst [vmem:[%s149 + $0x670] sm:$0xff] %v562
                %v564 = vld [vmem:[%s148 + $0xc78] sm:$0xff]
                %565 = vst [vmem:[%s149 + $0x678] sm:$0xff] %v564
                %v566 = vld [vmem:[%s148 + $0xd00] sm:$0xff]
                %567 = vst [vmem:[%s149 + $0x680] sm:$0xff] %v566
                %v568 = vld [vmem:[%s148 + $0xd08] sm:$0xff]
                %569 = vst [vmem:[%s149 + $0x688] sm:$0xff] %v568
                %v570 = vld [vmem:[%s148 + $0xd10] sm:$0xff]
                %571 = vst [vmem:[%s149 + $0x690] sm:$0xff] %v570
                %v572 = vld [vmem:[%s148 + $0xd18] sm:$0xff]
                %573 = vst [vmem:[%s149 + $0x698] sm:$0xff] %v572
                %v574 = vld [vmem:[%s148 + $0xd20] sm:$0xff]
                %575 = vst [vmem:[%s149 + $0x6a0] sm:$0xff] %v574
                %v576 = vld [vmem:[%s148 + $0xd28] sm:$0xff]
                %577 = vst [vmem:[%s149 + $0x6a8] sm:$0xff] %v576
                %v578 = vld [vmem:[%s148 + $0xd30] sm:$0xff]
                %579 = vst [vmem:[%s149 + $0x6b0] sm:$0xff] %v578
                %v580 = vld [vmem:[%s148 + $0xd38] sm:$0xff]
                %581 = vst [vmem:[%s149 + $0x6b8] sm:$0xff] %v580
                %v582 = vld [vmem:[%s148 + $0xd40] sm:$0xff]
                %583 = vst [vmem:[%s149 + $0x6c0] sm:$0xff] %v582
                %v584 = vld [vmem:[%s148 + $0xd48] sm:$0xff]
                %585 = vst [vmem:[%s149 + $0x6c8] sm:$0xff] %v584
                %v586 = vld [vmem:[%s148 + $0xd50] sm:$0xff]
                %587 = vst [vmem:[%s149 + $0x6d0] sm:$0xff] %v586
                %v588 = vld [vmem:[%s148 + $0xd58] sm:$0xff]
                %589 = vst [vmem:[%s149 + $0x6d8] sm:$0xff] %v588
                %v590 = vld [vmem:[%s148 + $0xd60] sm:$0xff]
                %591 = vst [vmem:[%s149 + $0x6e0] sm:$0xff] %v590
                %v592 = vld [vmem:[%s148 + $0xd68] sm:$0xff]
                %593 = vst [vmem:[%s149 + $0x6e8] sm:$0xff] %v592
                %v594 = vld [vmem:[%s148 + $0xd70] sm:$0xff]
                %595 = vst [vmem:[%s149 + $0x6f0] sm:$0xff] %v594
                %v596 = vld [vmem:[%s148 + $0xd78] sm:$0xff]
                %597 = vst [vmem:[%s149 + $0x6f8] sm:$0xff] %v596
                %v598 = vld [vmem:[%s148 + $0xe00] sm:$0xff]
                %599 = vst [vmem:[%s149 + $0x700] sm:$0xff] %v598
                %v600 = vld [vmem:[%s148 + $0xe08] sm:$0xff]
                %601 = vst [vmem:[%s149 + $0x708] sm:$0xff] %v600
                %v602 = vld [vmem:[%s148 + $0xe10] sm:$0xff]
                %603 = vst [vmem:[%s149 + $0x710] sm:$0xff] %v602
                %v604 = vld [vmem:[%s148 + $0xe18] sm:$0xff]
                %605 = vst [vmem:[%s149 + $0x718] sm:$0xff] %v604
                %v606 = vld [vmem:[%s148 + $0xe20] sm:$0xff]
                %607 = vst [vmem:[%s149 + $0x720] sm:$0xff] %v606
                %v608 = vld [vmem:[%s148 + $0xe28] sm:$0xff]
                %609 = vst [vmem:[%s149 + $0x728] sm:$0xff] %v608
                %v610 = vld [vmem:[%s148 + $0xe30] sm:$0xff]
                %611 = vst [vmem:[%s149 + $0x730] sm:$0xff] %v610
                %v612 = vld [vmem:[%s148 + $0xe38] sm:$0xff]
                %613 = vst [vmem:[%s149 + $0x738] sm:$0xff] %v612
                %v614 = vld [vmem:[%s148 + $0xe40] sm:$0xff]
                %615 = vst [vmem:[%s149 + $0x740] sm:$0xff] %v614
                %v616 = vld [vmem:[%s148 + $0xe48] sm:$0xff]
                %617 = vst [vmem:[%s149 + $0x748] sm:$0xff] %v616
                %v618 = vld [vmem:[%s148 + $0xe50] sm:$0xff]
                %619 = vst [vmem:[%s149 + $0x750] sm:$0xff] %v618
                %v620 = vld [vmem:[%s148 + $0xe58] sm:$0xff]
                %621 = vst [vmem:[%s149 + $0x758] sm:$0xff] %v620
                %v622 = vld [vmem:[%s148 + $0xe60] sm:$0xff]
                %623 = vst [vmem:[%s149 + $0x760] sm:$0xff] %v622
                %v624 = vld [vmem:[%s148 + $0xe68] sm:$0xff]
                %625 = vst [vmem:[%s149 + $0x768] sm:$0xff] %v624
                %v626 = vld [vmem:[%s148 + $0xe70] sm:$0xff]
                %627 = vst [vmem:[%s149 + $0x770] sm:$0xff] %v626
                %v628 = vld [vmem:[%s148 + $0xe78] sm:$0xff]
                %629 = vst [vmem:[%s149 + $0x778] sm:$0xff] %v628
                %v630 = vld [vmem:[%s148 + $0xf00] sm:$0xff]
                %631 = vst [vmem:[%s149 + $0x780] sm:$0xff] %v630
                %v632 = vld [vmem:[%s148 + $0xf08] sm:$0xff]
                %633 = vst [vmem:[%s149 + $0x788] sm:$0xff] %v632
                %v634 = vld [vmem:[%s148 + $0xf10] sm:$0xff]
                %635 = vst [vmem:[%s149 + $0x790] sm:$0xff] %v634
                %v636 = vld [vmem:[%s148 + $0xf18] sm:$0xff]
                %637 = vst [vmem:[%s149 + $0x798] sm:$0xff] %v636
                %v638 = vld [vmem:[%s148 + $0xf20] sm:$0xff]
                %639 = vst [vmem:[%s149 + $0x7a0] sm:$0xff] %v638
                %v640 = vld [vmem:[%s148 + $0xf28] sm:$0xff]
                %641 = vst [vmem:[%s149 + $0x7a8] sm:$0xff] %v640
                %v642 = vld [vmem:[%s148 + $0xf30] sm:$0xff]
                %643 = vst [vmem:[%s149 + $0x7b0] sm:$0xff] %v642
                %v644 = vld [vmem:[%s148 + $0xf38] sm:$0xff]
                %645 = vst [vmem:[%s149 + $0x7b8] sm:$0xff] %v644
                %v646 = vld [vmem:[%s148 + $0xf40] sm:$0xff]
                %647 = vst [vmem:[%s149 + $0x7c0] sm:$0xff] %v646
                %v648 = vld [vmem:[%s148 + $0xf48] sm:$0xff]
                %649 = vst [vmem:[%s149 + $0x7c8] sm:$0xff] %v648
                %v650 = vld [vmem:[%s148 + $0xf50] sm:$0xff]
                %651 = vst [vmem:[%s149 + $0x7d0] sm:$0xff] %v650
                %v652 = vld [vmem:[%s148 + $0xf58] sm:$0xff]
                %653 = vst [vmem:[%s149 + $0x7d8] sm:$0xff] %v652
                %v654 = vld [vmem:[%s148 + $0xf60] sm:$0xff]
                %655 = vst [vmem:[%s149 + $0x7e0] sm:$0xff] %v654
                %v656 = vld [vmem:[%s148 + $0xf68] sm:$0xff]
                %657 = vst [vmem:[%s149 + $0x7e8] sm:$0xff] %v656
                %v658 = vld [vmem:[%s148 + $0xf70] sm:$0xff]
                %659 = vst [vmem:[%s149 + $0x7f0] sm:$0xff] %v658
                %v660 = vld [vmem:[%s148 + $0xf78] sm:$0xff]
                %661 = vst [vmem:[%s149 + $0x7f8] sm:$0xff] %v660
                %v662 = vld [vmem:[%s148 + $0x1000] sm:$0xff]
                %663 = vst [vmem:[%s149 + $0x800] sm:$0xff] %v662
                %v664 = vld [vmem:[%s148 + $0x1008] sm:$0xff]
                %665 = vst [vmem:[%s149 + $0x808] sm:$0xff] %v664
                %v666 = vld [vmem:[%s148 + $0x1010] sm:$0xff]
                %667 = vst [vmem:[%s149 + $0x810] sm:$0xff] %v666
                %v668 = vld [vmem:[%s148 + $0x1018] sm:$0xff]
                %669 = vst [vmem:[%s149 + $0x818] sm:$0xff] %v668
                %v670 = vld [vmem:[%s148 + $0x1020] sm:$0xff]
                %671 = vst [vmem:[%s149 + $0x820] sm:$0xff] %v670
                %v672 = vld [vmem:[%s148 + $0x1028] sm:$0xff]
                %673 = vst [vmem:[%s149 + $0x828] sm:$0xff] %v672
                %v674 = vld [vmem:[%s148 + $0x1030] sm:$0xff]
                %675 = vst [vmem:[%s149 + $0x830] sm:$0xff] %v674
                %v676 = vld [vmem:[%s148 + $0x1038] sm:$0xff]
                %677 = vst [vmem:[%s149 + $0x838] sm:$0xff] %v676
                %v678 = vld [vmem:[%s148 + $0x1040] sm:$0xff]
                %679 = vst [vmem:[%s149 + $0x840] sm:$0xff] %v678
                %v680 = vld [vmem:[%s148 + $0x1048] sm:$0xff]
                %681 = vst [vmem:[%s149 + $0x848] sm:$0xff] %v680
                %v682 = vld [vmem:[%s148 + $0x1050] sm:$0xff]
                %683 = vst [vmem:[%s149 + $0x850] sm:$0xff] %v682
                %v684 = vld [vmem:[%s148 + $0x1058] sm:$0xff]
                %685 = vst [vmem:[%s149 + $0x858] sm:$0xff] %v684
                %v686 = vld [vmem:[%s148 + $0x1060] sm:$0xff]
                %687 = vst [vmem:[%s149 + $0x860] sm:$0xff] %v686
                %v688 = vld [vmem:[%s148 + $0x1068] sm:$0xff]
                %689 = vst [vmem:[%s149 + $0x868] sm:$0xff] %v688
                %v690 = vld [vmem:[%s148 + $0x1070] sm:$0xff]
                %691 = vst [vmem:[%s149 + $0x870] sm:$0xff] %v690
                %v692 = vld [vmem:[%s148 + $0x1078] sm:$0xff]
                %693 = vst [vmem:[%s149 + $0x878] sm:$0xff] %v692
                %v694 = vld [vmem:[%s148 + $0x1100] sm:$0xff]
                %695 = vst [vmem:[%s149 + $0x880] sm:$0xff] %v694
                %v696 = vld [vmem:[%s148 + $0x1108] sm:$0xff]
                %697 = vst [vmem:[%s149 + $0x888] sm:$0xff] %v696
                %v698 = vld [vmem:[%s148 + $0x1110] sm:$0xff]
                %699 = vst [vmem:[%s149 + $0x890] sm:$0xff] %v698
                %v700 = vld [vmem:[%s148 + $0x1118] sm:$0xff]
                %701 = vst [vmem:[%s149 + $0x898] sm:$0xff] %v700
                %v702 = vld [vmem:[%s148 + $0x1120] sm:$0xff]
                %703 = vst [vmem:[%s149 + $0x8a0] sm:$0xff] %v702
                %v704 = vld [vmem:[%s148 + $0x1128] sm:$0xff]
                %705 = vst [vmem:[%s149 + $0x8a8] sm:$0xff] %v704
                %v706 = vld [vmem:[%s148 + $0x1130] sm:$0xff]
                %707 = vst [vmem:[%s149 + $0x8b0] sm:$0xff] %v706
                %v708 = vld [vmem:[%s148 + $0x1138] sm:$0xff]
                %709 = vst [vmem:[%s149 + $0x8b8] sm:$0xff] %v708
                %v710 = vld [vmem:[%s148 + $0x1140] sm:$0xff]
                %711 = vst [vmem:[%s149 + $0x8c0] sm:$0xff] %v710
                %v712 = vld [vmem:[%s148 + $0x1148] sm:$0xff]
                %713 = vst [vmem:[%s149 + $0x8c8] sm:$0xff] %v712
                %v714 = vld [vmem:[%s148 + $0x1150] sm:$0xff]
                %715 = vst [vmem:[%s149 + $0x8d0] sm:$0xff] %v714
                %v716 = vld [vmem:[%s148 + $0x1158] sm:$0xff]
                %717 = vst [vmem:[%s149 + $0x8d8] sm:$0xff] %v716
                %v718 = vld [vmem:[%s148 + $0x1160] sm:$0xff]
                %719 = vst [vmem:[%s149 + $0x8e0] sm:$0xff] %v718
                %v720 = vld [vmem:[%s148 + $0x1168] sm:$0xff]
                %721 = vst [vmem:[%s149 + $0x8e8] sm:$0xff] %v720
                %v722 = vld [vmem:[%s148 + $0x1170] sm:$0xff]
                %723 = vst [vmem:[%s149 + $0x8f0] sm:$0xff] %v722
                %v724 = vld [vmem:[%s148 + $0x1178] sm:$0xff]
                %725 = vst [vmem:[%s149 + $0x8f8] sm:$0xff] %v724
                %v726 = vld [vmem:[%s148 + $0x1200] sm:$0xff]
                %727 = vst [vmem:[%s149 + $0x900] sm:$0xff] %v726
                %v728 = vld [vmem:[%s148 + $0x1208] sm:$0xff]
                %729 = vst [vmem:[%s149 + $0x908] sm:$0xff] %v728
                %v730 = vld [vmem:[%s148 + $0x1210] sm:$0xff]
                %731 = vst [vmem:[%s149 + $0x910] sm:$0xff] %v730
                %v732 = vld [vmem:[%s148 + $0x1218] sm:$0xff]
                %733 = vst [vmem:[%s149 + $0x918] sm:$0xff] %v732
                %v734 = vld [vmem:[%s148 + $0x1220] sm:$0xff]
                %735 = vst [vmem:[%s149 + $0x920] sm:$0xff] %v734
                %v736 = vld [vmem:[%s148 + $0x1228] sm:$0xff]
                %737 = vst [vmem:[%s149 + $0x928] sm:$0xff] %v736
                %v738 = vld [vmem:[%s148 + $0x1230] sm:$0xff]
                %739 = vst [vmem:[%s149 + $0x930] sm:$0xff] %v738
                %v740 = vld [vmem:[%s148 + $0x1238] sm:$0xff]
                %741 = vst [vmem:[%s149 + $0x938] sm:$0xff] %v740
                %v742 = vld [vmem:[%s148 + $0x1240] sm:$0xff]
                %743 = vst [vmem:[%s149 + $0x940] sm:$0xff] %v742
                %v744 = vld [vmem:[%s148 + $0x1248] sm:$0xff]
                %745 = vst [vmem:[%s149 + $0x948] sm:$0xff] %v744
                %v746 = vld [vmem:[%s148 + $0x1250] sm:$0xff]
                %747 = vst [vmem:[%s149 + $0x950] sm:$0xff] %v746
                %v748 = vld [vmem:[%s148 + $0x1258] sm:$0xff]
                %749 = vst [vmem:[%s149 + $0x958] sm:$0xff] %v748
                %v750 = vld [vmem:[%s148 + $0x1260] sm:$0xff]
                %751 = vst [vmem:[%s149 + $0x960] sm:$0xff] %v750
                %v752 = vld [vmem:[%s148 + $0x1268] sm:$0xff]
                %753 = vst [vmem:[%s149 + $0x968] sm:$0xff] %v752
                %v754 = vld [vmem:[%s148 + $0x1270] sm:$0xff]
                %755 = vst [vmem:[%s149 + $0x970] sm:$0xff] %v754
                %v756 = vld [vmem:[%s148 + $0x1278] sm:$0xff]
                %757 = vst [vmem:[%s149 + $0x978] sm:$0xff] %v756
                %v758 = vld [vmem:[%s148 + $0x1300] sm:$0xff]
                %759 = vst [vmem:[%s149 + $0x980] sm:$0xff] %v758
                %v760 = vld [vmem:[%s148 + $0x1308] sm:$0xff]
                %761 = vst [vmem:[%s149 + $0x988] sm:$0xff] %v760
                %v762 = vld [vmem:[%s148 + $0x1310] sm:$0xff]
                %763 = vst [vmem:[%s149 + $0x990] sm:$0xff] %v762
                %v764 = vld [vmem:[%s148 + $0x1318] sm:$0xff]
                %765 = vst [vmem:[%s149 + $0x998] sm:$0xff] %v764
                %v766 = vld [vmem:[%s148 + $0x1320] sm:$0xff]
                %767 = vst [vmem:[%s149 + $0x9a0] sm:$0xff] %v766
                %v768 = vld [vmem:[%s148 + $0x1328] sm:$0xff]
                %769 = vst [vmem:[%s149 + $0x9a8] sm:$0xff] %v768
                %v770 = vld [vmem:[%s148 + $0x1330] sm:$0xff]
                %771 = vst [vmem:[%s149 + $0x9b0] sm:$0xff] %v770
                %v772 = vld [vmem:[%s148 + $0x1338] sm:$0xff]
                %773 = vst [vmem:[%s149 + $0x9b8] sm:$0xff] %v772
                %v774 = vld [vmem:[%s148 + $0x1340] sm:$0xff]
                %775 = vst [vmem:[%s149 + $0x9c0] sm:$0xff] %v774
                %v776 = vld [vmem:[%s148 + $0x1348] sm:$0xff]
                %777 = vst [vmem:[%s149 + $0x9c8] sm:$0xff] %v776
                %v778 = vld [vmem:[%s148 + $0x1350] sm:$0xff]
                %779 = vst [vmem:[%s149 + $0x9d0] sm:$0xff] %v778
                %v780 = vld [vmem:[%s148 + $0x1358] sm:$0xff]
                %781 = vst [vmem:[%s149 + $0x9d8] sm:$0xff] %v780
                %v782 = vld [vmem:[%s148 + $0x1360] sm:$0xff]
                %783 = vst [vmem:[%s149 + $0x9e0] sm:$0xff] %v782
                %v784 = vld [vmem:[%s148 + $0x1368] sm:$0xff]
                %785 = vst [vmem:[%s149 + $0x9e8] sm:$0xff] %v784
                %v786 = vld [vmem:[%s148 + $0x1370] sm:$0xff]
                %787 = vst [vmem:[%s149 + $0x9f0] sm:$0xff] %v786
                %v788 = vld [vmem:[%s148 + $0x1378] sm:$0xff]
                %789 = vst [vmem:[%s149 + $0x9f8] sm:$0xff] %v788
                %v790 = vld [vmem:[%s148 + $0x1400] sm:$0xff]
                %791 = vst [vmem:[%s149 + $0xa00] sm:$0xff] %v790
                %v792 = vld [vmem:[%s148 + $0x1408] sm:$0xff]
                %793 = vst [vmem:[%s149 + $0xa08] sm:$0xff] %v792
                %v794 = vld [vmem:[%s148 + $0x1410] sm:$0xff]
                %795 = vst [vmem:[%s149 + $0xa10] sm:$0xff] %v794
                %v796 = vld [vmem:[%s148 + $0x1418] sm:$0xff]
                %797 = vst [vmem:[%s149 + $0xa18] sm:$0xff] %v796
                %v798 = vld [vmem:[%s148 + $0x1420] sm:$0xff]
                %799 = vst [vmem:[%s149 + $0xa20] sm:$0xff] %v798
                %v800 = vld [vmem:[%s148 + $0x1428] sm:$0xff]
                %801 = vst [vmem:[%s149 + $0xa28] sm:$0xff] %v800
                %v802 = vld [vmem:[%s148 + $0x1430] sm:$0xff]
                %803 = vst [vmem:[%s149 + $0xa30] sm:$0xff] %v802
                %v804 = vld [vmem:[%s148 + $0x1438] sm:$0xff]
                %805 = vst [vmem:[%s149 + $0xa38] sm:$0xff] %v804
                %v806 = vld [vmem:[%s148 + $0x1440] sm:$0xff]
                %807 = vst [vmem:[%s149 + $0xa40] sm:$0xff] %v806
                %v808 = vld [vmem:[%s148 + $0x1448] sm:$0xff]
                %809 = vst [vmem:[%s149 + $0xa48] sm:$0xff] %v808
                %v810 = vld [vmem:[%s148 + $0x1450] sm:$0xff]
                %811 = vst [vmem:[%s149 + $0xa50] sm:$0xff] %v810
                %v812 = vld [vmem:[%s148 + $0x1458] sm:$0xff]
                %813 = vst [vmem:[%s149 + $0xa58] sm:$0xff] %v812
                %v814 = vld [vmem:[%s148 + $0x1460] sm:$0xff]
                %815 = vst [vmem:[%s149 + $0xa60] sm:$0xff] %v814
                %v816 = vld [vmem:[%s148 + $0x1468] sm:$0xff]
                %817 = vst [vmem:[%s149 + $0xa68] sm:$0xff] %v816
                %v818 = vld [vmem:[%s148 + $0x1470] sm:$0xff]
                %819 = vst [vmem:[%s149 + $0xa70] sm:$0xff] %v818
                %v820 = vld [vmem:[%s148 + $0x1478] sm:$0xff]
                %821 = vst [vmem:[%s149 + $0xa78] sm:$0xff] %v820
                %v822 = vld [vmem:[%s148 + $0x1500] sm:$0xff]
                %823 = vst [vmem:[%s149 + $0xa80] sm:$0xff] %v822
                %v824 = vld [vmem:[%s148 + $0x1508] sm:$0xff]
                %825 = vst [vmem:[%s149 + $0xa88] sm:$0xff] %v824
                %v826 = vld [vmem:[%s148 + $0x1510] sm:$0xff]
                %827 = vst [vmem:[%s149 + $0xa90] sm:$0xff] %v826
                %v828 = vld [vmem:[%s148 + $0x1518] sm:$0xff]
                %829 = vst [vmem:[%s149 + $0xa98] sm:$0xff] %v828
                %v830 = vld [vmem:[%s148 + $0x1520] sm:$0xff]
                %831 = vst [vmem:[%s149 + $0xaa0] sm:$0xff] %v830
                %v832 = vld [vmem:[%s148 + $0x1528] sm:$0xff]
                %833 = vst [vmem:[%s149 + $0xaa8] sm:$0xff] %v832
                %v834 = vld [vmem:[%s148 + $0x1530] sm:$0xff]
                %835 = vst [vmem:[%s149 + $0xab0] sm:$0xff] %v834
                %v836 = vld [vmem:[%s148 + $0x1538] sm:$0xff]
                %837 = vst [vmem:[%s149 + $0xab8] sm:$0xff] %v836
                %v838 = vld [vmem:[%s148 + $0x1540] sm:$0xff]
                %839 = vst [vmem:[%s149 + $0xac0] sm:$0xff] %v838
                %v840 = vld [vmem:[%s148 + $0x1548] sm:$0xff]
                %841 = vst [vmem:[%s149 + $0xac8] sm:$0xff] %v840
                %v842 = vld [vmem:[%s148 + $0x1550] sm:$0xff]
                %843 = vst [vmem:[%s149 + $0xad0] sm:$0xff] %v842
                %v844 = vld [vmem:[%s148 + $0x1558] sm:$0xff]
                %845 = vst [vmem:[%s149 + $0xad8] sm:$0xff] %v844
                %v846 = vld [vmem:[%s148 + $0x1560] sm:$0xff]
                %847 = vst [vmem:[%s149 + $0xae0] sm:$0xff] %v846
                %v848 = vld [vmem:[%s148 + $0x1568] sm:$0xff]
                %849 = vst [vmem:[%s149 + $0xae8] sm:$0xff] %v848
                %v850 = vld [vmem:[%s148 + $0x1570] sm:$0xff]
                %851 = vst [vmem:[%s149 + $0xaf0] sm:$0xff] %v850
                %v852 = vld [vmem:[%s148 + $0x1578] sm:$0xff]
                %853 = vst [vmem:[%s149 + $0xaf8] sm:$0xff] %v852
                %v854 = vld [vmem:[%s148 + $0x1600] sm:$0xff]
                %855 = vst [vmem:[%s149 + $0xb00] sm:$0xff] %v854
                %v856 = vld [vmem:[%s148 + $0x1608] sm:$0xff]
                %857 = vst [vmem:[%s149 + $0xb08] sm:$0xff] %v856
                %v858 = vld [vmem:[%s148 + $0x1610] sm:$0xff]
                %859 = vst [vmem:[%s149 + $0xb10] sm:$0xff] %v858
                %v860 = vld [vmem:[%s148 + $0x1618] sm:$0xff]
                %861 = vst [vmem:[%s149 + $0xb18] sm:$0xff] %v860
                %v862 = vld [vmem:[%s148 + $0x1620] sm:$0xff]
                %863 = vst [vmem:[%s149 + $0xb20] sm:$0xff] %v862
                %v864 = vld [vmem:[%s148 + $0x1628] sm:$0xff]
                %865 = vst [vmem:[%s149 + $0xb28] sm:$0xff] %v864
                %v866 = vld [vmem:[%s148 + $0x1630] sm:$0xff]
                %867 = vst [vmem:[%s149 + $0xb30] sm:$0xff] %v866
                %v868 = vld [vmem:[%s148 + $0x1638] sm:$0xff]
                %869 = vst [vmem:[%s149 + $0xb38] sm:$0xff] %v868
                %v870 = vld [vmem:[%s148 + $0x1640] sm:$0xff]
                %871 = vst [vmem:[%s149 + $0xb40] sm:$0xff] %v870
                %v872 = vld [vmem:[%s148 + $0x1648] sm:$0xff]
                %873 = vst [vmem:[%s149 + $0xb48] sm:$0xff] %v872
                %v874 = vld [vmem:[%s148 + $0x1650] sm:$0xff]
                %875 = vst [vmem:[%s149 + $0xb50] sm:$0xff] %v874
                %v876 = vld [vmem:[%s148 + $0x1658] sm:$0xff]
                %877 = vst [vmem:[%s149 + $0xb58] sm:$0xff] %v876
                %v878 = vld [vmem:[%s148 + $0x1660] sm:$0xff]
                %879 = vst [vmem:[%s149 + $0xb60] sm:$0xff] %v878
                %v880 = vld [vmem:[%s148 + $0x1668] sm:$0xff]
                %881 = vst [vmem:[%s149 + $0xb68] sm:$0xff] %v880
                %v882 = vld [vmem:[%s148 + $0x1670] sm:$0xff]
                %883 = vst [vmem:[%s149 + $0xb70] sm:$0xff] %v882
                %v884 = vld [vmem:[%s148 + $0x1678] sm:$0xff]
                %885 = vst [vmem:[%s149 + $0xb78] sm:$0xff] %v884
                %v886 = vld [vmem:[%s148 + $0x1700] sm:$0xff]
                %887 = vst [vmem:[%s149 + $0xb80] sm:$0xff] %v886
                %v888 = vld [vmem:[%s148 + $0x1708] sm:$0xff]
                %889 = vst [vmem:[%s149 + $0xb88] sm:$0xff] %v888
                %v890 = vld [vmem:[%s148 + $0x1710] sm:$0xff]
                %891 = vst [vmem:[%s149 + $0xb90] sm:$0xff] %v890
                %v892 = vld [vmem:[%s148 + $0x1718] sm:$0xff]
                %893 = vst [vmem:[%s149 + $0xb98] sm:$0xff] %v892
                %v894 = vld [vmem:[%s148 + $0x1720] sm:$0xff]
                %895 = vst [vmem:[%s149 + $0xba0] sm:$0xff] %v894
                %v896 = vld [vmem:[%s148 + $0x1728] sm:$0xff]
                %897 = vst [vmem:[%s149 + $0xba8] sm:$0xff] %v896
                %v898 = vld [vmem:[%s148 + $0x1730] sm:$0xff]
                %899 = vst [vmem:[%s149 + $0xbb0] sm:$0xff] %v898
                %v900 = vld [vmem:[%s148 + $0x1738] sm:$0xff]
                %901 = vst [vmem:[%s149 + $0xbb8] sm:$0xff] %v900
                %v902 = vld [vmem:[%s148 + $0x1740] sm:$0xff]
                %903 = vst [vmem:[%s149 + $0xbc0] sm:$0xff] %v902
                %v904 = vld [vmem:[%s148 + $0x1748] sm:$0xff]
                %905 = vst [vmem:[%s149 + $0xbc8] sm:$0xff] %v904
                %v906 = vld [vmem:[%s148 + $0x1750] sm:$0xff]
                %907 = vst [vmem:[%s149 + $0xbd0] sm:$0xff] %v906
                %v908 = vld [vmem:[%s148 + $0x1758] sm:$0xff]
                %909 = vst [vmem:[%s149 + $0xbd8] sm:$0xff] %v908
                %v910 = vld [vmem:[%s148 + $0x1760] sm:$0xff]
                %911 = vst [vmem:[%s149 + $0xbe0] sm:$0xff] %v910
                %v912 = vld [vmem:[%s148 + $0x1768] sm:$0xff]
                %913 = vst [vmem:[%s149 + $0xbe8] sm:$0xff] %v912
                %v914 = vld [vmem:[%s148 + $0x1770] sm:$0xff]
                %915 = vst [vmem:[%s149 + $0xbf0] sm:$0xff] %v914
                %v916 = vld [vmem:[%s148 + $0x1778] sm:$0xff]
                %917 = vst [vmem:[%s149 + $0xbf8] sm:$0xff] %v916
              $region41: #{_lambda_.4} parent=35 // loop_footer
                %s147 = sadd.s32 1, %s143
              $region42: #{_lambda_.4} parent=35 // loop_footer_branch
                %142 = sbr.rel target = $region38
              $region43: #{_lambda_.4} parent=35 // loop_exit
                _
            $region36: #{_lambda_.4} parent=31 // pred_fallthru
              _
            // Predicated region
            $region44: #{_lambda_.4} parent=31 // pred_check
              _
            $region45: #{_lambda_.4} parent=31 // pred_check_branch
              %919 = sbr.rel target = $region47
            $region46: #{_lambda_.4} parent=31 // pred_region
              _
            $region47: #{_lambda_.4} parent=31 // pred_fallthru
              _
          $region32: #{_lambda_.4} parent=27 // pred_fallthru
            _
          %920 = vnop
        $region28: #{_lambda_.4} parent=23 // pred_fallthru
          _
      $region24: #{_lambda_.4} parent=5 // pred_fallthru
        _
      %p921 = scmp.le.s32.totalorder 1, %s9
      %p922 = scmp.lt.s32.totalorder %s9, 3
      %p923 = pnand %p921, %p922
      %p924 = pneg %p923
      // Predicated region
      $region48: #{_lambda_.4} parent=5 // pred_check
        _
      $region49: #{_lambda_.4} parent=5 // pred_check_branch
        %926 = sbr.rel (%p923) target = $region51
      $region50: #{_lambda_.4} parent=5 // pred_region
        %s927 = ssub.s32 %s9, 1
        %s928 = sand.u32 %s22, 1
        %s929 = sand.u32 %s22, 1
        %s930 = smul.addr %s929, 3072
        %s931 = scalar_lea.vmem [#allocation2], %s930
        // Predicated region
        $region52: #{_lambda_.4} parent=50 // pred_check
          %p932 = pneg %p35
        $region53: #{_lambda_.4} parent=50 // pred_check_branch
          %934 = sbr.rel (%p932) target = $region55
        $region54: #{_lambda_.4} parent=50 // pred_region
          _
        $region55: #{_lambda_.4} parent=50 // pred_fallthru
          _
        %s935 = sand.u32 %s22, 1
        %s936 = sand.u32 %s22, 1
        %s937 = smul.addr %s936, 3072
        %s938 = scalar_lea.vmem [#allocation2], %s937
        %p939 = pneg %p35
        %p940 = pneg %p32
        %p941 = pneg %p56
        %p942 = pneg %p53
        %p943 = pneg %p77
        %p944 = pneg %p74
        %p945 = pneg %p103
        %p946 = pneg %p100
        %s947 = smul.u32 32, %s14
        %p948 = scmp.lt.s32.totalorder %s947, 63
        %s949 = scalar_select %p948, %s947, 63
        %s950 = smul.addr %s949, 4
        %s951 = scalar_lea.vmem %s3, %s950
        %s952 = smul.u32 32, %s14
        %s953 = smul.u32 32, %s14
        %p954 = scmp.lt.s32.totalorder %s953, 63
        %s955 = scalar_select %p954, %s953, 63
        %s956 = smul.addr %s955, 4
        %s957 = scalar_lea.vmem %s3, %s956
        %s958 = smul.u32 32, %s14
        %v960 = vld [vmem:[%s1] sm:$0xf]
        %v961 = vld [vmem:[%s931] sm:$0xff]
        %v962 = vld [vmem:[%s931 + $0x8] sm:$0xff]
        %v963 = vld [vmem:[%s931 + $0x10] sm:$0xff]
        %v964 = vld [vmem:[%s931 + $0x18] sm:$0xff]
        %v965 = vld [vmem:[%s931 + $0x20] sm:$0xff]
        %v966 = vld [vmem:[%s931 + $0x28] sm:$0xff]
        %v967 = vld [vmem:[%s931 + $0x30] sm:$0xff]
        %v968 = vld [vmem:[%s931 + $0x38] sm:$0xff]
        %v969 = vld [vmem:[%s931 + $0x40] sm:$0xff]
        %v970 = vld [vmem:[%s931 + $0x48] sm:$0xff]
        %v971 = vld [vmem:[%s931 + $0x50] sm:$0xff]
        %v972 = vld [vmem:[%s931 + $0x58] sm:$0xff]
        %v973 = vld [vmem:[%s931 + $0x60] sm:$0xff]
        %v974 = vld [vmem:[%s931 + $0x68] sm:$0xff]
        %v975 = vld [vmem:[%s931 + $0x70] sm:$0xff]
        %v976 = vld [vmem:[%s931 + $0x78] sm:$0xff]
        %v977 = vld [vmem:[%s931 + $0x80] sm:$0xff]
        %v978 = vld [vmem:[%s931 + $0x88] sm:$0xff]
        %v979 = vld [vmem:[%s931 + $0x90] sm:$0xff]
        %v980 = vld [vmem:[%s931 + $0x98] sm:$0xff]
        %v981 = vld [vmem:[%s931 + $0xa0] sm:$0xff]
        %v982 = vld [vmem:[%s931 + $0xa8] sm:$0xff]
        %v983 = vld [vmem:[%s931 + $0xb0] sm:$0xff]
        %v984 = vld [vmem:[%s931 + $0xb8] sm:$0xff]
        %v985 = vld [vmem:[%s931 + $0xc0] sm:$0xff]
        %v986 = vld [vmem:[%s931 + $0xc8] sm:$0xff]
        %v987 = vld [vmem:[%s931 + $0xd0] sm:$0xff]
        %v988 = vld [vmem:[%s931 + $0xd8] sm:$0xff]
        %v989 = vld [vmem:[%s931 + $0xe0] sm:$0xff]
        %v990 = vld [vmem:[%s931 + $0xe8] sm:$0xff]
        %v991 = vld [vmem:[%s931 + $0xf0] sm:$0xff]
        %v992 = vld [vmem:[%s931 + $0xf8] sm:$0xff]
        %v993 = vld [vmem:[%s931 + $0x100] sm:$0xff]
        %v994 = vld [vmem:[%s931 + $0x108] sm:$0xff]
        %v995 = vld [vmem:[%s931 + $0x110] sm:$0xff]
        %v996 = vld [vmem:[%s931 + $0x118] sm:$0xff]
        %v997 = vld [vmem:[%s931 + $0x120] sm:$0xff]
        %v998 = vld [vmem:[%s931 + $0x128] sm:$0xff]
        %v999 = vld [vmem:[%s931 + $0x130] sm:$0xff]
        %v1000 = vld [vmem:[%s931 + $0x138] sm:$0xff]
        %v1001 = vld [vmem:[%s931 + $0x140] sm:$0xff]
        %v1002 = vld [vmem:[%s931 + $0x148] sm:$0xff]
        %v1003 = vld [vmem:[%s931 + $0x150] sm:$0xff]
        %v1004 = vld [vmem:[%s931 + $0x158] sm:$0xff]
        %v1005 = vld [vmem:[%s931 + $0x160] sm:$0xff]
        %v1006 = vld [vmem:[%s931 + $0x168] sm:$0xff]
        %v1007 = vld [vmem:[%s931 + $0x170] sm:$0xff]
        %v1008 = vld [vmem:[%s931 + $0x178] sm:$0xff]
        %v1009 = vld [vmem:[%s931 + $0x180] sm:$0xff]
        %v1010 = vld [vmem:[%s931 + $0x188] sm:$0xff]
        %v1011 = vld [vmem:[%s931 + $0x190] sm:$0xff]
        %v1012 = vld [vmem:[%s931 + $0x198] sm:$0xff]
        %v1013 = vld [vmem:[%s931 + $0x1a0] sm:$0xff]
        %v1014 = vld [vmem:[%s931 + $0x1a8] sm:$0xff]
        %v1015 = vld [vmem:[%s931 + $0x1b0] sm:$0xff]
        %v1016 = vld [vmem:[%s931 + $0x1b8] sm:$0xff]
        %v1017 = vld [vmem:[%s931 + $0x1c0] sm:$0xff]
        %v1018 = vld [vmem:[%s931 + $0x1c8] sm:$0xff]
        %v1019 = vld [vmem:[%s931 + $0x1d0] sm:$0xff]
        %v1020 = vld [vmem:[%s931 + $0x1d8] sm:$0xff]
        %v1021 = vld [vmem:[%s931 + $0x1e0] sm:$0xff]
        %v1022 = vld [vmem:[%s931 + $0x1e8] sm:$0xff]
        %v1023 = vld [vmem:[%s931 + $0x1f0] sm:$0xff]
        %v1024 = vld [vmem:[%s931 + $0x1f8] sm:$0xff]
        %v1025 = vld [vmem:[%s931 + $0x200] sm:$0xff]
        %v1026 = vld [vmem:[%s931 + $0x208] sm:$0xff]
        %v1027 = vld [vmem:[%s931 + $0x210] sm:$0xff]
        %v1028 = vld [vmem:[%s931 + $0x218] sm:$0xff]
        %v1029 = vld [vmem:[%s931 + $0x220] sm:$0xff]
        %v1030 = vld [vmem:[%s931 + $0x228] sm:$0xff]
        %v1031 = vld [vmem:[%s931 + $0x230] sm:$0xff]
        %v1032 = vld [vmem:[%s931 + $0x238] sm:$0xff]
        %v1033 = vld [vmem:[%s931 + $0x240] sm:$0xff]
        %v1034 = vld [vmem:[%s931 + $0x248] sm:$0xff]
        %v1035 = vld [vmem:[%s931 + $0x250] sm:$0xff]
        %v1036 = vld [vmem:[%s931 + $0x258] sm:$0xff]
        %v1037 = vld [vmem:[%s931 + $0x260] sm:$0xff]
        %v1038 = vld [vmem:[%s931 + $0x268] sm:$0xff]
        %v1039 = vld [vmem:[%s931 + $0x270] sm:$0xff]
        %v1040 = vld [vmem:[%s931 + $0x278] sm:$0xff]
        %v1041 = vld [vmem:[%s931 + $0x280] sm:$0xff]
        %v1042 = vld [vmem:[%s931 + $0x288] sm:$0xff]
        %v1043 = vld [vmem:[%s931 + $0x290] sm:$0xff]
        %v1044 = vld [vmem:[%s931 + $0x298] sm:$0xff]
        %v1045 = vld [vmem:[%s931 + $0x2a0] sm:$0xff]
        %v1046 = vld [vmem:[%s931 + $0x2a8] sm:$0xff]
        %v1047 = vld [vmem:[%s931 + $0x2b0] sm:$0xff]
        %v1048 = vld [vmem:[%s931 + $0x2b8] sm:$0xff]
        %v1049 = vld [vmem:[%s931 + $0x2c0] sm:$0xff]
        %v1050 = vld [vmem:[%s931 + $0x2c8] sm:$0xff]
        %v1051 = vld [vmem:[%s931 + $0x2d0] sm:$0xff]
        %v1052 = vld [vmem:[%s931 + $0x2d8] sm:$0xff]
        %v1053 = vld [vmem:[%s931 + $0x2e0] sm:$0xff]
        %v1054 = vld [vmem:[%s931 + $0x2e8] sm:$0xff]
        %v1055 = vld [vmem:[%s931 + $0x2f0] sm:$0xff]
        %v1056 = vld [vmem:[%s931 + $0x2f8] sm:$0xff]
        %v1153 = vunpack.c.l.b16 %v961
        %v1154 = vunpack.c.h.b16 %v961
        %v1155 = vunpack.c.l.b16 %v962
        %v1156 = vunpack.c.h.b16 %v962
        %v1157 = vunpack.c.l.b16 %v963
        %v1158 = vunpack.c.h.b16 %v963
        %v1159 = vunpack.c.l.b16 %v964
        %v1160 = vunpack.c.h.b16 %v964
        %v1161 = vunpack.c.l.b16 %v965
        %v1162 = vunpack.c.h.b16 %v965
        %v1163 = vunpack.c.l.b16 %v966
        %v1164 = vunpack.c.h.b16 %v966
        %v1165 = vunpack.c.l.b16 %v967
        %v1166 = vunpack.c.h.b16 %v967
        %v1167 = vunpack.c.l.b16 %v968
        %v1168 = vunpack.c.h.b16 %v968
        %v1169 = vunpack.c.l.b16 %v969
        %v1170 = vunpack.c.h.b16 %v969
        %v1171 = vunpack.c.l.b16 %v970
        %v1172 = vunpack.c.h.b16 %v970
        %v1173 = vunpack.c.l.b16 %v971
        %v1174 = vunpack.c.h.b16 %v971
        %v1175 = vunpack.c.l.b16 %v972
        %v1176 = vunpack.c.h.b16 %v972
        %v1177 = vunpack.c.l.b16 %v973
        %v1178 = vunpack.c.h.b16 %v973
        %v1179 = vunpack.c.l.b16 %v974
        %v1180 = vunpack.c.h.b16 %v974
        %v1181 = vunpack.c.l.b16 %v975
        %v1182 = vunpack.c.h.b16 %v975
        %v1183 = vunpack.c.l.b16 %v976
        %v1184 = vunpack.c.h.b16 %v976
        %v1185 = vunpack.c.l.b16 %v977
        %v1186 = vunpack.c.h.b16 %v977
        %v1187 = vunpack.c.l.b16 %v978
        %v1188 = vunpack.c.h.b16 %v978
        %v1189 = vunpack.c.l.b16 %v979
        %v1190 = vunpack.c.h.b16 %v979
        %v1191 = vunpack.c.l.b16 %v980
        %v1192 = vunpack.c.h.b16 %v980
        %v1193 = vunpack.c.l.b16 %v981
        %v1194 = vunpack.c.h.b16 %v981
        %v1195 = vunpack.c.l.b16 %v982
        %v1196 = vunpack.c.h.b16 %v982
        %v1197 = vunpack.c.l.b16 %v983
        %v1198 = vunpack.c.h.b16 %v983
        %v1199 = vunpack.c.l.b16 %v984
        %v1200 = vunpack.c.h.b16 %v984
        %v1201 = vunpack.c.l.b16 %v985
        %v1202 = vunpack.c.h.b16 %v985
        %v1203 = vunpack.c.l.b16 %v986
        %v1204 = vunpack.c.h.b16 %v986
        %v1205 = vunpack.c.l.b16 %v987
        %v1206 = vunpack.c.h.b16 %v987
        %v1207 = vunpack.c.l.b16 %v988
        %v1208 = vunpack.c.h.b16 %v988
        %v1209 = vunpack.c.l.b16 %v989
        %v1210 = vunpack.c.h.b16 %v989
        %v1211 = vunpack.c.l.b16 %v990
        %v1212 = vunpack.c.h.b16 %v990
        %v1213 = vunpack.c.l.b16 %v991
        %v1214 = vunpack.c.h.b16 %v991
        %v1215 = vunpack.c.l.b16 %v992
        %v1216 = vunpack.c.h.b16 %v992
        %v1217 = vunpack.c.l.b16 %v993
        %v1218 = vunpack.c.h.b16 %v993
        %v1219 = vunpack.c.l.b16 %v994
        %v1220 = vunpack.c.h.b16 %v994
        %v1221 = vunpack.c.l.b16 %v995
        %v1222 = vunpack.c.h.b16 %v995
        %v1223 = vunpack.c.l.b16 %v996
        %v1224 = vunpack.c.h.b16 %v996
        %v1225 = vunpack.c.l.b16 %v997
        %v1226 = vunpack.c.h.b16 %v997
        %v1227 = vunpack.c.l.b16 %v998
        %v1228 = vunpack.c.h.b16 %v998
        %v1229 = vunpack.c.l.b16 %v999
        %v1230 = vunpack.c.h.b16 %v999
        %v1231 = vunpack.c.l.b16 %v1000
        %v1232 = vunpack.c.h.b16 %v1000
        %v1233 = vunpack.c.l.b16 %v1001
        %v1234 = vunpack.c.h.b16 %v1001
        %v1235 = vunpack.c.l.b16 %v1002
        %v1236 = vunpack.c.h.b16 %v1002
        %v1237 = vunpack.c.l.b16 %v1003
        %v1238 = vunpack.c.h.b16 %v1003
        %v1239 = vunpack.c.l.b16 %v1004
        %v1240 = vunpack.c.h.b16 %v1004
        %v1241 = vunpack.c.l.b16 %v1005
        %v1242 = vunpack.c.h.b16 %v1005
        %v1243 = vunpack.c.l.b16 %v1006
        %v1244 = vunpack.c.h.b16 %v1006
        %v1245 = vunpack.c.l.b16 %v1007
        %v1246 = vunpack.c.h.b16 %v1007
        %v1247 = vunpack.c.l.b16 %v1008
        %v1248 = vunpack.c.h.b16 %v1008
        %v1249 = vunpack.c.l.b16 %v1009
        %v1250 = vunpack.c.h.b16 %v1009
        %v1251 = vunpack.c.l.b16 %v1010
        %v1252 = vunpack.c.h.b16 %v1010
        %v1253 = vunpack.c.l.b16 %v1011
        %v1254 = vunpack.c.h.b16 %v1011
        %v1255 = vunpack.c.l.b16 %v1012
        %v1256 = vunpack.c.h.b16 %v1012
        %v1257 = vunpack.c.l.b16 %v1013
        %v1258 = vunpack.c.h.b16 %v1013
        %v1259 = vunpack.c.l.b16 %v1014
        %v1260 = vunpack.c.h.b16 %v1014
        %v1261 = vunpack.c.l.b16 %v1015
        %v1262 = vunpack.c.h.b16 %v1015
        %v1263 = vunpack.c.l.b16 %v1016
        %v1264 = vunpack.c.h.b16 %v1016
        %v1265 = vunpack.c.l.b16 %v1017
        %v1266 = vunpack.c.h.b16 %v1017
        %v1267 = vunpack.c.l.b16 %v1018
        %v1268 = vunpack.c.h.b16 %v1018
        %v1269 = vunpack.c.l.b16 %v1019
        %v1270 = vunpack.c.h.b16 %v1019
        %v1271 = vunpack.c.l.b16 %v1020
        %v1272 = vunpack.c.h.b16 %v1020
        %v1273 = vunpack.c.l.b16 %v1021
        %v1274 = vunpack.c.h.b16 %v1021
        %v1275 = vunpack.c.l.b16 %v1022
        %v1276 = vunpack.c.h.b16 %v1022
        %v1277 = vunpack.c.l.b16 %v1023
        %v1278 = vunpack.c.h.b16 %v1023
        %v1279 = vunpack.c.l.b16 %v1024
        %v1280 = vunpack.c.h.b16 %v1024
        %v1281 = vunpack.c.l.b16 %v1025
        %v1282 = vunpack.c.h.b16 %v1025
        %v1283 = vunpack.c.l.b16 %v1026
        %v1284 = vunpack.c.h.b16 %v1026
        %v1285 = vunpack.c.l.b16 %v1027
        %v1286 = vunpack.c.h.b16 %v1027
        %v1287 = vunpack.c.l.b16 %v1028
        %v1288 = vunpack.c.h.b16 %v1028
        %v1289 = vunpack.c.l.b16 %v1029
        %v1290 = vunpack.c.h.b16 %v1029
        %v1291 = vunpack.c.l.b16 %v1030
        %v1292 = vunpack.c.h.b16 %v1030
        %v1293 = vunpack.c.l.b16 %v1031
        %v1294 = vunpack.c.h.b16 %v1031
        %v1295 = vunpack.c.l.b16 %v1032
        %v1296 = vunpack.c.h.b16 %v1032
        %v1297 = vunpack.c.l.b16 %v1033
        %v1298 = vunpack.c.h.b16 %v1033
        %v1299 = vunpack.c.l.b16 %v1034
        %v1300 = vunpack.c.h.b16 %v1034
        %v1301 = vunpack.c.l.b16 %v1035
        %v1302 = vunpack.c.h.b16 %v1035
        %v1303 = vunpack.c.l.b16 %v1036
        %v1304 = vunpack.c.h.b16 %v1036
        %v1305 = vunpack.c.l.b16 %v1037
        %v1306 = vunpack.c.h.b16 %v1037
        %v1307 = vunpack.c.l.b16 %v1038
        %v1308 = vunpack.c.h.b16 %v1038
        %v1309 = vunpack.c.l.b16 %v1039
        %v1310 = vunpack.c.h.b16 %v1039
        %v1311 = vunpack.c.l.b16 %v1040
        %v1312 = vunpack.c.h.b16 %v1040
        %v1313 = vunpack.c.l.b16 %v1041
        %v1314 = vunpack.c.h.b16 %v1041
        %v1315 = vunpack.c.l.b16 %v1042
        %v1316 = vunpack.c.h.b16 %v1042
        %v1317 = vunpack.c.l.b16 %v1043
        %v1318 = vunpack.c.h.b16 %v1043
        %v1319 = vunpack.c.l.b16 %v1044
        %v1320 = vunpack.c.h.b16 %v1044
        %v1321 = vunpack.c.l.b16 %v1045
        %v1322 = vunpack.c.h.b16 %v1045
        %v1323 = vunpack.c.l.b16 %v1046
        %v1324 = vunpack.c.h.b16 %v1046
        %v1325 = vunpack.c.l.b16 %v1047
        %v1326 = vunpack.c.h.b16 %v1047
        %v1327 = vunpack.c.l.b16 %v1048
        %v1328 = vunpack.c.h.b16 %v1048
        %v1329 = vunpack.c.l.b16 %v1049
        %v1330 = vunpack.c.h.b16 %v1049
        %v1331 = vunpack.c.l.b16 %v1050
        %v1332 = vunpack.c.h.b16 %v1050
        %v1333 = vunpack.c.l.b16 %v1051
        %v1334 = vunpack.c.h.b16 %v1051
        %v1335 = vunpack.c.l.b16 %v1052
        %v1336 = vunpack.c.h.b16 %v1052
        %v1337 = vunpack.c.l.b16 %v1053
        %v1338 = vunpack.c.h.b16 %v1053
        %v1339 = vunpack.c.l.b16 %v1054
        %v1340 = vunpack.c.h.b16 %v1054
        %v1341 = vunpack.c.l.b16 %v1055
        %v1342 = vunpack.c.h.b16 %v1055
        %v1343 = vunpack.c.l.b16 %v1056
        %v1344 = vunpack.c.h.b16 %v1056
        %v1345 = vpack.c.b16 %v1185, %v1153
        %v1346 = vpack.c.b16 %v1186, %v1154
        %v1347 = vpack.c.b16 %v1187, %v1155
        %v1348 = vpack.c.b16 %v1188, %v1156
        %v1349 = vpack.c.b16 %v1189, %v1157
        %v1350 = vpack.c.b16 %v1190, %v1158
        %v1351 = vpack.c.b16 %v1191, %v1159
        %v1352 = vpack.c.b16 %v1192, %v1160
        %v1353 = vpack.c.b16 %v1193, %v1161
        %v1354 = vpack.c.b16 %v1194, %v1162
        %v1355 = vpack.c.b16 %v1195, %v1163
        %v1356 = vpack.c.b16 %v1196, %v1164
        %v1357 = vpack.c.b16 %v1197, %v1165
        %v1358 = vpack.c.b16 %v1198, %v1166
        %v1359 = vpack.c.b16 %v1199, %v1167
        %v1360 = vpack.c.b16 %v1200, %v1168
        %v1361 = vpack.c.b16 %v1201, %v1169
        %v1362 = vpack.c.b16 %v1202, %v1170
        %v1363 = vpack.c.b16 %v1203, %v1171
        %v1364 = vpack.c.b16 %v1204, %v1172
        %v1365 = vpack.c.b16 %v1205, %v1173
        %v1366 = vpack.c.b16 %v1206, %v1174
        %v1367 = vpack.c.b16 %v1207, %v1175
        %v1368 = vpack.c.b16 %v1208, %v1176
        %v1369 = vpack.c.b16 %v1209, %v1177
        %v1370 = vpack.c.b16 %v1210, %v1178
        %v1371 = vpack.c.b16 %v1211, %v1179
        %v1372 = vpack.c.b16 %v1212, %v1180
        %v1373 = vpack.c.b16 %v1213, %v1181
        %v1374 = vpack.c.b16 %v1214, %v1182
        %v1375 = vpack.c.b16 %v1215, %v1183
        %v1376 = vpack.c.b16 %v1216, %v1184
        %v1377 = vpack.c.b16 %v1249, %v1217
        %v1378 = vpack.c.b16 %v1250, %v1218
        %v1379 = vpack.c.b16 %v1251, %v1219
        %v1380 = vpack.c.b16 %v1252, %v1220
        %v1381 = vpack.c.b16 %v1253, %v1221
        %v1382 = vpack.c.b16 %v1254, %v1222
        %v1383 = vpack.c.b16 %v1255, %v1223
        %v1384 = vpack.c.b16 %v1256, %v1224
        %v1385 = vpack.c.b16 %v1257, %v1225
        %v1386 = vpack.c.b16 %v1258, %v1226
        %v1387 = vpack.c.b16 %v1259, %v1227
        %v1388 = vpack.c.b16 %v1260, %v1228
        %v1389 = vpack.c.b16 %v1261, %v1229
        %v1390 = vpack.c.b16 %v1262, %v1230
        %v1391 = vpack.c.b16 %v1263, %v1231
        %v1392 = vpack.c.b16 %v1264, %v1232
        %v1393 = vpack.c.b16 %v1265, %v1233
        %v1394 = vpack.c.b16 %v1266, %v1234
        %v1395 = vpack.c.b16 %v1267, %v1235
        %v1396 = vpack.c.b16 %v1268, %v1236
        %v1397 = vpack.c.b16 %v1269, %v1237
        %v1398 = vpack.c.b16 %v1270, %v1238
        %v1399 = vpack.c.b16 %v1271, %v1239
        %v1400 = vpack.c.b16 %v1272, %v1240
        %v1401 = vpack.c.b16 %v1273, %v1241
        %v1402 = vpack.c.b16 %v1274, %v1242
        %v1403 = vpack.c.b16 %v1275, %v1243
        %v1404 = vpack.c.b16 %v1276, %v1244
        %v1405 = vpack.c.b16 %v1277, %v1245
        %v1406 = vpack.c.b16 %v1278, %v1246
        %v1407 = vpack.c.b16 %v1279, %v1247
        %v1408 = vpack.c.b16 %v1280, %v1248
        %v1409 = vpack.c.b16 %v1313, %v1281
        %v1410 = vpack.c.b16 %v1314, %v1282
        %v1411 = vpack.c.b16 %v1315, %v1283
        %v1412 = vpack.c.b16 %v1316, %v1284
        %v1413 = vpack.c.b16 %v1317, %v1285
        %v1414 = vpack.c.b16 %v1318, %v1286
        %v1415 = vpack.c.b16 %v1319, %v1287
        %v1416 = vpack.c.b16 %v1320, %v1288
        %v1417 = vpack.c.b16 %v1321, %v1289
        %v1418 = vpack.c.b16 %v1322, %v1290
        %v1419 = vpack.c.b16 %v1323, %v1291
        %v1420 = vpack.c.b16 %v1324, %v1292
        %v1421 = vpack.c.b16 %v1325, %v1293
        %v1422 = vpack.c.b16 %v1326, %v1294
        %v1423 = vpack.c.b16 %v1327, %v1295
        %v1424 = vpack.c.b16 %v1328, %v1296
        %v1425 = vpack.c.b16 %v1329, %v1297
        %v1426 = vpack.c.b16 %v1330, %v1298
        %v1427 = vpack.c.b16 %v1331, %v1299
        %v1428 = vpack.c.b16 %v1332, %v1300
        %v1429 = vpack.c.b16 %v1333, %v1301
        %v1430 = vpack.c.b16 %v1334, %v1302
        %v1431 = vpack.c.b16 %v1335, %v1303
        %v1432 = vpack.c.b16 %v1336, %v1304
        %v1433 = vpack.c.b16 %v1337, %v1305
        %v1434 = vpack.c.b16 %v1338, %v1306
        %v1435 = vpack.c.b16 %v1339, %v1307
        %v1436 = vpack.c.b16 %v1340, %v1308
        %v1437 = vpack.c.b16 %v1341, %v1309
        %v1438 = vpack.c.b16 %v1342, %v1310
        %v1439 = vpack.c.b16 %v1343, %v1311
        %v1440 = vpack.c.b16 %v1344, %v1312
        %vm1537 = vcmask 392192
        %v1539 = vsel %vm1537, %v960, 0
        %1541 = vmatprep.subr.bf16.mxu0 0
        %1542 = vmatpush1.bf16.msra.mxu0 0
        %1543 = vmatprep.subr.bf16.mxu0 0
        %1544 = vmatpush1.bf16.msra.mxu0 0
        %1545 = vmatprep.subr.bf16.mxu0 0
        %1546 = vmatpush1.bf16.msra.mxu0 0
        %1547 = vmatprep.subr.bf16.mxu0 0
        %1548 = vmatpush1.bf16.msra.mxu0 0
        %1549 = vmatprep.subr.bf16.mxu0 0
        %1550 = vmatpush1.bf16.msra.mxu0 0
        %1551 = vmatprep.subr.bf16.mxu0 %v1410
        %1552 = vmatpush1.bf16.msra.mxu0 %v1409
        %1553 = vmatprep.subr.bf16.mxu0 %v1378
        %1554 = vmatpush1.bf16.msra.mxu0 %v1377
        %1555 = vmatprep.subr.bf16.mxu0 %v1346
        %1556 = vmatpush1.bf16.msra.mxu0 %v1345
        %1557 = vmatprep.subr.bf16.mxu0 0
        %1558 = vmatpush2.bf16.msra.mxu0 0
        %1559 = vmatprep.subr.bf16.mxu0 0
        %1560 = vmatpush2.bf16.msra.mxu0 0
        %1561 = vmatprep.subr.bf16.mxu0 0
        %1562 = vmatpush2.bf16.msra.mxu0 0
        %1563 = vmatprep.subr.bf16.mxu0 0
        %1564 = vmatpush2.bf16.msra.mxu0 0
        %1565 = vmatprep.subr.bf16.mxu0 0
        %1566 = vmatpush2.bf16.msra.mxu0 0
        %1567 = vmatprep.subr.bf16.mxu0 0
        %1568 = vmatpush2.bf16.msra.mxu0 0
        %1569 = vmatprep.subr.bf16.mxu0 0
        %1570 = vmatpush2.bf16.msra.mxu0 0
        %1571 = vmatprep.subr.bf16.mxu0 0
        %1572 = vmatpush2.bf16.msra.mxu0 0
        %1573 = vmatprep.mubr.bf16.mxu0 0
        %1574 = vmatmul.mubr.bf16.gmra.mxu0 %v1539
        %v1575 = vpop.f32.mrf.mxu0
        %v1576 = vadd.f32 0.0, %v1575
        %v1577 = vpop.f32.mrf.mxu0
        %v1578 = vadd.f32 0.0, %v1577
        %v1579 = vpop.f32.mrf.mxu0
        %v1580 = vpop.f32.mrf.mxu0
        %1581 = vdwg.mxu0
        %1582 = vmatprep.subr.bf16.mxu0 0
        %1583 = vmatpush1.bf16.msra.mxu0 0
        %1584 = vmatprep.subr.bf16.mxu0 0
        %1585 = vmatpush1.bf16.msra.mxu0 0
        %1586 = vmatprep.subr.bf16.mxu0 0
        %1587 = vmatpush1.bf16.msra.mxu0 0
        %1588 = vmatprep.subr.bf16.mxu0 0
        %1589 = vmatpush1.bf16.msra.mxu0 0
        %1590 = vmatprep.subr.bf16.mxu0 0
        %1591 = vmatpush1.bf16.msra.mxu0 0
        %1592 = vmatprep.subr.bf16.mxu0 %v1412
        %1593 = vmatpush1.bf16.msra.mxu0 %v1411
        %1594 = vmatprep.subr.bf16.mxu0 %v1380
        %1595 = vmatpush1.bf16.msra.mxu0 %v1379
        %1596 = vmatprep.subr.bf16.mxu0 %v1348
        %1597 = vmatpush1.bf16.msra.mxu0 %v1347
        %1598 = vmatprep.subr.bf16.mxu0 0
        %1599 = vmatpush2.bf16.msra.mxu0 0
        %1600 = vmatprep.subr.bf16.mxu0 0
        %1601 = vmatpush2.bf16.msra.mxu0 0
        %1602 = vmatprep.subr.bf16.mxu0 0
        %1603 = vmatpush2.bf16.msra.mxu0 0
        %1604 = vmatprep.subr.bf16.mxu0 0
        %1605 = vmatpush2.bf16.msra.mxu0 0
        %1606 = vmatprep.subr.bf16.mxu0 0
        %1607 = vmatpush2.bf16.msra.mxu0 0
        %1608 = vmatprep.subr.bf16.mxu0 0
        %1609 = vmatpush2.bf16.msra.mxu0 0
        %1610 = vmatprep.subr.bf16.mxu0 0
        %1611 = vmatpush2.bf16.msra.mxu0 0
        %1612 = vmatprep.subr.bf16.mxu0 0
        %1613 = vmatpush2.bf16.msra.mxu0 0
        %1614 = vmatprep.mubr.bf16.mxu0 0
        %1615 = vmatmul.mubr.bf16.gmra.mxu0 %v1539
        %v1616 = vpop.f32.mrf.mxu0
        %v1617 = vadd.f32 0.0, %v1616
        %v1618 = vpop.f32.mrf.mxu0
        %v1619 = vadd.f32 0.0, %v1618
        %v1620 = vpop.f32.mrf.mxu0
        %v1621 = vpop.f32.mrf.mxu0
        %1622 = vdwg.mxu0
        %1623 = vmatprep.subr.bf16.mxu0 0
        %1624 = vmatpush1.bf16.msra.mxu0 0
        %1625 = vmatprep.subr.bf16.mxu0 0
        %1626 = vmatpush1.bf16.msra.mxu0 0
        %1627 = vmatprep.subr.bf16.mxu0 0
        %1628 = vmatpush1.bf16.msra.mxu0 0
        %1629 = vmatprep.subr.bf16.mxu0 0
        %1630 = vmatpush1.bf16.msra.mxu0 0
        %1631 = vmatprep.subr.bf16.mxu0 0
        %1632 = vmatpush1.bf16.msra.mxu0 0
        %1633 = vmatprep.subr.bf16.mxu0 %v1414
        %1634 = vmatpush1.bf16.msra.mxu0 %v1413
        %1635 = vmatprep.subr.bf16.mxu0 %v1382
        %1636 = vmatpush1.bf16.msra.mxu0 %v1381
        %1637 = vmatprep.subr.bf16.mxu0 %v1350
        %1638 = vmatpush1.bf16.msra.mxu0 %v1349
        %1639 = vmatprep.subr.bf16.mxu0 0
        %1640 = vmatpush2.bf16.msra.mxu0 0
        %1641 = vmatprep.subr.bf16.mxu0 0
        %1642 = vmatpush2.bf16.msra.mxu0 0
        %1643 = vmatprep.subr.bf16.mxu0 0
        %1644 = vmatpush2.bf16.msra.mxu0 0
        %1645 = vmatprep.subr.bf16.mxu0 0
        %1646 = vmatpush2.bf16.msra.mxu0 0
        %1647 = vmatprep.subr.bf16.mxu0 0
        %1648 = vmatpush2.bf16.msra.mxu0 0
        %1649 = vmatprep.subr.bf16.mxu0 0
        %1650 = vmatpush2.bf16.msra.mxu0 0
        %1651 = vmatprep.subr.bf16.mxu0 0
        %1652 = vmatpush2.bf16.msra.mxu0 0
        %1653 = vmatprep.subr.bf16.mxu0 0
        %1654 = vmatpush2.bf16.msra.mxu0 0
        %1655 = vmatprep.mubr.bf16.mxu0 0
        %1656 = vmatmul.mubr.bf16.gmra.mxu0 %v1539
        %v1657 = vpop.f32.mrf.mxu0
        %v1658 = vadd.f32 0.0, %v1657
        %v1659 = vpop.f32.mrf.mxu0
        %v1660 = vadd.f32 0.0, %v1659
        %v1661 = vpop.f32.mrf.mxu0
        %v1662 = vpop.f32.mrf.mxu0
        %1663 = vdwg.mxu0
        %1664 = vmatprep.subr.bf16.mxu0 0
        %1665 = vmatpush1.bf16.msra.mxu0 0
        %1666 = vmatprep.subr.bf16.mxu0 0
        %1667 = vmatpush1.bf16.msra.mxu0 0
        %1668 = vmatprep.subr.bf16.mxu0 0
        %1669 = vmatpush1.bf16.msra.mxu0 0
        %1670 = vmatprep.subr.bf16.mxu0 0
        %1671 = vmatpush1.bf16.msra.mxu0 0
        %1672 = vmatprep.subr.bf16.mxu0 0
        %1673 = vmatpush1.bf16.msra.mxu0 0
        %1674 = vmatprep.subr.bf16.mxu0 %v1416
        %1675 = vmatpush1.bf16.msra.mxu0 %v1415
        %1676 = vmatprep.subr.bf16.mxu0 %v1384
        %1677 = vmatpush1.bf16.msra.mxu0 %v1383
        %1678 = vmatprep.subr.bf16.mxu0 %v1352
        %1679 = vmatpush1.bf16.msra.mxu0 %v1351
        %1680 = vmatprep.subr.bf16.mxu0 0
        %1681 = vmatpush2.bf16.msra.mxu0 0
        %1682 = vmatprep.subr.bf16.mxu0 0
        %1683 = vmatpush2.bf16.msra.mxu0 0
        %1684 = vmatprep.subr.bf16.mxu0 0
        %1685 = vmatpush2.bf16.msra.mxu0 0
        %1686 = vmatprep.subr.bf16.mxu0 0
        %1687 = vmatpush2.bf16.msra.mxu0 0
        %1688 = vmatprep.subr.bf16.mxu0 0
        %1689 = vmatpush2.bf16.msra.mxu0 0
        %1690 = vmatprep.subr.bf16.mxu0 0
        %1691 = vmatpush2.bf16.msra.mxu0 0
        %1692 = vmatprep.subr.bf16.mxu0 0
        %1693 = vmatpush2.bf16.msra.mxu0 0
        %1694 = vmatprep.subr.bf16.mxu0 0
        %1695 = vmatpush2.bf16.msra.mxu0 0
        %1696 = vmatprep.mubr.bf16.mxu0 0
        %1697 = vmatmul.mubr.bf16.gmra.mxu0 %v1539
        %v1698 = vpop.f32.mrf.mxu0
        %v1699 = vadd.f32 0.0, %v1698
        %v1700 = vpop.f32.mrf.mxu0
        %v1701 = vadd.f32 0.0, %v1700
        %v1702 = vpop.f32.mrf.mxu0
        %v1703 = vpop.f32.mrf.mxu0
        %1704 = vdwg.mxu0
        %1705 = vmatprep.subr.bf16.mxu0 0
        %1706 = vmatpush1.bf16.msra.mxu0 0
        %1707 = vmatprep.subr.bf16.mxu0 0
        %1708 = vmatpush1.bf16.msra.mxu0 0
        %1709 = vmatprep.subr.bf16.mxu0 0
        %1710 = vmatpush1.bf16.msra.mxu0 0
        %1711 = vmatprep.subr.bf16.mxu0 0
        %1712 = vmatpush1.bf16.msra.mxu0 0
        %1713 = vmatprep.subr.bf16.mxu0 0
        %1714 = vmatpush1.bf16.msra.mxu0 0
        %1715 = vmatprep.subr.bf16.mxu0 %v1418
        %1716 = vmatpush1.bf16.msra.mxu0 %v1417
        %1717 = vmatprep.subr.bf16.mxu0 %v1386
        %1718 = vmatpush1.bf16.msra.mxu0 %v1385
        %1719 = vmatprep.subr.bf16.mxu0 %v1354
        %1720 = vmatpush1.bf16.msra.mxu0 %v1353
        %1721 = vmatprep.subr.bf16.mxu0 0
        %1722 = vmatpush2.bf16.msra.mxu0 0
        %1723 = vmatprep.subr.bf16.mxu0 0
        %1724 = vmatpush2.bf16.msra.mxu0 0
        %1725 = vmatprep.subr.bf16.mxu0 0
        %1726 = vmatpush2.bf16.msra.mxu0 0
        %1727 = vmatprep.subr.bf16.mxu0 0
        %1728 = vmatpush2.bf16.msra.mxu0 0
        %1729 = vmatprep.subr.bf16.mxu0 0
        %1730 = vmatpush2.bf16.msra.mxu0 0
        %1731 = vmatprep.subr.bf16.mxu0 0
        %1732 = vmatpush2.bf16.msra.mxu0 0
        %1733 = vmatprep.subr.bf16.mxu0 0
        %1734 = vmatpush2.bf16.msra.mxu0 0
        %1735 = vmatprep.subr.bf16.mxu0 0
        %1736 = vmatpush2.bf16.msra.mxu0 0
        %1737 = vmatprep.mubr.bf16.mxu0 0
        %1738 = vmatmul.mubr.bf16.gmra.mxu0 %v1539
        %v1739 = vpop.f32.mrf.mxu0
        %v1740 = vadd.f32 0.0, %v1739
        %v1741 = vpop.f32.mrf.mxu0
        %v1742 = vadd.f32 0.0, %v1741
        %v1743 = vpop.f32.mrf.mxu0
        %v1744 = vpop.f32.mrf.mxu0
        %1745 = vdwg.mxu0
        %1746 = vmatprep.subr.bf16.mxu0 0
        %1747 = vmatpush1.bf16.msra.mxu0 0
        %1748 = vmatprep.subr.bf16.mxu0 0
        %1749 = vmatpush1.bf16.msra.mxu0 0
        %1750 = vmatprep.subr.bf16.mxu0 0
        %1751 = vmatpush1.bf16.msra.mxu0 0
        %1752 = vmatprep.subr.bf16.mxu0 0
        %1753 = vmatpush1.bf16.msra.mxu0 0
        %1754 = vmatprep.subr.bf16.mxu0 0
        %1755 = vmatpush1.bf16.msra.mxu0 0
        %1756 = vmatprep.subr.bf16.mxu0 %v1420
        %1757 = vmatpush1.bf16.msra.mxu0 %v1419
        %1758 = vmatprep.subr.bf16.mxu0 %v1388
        %1759 = vmatpush1.bf16.msra.mxu0 %v1387
        %1760 = vmatprep.subr.bf16.mxu0 %v1356
        %1761 = vmatpush1.bf16.msra.mxu0 %v1355
        %1762 = vmatprep.subr.bf16.mxu0 0
        %1763 = vmatpush2.bf16.msra.mxu0 0
        %1764 = vmatprep.subr.bf16.mxu0 0
        %1765 = vmatpush2.bf16.msra.mxu0 0
        %1766 = vmatprep.subr.bf16.mxu0 0
        %1767 = vmatpush2.bf16.msra.mxu0 0
        %1768 = vmatprep.subr.bf16.mxu0 0
        %1769 = vmatpush2.bf16.msra.mxu0 0
        %1770 = vmatprep.subr.bf16.mxu0 0
        %1771 = vmatpush2.bf16.msra.mxu0 0
        %1772 = vmatprep.subr.bf16.mxu0 0
        %1773 = vmatpush2.bf16.msra.mxu0 0
        %1774 = vmatprep.subr.bf16.mxu0 0
        %1775 = vmatpush2.bf16.msra.mxu0 0
        %1776 = vmatprep.subr.bf16.mxu0 0
        %1777 = vmatpush2.bf16.msra.mxu0 0
        %1778 = vmatprep.mubr.bf16.mxu0 0
        %1779 = vmatmul.mubr.bf16.gmra.mxu0 %v1539
        %v1780 = vpop.f32.mrf.mxu0
        %v1781 = vadd.f32 0.0, %v1780
        %v1782 = vpop.f32.mrf.mxu0
        %v1783 = vadd.f32 0.0, %v1782
        %v1784 = vpop.f32.mrf.mxu0
        %v1785 = vpop.f32.mrf.mxu0
        %1786 = vdwg.mxu0
        %1787 = vmatprep.subr.bf16.mxu0 0
        %1788 = vmatpush1.bf16.msra.mxu0 0
        %1789 = vmatprep.subr.bf16.mxu0 0
        %1790 = vmatpush1.bf16.msra.mxu0 0
        %1791 = vmatprep.subr.bf16.mxu0 0
        %1792 = vmatpush1.bf16.msra.mxu0 0
        %1793 = vmatprep.subr.bf16.mxu0 0
        %1794 = vmatpush1.bf16.msra.mxu0 0
        %1795 = vmatprep.subr.bf16.mxu0 0
        %1796 = vmatpush1.bf16.msra.mxu0 0
        %1797 = vmatprep.subr.bf16.mxu0 %v1422
        %1798 = vmatpush1.bf16.msra.mxu0 %v1421
        %1799 = vmatprep.subr.bf16.mxu0 %v1390
        %1800 = vmatpush1.bf16.msra.mxu0 %v1389
        %1801 = vmatprep.subr.bf16.mxu0 %v1358
        %1802 = vmatpush1.bf16.msra.mxu0 %v1357
        %1803 = vmatprep.subr.bf16.mxu0 0
        %1804 = vmatpush2.bf16.msra.mxu0 0
        %1805 = vmatprep.subr.bf16.mxu0 0
        %1806 = vmatpush2.bf16.msra.mxu0 0
        %1807 = vmatprep.subr.bf16.mxu0 0
        %1808 = vmatpush2.bf16.msra.mxu0 0
        %1809 = vmatprep.subr.bf16.mxu0 0
        %1810 = vmatpush2.bf16.msra.mxu0 0
        %1811 = vmatprep.subr.bf16.mxu0 0
        %1812 = vmatpush2.bf16.msra.mxu0 0
        %1813 = vmatprep.subr.bf16.mxu0 0
        %1814 = vmatpush2.bf16.msra.mxu0 0
        %1815 = vmatprep.subr.bf16.mxu0 0
        %1816 = vmatpush2.bf16.msra.mxu0 0
        %1817 = vmatprep.subr.bf16.mxu0 0
        %1818 = vmatpush2.bf16.msra.mxu0 0
        %1819 = vmatprep.mubr.bf16.mxu0 0
        %1820 = vmatmul.mubr.bf16.gmra.mxu0 %v1539
        %v1821 = vpop.f32.mrf.mxu0
        %v1822 = vadd.f32 0.0, %v1821
        %v1823 = vpop.f32.mrf.mxu0
        %v1824 = vadd.f32 0.0, %v1823
        %v1825 = vpop.f32.mrf.mxu0
        %v1826 = vpop.f32.mrf.mxu0
        %1827 = vdwg.mxu0
        %1828 = vmatprep.subr.bf16.mxu0 0
        %1829 = vmatpush1.bf16.msra.mxu0 0
        %1830 = vmatprep.subr.bf16.mxu0 0
        %1831 = vmatpush1.bf16.msra.mxu0 0
        %1832 = vmatprep.subr.bf16.mxu0 0
        %1833 = vmatpush1.bf16.msra.mxu0 0
        %1834 = vmatprep.subr.bf16.mxu0 0
        %1835 = vmatpush1.bf16.msra.mxu0 0
        %1836 = vmatprep.subr.bf16.mxu0 0
        %1837 = vmatpush1.bf16.msra.mxu0 0
        %1838 = vmatprep.subr.bf16.mxu0 %v1424
        %1839 = vmatpush1.bf16.msra.mxu0 %v1423
        %1840 = vmatprep.subr.bf16.mxu0 %v1392
        %1841 = vmatpush1.bf16.msra.mxu0 %v1391
        %1842 = vmatprep.subr.bf16.mxu0 %v1360
        %1843 = vmatpush1.bf16.msra.mxu0 %v1359
        %1844 = vmatprep.subr.bf16.mxu0 0
        %1845 = vmatpush2.bf16.msra.mxu0 0
        %1846 = vmatprep.subr.bf16.mxu0 0
        %1847 = vmatpush2.bf16.msra.mxu0 0
        %1848 = vmatprep.subr.bf16.mxu0 0
        %1849 = vmatpush2.bf16.msra.mxu0 0
        %1850 = vmatprep.subr.bf16.mxu0 0
        %1851 = vmatpush2.bf16.msra.mxu0 0
        %1852 = vmatprep.subr.bf16.mxu0 0
        %1853 = vmatpush2.bf16.msra.mxu0 0
        %1854 = vmatprep.subr.bf16.mxu0 0
        %1855 = vmatpush2.bf16.msra.mxu0 0
        %1856 = vmatprep.subr.bf16.mxu0 0
        %1857 = vmatpush2.bf16.msra.mxu0 0
        %1858 = vmatprep.subr.bf16.mxu0 0
        %1859 = vmatpush2.bf16.msra.mxu0 0
        %1860 = vmatprep.mubr.bf16.mxu0 0
        %1861 = vmatmul.mubr.bf16.gmra.mxu0 %v1539
        %v1862 = vpop.f32.mrf.mxu0
        %v1863 = vadd.f32 0.0, %v1862
        %v1864 = vpop.f32.mrf.mxu0
        %v1865 = vadd.f32 0.0, %v1864
        %v1866 = vpop.f32.mrf.mxu0
        %v1867 = vpop.f32.mrf.mxu0
        %1868 = vdwg.mxu0
        %1869 = vmatprep.subr.bf16.mxu0 0
        %1870 = vmatpush1.bf16.msra.mxu0 0
        %1871 = vmatprep.subr.bf16.mxu0 0
        %1872 = vmatpush1.bf16.msra.mxu0 0
        %1873 = vmatprep.subr.bf16.mxu0 0
        %1874 = vmatpush1.bf16.msra.mxu0 0
        %1875 = vmatprep.subr.bf16.mxu0 0
        %1876 = vmatpush1.bf16.msra.mxu0 0
        %1877 = vmatprep.subr.bf16.mxu0 0
        %1878 = vmatpush1.bf16.msra.mxu0 0
        %1879 = vmatprep.subr.bf16.mxu0 %v1426
        %1880 = vmatpush1.bf16.msra.mxu0 %v1425
        %1881 = vmatprep.subr.bf16.mxu0 %v1394
        %1882 = vmatpush1.bf16.msra.mxu0 %v1393
        %1883 = vmatprep.subr.bf16.mxu0 %v1362
        %1884 = vmatpush1.bf16.msra.mxu0 %v1361
        %1885 = vmatprep.subr.bf16.mxu0 0
        %1886 = vmatpush2.bf16.msra.mxu0 0
        %1887 = vmatprep.subr.bf16.mxu0 0
        %1888 = vmatpush2.bf16.msra.mxu0 0
        %1889 = vmatprep.subr.bf16.mxu0 0
        %1890 = vmatpush2.bf16.msra.mxu0 0
        %1891 = vmatprep.subr.bf16.mxu0 0
        %1892 = vmatpush2.bf16.msra.mxu0 0
        %1893 = vmatprep.subr.bf16.mxu0 0
        %1894 = vmatpush2.bf16.msra.mxu0 0
        %1895 = vmatprep.subr.bf16.mxu0 0
        %1896 = vmatpush2.bf16.msra.mxu0 0
        %1897 = vmatprep.subr.bf16.mxu0 0
        %1898 = vmatpush2.bf16.msra.mxu0 0
        %1899 = vmatprep.subr.bf16.mxu0 0
        %1900 = vmatpush2.bf16.msra.mxu0 0
        %1901 = vmatprep.mubr.bf16.mxu0 0
        %1902 = vmatmul.mubr.bf16.gmra.mxu0 %v1539
        %v1903 = vpop.f32.mrf.mxu0
        %v1904 = vadd.f32 0.0, %v1903
        %v1905 = vpop.f32.mrf.mxu0
        %v1906 = vadd.f32 0.0, %v1905
        %v1907 = vpop.f32.mrf.mxu0
        %v1908 = vpop.f32.mrf.mxu0
        %1909 = vdwg.mxu0
        %1910 = vmatprep.subr.bf16.mxu0 0
        %1911 = vmatpush1.bf16.msra.mxu0 0
        %1912 = vmatprep.subr.bf16.mxu0 0
        %1913 = vmatpush1.bf16.msra.mxu0 0
        %1914 = vmatprep.subr.bf16.mxu0 0
        %1915 = vmatpush1.bf16.msra.mxu0 0
        %1916 = vmatprep.subr.bf16.mxu0 0
        %1917 = vmatpush1.bf16.msra.mxu0 0
        %1918 = vmatprep.subr.bf16.mxu0 0
        %1919 = vmatpush1.bf16.msra.mxu0 0
        %1920 = vmatprep.subr.bf16.mxu0 %v1428
        %1921 = vmatpush1.bf16.msra.mxu0 %v1427
        %1922 = vmatprep.subr.bf16.mxu0 %v1396
        %1923 = vmatpush1.bf16.msra.mxu0 %v1395
        %1924 = vmatprep.subr.bf16.mxu0 %v1364
        %1925 = vmatpush1.bf16.msra.mxu0 %v1363
        %1926 = vmatprep.subr.bf16.mxu0 0
        %1927 = vmatpush2.bf16.msra.mxu0 0
        %1928 = vmatprep.subr.bf16.mxu0 0
        %1929 = vmatpush2.bf16.msra.mxu0 0
        %1930 = vmatprep.subr.bf16.mxu0 0
        %1931 = vmatpush2.bf16.msra.mxu0 0
        %1932 = vmatprep.subr.bf16.mxu0 0
        %1933 = vmatpush2.bf16.msra.mxu0 0
        %1934 = vmatprep.subr.bf16.mxu0 0
        %1935 = vmatpush2.bf16.msra.mxu0 0
        %1936 = vmatprep.subr.bf16.mxu0 0
        %1937 = vmatpush2.bf16.msra.mxu0 0
        %1938 = vmatprep.subr.bf16.mxu0 0
        %1939 = vmatpush2.bf16.msra.mxu0 0
        %1940 = vmatprep.subr.bf16.mxu0 0
        %1941 = vmatpush2.bf16.msra.mxu0 0
        %1942 = vmatprep.mubr.bf16.mxu0 0
        %1943 = vmatmul.mubr.bf16.gmra.mxu0 %v1539
        %v1944 = vpop.f32.mrf.mxu0
        %v1945 = vadd.f32 0.0, %v1944
        %v1946 = vpop.f32.mrf.mxu0
        %v1947 = vadd.f32 0.0, %v1946
        %v1948 = vpop.f32.mrf.mxu0
        %v1949 = vpop.f32.mrf.mxu0
        %1950 = vdwg.mxu0
        %1951 = vmatprep.subr.bf16.mxu0 0
        %1952 = vmatpush1.bf16.msra.mxu0 0
        %1953 = vmatprep.subr.bf16.mxu0 0
        %1954 = vmatpush1.bf16.msra.mxu0 0
        %1955 = vmatprep.subr.bf16.mxu0 0
        %1956 = vmatpush1.bf16.msra.mxu0 0
        %1957 = vmatprep.subr.bf16.mxu0 0
        %1958 = vmatpush1.bf16.msra.mxu0 0
        %1959 = vmatprep.subr.bf16.mxu0 0
        %1960 = vmatpush1.bf16.msra.mxu0 0
        %1961 = vmatprep.subr.bf16.mxu0 %v1430
        %1962 = vmatpush1.bf16.msra.mxu0 %v1429
        %1963 = vmatprep.subr.bf16.mxu0 %v1398
        %1964 = vmatpush1.bf16.msra.mxu0 %v1397
        %1965 = vmatprep.subr.bf16.mxu0 %v1366
        %1966 = vmatpush1.bf16.msra.mxu0 %v1365
        %1967 = vmatprep.subr.bf16.mxu0 0
        %1968 = vmatpush2.bf16.msra.mxu0 0
        %1969 = vmatprep.subr.bf16.mxu0 0
        %1970 = vmatpush2.bf16.msra.mxu0 0
        %1971 = vmatprep.subr.bf16.mxu0 0
        %1972 = vmatpush2.bf16.msra.mxu0 0
        %1973 = vmatprep.subr.bf16.mxu0 0
        %1974 = vmatpush2.bf16.msra.mxu0 0
        %1975 = vmatprep.subr.bf16.mxu0 0
        %1976 = vmatpush2.bf16.msra.mxu0 0
        %1977 = vmatprep.subr.bf16.mxu0 0
        %1978 = vmatpush2.bf16.msra.mxu0 0
        %1979 = vmatprep.subr.bf16.mxu0 0
        %1980 = vmatpush2.bf16.msra.mxu0 0
        %1981 = vmatprep.subr.bf16.mxu0 0
        %1982 = vmatpush2.bf16.msra.mxu0 0
        %1983 = vmatprep.mubr.bf16.mxu0 0
        %1984 = vmatmul.mubr.bf16.gmra.mxu0 %v1539
        %v1985 = vpop.f32.mrf.mxu0
        %v1986 = vadd.f32 0.0, %v1985
        %v1987 = vpop.f32.mrf.mxu0
        %v1988 = vadd.f32 0.0, %v1987
        %v1989 = vpop.f32.mrf.mxu0
        %v1990 = vpop.f32.mrf.mxu0
        %1991 = vdwg.mxu0
        %1992 = vmatprep.subr.bf16.mxu0 0
        %1993 = vmatpush1.bf16.msra.mxu0 0
        %1994 = vmatprep.subr.bf16.mxu0 0
        %1995 = vmatpush1.bf16.msra.mxu0 0
        %1996 = vmatprep.subr.bf16.mxu0 0
        %1997 = vmatpush1.bf16.msra.mxu0 0
        %1998 = vmatprep.subr.bf16.mxu0 0
        %1999 = vmatpush1.bf16.msra.mxu0 0
        %2000 = vmatprep.subr.bf16.mxu0 0
        %2001 = vmatpush1.bf16.msra.mxu0 0
        %2002 = vmatprep.subr.bf16.mxu0 %v1432
        %2003 = vmatpush1.bf16.msra.mxu0 %v1431
        %2004 = vmatprep.subr.bf16.mxu0 %v1400
        %2005 = vmatpush1.bf16.msra.mxu0 %v1399
        %2006 = vmatprep.subr.bf16.mxu0 %v1368
        %2007 = vmatpush1.bf16.msra.mxu0 %v1367
        %2008 = vmatprep.subr.bf16.mxu0 0
        %2009 = vmatpush2.bf16.msra.mxu0 0
        %2010 = vmatprep.subr.bf16.mxu0 0
        %2011 = vmatpush2.bf16.msra.mxu0 0
        %2012 = vmatprep.subr.bf16.mxu0 0
        %2013 = vmatpush2.bf16.msra.mxu0 0
        %2014 = vmatprep.subr.bf16.mxu0 0
        %2015 = vmatpush2.bf16.msra.mxu0 0
        %2016 = vmatprep.subr.bf16.mxu0 0
        %2017 = vmatpush2.bf16.msra.mxu0 0
        %2018 = vmatprep.subr.bf16.mxu0 0
        %2019 = vmatpush2.bf16.msra.mxu0 0
        %2020 = vmatprep.subr.bf16.mxu0 0
        %2021 = vmatpush2.bf16.msra.mxu0 0
        %2022 = vmatprep.subr.bf16.mxu0 0
        %2023 = vmatpush2.bf16.msra.mxu0 0
        %2024 = vmatprep.mubr.bf16.mxu0 0
        %2025 = vmatmul.mubr.bf16.gmra.mxu0 %v1539
        %v2026 = vpop.f32.mrf.mxu0
        %v2027 = vadd.f32 0.0, %v2026
        %v2028 = vpop.f32.mrf.mxu0
        %v2029 = vadd.f32 0.0, %v2028
        %v2030 = vpop.f32.mrf.mxu0
        %v2031 = vpop.f32.mrf.mxu0
        %2032 = vdwg.mxu0
        %2033 = vmatprep.subr.bf16.mxu0 0
        %2034 = vmatpush1.bf16.msra.mxu0 0
        %2035 = vmatprep.subr.bf16.mxu0 0
        %2036 = vmatpush1.bf16.msra.mxu0 0
        %2037 = vmatprep.subr.bf16.mxu0 0
        %2038 = vmatpush1.bf16.msra.mxu0 0
        %2039 = vmatprep.subr.bf16.mxu0 0
        %2040 = vmatpush1.bf16.msra.mxu0 0
        %2041 = vmatprep.subr.bf16.mxu0 0
        %2042 = vmatpush1.bf16.msra.mxu0 0
        %2043 = vmatprep.subr.bf16.mxu0 %v1434
        %2044 = vmatpush1.bf16.msra.mxu0 %v1433
        %2045 = vmatprep.subr.bf16.mxu0 %v1402
        %2046 = vmatpush1.bf16.msra.mxu0 %v1401
        %2047 = vmatprep.subr.bf16.mxu0 %v1370
        %2048 = vmatpush1.bf16.msra.mxu0 %v1369
        %2049 = vmatprep.subr.bf16.mxu0 0
        %2050 = vmatpush2.bf16.msra.mxu0 0
        %2051 = vmatprep.subr.bf16.mxu0 0
        %2052 = vmatpush2.bf16.msra.mxu0 0
        %2053 = vmatprep.subr.bf16.mxu0 0
        %2054 = vmatpush2.bf16.msra.mxu0 0
        %2055 = vmatprep.subr.bf16.mxu0 0
        %2056 = vmatpush2.bf16.msra.mxu0 0
        %2057 = vmatprep.subr.bf16.mxu0 0
        %2058 = vmatpush2.bf16.msra.mxu0 0
        %2059 = vmatprep.subr.bf16.mxu0 0
        %2060 = vmatpush2.bf16.msra.mxu0 0
        %2061 = vmatprep.subr.bf16.mxu0 0
        %2062 = vmatpush2.bf16.msra.mxu0 0
        %2063 = vmatprep.subr.bf16.mxu0 0
        %2064 = vmatpush2.bf16.msra.mxu0 0
        %2065 = vmatprep.mubr.bf16.mxu0 0
        %2066 = vmatmul.mubr.bf16.gmra.mxu0 %v1539
        %v2067 = vpop.f32.mrf.mxu0
        %v2068 = vadd.f32 0.0, %v2067
        %v2069 = vpop.f32.mrf.mxu0
        %v2070 = vadd.f32 0.0, %v2069
        %v2071 = vpop.f32.mrf.mxu0
        %v2072 = vpop.f32.mrf.mxu0
        %2073 = vdwg.mxu0
        %2074 = vmatprep.subr.bf16.mxu0 0
        %2075 = vmatpush1.bf16.msra.mxu0 0
        %2076 = vmatprep.subr.bf16.mxu0 0
        %2077 = vmatpush1.bf16.msra.mxu0 0
        %2078 = vmatprep.subr.bf16.mxu0 0
        %2079 = vmatpush1.bf16.msra.mxu0 0
        %2080 = vmatprep.subr.bf16.mxu0 0
        %2081 = vmatpush1.bf16.msra.mxu0 0
        %2082 = vmatprep.subr.bf16.mxu0 0
        %2083 = vmatpush1.bf16.msra.mxu0 0
        %2084 = vmatprep.subr.bf16.mxu0 %v1436
        %2085 = vmatpush1.bf16.msra.mxu0 %v1435
        %2086 = vmatprep.subr.bf16.mxu0 %v1404
        %2087 = vmatpush1.bf16.msra.mxu0 %v1403
        %2088 = vmatprep.subr.bf16.mxu0 %v1372
        %2089 = vmatpush1.bf16.msra.mxu0 %v1371
        %2090 = vmatprep.subr.bf16.mxu0 0
        %2091 = vmatpush2.bf16.msra.mxu0 0
        %2092 = vmatprep.subr.bf16.mxu0 0
        %2093 = vmatpush2.bf16.msra.mxu0 0
        %2094 = vmatprep.subr.bf16.mxu0 0
        %2095 = vmatpush2.bf16.msra.mxu0 0
        %2096 = vmatprep.subr.bf16.mxu0 0
        %2097 = vmatpush2.bf16.msra.mxu0 0
        %2098 = vmatprep.subr.bf16.mxu0 0
        %2099 = vmatpush2.bf16.msra.mxu0 0
        %2100 = vmatprep.subr.bf16.mxu0 0
        %2101 = vmatpush2.bf16.msra.mxu0 0
        %2102 = vmatprep.subr.bf16.mxu0 0
        %2103 = vmatpush2.bf16.msra.mxu0 0
        %2104 = vmatprep.subr.bf16.mxu0 0
        %2105 = vmatpush2.bf16.msra.mxu0 0
        %2106 = vmatprep.mubr.bf16.mxu0 0
        %2107 = vmatmul.mubr.bf16.gmra.mxu0 %v1539
        %v2108 = vpop.f32.mrf.mxu0
        %v2109 = vadd.f32 0.0, %v2108
        %v2110 = vpop.f32.mrf.mxu0
        %v2111 = vadd.f32 0.0, %v2110
        %v2112 = vpop.f32.mrf.mxu0
        %v2113 = vpop.f32.mrf.mxu0
        %2114 = vdwg.mxu0
        %2115 = vmatprep.subr.bf16.mxu0 0
        %2116 = vmatpush1.bf16.msra.mxu0 0
        %2117 = vmatprep.subr.bf16.mxu0 0
        %2118 = vmatpush1.bf16.msra.mxu0 0
        %2119 = vmatprep.subr.bf16.mxu0 0
        %2120 = vmatpush1.bf16.msra.mxu0 0
        %2121 = vmatprep.subr.bf16.mxu0 0
        %2122 = vmatpush1.bf16.msra.mxu0 0
        %2123 = vmatprep.subr.bf16.mxu0 0
        %2124 = vmatpush1.bf16.msra.mxu0 0
        %2125 = vmatprep.subr.bf16.mxu0 %v1438
        %2126 = vmatpush1.bf16.msra.mxu0 %v1437
        %2127 = vmatprep.subr.bf16.mxu0 %v1406
        %2128 = vmatpush1.bf16.msra.mxu0 %v1405
        %2129 = vmatprep.subr.bf16.mxu0 %v1374
        %2130 = vmatpush1.bf16.msra.mxu0 %v1373
        %2131 = vmatprep.subr.bf16.mxu0 0
        %2132 = vmatpush2.bf16.msra.mxu0 0
        %2133 = vmatprep.subr.bf16.mxu0 0
        %2134 = vmatpush2.bf16.msra.mxu0 0
        %2135 = vmatprep.subr.bf16.mxu0 0
        %2136 = vmatpush2.bf16.msra.mxu0 0
        %2137 = vmatprep.subr.bf16.mxu0 0
        %2138 = vmatpush2.bf16.msra.mxu0 0
        %2139 = vmatprep.subr.bf16.mxu0 0
        %2140 = vmatpush2.bf16.msra.mxu0 0
        %2141 = vmatprep.subr.bf16.mxu0 0
        %2142 = vmatpush2.bf16.msra.mxu0 0
        %2143 = vmatprep.subr.bf16.mxu0 0
        %2144 = vmatpush2.bf16.msra.mxu0 0
        %2145 = vmatprep.subr.bf16.mxu0 0
        %2146 = vmatpush2.bf16.msra.mxu0 0
        %2147 = vmatprep.mubr.bf16.mxu0 0
        %2148 = vmatmul.mubr.bf16.gmra.mxu0 %v1539
        %v2149 = vpop.f32.mrf.mxu0
        %v2150 = vadd.f32 0.0, %v2149
        %v2151 = vpop.f32.mrf.mxu0
        %v2152 = vadd.f32 0.0, %v2151
        %v2153 = vpop.f32.mrf.mxu0
        %v2154 = vpop.f32.mrf.mxu0
        %2155 = vdwg.mxu0
        %2156 = vmatprep.subr.bf16.mxu0 0
        %2157 = vmatpush1.bf16.msra.mxu0 0
        %2158 = vmatprep.subr.bf16.mxu0 0
        %2159 = vmatpush1.bf16.msra.mxu0 0
        %2160 = vmatprep.subr.bf16.mxu0 0
        %2161 = vmatpush1.bf16.msra.mxu0 0
        %2162 = vmatprep.subr.bf16.mxu0 0
        %2163 = vmatpush1.bf16.msra.mxu0 0
        %2164 = vmatprep.subr.bf16.mxu0 0
        %2165 = vmatpush1.bf16.msra.mxu0 0
        %2166 = vmatprep.subr.bf16.mxu0 %v1440
        %2167 = vmatpush1.bf16.msra.mxu0 %v1439
        %2168 = vmatprep.subr.bf16.mxu0 %v1408
        %2169 = vmatpush1.bf16.msra.mxu0 %v1407
        %2170 = vmatprep.subr.bf16.mxu0 %v1376
        %2171 = vmatpush1.bf16.msra.mxu0 %v1375
        %2172 = vmatprep.subr.bf16.mxu0 0
        %2173 = vmatpush2.bf16.msra.mxu0 0
        %2174 = vmatprep.subr.bf16.mxu0 0
        %2175 = vmatpush2.bf16.msra.mxu0 0
        %2176 = vmatprep.subr.bf16.mxu0 0
        %2177 = vmatpush2.bf16.msra.mxu0 0
        %2178 = vmatprep.subr.bf16.mxu0 0
        %2179 = vmatpush2.bf16.msra.mxu0 0
        %2180 = vmatprep.subr.bf16.mxu0 0
        %2181 = vmatpush2.bf16.msra.mxu0 0
        %2182 = vmatprep.subr.bf16.mxu0 0
        %2183 = vmatpush2.bf16.msra.mxu0 0
        %2184 = vmatprep.subr.bf16.mxu0 0
        %2185 = vmatpush2.bf16.msra.mxu0 0
        %2186 = vmatprep.subr.bf16.mxu0 0
        %2187 = vmatpush2.bf16.msra.mxu0 0
        %2188 = vmatprep.mubr.bf16.mxu0 0
        %2189 = vmatmul.mubr.bf16.gmra.mxu0 %v1539
        %v2190 = vpop.f32.mrf.mxu0
        %v2191 = vadd.f32 0.0, %v2190
        %v2192 = vpop.f32.mrf.mxu0
        %v2193 = vadd.f32 0.0, %v2192
        %v2194 = vpop.f32.mrf.mxu0
        %v2195 = vpop.f32.mrf.mxu0
        %2196 = vdwg.mxu0
        %s2197 = scalar_lea.vmem %s931, 768 [#allocation2]
        %v2198 = vld [vmem:[%s2197] sm:$0xff]
        %v2199 = vld [vmem:[%s2197 + $0x8] sm:$0xff]
        %v2200 = vld [vmem:[%s2197 + $0x10] sm:$0xff]
        %v2201 = vld [vmem:[%s2197 + $0x18] sm:$0xff]
        %v2202 = vld [vmem:[%s2197 + $0x20] sm:$0xff]
        %v2203 = vld [vmem:[%s2197 + $0x28] sm:$0xff]
        %v2204 = vld [vmem:[%s2197 + $0x30] sm:$0xff]
        %v2205 = vld [vmem:[%s2197 + $0x38] sm:$0xff]
        %v2206 = vld [vmem:[%s2197 + $0x40] sm:$0xff]
        %v2207 = vld [vmem:[%s2197 + $0x48] sm:$0xff]
        %v2208 = vld [vmem:[%s2197 + $0x50] sm:$0xff]
        %v2209 = vld [vmem:[%s2197 + $0x58] sm:$0xff]
        %v2210 = vld [vmem:[%s2197 + $0x60] sm:$0xff]
        %v2211 = vld [vmem:[%s2197 + $0x68] sm:$0xff]
        %v2212 = vld [vmem:[%s2197 + $0x70] sm:$0xff]
        %v2213 = vld [vmem:[%s2197 + $0x78] sm:$0xff]
        %v2214 = vld [vmem:[%s2197 + $0x80] sm:$0xff]
        %v2215 = vld [vmem:[%s2197 + $0x88] sm:$0xff]
        %v2216 = vld [vmem:[%s2197 + $0x90] sm:$0xff]
        %v2217 = vld [vmem:[%s2197 + $0x98] sm:$0xff]
        %v2218 = vld [vmem:[%s2197 + $0xa0] sm:$0xff]
        %v2219 = vld [vmem:[%s2197 + $0xa8] sm:$0xff]
        %v2220 = vld [vmem:[%s2197 + $0xb0] sm:$0xff]
        %v2221 = vld [vmem:[%s2197 + $0xb8] sm:$0xff]
        %v2222 = vld [vmem:[%s2197 + $0xc0] sm:$0xff]
        %v2223 = vld [vmem:[%s2197 + $0xc8] sm:$0xff]
        %v2224 = vld [vmem:[%s2197 + $0xd0] sm:$0xff]
        %v2225 = vld [vmem:[%s2197 + $0xd8] sm:$0xff]
        %v2226 = vld [vmem:[%s2197 + $0xe0] sm:$0xff]
        %v2227 = vld [vmem:[%s2197 + $0xe8] sm:$0xff]
        %v2228 = vld [vmem:[%s2197 + $0xf0] sm:$0xff]
        %v2229 = vld [vmem:[%s2197 + $0xf8] sm:$0xff]
        %v2230 = vld [vmem:[%s2197 + $0x100] sm:$0xff]
        %v2231 = vld [vmem:[%s2197 + $0x108] sm:$0xff]
        %v2232 = vld [vmem:[%s2197 + $0x110] sm:$0xff]
        %v2233 = vld [vmem:[%s2197 + $0x118] sm:$0xff]
        %v2234 = vld [vmem:[%s2197 + $0x120] sm:$0xff]
        %v2235 = vld [vmem:[%s2197 + $0x128] sm:$0xff]
        %v2236 = vld [vmem:[%s2197 + $0x130] sm:$0xff]
        %v2237 = vld [vmem:[%s2197 + $0x138] sm:$0xff]
        %v2238 = vld [vmem:[%s2197 + $0x140] sm:$0xff]
        %v2239 = vld [vmem:[%s2197 + $0x148] sm:$0xff]
        %v2240 = vld [vmem:[%s2197 + $0x150] sm:$0xff]
        %v2241 = vld [vmem:[%s2197 + $0x158] sm:$0xff]
        %v2242 = vld [vmem:[%s2197 + $0x160] sm:$0xff]
        %v2243 = vld [vmem:[%s2197 + $0x168] sm:$0xff]
        %v2244 = vld [vmem:[%s2197 + $0x170] sm:$0xff]
        %v2245 = vld [vmem:[%s2197 + $0x178] sm:$0xff]
        %v2246 = vld [vmem:[%s2197 + $0x180] sm:$0xff]
        %v2247 = vld [vmem:[%s2197 + $0x188] sm:$0xff]
        %v2248 = vld [vmem:[%s2197 + $0x190] sm:$0xff]
        %v2249 = vld [vmem:[%s2197 + $0x198] sm:$0xff]
        %v2250 = vld [vmem:[%s2197 + $0x1a0] sm:$0xff]
        %v2251 = vld [vmem:[%s2197 + $0x1a8] sm:$0xff]
        %v2252 = vld [vmem:[%s2197 + $0x1b0] sm:$0xff]
        %v2253 = vld [vmem:[%s2197 + $0x1b8] sm:$0xff]
        %v2254 = vld [vmem:[%s2197 + $0x1c0] sm:$0xff]
        %v2255 = vld [vmem:[%s2197 + $0x1c8] sm:$0xff]
        %v2256 = vld [vmem:[%s2197 + $0x1d0] sm:$0xff]
        %v2257 = vld [vmem:[%s2197 + $0x1d8] sm:$0xff]
        %v2258 = vld [vmem:[%s2197 + $0x1e0] sm:$0xff]
        %v2259 = vld [vmem:[%s2197 + $0x1e8] sm:$0xff]
        %v2260 = vld [vmem:[%s2197 + $0x1f0] sm:$0xff]
        %v2261 = vld [vmem:[%s2197 + $0x1f8] sm:$0xff]
        %v2262 = vld [vmem:[%s2197 + $0x200] sm:$0xff]
        %v2263 = vld [vmem:[%s2197 + $0x208] sm:$0xff]
        %v2264 = vld [vmem:[%s2197 + $0x210] sm:$0xff]
        %v2265 = vld [vmem:[%s2197 + $0x218] sm:$0xff]
        %v2266 = vld [vmem:[%s2197 + $0x220] sm:$0xff]
        %v2267 = vld [vmem:[%s2197 + $0x228] sm:$0xff]
        %v2268 = vld [vmem:[%s2197 + $0x230] sm:$0xff]
        %v2269 = vld [vmem:[%s2197 + $0x238] sm:$0xff]
        %v2270 = vld [vmem:[%s2197 + $0x240] sm:$0xff]
        %v2271 = vld [vmem:[%s2197 + $0x248] sm:$0xff]
        %v2272 = vld [vmem:[%s2197 + $0x250] sm:$0xff]
        %v2273 = vld [vmem:[%s2197 + $0x258] sm:$0xff]
        %v2274 = vld [vmem:[%s2197 + $0x260] sm:$0xff]
        %v2275 = vld [vmem:[%s2197 + $0x268] sm:$0xff]
        %v2276 = vld [vmem:[%s2197 + $0x270] sm:$0xff]
        %v2277 = vld [vmem:[%s2197 + $0x278] sm:$0xff]
        %v2278 = vld [vmem:[%s2197 + $0x280] sm:$0xff]
        %v2279 = vld [vmem:[%s2197 + $0x288] sm:$0xff]
        %v2280 = vld [vmem:[%s2197 + $0x290] sm:$0xff]
        %v2281 = vld [vmem:[%s2197 + $0x298] sm:$0xff]
        %v2282 = vld [vmem:[%s2197 + $0x2a0] sm:$0xff]
        %v2283 = vld [vmem:[%s2197 + $0x2a8] sm:$0xff]
        %v2284 = vld [vmem:[%s2197 + $0x2b0] sm:$0xff]
        %v2285 = vld [vmem:[%s2197 + $0x2b8] sm:$0xff]
        %v2286 = vld [vmem:[%s2197 + $0x2c0] sm:$0xff]
        %v2287 = vld [vmem:[%s2197 + $0x2c8] sm:$0xff]
        %v2288 = vld [vmem:[%s2197 + $0x2d0] sm:$0xff]
        %v2289 = vld [vmem:[%s2197 + $0x2d8] sm:$0xff]
        %v2290 = vld [vmem:[%s2197 + $0x2e0] sm:$0xff]
        %v2291 = vld [vmem:[%s2197 + $0x2e8] sm:$0xff]
        %v2292 = vld [vmem:[%s2197 + $0x2f0] sm:$0xff]
        %v2293 = vld [vmem:[%s2197 + $0x2f8] sm:$0xff]
        %v2390 = vunpack.c.l.b16 %v2198
        %v2391 = vunpack.c.h.b16 %v2198
        %v2392 = vunpack.c.l.b16 %v2199
        %v2393 = vunpack.c.h.b16 %v2199
        %v2394 = vunpack.c.l.b16 %v2200
        %v2395 = vunpack.c.h.b16 %v2200
        %v2396 = vunpack.c.l.b16 %v2201
        %v2397 = vunpack.c.h.b16 %v2201
        %v2398 = vunpack.c.l.b16 %v2202
        %v2399 = vunpack.c.h.b16 %v2202
        %v2400 = vunpack.c.l.b16 %v2203
        %v2401 = vunpack.c.h.b16 %v2203
        %v2402 = vunpack.c.l.b16 %v2204
        %v2403 = vunpack.c.h.b16 %v2204
        %v2404 = vunpack.c.l.b16 %v2205
        %v2405 = vunpack.c.h.b16 %v2205
        %v2406 = vunpack.c.l.b16 %v2206
        %v2407 = vunpack.c.h.b16 %v2206
        %v2408 = vunpack.c.l.b16 %v2207
        %v2409 = vunpack.c.h.b16 %v2207
        %v2410 = vunpack.c.l.b16 %v2208
        %v2411 = vunpack.c.h.b16 %v2208
        %v2412 = vunpack.c.l.b16 %v2209
        %v2413 = vunpack.c.h.b16 %v2209
        %v2414 = vunpack.c.l.b16 %v2210
        %v2415 = vunpack.c.h.b16 %v2210
        %v2416 = vunpack.c.l.b16 %v2211
        %v2417 = vunpack.c.h.b16 %v2211
        %v2418 = vunpack.c.l.b16 %v2212
        %v2419 = vunpack.c.h.b16 %v2212
        %v2420 = vunpack.c.l.b16 %v2213
        %v2421 = vunpack.c.h.b16 %v2213
        %v2422 = vunpack.c.l.b16 %v2214
        %v2423 = vunpack.c.h.b16 %v2214
        %v2424 = vunpack.c.l.b16 %v2215
        %v2425 = vunpack.c.h.b16 %v2215
        %v2426 = vunpack.c.l.b16 %v2216
        %v2427 = vunpack.c.h.b16 %v2216
        %v2428 = vunpack.c.l.b16 %v2217
        %v2429 = vunpack.c.h.b16 %v2217
        %v2430 = vunpack.c.l.b16 %v2218
        %v2431 = vunpack.c.h.b16 %v2218
        %v2432 = vunpack.c.l.b16 %v2219
        %v2433 = vunpack.c.h.b16 %v2219
        %v2434 = vunpack.c.l.b16 %v2220
        %v2435 = vunpack.c.h.b16 %v2220
        %v2436 = vunpack.c.l.b16 %v2221
        %v2437 = vunpack.c.h.b16 %v2221
        %v2438 = vunpack.c.l.b16 %v2222
        %v2439 = vunpack.c.h.b16 %v2222
        %v2440 = vunpack.c.l.b16 %v2223
        %v2441 = vunpack.c.h.b16 %v2223
        %v2442 = vunpack.c.l.b16 %v2224
        %v2443 = vunpack.c.h.b16 %v2224
        %v2444 = vunpack.c.l.b16 %v2225
        %v2445 = vunpack.c.h.b16 %v2225
        %v2446 = vunpack.c.l.b16 %v2226
        %v2447 = vunpack.c.h.b16 %v2226
        %v2448 = vunpack.c.l.b16 %v2227
        %v2449 = vunpack.c.h.b16 %v2227
        %v2450 = vunpack.c.l.b16 %v2228
        %v2451 = vunpack.c.h.b16 %v2228
        %v2452 = vunpack.c.l.b16 %v2229
        %v2453 = vunpack.c.h.b16 %v2229
        %v2454 = vunpack.c.l.b16 %v2230
        %v2455 = vunpack.c.h.b16 %v2230
        %v2456 = vunpack.c.l.b16 %v2231
        %v2457 = vunpack.c.h.b16 %v2231
        %v2458 = vunpack.c.l.b16 %v2232
        %v2459 = vunpack.c.h.b16 %v2232
        %v2460 = vunpack.c.l.b16 %v2233
        %v2461 = vunpack.c.h.b16 %v2233
        %v2462 = vunpack.c.l.b16 %v2234
        %v2463 = vunpack.c.h.b16 %v2234
        %v2464 = vunpack.c.l.b16 %v2235
        %v2465 = vunpack.c.h.b16 %v2235
        %v2466 = vunpack.c.l.b16 %v2236
        %v2467 = vunpack.c.h.b16 %v2236
        %v2468 = vunpack.c.l.b16 %v2237
        %v2469 = vunpack.c.h.b16 %v2237
        %v2470 = vunpack.c.l.b16 %v2238
        %v2471 = vunpack.c.h.b16 %v2238
        %v2472 = vunpack.c.l.b16 %v2239
        %v2473 = vunpack.c.h.b16 %v2239
        %v2474 = vunpack.c.l.b16 %v2240
        %v2475 = vunpack.c.h.b16 %v2240
        %v2476 = vunpack.c.l.b16 %v2241
        %v2477 = vunpack.c.h.b16 %v2241
        %v2478 = vunpack.c.l.b16 %v2242
        %v2479 = vunpack.c.h.b16 %v2242
        %v2480 = vunpack.c.l.b16 %v2243
        %v2481 = vunpack.c.h.b16 %v2243
        %v2482 = vunpack.c.l.b16 %v2244
        %v2483 = vunpack.c.h.b16 %v2244
        %v2484 = vunpack.c.l.b16 %v2245
        %v2485 = vunpack.c.h.b16 %v2245
        %v2486 = vunpack.c.l.b16 %v2246
        %v2487 = vunpack.c.h.b16 %v2246
        %v2488 = vunpack.c.l.b16 %v2247
        %v2489 = vunpack.c.h.b16 %v2247
        %v2490 = vunpack.c.l.b16 %v2248
        %v2491 = vunpack.c.h.b16 %v2248
        %v2492 = vunpack.c.l.b16 %v2249
        %v2493 = vunpack.c.h.b16 %v2249
        %v2494 = vunpack.c.l.b16 %v2250
        %v2495 = vunpack.c.h.b16 %v2250
        %v2496 = vunpack.c.l.b16 %v2251
        %v2497 = vunpack.c.h.b16 %v2251
        %v2498 = vunpack.c.l.b16 %v2252
        %v2499 = vunpack.c.h.b16 %v2252
        %v2500 = vunpack.c.l.b16 %v2253
        %v2501 = vunpack.c.h.b16 %v2253
        %v2502 = vunpack.c.l.b16 %v2254
        %v2503 = vunpack.c.h.b16 %v2254
        %v2504 = vunpack.c.l.b16 %v2255
        %v2505 = vunpack.c.h.b16 %v2255
        %v2506 = vunpack.c.l.b16 %v2256
        %v2507 = vunpack.c.h.b16 %v2256
        %v2508 = vunpack.c.l.b16 %v2257
        %v2509 = vunpack.c.h.b16 %v2257
        %v2510 = vunpack.c.l.b16 %v2258
        %v2511 = vunpack.c.h.b16 %v2258
        %v2512 = vunpack.c.l.b16 %v2259
        %v2513 = vunpack.c.h.b16 %v2259
        %v2514 = vunpack.c.l.b16 %v2260
        %v2515 = vunpack.c.h.b16 %v2260
        %v2516 = vunpack.c.l.b16 %v2261
        %v2517 = vunpack.c.h.b16 %v2261
        %v2518 = vunpack.c.l.b16 %v2262
        %v2519 = vunpack.c.h.b16 %v2262
        %v2520 = vunpack.c.l.b16 %v2263
        %v2521 = vunpack.c.h.b16 %v2263
        %v2522 = vunpack.c.l.b16 %v2264
        %v2523 = vunpack.c.h.b16 %v2264
        %v2524 = vunpack.c.l.b16 %v2265
        %v2525 = vunpack.c.h.b16 %v2265
        %v2526 = vunpack.c.l.b16 %v2266
        %v2527 = vunpack.c.h.b16 %v2266
        %v2528 = vunpack.c.l.b16 %v2267
        %v2529 = vunpack.c.h.b16 %v2267
        %v2530 = vunpack.c.l.b16 %v2268
        %v2531 = vunpack.c.h.b16 %v2268
        %v2532 = vunpack.c.l.b16 %v2269
        %v2533 = vunpack.c.h.b16 %v2269
        %v2534 = vunpack.c.l.b16 %v2270
        %v2535 = vunpack.c.h.b16 %v2270
        %v2536 = vunpack.c.l.b16 %v2271
        %v2537 = vunpack.c.h.b16 %v2271
        %v2538 = vunpack.c.l.b16 %v2272
        %v2539 = vunpack.c.h.b16 %v2272
        %v2540 = vunpack.c.l.b16 %v2273
        %v2541 = vunpack.c.h.b16 %v2273
        %v2542 = vunpack.c.l.b16 %v2274
        %v2543 = vunpack.c.h.b16 %v2274
        %v2544 = vunpack.c.l.b16 %v2275
        %v2545 = vunpack.c.h.b16 %v2275
        %v2546 = vunpack.c.l.b16 %v2276
        %v2547 = vunpack.c.h.b16 %v2276
        %v2548 = vunpack.c.l.b16 %v2277
        %v2549 = vunpack.c.h.b16 %v2277
        %v2550 = vunpack.c.l.b16 %v2278
        %v2551 = vunpack.c.h.b16 %v2278
        %v2552 = vunpack.c.l.b16 %v2279
        %v2553 = vunpack.c.h.b16 %v2279
        %v2554 = vunpack.c.l.b16 %v2280
        %v2555 = vunpack.c.h.b16 %v2280
        %v2556 = vunpack.c.l.b16 %v2281
        %v2557 = vunpack.c.h.b16 %v2281
        %v2558 = vunpack.c.l.b16 %v2282
        %v2559 = vunpack.c.h.b16 %v2282
        %v2560 = vunpack.c.l.b16 %v2283
        %v2561 = vunpack.c.h.b16 %v2283
        %v2562 = vunpack.c.l.b16 %v2284
        %v2563 = vunpack.c.h.b16 %v2284
        %v2564 = vunpack.c.l.b16 %v2285
        %v2565 = vunpack.c.h.b16 %v2285
        %v2566 = vunpack.c.l.b16 %v2286
        %v2567 = vunpack.c.h.b16 %v2286
        %v2568 = vunpack.c.l.b16 %v2287
        %v2569 = vunpack.c.h.b16 %v2287
        %v2570 = vunpack.c.l.b16 %v2288
        %v2571 = vunpack.c.h.b16 %v2288
        %v2572 = vunpack.c.l.b16 %v2289
        %v2573 = vunpack.c.h.b16 %v2289
        %v2574 = vunpack.c.l.b16 %v2290
        %v2575 = vunpack.c.h.b16 %v2290
        %v2576 = vunpack.c.l.b16 %v2291
        %v2577 = vunpack.c.h.b16 %v2291
        %v2578 = vunpack.c.l.b16 %v2292
        %v2579 = vunpack.c.h.b16 %v2292
        %v2580 = vunpack.c.l.b16 %v2293
        %v2581 = vunpack.c.h.b16 %v2293
        %v2582 = vpack.c.b16 %v2422, %v2390
        %v2583 = vpack.c.b16 %v2423, %v2391
        %v2584 = vpack.c.b16 %v2424, %v2392
        %v2585 = vpack.c.b16 %v2425, %v2393
        %v2586 = vpack.c.b16 %v2426, %v2394
        %v2587 = vpack.c.b16 %v2427, %v2395
        %v2588 = vpack.c.b16 %v2428, %v2396
        %v2589 = vpack.c.b16 %v2429, %v2397
        %v2590 = vpack.c.b16 %v2430, %v2398
        %v2591 = vpack.c.b16 %v2431, %v2399
        %v2592 = vpack.c.b16 %v2432, %v2400
        %v2593 = vpack.c.b16 %v2433, %v2401
        %v2594 = vpack.c.b16 %v2434, %v2402
        %v2595 = vpack.c.b16 %v2435, %v2403
        %v2596 = vpack.c.b16 %v2436, %v2404
        %v2597 = vpack.c.b16 %v2437, %v2405
        %v2598 = vpack.c.b16 %v2438, %v2406
        %v2599 = vpack.c.b16 %v2439, %v2407
        %v2600 = vpack.c.b16 %v2440, %v2408
        %v2601 = vpack.c.b16 %v2441, %v2409
        %v2602 = vpack.c.b16 %v2442, %v2410
        %v2603 = vpack.c.b16 %v2443, %v2411
        %v2604 = vpack.c.b16 %v2444, %v2412
        %v2605 = vpack.c.b16 %v2445, %v2413
        %v2606 = vpack.c.b16 %v2446, %v2414
        %v2607 = vpack.c.b16 %v2447, %v2415
        %v2608 = vpack.c.b16 %v2448, %v2416
        %v2609 = vpack.c.b16 %v2449, %v2417
        %v2610 = vpack.c.b16 %v2450, %v2418
        %v2611 = vpack.c.b16 %v2451, %v2419
        %v2612 = vpack.c.b16 %v2452, %v2420
        %v2613 = vpack.c.b16 %v2453, %v2421
        %v2614 = vpack.c.b16 %v2486, %v2454
        %v2615 = vpack.c.b16 %v2487, %v2455
        %v2616 = vpack.c.b16 %v2488, %v2456
        %v2617 = vpack.c.b16 %v2489, %v2457
        %v2618 = vpack.c.b16 %v2490, %v2458
        %v2619 = vpack.c.b16 %v2491, %v2459
        %v2620 = vpack.c.b16 %v2492, %v2460
        %v2621 = vpack.c.b16 %v2493, %v2461
        %v2622 = vpack.c.b16 %v2494, %v2462
        %v2623 = vpack.c.b16 %v2495, %v2463
        %v2624 = vpack.c.b16 %v2496, %v2464
        %v2625 = vpack.c.b16 %v2497, %v2465
        %v2626 = vpack.c.b16 %v2498, %v2466
        %v2627 = vpack.c.b16 %v2499, %v2467
        %v2628 = vpack.c.b16 %v2500, %v2468
        %v2629 = vpack.c.b16 %v2501, %v2469
        %v2630 = vpack.c.b16 %v2502, %v2470
        %v2631 = vpack.c.b16 %v2503, %v2471
        %v2632 = vpack.c.b16 %v2504, %v2472
        %v2633 = vpack.c.b16 %v2505, %v2473
        %v2634 = vpack.c.b16 %v2506, %v2474
        %v2635 = vpack.c.b16 %v2507, %v2475
        %v2636 = vpack.c.b16 %v2508, %v2476
        %v2637 = vpack.c.b16 %v2509, %v2477
        %v2638 = vpack.c.b16 %v2510, %v2478
        %v2639 = vpack.c.b16 %v2511, %v2479
        %v2640 = vpack.c.b16 %v2512, %v2480
        %v2641 = vpack.c.b16 %v2513, %v2481
        %v2642 = vpack.c.b16 %v2514, %v2482
        %v2643 = vpack.c.b16 %v2515, %v2483
        %v2644 = vpack.c.b16 %v2516, %v2484
        %v2645 = vpack.c.b16 %v2517, %v2485
        %v2646 = vpack.c.b16 %v2550, %v2518
        %v2647 = vpack.c.b16 %v2551, %v2519
        %v2648 = vpack.c.b16 %v2552, %v2520
        %v2649 = vpack.c.b16 %v2553, %v2521
        %v2650 = vpack.c.b16 %v2554, %v2522
        %v2651 = vpack.c.b16 %v2555, %v2523
        %v2652 = vpack.c.b16 %v2556, %v2524
        %v2653 = vpack.c.b16 %v2557, %v2525
        %v2654 = vpack.c.b16 %v2558, %v2526
        %v2655 = vpack.c.b16 %v2559, %v2527
        %v2656 = vpack.c.b16 %v2560, %v2528
        %v2657 = vpack.c.b16 %v2561, %v2529
        %v2658 = vpack.c.b16 %v2562, %v2530
        %v2659 = vpack.c.b16 %v2563, %v2531
        %v2660 = vpack.c.b16 %v2564, %v2532
        %v2661 = vpack.c.b16 %v2565, %v2533
        %v2662 = vpack.c.b16 %v2566, %v2534
        %v2663 = vpack.c.b16 %v2567, %v2535
        %v2664 = vpack.c.b16 %v2568, %v2536
        %v2665 = vpack.c.b16 %v2569, %v2537
        %v2666 = vpack.c.b16 %v2570, %v2538
        %v2667 = vpack.c.b16 %v2571, %v2539
        %v2668 = vpack.c.b16 %v2572, %v2540
        %v2669 = vpack.c.b16 %v2573, %v2541
        %v2670 = vpack.c.b16 %v2574, %v2542
        %v2671 = vpack.c.b16 %v2575, %v2543
        %v2672 = vpack.c.b16 %v2576, %v2544
        %v2673 = vpack.c.b16 %v2577, %v2545
        %v2674 = vpack.c.b16 %v2578, %v2546
        %v2675 = vpack.c.b16 %v2579, %v2547
        %v2676 = vpack.c.b16 %v2580, %v2548
        %v2677 = vpack.c.b16 %v2581, %v2549
        %2774 = vmatprep.subr.bf16.mxu0 0
        %2775 = vmatpush1.bf16.msra.mxu0 0
        %2776 = vmatprep.subr.bf16.mxu0 0
        %2777 = vmatpush1.bf16.msra.mxu0 0
        %2778 = vmatprep.subr.bf16.mxu0 0
        %2779 = vmatpush1.bf16.msra.mxu0 0
        %2780 = vmatprep.subr.bf16.mxu0 0
        %2781 = vmatpush1.bf16.msra.mxu0 0
        %2782 = vmatprep.subr.bf16.mxu0 0
        %2783 = vmatpush1.bf16.msra.mxu0 0
        %2784 = vmatprep.subr.bf16.mxu0 %v2647
        %2785 = vmatpush1.bf16.msra.mxu0 %v2646
        %2786 = vmatprep.subr.bf16.mxu0 %v2615
        %2787 = vmatpush1.bf16.msra.mxu0 %v2614
        %2788 = vmatprep.subr.bf16.mxu0 %v2583
        %2789 = vmatpush1.bf16.msra.mxu0 %v2582
        %2790 = vmatprep.subr.bf16.mxu0 0
        %2791 = vmatpush2.bf16.msra.mxu0 0
        %2792 = vmatprep.subr.bf16.mxu0 0
        %2793 = vmatpush2.bf16.msra.mxu0 0
        %2794 = vmatprep.subr.bf16.mxu0 0
        %2795 = vmatpush2.bf16.msra.mxu0 0
        %2796 = vmatprep.subr.bf16.mxu0 0
        %2797 = vmatpush2.bf16.msra.mxu0 0
        %2798 = vmatprep.subr.bf16.mxu0 0
        %2799 = vmatpush2.bf16.msra.mxu0 0
        %2800 = vmatprep.subr.bf16.mxu0 0
        %2801 = vmatpush2.bf16.msra.mxu0 0
        %2802 = vmatprep.subr.bf16.mxu0 0
        %2803 = vmatpush2.bf16.msra.mxu0 0
        %2804 = vmatprep.subr.bf16.mxu0 0
        %2805 = vmatpush2.bf16.msra.mxu0 0
        %2806 = vmatprep.mubr.bf16.mxu0 0
        %2807 = vmatmul.mubr.bf16.gmra.mxu0 %v1539
        %v2808 = vpop.f32.mrf.mxu0
        %v2809 = vadd.f32 0.0, %v2808
        %v2810 = vpop.f32.mrf.mxu0
        %v2811 = vadd.f32 0.0, %v2810
        %v2812 = vpop.f32.mrf.mxu0
        %v2813 = vpop.f32.mrf.mxu0
        %2814 = vdwg.mxu0
        %2815 = vmatprep.subr.bf16.mxu0 0
        %2816 = vmatpush1.bf16.msra.mxu0 0
        %2817 = vmatprep.subr.bf16.mxu0 0
        %2818 = vmatpush1.bf16.msra.mxu0 0
        %2819 = vmatprep.subr.bf16.mxu0 0
        %2820 = vmatpush1.bf16.msra.mxu0 0
        %2821 = vmatprep.subr.bf16.mxu0 0
        %2822 = vmatpush1.bf16.msra.mxu0 0
        %2823 = vmatprep.subr.bf16.mxu0 0
        %2824 = vmatpush1.bf16.msra.mxu0 0
        %2825 = vmatprep.subr.bf16.mxu0 %v2649
        %2826 = vmatpush1.bf16.msra.mxu0 %v2648
        %2827 = vmatprep.subr.bf16.mxu0 %v2617
        %2828 = vmatpush1.bf16.msra.mxu0 %v2616
        %2829 = vmatprep.subr.bf16.mxu0 %v2585
        %2830 = vmatpush1.bf16.msra.mxu0 %v2584
        %2831 = vmatprep.subr.bf16.mxu0 0
        %2832 = vmatpush2.bf16.msra.mxu0 0
        %2833 = vmatprep.subr.bf16.mxu0 0
        %2834 = vmatpush2.bf16.msra.mxu0 0
        %2835 = vmatprep.subr.bf16.mxu0 0
        %2836 = vmatpush2.bf16.msra.mxu0 0
        %2837 = vmatprep.subr.bf16.mxu0 0
        %2838 = vmatpush2.bf16.msra.mxu0 0
        %2839 = vmatprep.subr.bf16.mxu0 0
        %2840 = vmatpush2.bf16.msra.mxu0 0
        %2841 = vmatprep.subr.bf16.mxu0 0
        %2842 = vmatpush2.bf16.msra.mxu0 0
        %2843 = vmatprep.subr.bf16.mxu0 0
        %2844 = vmatpush2.bf16.msra.mxu0 0
        %2845 = vmatprep.subr.bf16.mxu0 0
        %2846 = vmatpush2.bf16.msra.mxu0 0
        %2847 = vmatprep.mubr.bf16.mxu0 0
        %2848 = vmatmul.mubr.bf16.gmra.mxu0 %v1539
        %v2849 = vpop.f32.mrf.mxu0
        %v2850 = vadd.f32 0.0, %v2849
        %v2851 = vpop.f32.mrf.mxu0
        %v2852 = vadd.f32 0.0, %v2851
        %v2853 = vpop.f32.mrf.mxu0
        %v2854 = vpop.f32.mrf.mxu0
        %2855 = vdwg.mxu0
        %2856 = vmatprep.subr.bf16.mxu0 0
        %2857 = vmatpush1.bf16.msra.mxu0 0
        %2858 = vmatprep.subr.bf16.mxu0 0
        %2859 = vmatpush1.bf16.msra.mxu0 0
        %2860 = vmatprep.subr.bf16.mxu0 0
        %2861 = vmatpush1.bf16.msra.mxu0 0
        %2862 = vmatprep.subr.bf16.mxu0 0
        %2863 = vmatpush1.bf16.msra.mxu0 0
        %2864 = vmatprep.subr.bf16.mxu0 0
        %2865 = vmatpush1.bf16.msra.mxu0 0
        %2866 = vmatprep.subr.bf16.mxu0 %v2651
        %2867 = vmatpush1.bf16.msra.mxu0 %v2650
        %2868 = vmatprep.subr.bf16.mxu0 %v2619
        %2869 = vmatpush1.bf16.msra.mxu0 %v2618
        %2870 = vmatprep.subr.bf16.mxu0 %v2587
        %2871 = vmatpush1.bf16.msra.mxu0 %v2586
        %2872 = vmatprep.subr.bf16.mxu0 0
        %2873 = vmatpush2.bf16.msra.mxu0 0
        %2874 = vmatprep.subr.bf16.mxu0 0
        %2875 = vmatpush2.bf16.msra.mxu0 0
        %2876 = vmatprep.subr.bf16.mxu0 0
        %2877 = vmatpush2.bf16.msra.mxu0 0
        %2878 = vmatprep.subr.bf16.mxu0 0
        %2879 = vmatpush2.bf16.msra.mxu0 0
        %2880 = vmatprep.subr.bf16.mxu0 0
        %2881 = vmatpush2.bf16.msra.mxu0 0
        %2882 = vmatprep.subr.bf16.mxu0 0
        %2883 = vmatpush2.bf16.msra.mxu0 0
        %2884 = vmatprep.subr.bf16.mxu0 0
        %2885 = vmatpush2.bf16.msra.mxu0 0
        %2886 = vmatprep.subr.bf16.mxu0 0
        %2887 = vmatpush2.bf16.msra.mxu0 0
        %2888 = vmatprep.mubr.bf16.mxu0 0
        %2889 = vmatmul.mubr.bf16.gmra.mxu0 %v1539
        %v2890 = vpop.f32.mrf.mxu0
        %v2891 = vadd.f32 0.0, %v2890
        %v2892 = vpop.f32.mrf.mxu0
        %v2893 = vadd.f32 0.0, %v2892
        %v2894 = vpop.f32.mrf.mxu0
        %v2895 = vpop.f32.mrf.mxu0
        %2896 = vdwg.mxu0
        %2897 = vmatprep.subr.bf16.mxu0 0
        %2898 = vmatpush1.bf16.msra.mxu0 0
        %2899 = vmatprep.subr.bf16.mxu0 0
        %2900 = vmatpush1.bf16.msra.mxu0 0
        %2901 = vmatprep.subr.bf16.mxu0 0
        %2902 = vmatpush1.bf16.msra.mxu0 0
        %2903 = vmatprep.subr.bf16.mxu0 0
        %2904 = vmatpush1.bf16.msra.mxu0 0
        %2905 = vmatprep.subr.bf16.mxu0 0
        %2906 = vmatpush1.bf16.msra.mxu0 0
        %2907 = vmatprep.subr.bf16.mxu0 %v2653
        %2908 = vmatpush1.bf16.msra.mxu0 %v2652
        %2909 = vmatprep.subr.bf16.mxu0 %v2621
        %2910 = vmatpush1.bf16.msra.mxu0 %v2620
        %2911 = vmatprep.subr.bf16.mxu0 %v2589
        %2912 = vmatpush1.bf16.msra.mxu0 %v2588
        %2913 = vmatprep.subr.bf16.mxu0 0
        %2914 = vmatpush2.bf16.msra.mxu0 0
        %2915 = vmatprep.subr.bf16.mxu0 0
        %2916 = vmatpush2.bf16.msra.mxu0 0
        %2917 = vmatprep.subr.bf16.mxu0 0
        %2918 = vmatpush2.bf16.msra.mxu0 0
        %2919 = vmatprep.subr.bf16.mxu0 0
        %2920 = vmatpush2.bf16.msra.mxu0 0
        %2921 = vmatprep.subr.bf16.mxu0 0
        %2922 = vmatpush2.bf16.msra.mxu0 0
        %2923 = vmatprep.subr.bf16.mxu0 0
        %2924 = vmatpush2.bf16.msra.mxu0 0
        %2925 = vmatprep.subr.bf16.mxu0 0
        %2926 = vmatpush2.bf16.msra.mxu0 0
        %2927 = vmatprep.subr.bf16.mxu0 0
        %2928 = vmatpush2.bf16.msra.mxu0 0
        %2929 = vmatprep.mubr.bf16.mxu0 0
        %2930 = vmatmul.mubr.bf16.gmra.mxu0 %v1539
        %v2931 = vpop.f32.mrf.mxu0
        %v2932 = vadd.f32 0.0, %v2931
        %v2933 = vpop.f32.mrf.mxu0
        %v2934 = vadd.f32 0.0, %v2933
        %v2935 = vpop.f32.mrf.mxu0
        %v2936 = vpop.f32.mrf.mxu0
        %2937 = vdwg.mxu0
        %2938 = vmatprep.subr.bf16.mxu0 0
        %2939 = vmatpush1.bf16.msra.mxu0 0
        %2940 = vmatprep.subr.bf16.mxu0 0
        %2941 = vmatpush1.bf16.msra.mxu0 0
        %2942 = vmatprep.subr.bf16.mxu0 0
        %2943 = vmatpush1.bf16.msra.mxu0 0
        %2944 = vmatprep.subr.bf16.mxu0 0
        %2945 = vmatpush1.bf16.msra.mxu0 0
        %2946 = vmatprep.subr.bf16.mxu0 0
        %2947 = vmatpush1.bf16.msra.mxu0 0
        %2948 = vmatprep.subr.bf16.mxu0 %v2655
        %2949 = vmatpush1.bf16.msra.mxu0 %v2654
        %2950 = vmatprep.subr.bf16.mxu0 %v2623
        %2951 = vmatpush1.bf16.msra.mxu0 %v2622
        %2952 = vmatprep.subr.bf16.mxu0 %v2591
        %2953 = vmatpush1.bf16.msra.mxu0 %v2590
        %2954 = vmatprep.subr.bf16.mxu0 0
        %2955 = vmatpush2.bf16.msra.mxu0 0
        %2956 = vmatprep.subr.bf16.mxu0 0
        %2957 = vmatpush2.bf16.msra.mxu0 0
        %2958 = vmatprep.subr.bf16.mxu0 0
        %2959 = vmatpush2.bf16.msra.mxu0 0
        %2960 = vmatprep.subr.bf16.mxu0 0
        %2961 = vmatpush2.bf16.msra.mxu0 0
        %2962 = vmatprep.subr.bf16.mxu0 0
        %2963 = vmatpush2.bf16.msra.mxu0 0
        %2964 = vmatprep.subr.bf16.mxu0 0
        %2965 = vmatpush2.bf16.msra.mxu0 0
        %2966 = vmatprep.subr.bf16.mxu0 0
        %2967 = vmatpush2.bf16.msra.mxu0 0
        %2968 = vmatprep.subr.bf16.mxu0 0
        %2969 = vmatpush2.bf16.msra.mxu0 0
        %2970 = vmatprep.mubr.bf16.mxu0 0
        %2971 = vmatmul.mubr.bf16.gmra.mxu0 %v1539
        %v2972 = vpop.f32.mrf.mxu0
        %v2973 = vadd.f32 0.0, %v2972
        %v2974 = vpop.f32.mrf.mxu0
        %v2975 = vadd.f32 0.0, %v2974
        %v2976 = vpop.f32.mrf.mxu0
        %v2977 = vpop.f32.mrf.mxu0
        %2978 = vdwg.mxu0
        %2979 = vmatprep.subr.bf16.mxu0 0
        %2980 = vmatpush1.bf16.msra.mxu0 0
        %2981 = vmatprep.subr.bf16.mxu0 0
        %2982 = vmatpush1.bf16.msra.mxu0 0
        %2983 = vmatprep.subr.bf16.mxu0 0
        %2984 = vmatpush1.bf16.msra.mxu0 0
        %2985 = vmatprep.subr.bf16.mxu0 0
        %2986 = vmatpush1.bf16.msra.mxu0 0
        %2987 = vmatprep.subr.bf16.mxu0 0
        %2988 = vmatpush1.bf16.msra.mxu0 0
        %2989 = vmatprep.subr.bf16.mxu0 %v2657
        %2990 = vmatpush1.bf16.msra.mxu0 %v2656
        %2991 = vmatprep.subr.bf16.mxu0 %v2625
        %2992 = vmatpush1.bf16.msra.mxu0 %v2624
        %2993 = vmatprep.subr.bf16.mxu0 %v2593
        %2994 = vmatpush1.bf16.msra.mxu0 %v2592
        %2995 = vmatprep.subr.bf16.mxu0 0
        %2996 = vmatpush2.bf16.msra.mxu0 0
        %2997 = vmatprep.subr.bf16.mxu0 0
        %2998 = vmatpush2.bf16.msra.mxu0 0
        %2999 = vmatprep.subr.bf16.mxu0 0
        %3000 = vmatpush2.bf16.msra.mxu0 0
        %3001 = vmatprep.subr.bf16.mxu0 0
        %3002 = vmatpush2.bf16.msra.mxu0 0
        %3003 = vmatprep.subr.bf16.mxu0 0
        %3004 = vmatpush2.bf16.msra.mxu0 0
        %3005 = vmatprep.subr.bf16.mxu0 0
        %3006 = vmatpush2.bf16.msra.mxu0 0
        %3007 = vmatprep.subr.bf16.mxu0 0
        %3008 = vmatpush2.bf16.msra.mxu0 0
        %3009 = vmatprep.subr.bf16.mxu0 0
        %3010 = vmatpush2.bf16.msra.mxu0 0
        %3011 = vmatprep.mubr.bf16.mxu0 0
        %3012 = vmatmul.mubr.bf16.gmra.mxu0 %v1539
        %v3013 = vpop.f32.mrf.mxu0
        %v3014 = vadd.f32 0.0, %v3013
        %v3015 = vpop.f32.mrf.mxu0
        %v3016 = vadd.f32 0.0, %v3015
        %v3017 = vpop.f32.mrf.mxu0
        %v3018 = vpop.f32.mrf.mxu0
        %3019 = vdwg.mxu0
        %3020 = vmatprep.subr.bf16.mxu0 0
        %3021 = vmatpush1.bf16.msra.mxu0 0
        %3022 = vmatprep.subr.bf16.mxu0 0
        %3023 = vmatpush1.bf16.msra.mxu0 0
        %3024 = vmatprep.subr.bf16.mxu0 0
        %3025 = vmatpush1.bf16.msra.mxu0 0
        %3026 = vmatprep.subr.bf16.mxu0 0
        %3027 = vmatpush1.bf16.msra.mxu0 0
        %3028 = vmatprep.subr.bf16.mxu0 0
        %3029 = vmatpush1.bf16.msra.mxu0 0
        %3030 = vmatprep.subr.bf16.mxu0 %v2659
        %3031 = vmatpush1.bf16.msra.mxu0 %v2658
        %3032 = vmatprep.subr.bf16.mxu0 %v2627
        %3033 = vmatpush1.bf16.msra.mxu0 %v2626
        %3034 = vmatprep.subr.bf16.mxu0 %v2595
        %3035 = vmatpush1.bf16.msra.mxu0 %v2594
        %3036 = vmatprep.subr.bf16.mxu0 0
        %3037 = vmatpush2.bf16.msra.mxu0 0
        %3038 = vmatprep.subr.bf16.mxu0 0
        %3039 = vmatpush2.bf16.msra.mxu0 0
        %3040 = vmatprep.subr.bf16.mxu0 0
        %3041 = vmatpush2.bf16.msra.mxu0 0
        %3042 = vmatprep.subr.bf16.mxu0 0
        %3043 = vmatpush2.bf16.msra.mxu0 0
        %3044 = vmatprep.subr.bf16.mxu0 0
        %3045 = vmatpush2.bf16.msra.mxu0 0
        %3046 = vmatprep.subr.bf16.mxu0 0
        %3047 = vmatpush2.bf16.msra.mxu0 0
        %3048 = vmatprep.subr.bf16.mxu0 0
        %3049 = vmatpush2.bf16.msra.mxu0 0
        %3050 = vmatprep.subr.bf16.mxu0 0
        %3051 = vmatpush2.bf16.msra.mxu0 0
        %3052 = vmatprep.mubr.bf16.mxu0 0
        %3053 = vmatmul.mubr.bf16.gmra.mxu0 %v1539
        %v3054 = vpop.f32.mrf.mxu0
        %v3055 = vadd.f32 0.0, %v3054
        %v3056 = vpop.f32.mrf.mxu0
        %v3057 = vadd.f32 0.0, %v3056
        %v3058 = vpop.f32.mrf.mxu0
        %v3059 = vpop.f32.mrf.mxu0
        %3060 = vdwg.mxu0
        %3061 = vmatprep.subr.bf16.mxu0 0
        %3062 = vmatpush1.bf16.msra.mxu0 0
        %3063 = vmatprep.subr.bf16.mxu0 0
        %3064 = vmatpush1.bf16.msra.mxu0 0
        %3065 = vmatprep.subr.bf16.mxu0 0
        %3066 = vmatpush1.bf16.msra.mxu0 0
        %3067 = vmatprep.subr.bf16.mxu0 0
        %3068 = vmatpush1.bf16.msra.mxu0 0
        %3069 = vmatprep.subr.bf16.mxu0 0
        %3070 = vmatpush1.bf16.msra.mxu0 0
        %3071 = vmatprep.subr.bf16.mxu0 %v2661
        %3072 = vmatpush1.bf16.msra.mxu0 %v2660
        %3073 = vmatprep.subr.bf16.mxu0 %v2629
        %3074 = vmatpush1.bf16.msra.mxu0 %v2628
        %3075 = vmatprep.subr.bf16.mxu0 %v2597
        %3076 = vmatpush1.bf16.msra.mxu0 %v2596
        %3077 = vmatprep.subr.bf16.mxu0 0
        %3078 = vmatpush2.bf16.msra.mxu0 0
        %3079 = vmatprep.subr.bf16.mxu0 0
        %3080 = vmatpush2.bf16.msra.mxu0 0
        %3081 = vmatprep.subr.bf16.mxu0 0
        %3082 = vmatpush2.bf16.msra.mxu0 0
        %3083 = vmatprep.subr.bf16.mxu0 0
        %3084 = vmatpush2.bf16.msra.mxu0 0
        %3085 = vmatprep.subr.bf16.mxu0 0
        %3086 = vmatpush2.bf16.msra.mxu0 0
        %3087 = vmatprep.subr.bf16.mxu0 0
        %3088 = vmatpush2.bf16.msra.mxu0 0
        %3089 = vmatprep.subr.bf16.mxu0 0
        %3090 = vmatpush2.bf16.msra.mxu0 0
        %3091 = vmatprep.subr.bf16.mxu0 0
        %3092 = vmatpush2.bf16.msra.mxu0 0
        %3093 = vmatprep.mubr.bf16.mxu0 0
        %3094 = vmatmul.mubr.bf16.gmra.mxu0 %v1539
        %v3095 = vpop.f32.mrf.mxu0
        %v3096 = vadd.f32 0.0, %v3095
        %v3097 = vpop.f32.mrf.mxu0
        %v3098 = vadd.f32 0.0, %v3097
        %v3099 = vpop.f32.mrf.mxu0
        %v3100 = vpop.f32.mrf.mxu0
        %3101 = vdwg.mxu0
        %3102 = vmatprep.subr.bf16.mxu0 0
        %3103 = vmatpush1.bf16.msra.mxu0 0
        %3104 = vmatprep.subr.bf16.mxu0 0
        %3105 = vmatpush1.bf16.msra.mxu0 0
        %3106 = vmatprep.subr.bf16.mxu0 0
        %3107 = vmatpush1.bf16.msra.mxu0 0
        %3108 = vmatprep.subr.bf16.mxu0 0
        %3109 = vmatpush1.bf16.msra.mxu0 0
        %3110 = vmatprep.subr.bf16.mxu0 0
        %3111 = vmatpush1.bf16.msra.mxu0 0
        %3112 = vmatprep.subr.bf16.mxu0 %v2663
        %3113 = vmatpush1.bf16.msra.mxu0 %v2662
        %3114 = vmatprep.subr.bf16.mxu0 %v2631
        %3115 = vmatpush1.bf16.msra.mxu0 %v2630
        %3116 = vmatprep.subr.bf16.mxu0 %v2599
        %3117 = vmatpush1.bf16.msra.mxu0 %v2598
        %3118 = vmatprep.subr.bf16.mxu0 0
        %3119 = vmatpush2.bf16.msra.mxu0 0
        %3120 = vmatprep.subr.bf16.mxu0 0
        %3121 = vmatpush2.bf16.msra.mxu0 0
        %3122 = vmatprep.subr.bf16.mxu0 0
        %3123 = vmatpush2.bf16.msra.mxu0 0
        %3124 = vmatprep.subr.bf16.mxu0 0
        %3125 = vmatpush2.bf16.msra.mxu0 0
        %3126 = vmatprep.subr.bf16.mxu0 0
        %3127 = vmatpush2.bf16.msra.mxu0 0
        %3128 = vmatprep.subr.bf16.mxu0 0
        %3129 = vmatpush2.bf16.msra.mxu0 0
        %3130 = vmatprep.subr.bf16.mxu0 0
        %3131 = vmatpush2.bf16.msra.mxu0 0
        %3132 = vmatprep.subr.bf16.mxu0 0
        %3133 = vmatpush2.bf16.msra.mxu0 0
        %3134 = vmatprep.mubr.bf16.mxu0 0
        %3135 = vmatmul.mubr.bf16.gmra.mxu0 %v1539
        %v3136 = vpop.f32.mrf.mxu0
        %v3137 = vadd.f32 0.0, %v3136
        %v3138 = vpop.f32.mrf.mxu0
        %v3139 = vadd.f32 0.0, %v3138
        %v3140 = vpop.f32.mrf.mxu0
        %v3141 = vpop.f32.mrf.mxu0
        %3142 = vdwg.mxu0
        %3143 = vmatprep.subr.bf16.mxu0 0
        %3144 = vmatpush1.bf16.msra.mxu0 0
        %3145 = vmatprep.subr.bf16.mxu0 0
        %3146 = vmatpush1.bf16.msra.mxu0 0
        %3147 = vmatprep.subr.bf16.mxu0 0
        %3148 = vmatpush1.bf16.msra.mxu0 0
        %3149 = vmatprep.subr.bf16.mxu0 0
        %3150 = vmatpush1.bf16.msra.mxu0 0
        %3151 = vmatprep.subr.bf16.mxu0 0
        %3152 = vmatpush1.bf16.msra.mxu0 0
        %3153 = vmatprep.subr.bf16.mxu0 %v2665
        %3154 = vmatpush1.bf16.msra.mxu0 %v2664
        %3155 = vmatprep.subr.bf16.mxu0 %v2633
        %3156 = vmatpush1.bf16.msra.mxu0 %v2632
        %3157 = vmatprep.subr.bf16.mxu0 %v2601
        %3158 = vmatpush1.bf16.msra.mxu0 %v2600
        %3159 = vmatprep.subr.bf16.mxu0 0
        %3160 = vmatpush2.bf16.msra.mxu0 0
        %3161 = vmatprep.subr.bf16.mxu0 0
        %3162 = vmatpush2.bf16.msra.mxu0 0
        %3163 = vmatprep.subr.bf16.mxu0 0
        %3164 = vmatpush2.bf16.msra.mxu0 0
        %3165 = vmatprep.subr.bf16.mxu0 0
        %3166 = vmatpush2.bf16.msra.mxu0 0
        %3167 = vmatprep.subr.bf16.mxu0 0
        %3168 = vmatpush2.bf16.msra.mxu0 0
        %3169 = vmatprep.subr.bf16.mxu0 0
        %3170 = vmatpush2.bf16.msra.mxu0 0
        %3171 = vmatprep.subr.bf16.mxu0 0
        %3172 = vmatpush2.bf16.msra.mxu0 0
        %3173 = vmatprep.subr.bf16.mxu0 0
        %3174 = vmatpush2.bf16.msra.mxu0 0
        %3175 = vmatprep.mubr.bf16.mxu0 0
        %3176 = vmatmul.mubr.bf16.gmra.mxu0 %v1539
        %v3177 = vpop.f32.mrf.mxu0
        %v3178 = vadd.f32 0.0, %v3177
        %v3179 = vpop.f32.mrf.mxu0
        %v3180 = vadd.f32 0.0, %v3179
        %v3181 = vpop.f32.mrf.mxu0
        %v3182 = vpop.f32.mrf.mxu0
        %3183 = vdwg.mxu0
        %3184 = vmatprep.subr.bf16.mxu0 0
        %3185 = vmatpush1.bf16.msra.mxu0 0
        %3186 = vmatprep.subr.bf16.mxu0 0
        %3187 = vmatpush1.bf16.msra.mxu0 0
        %3188 = vmatprep.subr.bf16.mxu0 0
        %3189 = vmatpush1.bf16.msra.mxu0 0
        %3190 = vmatprep.subr.bf16.mxu0 0
        %3191 = vmatpush1.bf16.msra.mxu0 0
        %3192 = vmatprep.subr.bf16.mxu0 0
        %3193 = vmatpush1.bf16.msra.mxu0 0
        %3194 = vmatprep.subr.bf16.mxu0 %v2667
        %3195 = vmatpush1.bf16.msra.mxu0 %v2666
        %3196 = vmatprep.subr.bf16.mxu0 %v2635
        %3197 = vmatpush1.bf16.msra.mxu0 %v2634
        %3198 = vmatprep.subr.bf16.mxu0 %v2603
        %3199 = vmatpush1.bf16.msra.mxu0 %v2602
        %3200 = vmatprep.subr.bf16.mxu0 0
        %3201 = vmatpush2.bf16.msra.mxu0 0
        %3202 = vmatprep.subr.bf16.mxu0 0
        %3203 = vmatpush2.bf16.msra.mxu0 0
        %3204 = vmatprep.subr.bf16.mxu0 0
        %3205 = vmatpush2.bf16.msra.mxu0 0
        %3206 = vmatprep.subr.bf16.mxu0 0
        %3207 = vmatpush2.bf16.msra.mxu0 0
        %3208 = vmatprep.subr.bf16.mxu0 0
        %3209 = vmatpush2.bf16.msra.mxu0 0
        %3210 = vmatprep.subr.bf16.mxu0 0
        %3211 = vmatpush2.bf16.msra.mxu0 0
        %3212 = vmatprep.subr.bf16.mxu0 0
        %3213 = vmatpush2.bf16.msra.mxu0 0
        %3214 = vmatprep.subr.bf16.mxu0 0
        %3215 = vmatpush2.bf16.msra.mxu0 0
        %3216 = vmatprep.mubr.bf16.mxu0 0
        %3217 = vmatmul.mubr.bf16.gmra.mxu0 %v1539
        %v3218 = vpop.f32.mrf.mxu0
        %v3219 = vadd.f32 0.0, %v3218
        %v3220 = vpop.f32.mrf.mxu0
        %v3221 = vadd.f32 0.0, %v3220
        %v3222 = vpop.f32.mrf.mxu0
        %v3223 = vpop.f32.mrf.mxu0
        %3224 = vdwg.mxu0
        %3225 = vmatprep.subr.bf16.mxu0 0
        %3226 = vmatpush1.bf16.msra.mxu0 0
        %3227 = vmatprep.subr.bf16.mxu0 0
        %3228 = vmatpush1.bf16.msra.mxu0 0
        %3229 = vmatprep.subr.bf16.mxu0 0
        %3230 = vmatpush1.bf16.msra.mxu0 0
        %3231 = vmatprep.subr.bf16.mxu0 0
        %3232 = vmatpush1.bf16.msra.mxu0 0
        %3233 = vmatprep.subr.bf16.mxu0 0
        %3234 = vmatpush1.bf16.msra.mxu0 0
        %3235 = vmatprep.subr.bf16.mxu0 %v2669
        %3236 = vmatpush1.bf16.msra.mxu0 %v2668
        %3237 = vmatprep.subr.bf16.mxu0 %v2637
        %3238 = vmatpush1.bf16.msra.mxu0 %v2636
        %3239 = vmatprep.subr.bf16.mxu0 %v2605
        %3240 = vmatpush1.bf16.msra.mxu0 %v2604
        %3241 = vmatprep.subr.bf16.mxu0 0
        %3242 = vmatpush2.bf16.msra.mxu0 0
        %3243 = vmatprep.subr.bf16.mxu0 0
        %3244 = vmatpush2.bf16.msra.mxu0 0
        %3245 = vmatprep.subr.bf16.mxu0 0
        %3246 = vmatpush2.bf16.msra.mxu0 0
        %3247 = vmatprep.subr.bf16.mxu0 0
        %3248 = vmatpush2.bf16.msra.mxu0 0
        %3249 = vmatprep.subr.bf16.mxu0 0
        %3250 = vmatpush2.bf16.msra.mxu0 0
        %3251 = vmatprep.subr.bf16.mxu0 0
        %3252 = vmatpush2.bf16.msra.mxu0 0
        %3253 = vmatprep.subr.bf16.mxu0 0
        %3254 = vmatpush2.bf16.msra.mxu0 0
        %3255 = vmatprep.subr.bf16.mxu0 0
        %3256 = vmatpush2.bf16.msra.mxu0 0
        %3257 = vmatprep.mubr.bf16.mxu0 0
        %3258 = vmatmul.mubr.bf16.gmra.mxu0 %v1539
        %v3259 = vpop.f32.mrf.mxu0
        %v3260 = vadd.f32 0.0, %v3259
        %v3261 = vpop.f32.mrf.mxu0
        %v3262 = vadd.f32 0.0, %v3261
        %v3263 = vpop.f32.mrf.mxu0
        %v3264 = vpop.f32.mrf.mxu0
        %3265 = vdwg.mxu0
        %3266 = vmatprep.subr.bf16.mxu0 0
        %3267 = vmatpush1.bf16.msra.mxu0 0
        %3268 = vmatprep.subr.bf16.mxu0 0
        %3269 = vmatpush1.bf16.msra.mxu0 0
        %3270 = vmatprep.subr.bf16.mxu0 0
        %3271 = vmatpush1.bf16.msra.mxu0 0
        %3272 = vmatprep.subr.bf16.mxu0 0
        %3273 = vmatpush1.bf16.msra.mxu0 0
        %3274 = vmatprep.subr.bf16.mxu0 0
        %3275 = vmatpush1.bf16.msra.mxu0 0
        %3276 = vmatprep.subr.bf16.mxu0 %v2671
        %3277 = vmatpush1.bf16.msra.mxu0 %v2670
        %3278 = vmatprep.subr.bf16.mxu0 %v2639
        %3279 = vmatpush1.bf16.msra.mxu0 %v2638
        %3280 = vmatprep.subr.bf16.mxu0 %v2607
        %3281 = vmatpush1.bf16.msra.mxu0 %v2606
        %3282 = vmatprep.subr.bf16.mxu0 0
        %3283 = vmatpush2.bf16.msra.mxu0 0
        %3284 = vmatprep.subr.bf16.mxu0 0
        %3285 = vmatpush2.bf16.msra.mxu0 0
        %3286 = vmatprep.subr.bf16.mxu0 0
        %3287 = vmatpush2.bf16.msra.mxu0 0
        %3288 = vmatprep.subr.bf16.mxu0 0
        %3289 = vmatpush2.bf16.msra.mxu0 0
        %3290 = vmatprep.subr.bf16.mxu0 0
        %3291 = vmatpush2.bf16.msra.mxu0 0
        %3292 = vmatprep.subr.bf16.mxu0 0
        %3293 = vmatpush2.bf16.msra.mxu0 0
        %3294 = vmatprep.subr.bf16.mxu0 0
        %3295 = vmatpush2.bf16.msra.mxu0 0
        %3296 = vmatprep.subr.bf16.mxu0 0
        %3297 = vmatpush2.bf16.msra.mxu0 0
        %3298 = vmatprep.mubr.bf16.mxu0 0
        %3299 = vmatmul.mubr.bf16.gmra.mxu0 %v1539
        %v3300 = vpop.f32.mrf.mxu0
        %v3301 = vadd.f32 0.0, %v3300
        %v3302 = vpop.f32.mrf.mxu0
        %v3303 = vadd.f32 0.0, %v3302
        %v3304 = vpop.f32.mrf.mxu0
        %v3305 = vpop.f32.mrf.mxu0
        %3306 = vdwg.mxu0
        %3307 = vmatprep.subr.bf16.mxu0 0
        %3308 = vmatpush1.bf16.msra.mxu0 0
        %3309 = vmatprep.subr.bf16.mxu0 0
        %3310 = vmatpush1.bf16.msra.mxu0 0
        %3311 = vmatprep.subr.bf16.mxu0 0
        %3312 = vmatpush1.bf16.msra.mxu0 0
        %3313 = vmatprep.subr.bf16.mxu0 0
        %3314 = vmatpush1.bf16.msra.mxu0 0
        %3315 = vmatprep.subr.bf16.mxu0 0
        %3316 = vmatpush1.bf16.msra.mxu0 0
        %3317 = vmatprep.subr.bf16.mxu0 %v2673
        %3318 = vmatpush1.bf16.msra.mxu0 %v2672
        %3319 = vmatprep.subr.bf16.mxu0 %v2641
        %3320 = vmatpush1.bf16.msra.mxu0 %v2640
        %3321 = vmatprep.subr.bf16.mxu0 %v2609
        %3322 = vmatpush1.bf16.msra.mxu0 %v2608
        %3323 = vmatprep.subr.bf16.mxu0 0
        %3324 = vmatpush2.bf16.msra.mxu0 0
        %3325 = vmatprep.subr.bf16.mxu0 0
        %3326 = vmatpush2.bf16.msra.mxu0 0
        %3327 = vmatprep.subr.bf16.mxu0 0
        %3328 = vmatpush2.bf16.msra.mxu0 0
        %3329 = vmatprep.subr.bf16.mxu0 0
        %3330 = vmatpush2.bf16.msra.mxu0 0
        %3331 = vmatprep.subr.bf16.mxu0 0
        %3332 = vmatpush2.bf16.msra.mxu0 0
        %3333 = vmatprep.subr.bf16.mxu0 0
        %3334 = vmatpush2.bf16.msra.mxu0 0
        %3335 = vmatprep.subr.bf16.mxu0 0
        %3336 = vmatpush2.bf16.msra.mxu0 0
        %3337 = vmatprep.subr.bf16.mxu0 0
        %3338 = vmatpush2.bf16.msra.mxu0 0
        %3339 = vmatprep.mubr.bf16.mxu0 0
        %3340 = vmatmul.mubr.bf16.gmra.mxu0 %v1539
        %v3341 = vpop.f32.mrf.mxu0
        %v3342 = vadd.f32 0.0, %v3341
        %v3343 = vpop.f32.mrf.mxu0
        %v3344 = vadd.f32 0.0, %v3343
        %v3345 = vpop.f32.mrf.mxu0
        %v3346 = vpop.f32.mrf.mxu0
        %3347 = vdwg.mxu0
        %3348 = vmatprep.subr.bf16.mxu0 0
        %3349 = vmatpush1.bf16.msra.mxu0 0
        %3350 = vmatprep.subr.bf16.mxu0 0
        %3351 = vmatpush1.bf16.msra.mxu0 0
        %3352 = vmatprep.subr.bf16.mxu0 0
        %3353 = vmatpush1.bf16.msra.mxu0 0
        %3354 = vmatprep.subr.bf16.mxu0 0
        %3355 = vmatpush1.bf16.msra.mxu0 0
        %3356 = vmatprep.subr.bf16.mxu0 0
        %3357 = vmatpush1.bf16.msra.mxu0 0
        %3358 = vmatprep.subr.bf16.mxu0 %v2675
        %3359 = vmatpush1.bf16.msra.mxu0 %v2674
        %3360 = vmatprep.subr.bf16.mxu0 %v2643
        %3361 = vmatpush1.bf16.msra.mxu0 %v2642
        %3362 = vmatprep.subr.bf16.mxu0 %v2611
        %3363 = vmatpush1.bf16.msra.mxu0 %v2610
        %3364 = vmatprep.subr.bf16.mxu0 0
        %3365 = vmatpush2.bf16.msra.mxu0 0
        %3366 = vmatprep.subr.bf16.mxu0 0
        %3367 = vmatpush2.bf16.msra.mxu0 0
        %3368 = vmatprep.subr.bf16.mxu0 0
        %3369 = vmatpush2.bf16.msra.mxu0 0
        %3370 = vmatprep.subr.bf16.mxu0 0
        %3371 = vmatpush2.bf16.msra.mxu0 0
        %3372 = vmatprep.subr.bf16.mxu0 0
        %3373 = vmatpush2.bf16.msra.mxu0 0
        %3374 = vmatprep.subr.bf16.mxu0 0
        %3375 = vmatpush2.bf16.msra.mxu0 0
        %3376 = vmatprep.subr.bf16.mxu0 0
        %3377 = vmatpush2.bf16.msra.mxu0 0
        %3378 = vmatprep.subr.bf16.mxu0 0
        %3379 = vmatpush2.bf16.msra.mxu0 0
        %3380 = vmatprep.mubr.bf16.mxu0 0
        %3381 = vmatmul.mubr.bf16.gmra.mxu0 %v1539
        %v3382 = vpop.f32.mrf.mxu0
        %v3383 = vadd.f32 0.0, %v3382
        %v3384 = vpop.f32.mrf.mxu0
        %v3385 = vadd.f32 0.0, %v3384
        %v3386 = vpop.f32.mrf.mxu0
        %v3387 = vpop.f32.mrf.mxu0
        %3388 = vdwg.mxu0
        %3389 = vmatprep.subr.bf16.mxu0 0
        %3390 = vmatpush1.bf16.msra.mxu0 0
        %3391 = vmatprep.subr.bf16.mxu0 0
        %3392 = vmatpush1.bf16.msra.mxu0 0
        %3393 = vmatprep.subr.bf16.mxu0 0
        %3394 = vmatpush1.bf16.msra.mxu0 0
        %3395 = vmatprep.subr.bf16.mxu0 0
        %3396 = vmatpush1.bf16.msra.mxu0 0
        %3397 = vmatprep.subr.bf16.mxu0 0
        %3398 = vmatpush1.bf16.msra.mxu0 0
        %3399 = vmatprep.subr.bf16.mxu0 %v2677
        %3400 = vmatpush1.bf16.msra.mxu0 %v2676
        %3401 = vmatprep.subr.bf16.mxu0 %v2645
        %3402 = vmatpush1.bf16.msra.mxu0 %v2644
        %3403 = vmatprep.subr.bf16.mxu0 %v2613
        %3404 = vmatpush1.bf16.msra.mxu0 %v2612
        %3405 = vmatprep.subr.bf16.mxu0 0
        %3406 = vmatpush2.bf16.msra.mxu0 0
        %3407 = vmatprep.subr.bf16.mxu0 0
        %3408 = vmatpush2.bf16.msra.mxu0 0
        %3409 = vmatprep.subr.bf16.mxu0 0
        %3410 = vmatpush2.bf16.msra.mxu0 0
        %3411 = vmatprep.subr.bf16.mxu0 0
        %3412 = vmatpush2.bf16.msra.mxu0 0
        %3413 = vmatprep.subr.bf16.mxu0 0
        %3414 = vmatpush2.bf16.msra.mxu0 0
        %3415 = vmatprep.subr.bf16.mxu0 0
        %3416 = vmatpush2.bf16.msra.mxu0 0
        %3417 = vmatprep.subr.bf16.mxu0 0
        %3418 = vmatpush2.bf16.msra.mxu0 0
        %3419 = vmatprep.subr.bf16.mxu0 0
        %3420 = vmatpush2.bf16.msra.mxu0 0
        %3421 = vmatprep.mubr.bf16.mxu0 0
        %3422 = vmatmul.mubr.bf16.gmra.mxu0 %v1539
        %v3423 = vpop.f32.mrf.mxu0
        %v3424 = vadd.f32 0.0, %v3423
        %v3425 = vpop.f32.mrf.mxu0
        %v3426 = vadd.f32 0.0, %v3425
        %v3427 = vpop.f32.mrf.mxu0
        %v3428 = vpop.f32.mrf.mxu0
        %3429 = vdwg.mxu0
        %v3430 = vmax.f32 %v1576, %v2809
        %v3431 = vmax.f32 %v1578, %v2811
        %v3432 = vmax.f32 %v1617, %v2850
        %v3433 = vmax.f32 %v1619, %v2852
        %v3434 = vmax.f32 %v1658, %v2891
        %v3435 = vmax.f32 %v1660, %v2893
        %v3436 = vmax.f32 %v1699, %v2932
        %v3437 = vmax.f32 %v1701, %v2934
        %v3438 = vmax.f32 %v1740, %v2973
        %v3439 = vmax.f32 %v1742, %v2975
        %v3440 = vmax.f32 %v1781, %v3014
        %v3441 = vmax.f32 %v1783, %v3016
        %v3442 = vmax.f32 %v1822, %v3055
        %v3443 = vmax.f32 %v1824, %v3057
        %v3444 = vmax.f32 %v1863, %v3096
        %v3445 = vmax.f32 %v1865, %v3098
        %v3446 = vmax.f32 %v1904, %v3137
        %v3447 = vmax.f32 %v1906, %v3139
        %v3448 = vmax.f32 %v1945, %v3178
        %v3449 = vmax.f32 %v1947, %v3180
        %v3450 = vmax.f32 %v1986, %v3219
        %v3451 = vmax.f32 %v1988, %v3221
        %v3452 = vmax.f32 %v2027, %v3260
        %v3453 = vmax.f32 %v2029, %v3262
        %v3454 = vmax.f32 %v2068, %v3301
        %v3455 = vmax.f32 %v2070, %v3303
        %v3456 = vmax.f32 %v2109, %v3342
        %v3457 = vmax.f32 %v2111, %v3344
        %v3458 = vmax.f32 %v2150, %v3383
        %v3459 = vmax.f32 %v2152, %v3385
        %v3460 = vmax.f32 %v2191, %v3424
        %v3461 = vmax.f32 %v2193, %v3426
        %s3462 = scalar_lea.vmem %s931, 1536 [#allocation2]
        %v3463 = vld [vmem:[%s3462] sm:$0xff]
        %v3464 = vld [vmem:[%s3462 + $0x8] sm:$0xff]
        %v3465 = vld [vmem:[%s3462 + $0x10] sm:$0xff]
        %v3466 = vld [vmem:[%s3462 + $0x18] sm:$0xff]
        %v3467 = vld [vmem:[%s3462 + $0x20] sm:$0xff]
        %v3468 = vld [vmem:[%s3462 + $0x28] sm:$0xff]
        %v3469 = vld [vmem:[%s3462 + $0x30] sm:$0xff]
        %v3470 = vld [vmem:[%s3462 + $0x38] sm:$0xff]
        %v3471 = vld [vmem:[%s3462 + $0x40] sm:$0xff]
        %v3472 = vld [vmem:[%s3462 + $0x48] sm:$0xff]
        %v3473 = vld [vmem:[%s3462 + $0x50] sm:$0xff]
        %v3474 = vld [vmem:[%s3462 + $0x58] sm:$0xff]
        %v3475 = vld [vmem:[%s3462 + $0x60] sm:$0xff]
        %v3476 = vld [vmem:[%s3462 + $0x68] sm:$0xff]
        %v3477 = vld [vmem:[%s3462 + $0x70] sm:$0xff]
        %v3478 = vld [vmem:[%s3462 + $0x78] sm:$0xff]
        %v3479 = vld [vmem:[%s3462 + $0x80] sm:$0xff]
        %v3480 = vld [vmem:[%s3462 + $0x88] sm:$0xff]
        %v3481 = vld [vmem:[%s3462 + $0x90] sm:$0xff]
        %v3482 = vld [vmem:[%s3462 + $0x98] sm:$0xff]
        %v3483 = vld [vmem:[%s3462 + $0xa0] sm:$0xff]
        %v3484 = vld [vmem:[%s3462 + $0xa8] sm:$0xff]
        %v3485 = vld [vmem:[%s3462 + $0xb0] sm:$0xff]
        %v3486 = vld [vmem:[%s3462 + $0xb8] sm:$0xff]
        %v3487 = vld [vmem:[%s3462 + $0xc0] sm:$0xff]
        %v3488 = vld [vmem:[%s3462 + $0xc8] sm:$0xff]
        %v3489 = vld [vmem:[%s3462 + $0xd0] sm:$0xff]
        %v3490 = vld [vmem:[%s3462 + $0xd8] sm:$0xff]
        %v3491 = vld [vmem:[%s3462 + $0xe0] sm:$0xff]
        %v3492 = vld [vmem:[%s3462 + $0xe8] sm:$0xff]
        %v3493 = vld [vmem:[%s3462 + $0xf0] sm:$0xff]
        %v3494 = vld [vmem:[%s3462 + $0xf8] sm:$0xff]
        %v3495 = vld [vmem:[%s3462 + $0x100] sm:$0xff]
        %v3496 = vld [vmem:[%s3462 + $0x108] sm:$0xff]
        %v3497 = vld [vmem:[%s3462 + $0x110] sm:$0xff]
        %v3498 = vld [vmem:[%s3462 + $0x118] sm:$0xff]
        %v3499 = vld [vmem:[%s3462 + $0x120] sm:$0xff]
        %v3500 = vld [vmem:[%s3462 + $0x128] sm:$0xff]
        %v3501 = vld [vmem:[%s3462 + $0x130] sm:$0xff]
        %v3502 = vld [vmem:[%s3462 + $0x138] sm:$0xff]
        %v3503 = vld [vmem:[%s3462 + $0x140] sm:$0xff]
        %v3504 = vld [vmem:[%s3462 + $0x148] sm:$0xff]
        %v3505 = vld [vmem:[%s3462 + $0x150] sm:$0xff]
        %v3506 = vld [vmem:[%s3462 + $0x158] sm:$0xff]
        %v3507 = vld [vmem:[%s3462 + $0x160] sm:$0xff]
        %v3508 = vld [vmem:[%s3462 + $0x168] sm:$0xff]
        %v3509 = vld [vmem:[%s3462 + $0x170] sm:$0xff]
        %v3510 = vld [vmem:[%s3462 + $0x178] sm:$0xff]
        %v3511 = vld [vmem:[%s3462 + $0x180] sm:$0xff]
        %v3512 = vld [vmem:[%s3462 + $0x188] sm:$0xff]
        %v3513 = vld [vmem:[%s3462 + $0x190] sm:$0xff]
        %v3514 = vld [vmem:[%s3462 + $0x198] sm:$0xff]
        %v3515 = vld [vmem:[%s3462 + $0x1a0] sm:$0xff]
        %v3516 = vld [vmem:[%s3462 + $0x1a8] sm:$0xff]
        %v3517 = vld [vmem:[%s3462 + $0x1b0] sm:$0xff]
        %v3518 = vld [vmem:[%s3462 + $0x1b8] sm:$0xff]
        %v3519 = vld [vmem:[%s3462 + $0x1c0] sm:$0xff]
        %v3520 = vld [vmem:[%s3462 + $0x1c8] sm:$0xff]
        %v3521 = vld [vmem:[%s3462 + $0x1d0] sm:$0xff]
        %v3522 = vld [vmem:[%s3462 + $0x1d8] sm:$0xff]
        %v3523 = vld [vmem:[%s3462 + $0x1e0] sm:$0xff]
        %v3524 = vld [vmem:[%s3462 + $0x1e8] sm:$0xff]
        %v3525 = vld [vmem:[%s3462 + $0x1f0] sm:$0xff]
        %v3526 = vld [vmem:[%s3462 + $0x1f8] sm:$0xff]
        %v3527 = vld [vmem:[%s3462 + $0x200] sm:$0xff]
        %v3528 = vld [vmem:[%s3462 + $0x208] sm:$0xff]
        %v3529 = vld [vmem:[%s3462 + $0x210] sm:$0xff]
        %v3530 = vld [vmem:[%s3462 + $0x218] sm:$0xff]
        %v3531 = vld [vmem:[%s3462 + $0x220] sm:$0xff]
        %v3532 = vld [vmem:[%s3462 + $0x228] sm:$0xff]
        %v3533 = vld [vmem:[%s3462 + $0x230] sm:$0xff]
        %v3534 = vld [vmem:[%s3462 + $0x238] sm:$0xff]
        %v3535 = vld [vmem:[%s3462 + $0x240] sm:$0xff]
        %v3536 = vld [vmem:[%s3462 + $0x248] sm:$0xff]
        %v3537 = vld [vmem:[%s3462 + $0x250] sm:$0xff]
        %v3538 = vld [vmem:[%s3462 + $0x258] sm:$0xff]
        %v3539 = vld [vmem:[%s3462 + $0x260] sm:$0xff]
        %v3540 = vld [vmem:[%s3462 + $0x268] sm:$0xff]
        %v3541 = vld [vmem:[%s3462 + $0x270] sm:$0xff]
        %v3542 = vld [vmem:[%s3462 + $0x278] sm:$0xff]
        %v3543 = vld [vmem:[%s3462 + $0x280] sm:$0xff]
        %v3544 = vld [vmem:[%s3462 + $0x288] sm:$0xff]
        %v3545 = vld [vmem:[%s3462 + $0x290] sm:$0xff]
        %v3546 = vld [vmem:[%s3462 + $0x298] sm:$0xff]
        %v3547 = vld [vmem:[%s3462 + $0x2a0] sm:$0xff]
        %v3548 = vld [vmem:[%s3462 + $0x2a8] sm:$0xff]
        %v3549 = vld [vmem:[%s3462 + $0x2b0] sm:$0xff]
        %v3550 = vld [vmem:[%s3462 + $0x2b8] sm:$0xff]
        %v3551 = vld [vmem:[%s3462 + $0x2c0] sm:$0xff]
        %v3552 = vld [vmem:[%s3462 + $0x2c8] sm:$0xff]
        %v3553 = vld [vmem:[%s3462 + $0x2d0] sm:$0xff]
        %v3554 = vld [vmem:[%s3462 + $0x2d8] sm:$0xff]
        %v3555 = vld [vmem:[%s3462 + $0x2e0] sm:$0xff]
        %v3556 = vld [vmem:[%s3462 + $0x2e8] sm:$0xff]
        %v3557 = vld [vmem:[%s3462 + $0x2f0] sm:$0xff]
        %v3558 = vld [vmem:[%s3462 + $0x2f8] sm:$0xff]
        %v3655 = vunpack.c.l.b16 %v3463
        %v3656 = vunpack.c.h.b16 %v3463
        %v3657 = vunpack.c.l.b16 %v3464
        %v3658 = vunpack.c.h.b16 %v3464
        %v3659 = vunpack.c.l.b16 %v3465
        %v3660 = vunpack.c.h.b16 %v3465
        %v3661 = vunpack.c.l.b16 %v3466
        %v3662 = vunpack.c.h.b16 %v3466
        %v3663 = vunpack.c.l.b16 %v3467
        %v3664 = vunpack.c.h.b16 %v3467
        %v3665 = vunpack.c.l.b16 %v3468
        %v3666 = vunpack.c.h.b16 %v3468
        %v3667 = vunpack.c.l.b16 %v3469
        %v3668 = vunpack.c.h.b16 %v3469
        %v3669 = vunpack.c.l.b16 %v3470
        %v3670 = vunpack.c.h.b16 %v3470
        %v3671 = vunpack.c.l.b16 %v3471
        %v3672 = vunpack.c.h.b16 %v3471
        %v3673 = vunpack.c.l.b16 %v3472
        %v3674 = vunpack.c.h.b16 %v3472
        %v3675 = vunpack.c.l.b16 %v3473
        %v3676 = vunpack.c.h.b16 %v3473
        %v3677 = vunpack.c.l.b16 %v3474
        %v3678 = vunpack.c.h.b16 %v3474
        %v3679 = vunpack.c.l.b16 %v3475
        %v3680 = vunpack.c.h.b16 %v3475
        %v3681 = vunpack.c.l.b16 %v3476
        %v3682 = vunpack.c.h.b16 %v3476
        %v3683 = vunpack.c.l.b16 %v3477
        %v3684 = vunpack.c.h.b16 %v3477
        %v3685 = vunpack.c.l.b16 %v3478
        %v3686 = vunpack.c.h.b16 %v3478
        %v3687 = vunpack.c.l.b16 %v3479
        %v3688 = vunpack.c.h.b16 %v3479
        %v3689 = vunpack.c.l.b16 %v3480
        %v3690 = vunpack.c.h.b16 %v3480
        %v3691 = vunpack.c.l.b16 %v3481
        %v3692 = vunpack.c.h.b16 %v3481
        %v3693 = vunpack.c.l.b16 %v3482
        %v3694 = vunpack.c.h.b16 %v3482
        %v3695 = vunpack.c.l.b16 %v3483
        %v3696 = vunpack.c.h.b16 %v3483
        %v3697 = vunpack.c.l.b16 %v3484
        %v3698 = vunpack.c.h.b16 %v3484
        %v3699 = vunpack.c.l.b16 %v3485
        %v3700 = vunpack.c.h.b16 %v3485
        %v3701 = vunpack.c.l.b16 %v3486
        %v3702 = vunpack.c.h.b16 %v3486
        %v3703 = vunpack.c.l.b16 %v3487
        %v3704 = vunpack.c.h.b16 %v3487
        %v3705 = vunpack.c.l.b16 %v3488
        %v3706 = vunpack.c.h.b16 %v3488
        %v3707 = vunpack.c.l.b16 %v3489
        %v3708 = vunpack.c.h.b16 %v3489
        %v3709 = vunpack.c.l.b16 %v3490
        %v3710 = vunpack.c.h.b16 %v3490
        %v3711 = vunpack.c.l.b16 %v3491
        %v3712 = vunpack.c.h.b16 %v3491
        %v3713 = vunpack.c.l.b16 %v3492
        %v3714 = vunpack.c.h.b16 %v3492
        %v3715 = vunpack.c.l.b16 %v3493
        %v3716 = vunpack.c.h.b16 %v3493
        %v3717 = vunpack.c.l.b16 %v3494
        %v3718 = vunpack.c.h.b16 %v3494
        %v3719 = vunpack.c.l.b16 %v3495
        %v3720 = vunpack.c.h.b16 %v3495
        %v3721 = vunpack.c.l.b16 %v3496
        %v3722 = vunpack.c.h.b16 %v3496
        %v3723 = vunpack.c.l.b16 %v3497
        %v3724 = vunpack.c.h.b16 %v3497
        %v3725 = vunpack.c.l.b16 %v3498
        %v3726 = vunpack.c.h.b16 %v3498
        %v3727 = vunpack.c.l.b16 %v3499
        %v3728 = vunpack.c.h.b16 %v3499
        %v3729 = vunpack.c.l.b16 %v3500
        %v3730 = vunpack.c.h.b16 %v3500
        %v3731 = vunpack.c.l.b16 %v3501
        %v3732 = vunpack.c.h.b16 %v3501
        %v3733 = vunpack.c.l.b16 %v3502
        %v3734 = vunpack.c.h.b16 %v3502
        %v3735 = vunpack.c.l.b16 %v3503
        %v3736 = vunpack.c.h.b16 %v3503
        %v3737 = vunpack.c.l.b16 %v3504
        %v3738 = vunpack.c.h.b16 %v3504
        %v3739 = vunpack.c.l.b16 %v3505
        %v3740 = vunpack.c.h.b16 %v3505
        %v3741 = vunpack.c.l.b16 %v3506
        %v3742 = vunpack.c.h.b16 %v3506
        %v3743 = vunpack.c.l.b16 %v3507
        %v3744 = vunpack.c.h.b16 %v3507
        %v3745 = vunpack.c.l.b16 %v3508
        %v3746 = vunpack.c.h.b16 %v3508
        %v3747 = vunpack.c.l.b16 %v3509
        %v3748 = vunpack.c.h.b16 %v3509
        %v3749 = vunpack.c.l.b16 %v3510
        %v3750 = vunpack.c.h.b16 %v3510
        %v3751 = vunpack.c.l.b16 %v3511
        %v3752 = vunpack.c.h.b16 %v3511
        %v3753 = vunpack.c.l.b16 %v3512
        %v3754 = vunpack.c.h.b16 %v3512
        %v3755 = vunpack.c.l.b16 %v3513
        %v3756 = vunpack.c.h.b16 %v3513
        %v3757 = vunpack.c.l.b16 %v3514
        %v3758 = vunpack.c.h.b16 %v3514
        %v3759 = vunpack.c.l.b16 %v3515
        %v3760 = vunpack.c.h.b16 %v3515
        %v3761 = vunpack.c.l.b16 %v3516
        %v3762 = vunpack.c.h.b16 %v3516
        %v3763 = vunpack.c.l.b16 %v3517
        %v3764 = vunpack.c.h.b16 %v3517
        %v3765 = vunpack.c.l.b16 %v3518
        %v3766 = vunpack.c.h.b16 %v3518
        %v3767 = vunpack.c.l.b16 %v3519
        %v3768 = vunpack.c.h.b16 %v3519
        %v3769 = vunpack.c.l.b16 %v3520
        %v3770 = vunpack.c.h.b16 %v3520
        %v3771 = vunpack.c.l.b16 %v3521
        %v3772 = vunpack.c.h.b16 %v3521
        %v3773 = vunpack.c.l.b16 %v3522
        %v3774 = vunpack.c.h.b16 %v3522
        %v3775 = vunpack.c.l.b16 %v3523
        %v3776 = vunpack.c.h.b16 %v3523
        %v3777 = vunpack.c.l.b16 %v3524
        %v3778 = vunpack.c.h.b16 %v3524
        %v3779 = vunpack.c.l.b16 %v3525
        %v3780 = vunpack.c.h.b16 %v3525
        %v3781 = vunpack.c.l.b16 %v3526
        %v3782 = vunpack.c.h.b16 %v3526
        %v3783 = vunpack.c.l.b16 %v3527
        %v3784 = vunpack.c.h.b16 %v3527
        %v3785 = vunpack.c.l.b16 %v3528
        %v3786 = vunpack.c.h.b16 %v3528
        %v3787 = vunpack.c.l.b16 %v3529
        %v3788 = vunpack.c.h.b16 %v3529
        %v3789 = vunpack.c.l.b16 %v3530
        %v3790 = vunpack.c.h.b16 %v3530
        %v3791 = vunpack.c.l.b16 %v3531
        %v3792 = vunpack.c.h.b16 %v3531
        %v3793 = vunpack.c.l.b16 %v3532
        %v3794 = vunpack.c.h.b16 %v3532
        %v3795 = vunpack.c.l.b16 %v3533
        %v3796 = vunpack.c.h.b16 %v3533
        %v3797 = vunpack.c.l.b16 %v3534
        %v3798 = vunpack.c.h.b16 %v3534
        %v3799 = vunpack.c.l.b16 %v3535
        %v3800 = vunpack.c.h.b16 %v3535
        %v3801 = vunpack.c.l.b16 %v3536
        %v3802 = vunpack.c.h.b16 %v3536
        %v3803 = vunpack.c.l.b16 %v3537
        %v3804 = vunpack.c.h.b16 %v3537
        %v3805 = vunpack.c.l.b16 %v3538
        %v3806 = vunpack.c.h.b16 %v3538
        %v3807 = vunpack.c.l.b16 %v3539
        %v3808 = vunpack.c.h.b16 %v3539
        %v3809 = vunpack.c.l.b16 %v3540
        %v3810 = vunpack.c.h.b16 %v3540
        %v3811 = vunpack.c.l.b16 %v3541
        %v3812 = vunpack.c.h.b16 %v3541
        %v3813 = vunpack.c.l.b16 %v3542
        %v3814 = vunpack.c.h.b16 %v3542
        %v3815 = vunpack.c.l.b16 %v3543
        %v3816 = vunpack.c.h.b16 %v3543
        %v3817 = vunpack.c.l.b16 %v3544
        %v3818 = vunpack.c.h.b16 %v3544
        %v3819 = vunpack.c.l.b16 %v3545
        %v3820 = vunpack.c.h.b16 %v3545
        %v3821 = vunpack.c.l.b16 %v3546
        %v3822 = vunpack.c.h.b16 %v3546
        %v3823 = vunpack.c.l.b16 %v3547
        %v3824 = vunpack.c.h.b16 %v3547
        %v3825 = vunpack.c.l.b16 %v3548
        %v3826 = vunpack.c.h.b16 %v3548
        %v3827 = vunpack.c.l.b16 %v3549
        %v3828 = vunpack.c.h.b16 %v3549
        %v3829 = vunpack.c.l.b16 %v3550
        %v3830 = vunpack.c.h.b16 %v3550
        %v3831 = vunpack.c.l.b16 %v3551
        %v3832 = vunpack.c.h.b16 %v3551
        %v3833 = vunpack.c.l.b16 %v3552
        %v3834 = vunpack.c.h.b16 %v3552
        %v3835 = vunpack.c.l.b16 %v3553
        %v3836 = vunpack.c.h.b16 %v3553
        %v3837 = vunpack.c.l.b16 %v3554
        %v3838 = vunpack.c.h.b16 %v3554
        %v3839 = vunpack.c.l.b16 %v3555
        %v3840 = vunpack.c.h.b16 %v3555
        %v3841 = vunpack.c.l.b16 %v3556
        %v3842 = vunpack.c.h.b16 %v3556
        %v3843 = vunpack.c.l.b16 %v3557
        %v3844 = vunpack.c.h.b16 %v3557
        %v3845 = vunpack.c.l.b16 %v3558
        %v3846 = vunpack.c.h.b16 %v3558
        %v3847 = vpack.c.b16 %v3687, %v3655
        %v3848 = vpack.c.b16 %v3688, %v3656
        %v3849 = vpack.c.b16 %v3689, %v3657
        %v3850 = vpack.c.b16 %v3690, %v3658
        %v3851 = vpack.c.b16 %v3691, %v3659
        %v3852 = vpack.c.b16 %v3692, %v3660
        %v3853 = vpack.c.b16 %v3693, %v3661
        %v3854 = vpack.c.b16 %v3694, %v3662
        %v3855 = vpack.c.b16 %v3695, %v3663
        %v3856 = vpack.c.b16 %v3696, %v3664
        %v3857 = vpack.c.b16 %v3697, %v3665
        %v3858 = vpack.c.b16 %v3698, %v3666
        %v3859 = vpack.c.b16 %v3699, %v3667
        %v3860 = vpack.c.b16 %v3700, %v3668
        %v3861 = vpack.c.b16 %v3701, %v3669
        %v3862 = vpack.c.b16 %v3702, %v3670
        %v3863 = vpack.c.b16 %v3703, %v3671
        %v3864 = vpack.c.b16 %v3704, %v3672
        %v3865 = vpack.c.b16 %v3705, %v3673
        %v3866 = vpack.c.b16 %v3706, %v3674
        %v3867 = vpack.c.b16 %v3707, %v3675
        %v3868 = vpack.c.b16 %v3708, %v3676
        %v3869 = vpack.c.b16 %v3709, %v3677
        %v3870 = vpack.c.b16 %v3710, %v3678
        %v3871 = vpack.c.b16 %v3711, %v3679
        %v3872 = vpack.c.b16 %v3712, %v3680
        %v3873 = vpack.c.b16 %v3713, %v3681
        %v3874 = vpack.c.b16 %v3714, %v3682
        %v3875 = vpack.c.b16 %v3715, %v3683
        %v3876 = vpack.c.b16 %v3716, %v3684
        %v3877 = vpack.c.b16 %v3717, %v3685
        %v3878 = vpack.c.b16 %v3718, %v3686
        %v3879 = vpack.c.b16 %v3751, %v3719
        %v3880 = vpack.c.b16 %v3752, %v3720
        %v3881 = vpack.c.b16 %v3753, %v3721
        %v3882 = vpack.c.b16 %v3754, %v3722
        %v3883 = vpack.c.b16 %v3755, %v3723
        %v3884 = vpack.c.b16 %v3756, %v3724
        %v3885 = vpack.c.b16 %v3757, %v3725
        %v3886 = vpack.c.b16 %v3758, %v3726
        %v3887 = vpack.c.b16 %v3759, %v3727
        %v3888 = vpack.c.b16 %v3760, %v3728
        %v3889 = vpack.c.b16 %v3761, %v3729
        %v3890 = vpack.c.b16 %v3762, %v3730
        %v3891 = vpack.c.b16 %v3763, %v3731
        %v3892 = vpack.c.b16 %v3764, %v3732
        %v3893 = vpack.c.b16 %v3765, %v3733
        %v3894 = vpack.c.b16 %v3766, %v3734
        %v3895 = vpack.c.b16 %v3767, %v3735
        %v3896 = vpack.c.b16 %v3768, %v3736
        %v3897 = vpack.c.b16 %v3769, %v3737
        %v3898 = vpack.c.b16 %v3770, %v3738
        %v3899 = vpack.c.b16 %v3771, %v3739
        %v3900 = vpack.c.b16 %v3772, %v3740
        %v3901 = vpack.c.b16 %v3773, %v3741
        %v3902 = vpack.c.b16 %v3774, %v3742
        %v3903 = vpack.c.b16 %v3775, %v3743
        %v3904 = vpack.c.b16 %v3776, %v3744
        %v3905 = vpack.c.b16 %v3777, %v3745
        %v3906 = vpack.c.b16 %v3778, %v3746
        %v3907 = vpack.c.b16 %v3779, %v3747
        %v3908 = vpack.c.b16 %v3780, %v3748
        %v3909 = vpack.c.b16 %v3781, %v3749
        %v3910 = vpack.c.b16 %v3782, %v3750
        %v3911 = vpack.c.b16 %v3815, %v3783
        %v3912 = vpack.c.b16 %v3816, %v3784
        %v3913 = vpack.c.b16 %v3817, %v3785
        %v3914 = vpack.c.b16 %v3818, %v3786
        %v3915 = vpack.c.b16 %v3819, %v3787
        %v3916 = vpack.c.b16 %v3820, %v3788
        %v3917 = vpack.c.b16 %v3821, %v3789
        %v3918 = vpack.c.b16 %v3822, %v3790
        %v3919 = vpack.c.b16 %v3823, %v3791
        %v3920 = vpack.c.b16 %v3824, %v3792
        %v3921 = vpack.c.b16 %v3825, %v3793
        %v3922 = vpack.c.b16 %v3826, %v3794
        %v3923 = vpack.c.b16 %v3827, %v3795
        %v3924 = vpack.c.b16 %v3828, %v3796
        %v3925 = vpack.c.b16 %v3829, %v3797
        %v3926 = vpack.c.b16 %v3830, %v3798
        %v3927 = vpack.c.b16 %v3831, %v3799
        %v3928 = vpack.c.b16 %v3832, %v3800
        %v3929 = vpack.c.b16 %v3833, %v3801
        %v3930 = vpack.c.b16 %v3834, %v3802
        %v3931 = vpack.c.b16 %v3835, %v3803
        %v3932 = vpack.c.b16 %v3836, %v3804
        %v3933 = vpack.c.b16 %v3837, %v3805
        %v3934 = vpack.c.b16 %v3838, %v3806
        %v3935 = vpack.c.b16 %v3839, %v3807
        %v3936 = vpack.c.b16 %v3840, %v3808
        %v3937 = vpack.c.b16 %v3841, %v3809
        %v3938 = vpack.c.b16 %v3842, %v3810
        %v3939 = vpack.c.b16 %v3843, %v3811
        %v3940 = vpack.c.b16 %v3844, %v3812
        %v3941 = vpack.c.b16 %v3845, %v3813
        %v3942 = vpack.c.b16 %v3846, %v3814
        %4039 = vmatprep.subr.bf16.mxu0 0
        %4040 = vmatpush1.bf16.msra.mxu0 0
        %4041 = vmatprep.subr.bf16.mxu0 0
        %4042 = vmatpush1.bf16.msra.mxu0 0
        %4043 = vmatprep.subr.bf16.mxu0 0
        %4044 = vmatpush1.bf16.msra.mxu0 0
        %4045 = vmatprep.subr.bf16.mxu0 0
        %4046 = vmatpush1.bf16.msra.mxu0 0
        %4047 = vmatprep.subr.bf16.mxu0 0
        %4048 = vmatpush1.bf16.msra.mxu0 0
        %4049 = vmatprep.subr.bf16.mxu0 %v3912
        %4050 = vmatpush1.bf16.msra.mxu0 %v3911
        %4051 = vmatprep.subr.bf16.mxu0 %v3880
        %4052 = vmatpush1.bf16.msra.mxu0 %v3879
        %4053 = vmatprep.subr.bf16.mxu0 %v3848
        %4054 = vmatpush1.bf16.msra.mxu0 %v3847
        %4055 = vmatprep.subr.bf16.mxu0 0
        %4056 = vmatpush2.bf16.msra.mxu0 0
        %4057 = vmatprep.subr.bf16.mxu0 0
        %4058 = vmatpush2.bf16.msra.mxu0 0
        %4059 = vmatprep.subr.bf16.mxu0 0
        %4060 = vmatpush2.bf16.msra.mxu0 0
        %4061 = vmatprep.subr.bf16.mxu0 0
        %4062 = vmatpush2.bf16.msra.mxu0 0
        %4063 = vmatprep.subr.bf16.mxu0 0
        %4064 = vmatpush2.bf16.msra.mxu0 0
        %4065 = vmatprep.subr.bf16.mxu0 0
        %4066 = vmatpush2.bf16.msra.mxu0 0
        %4067 = vmatprep.subr.bf16.mxu0 0
        %4068 = vmatpush2.bf16.msra.mxu0 0
        %4069 = vmatprep.subr.bf16.mxu0 0
        %4070 = vmatpush2.bf16.msra.mxu0 0
        %4071 = vmatprep.mubr.bf16.mxu0 0
        %4072 = vmatmul.mubr.bf16.gmra.mxu0 %v1539
        %v4073 = vpop.f32.mrf.mxu0
        %v4074 = vadd.f32 0.0, %v4073
        %v4075 = vpop.f32.mrf.mxu0
        %v4076 = vadd.f32 0.0, %v4075
        %v4077 = vpop.f32.mrf.mxu0
        %v4078 = vpop.f32.mrf.mxu0
        %4079 = vdwg.mxu0
        %4080 = vmatprep.subr.bf16.mxu0 0
        %4081 = vmatpush1.bf16.msra.mxu0 0
        %4082 = vmatprep.subr.bf16.mxu0 0
        %4083 = vmatpush1.bf16.msra.mxu0 0
        %4084 = vmatprep.subr.bf16.mxu0 0
        %4085 = vmatpush1.bf16.msra.mxu0 0
        %4086 = vmatprep.subr.bf16.mxu0 0
        %4087 = vmatpush1.bf16.msra.mxu0 0
        %4088 = vmatprep.subr.bf16.mxu0 0
        %4089 = vmatpush1.bf16.msra.mxu0 0
        %4090 = vmatprep.subr.bf16.mxu0 %v3914
        %4091 = vmatpush1.bf16.msra.mxu0 %v3913
        %4092 = vmatprep.subr.bf16.mxu0 %v3882
        %4093 = vmatpush1.bf16.msra.mxu0 %v3881
        %4094 = vmatprep.subr.bf16.mxu0 %v3850
        %4095 = vmatpush1.bf16.msra.mxu0 %v3849
        %4096 = vmatprep.subr.bf16.mxu0 0
        %4097 = vmatpush2.bf16.msra.mxu0 0
        %4098 = vmatprep.subr.bf16.mxu0 0
        %4099 = vmatpush2.bf16.msra.mxu0 0
        %4100 = vmatprep.subr.bf16.mxu0 0
        %4101 = vmatpush2.bf16.msra.mxu0 0
        %4102 = vmatprep.subr.bf16.mxu0 0
        %4103 = vmatpush2.bf16.msra.mxu0 0
        %4104 = vmatprep.subr.bf16.mxu0 0
        %4105 = vmatpush2.bf16.msra.mxu0 0
        %4106 = vmatprep.subr.bf16.mxu0 0
        %4107 = vmatpush2.bf16.msra.mxu0 0
        %4108 = vmatprep.subr.bf16.mxu0 0
        %4109 = vmatpush2.bf16.msra.mxu0 0
        %4110 = vmatprep.subr.bf16.mxu0 0
        %4111 = vmatpush2.bf16.msra.mxu0 0
        %4112 = vmatprep.mubr.bf16.mxu0 0
        %4113 = vmatmul.mubr.bf16.gmra.mxu0 %v1539
        %v4114 = vpop.f32.mrf.mxu0
        %v4115 = vadd.f32 0.0, %v4114
        %v4116 = vpop.f32.mrf.mxu0
        %v4117 = vadd.f32 0.0, %v4116
        %v4118 = vpop.f32.mrf.mxu0
        %v4119 = vpop.f32.mrf.mxu0
        %4120 = vdwg.mxu0
        %4121 = vmatprep.subr.bf16.mxu0 0
        %4122 = vmatpush1.bf16.msra.mxu0 0
        %4123 = vmatprep.subr.bf16.mxu0 0
        %4124 = vmatpush1.bf16.msra.mxu0 0
        %4125 = vmatprep.subr.bf16.mxu0 0
        %4126 = vmatpush1.bf16.msra.mxu0 0
        %4127 = vmatprep.subr.bf16.mxu0 0
        %4128 = vmatpush1.bf16.msra.mxu0 0
        %4129 = vmatprep.subr.bf16.mxu0 0
        %4130 = vmatpush1.bf16.msra.mxu0 0
        %4131 = vmatprep.subr.bf16.mxu0 %v3916
        %4132 = vmatpush1.bf16.msra.mxu0 %v3915
        %4133 = vmatprep.subr.bf16.mxu0 %v3884
        %4134 = vmatpush1.bf16.msra.mxu0 %v3883
        %4135 = vmatprep.subr.bf16.mxu0 %v3852
        %4136 = vmatpush1.bf16.msra.mxu0 %v3851
        %4137 = vmatprep.subr.bf16.mxu0 0
        %4138 = vmatpush2.bf16.msra.mxu0 0
        %4139 = vmatprep.subr.bf16.mxu0 0
        %4140 = vmatpush2.bf16.msra.mxu0 0
        %4141 = vmatprep.subr.bf16.mxu0 0
        %4142 = vmatpush2.bf16.msra.mxu0 0
        %4143 = vmatprep.subr.bf16.mxu0 0
        %4144 = vmatpush2.bf16.msra.mxu0 0
        %4145 = vmatprep.subr.bf16.mxu0 0
        %4146 = vmatpush2.bf16.msra.mxu0 0
        %4147 = vmatprep.subr.bf16.mxu0 0
        %4148 = vmatpush2.bf16.msra.mxu0 0
        %4149 = vmatprep.subr.bf16.mxu0 0
        %4150 = vmatpush2.bf16.msra.mxu0 0
        %4151 = vmatprep.subr.bf16.mxu0 0
        %4152 = vmatpush2.bf16.msra.mxu0 0
        %4153 = vmatprep.mubr.bf16.mxu0 0
        %4154 = vmatmul.mubr.bf16.gmra.mxu0 %v1539
        %v4155 = vpop.f32.mrf.mxu0
        %v4156 = vadd.f32 0.0, %v4155
        %v4157 = vpop.f32.mrf.mxu0
        %v4158 = vadd.f32 0.0, %v4157
        %v4159 = vpop.f32.mrf.mxu0
        %v4160 = vpop.f32.mrf.mxu0
        %4161 = vdwg.mxu0
        %4162 = vmatprep.subr.bf16.mxu0 0
        %4163 = vmatpush1.bf16.msra.mxu0 0
        %4164 = vmatprep.subr.bf16.mxu0 0
        %4165 = vmatpush1.bf16.msra.mxu0 0
        %4166 = vmatprep.subr.bf16.mxu0 0
        %4167 = vmatpush1.bf16.msra.mxu0 0
        %4168 = vmatprep.subr.bf16.mxu0 0
        %4169 = vmatpush1.bf16.msra.mxu0 0
        %4170 = vmatprep.subr.bf16.mxu0 0
        %4171 = vmatpush1.bf16.msra.mxu0 0
        %4172 = vmatprep.subr.bf16.mxu0 %v3918
        %4173 = vmatpush1.bf16.msra.mxu0 %v3917
        %4174 = vmatprep.subr.bf16.mxu0 %v3886
        %4175 = vmatpush1.bf16.msra.mxu0 %v3885
        %4176 = vmatprep.subr.bf16.mxu0 %v3854
        %4177 = vmatpush1.bf16.msra.mxu0 %v3853
        %4178 = vmatprep.subr.bf16.mxu0 0
        %4179 = vmatpush2.bf16.msra.mxu0 0
        %4180 = vmatprep.subr.bf16.mxu0 0
        %4181 = vmatpush2.bf16.msra.mxu0 0
        %4182 = vmatprep.subr.bf16.mxu0 0
        %4183 = vmatpush2.bf16.msra.mxu0 0
        %4184 = vmatprep.subr.bf16.mxu0 0
        %4185 = vmatpush2.bf16.msra.mxu0 0
        %4186 = vmatprep.subr.bf16.mxu0 0
        %4187 = vmatpush2.bf16.msra.mxu0 0
        %4188 = vmatprep.subr.bf16.mxu0 0
        %4189 = vmatpush2.bf16.msra.mxu0 0
        %4190 = vmatprep.subr.bf16.mxu0 0
        %4191 = vmatpush2.bf16.msra.mxu0 0
        %4192 = vmatprep.subr.bf16.mxu0 0
        %4193 = vmatpush2.bf16.msra.mxu0 0
        %4194 = vmatprep.mubr.bf16.mxu0 0
        %4195 = vmatmul.mubr.bf16.gmra.mxu0 %v1539
        %v4196 = vpop.f32.mrf.mxu0
        %v4197 = vadd.f32 0.0, %v4196
        %v4198 = vpop.f32.mrf.mxu0
        %v4199 = vadd.f32 0.0, %v4198
        %v4200 = vpop.f32.mrf.mxu0
        %v4201 = vpop.f32.mrf.mxu0
        %4202 = vdwg.mxu0
        %4203 = vmatprep.subr.bf16.mxu0 0
        %4204 = vmatpush1.bf16.msra.mxu0 0
        %4205 = vmatprep.subr.bf16.mxu0 0
        %4206 = vmatpush1.bf16.msra.mxu0 0
        %4207 = vmatprep.subr.bf16.mxu0 0
        %4208 = vmatpush1.bf16.msra.mxu0 0
        %4209 = vmatprep.subr.bf16.mxu0 0
        %4210 = vmatpush1.bf16.msra.mxu0 0
        %4211 = vmatprep.subr.bf16.mxu0 0
        %4212 = vmatpush1.bf16.msra.mxu0 0
        %4213 = vmatprep.subr.bf16.mxu0 %v3920
        %4214 = vmatpush1.bf16.msra.mxu0 %v3919
        %4215 = vmatprep.subr.bf16.mxu0 %v3888
        %4216 = vmatpush1.bf16.msra.mxu0 %v3887
        %4217 = vmatprep.subr.bf16.mxu0 %v3856
        %4218 = vmatpush1.bf16.msra.mxu0 %v3855
        %4219 = vmatprep.subr.bf16.mxu0 0
        %4220 = vmatpush2.bf16.msra.mxu0 0
        %4221 = vmatprep.subr.bf16.mxu0 0
        %4222 = vmatpush2.bf16.msra.mxu0 0
        %4223 = vmatprep.subr.bf16.mxu0 0
        %4224 = vmatpush2.bf16.msra.mxu0 0
        %4225 = vmatprep.subr.bf16.mxu0 0
        %4226 = vmatpush2.bf16.msra.mxu0 0
        %4227 = vmatprep.subr.bf16.mxu0 0
        %4228 = vmatpush2.bf16.msra.mxu0 0
        %4229 = vmatprep.subr.bf16.mxu0 0
        %4230 = vmatpush2.bf16.msra.mxu0 0
        %4231 = vmatprep.subr.bf16.mxu0 0
        %4232 = vmatpush2.bf16.msra.mxu0 0
        %4233 = vmatprep.subr.bf16.mxu0 0
        %4234 = vmatpush2.bf16.msra.mxu0 0
        %4235 = vmatprep.mubr.bf16.mxu0 0
        %4236 = vmatmul.mubr.bf16.gmra.mxu0 %v1539
        %v4237 = vpop.f32.mrf.mxu0
        %v4238 = vadd.f32 0.0, %v4237
        %v4239 = vpop.f32.mrf.mxu0
        %v4240 = vadd.f32 0.0, %v4239
        %v4241 = vpop.f32.mrf.mxu0
        %v4242 = vpop.f32.mrf.mxu0
        %4243 = vdwg.mxu0
        %4244 = vmatprep.subr.bf16.mxu0 0
        %4245 = vmatpush1.bf16.msra.mxu0 0
        %4246 = vmatprep.subr.bf16.mxu0 0
        %4247 = vmatpush1.bf16.msra.mxu0 0
        %4248 = vmatprep.subr.bf16.mxu0 0
        %4249 = vmatpush1.bf16.msra.mxu0 0
        %4250 = vmatprep.subr.bf16.mxu0 0
        %4251 = vmatpush1.bf16.msra.mxu0 0
        %4252 = vmatprep.subr.bf16.mxu0 0
        %4253 = vmatpush1.bf16.msra.mxu0 0
        %4254 = vmatprep.subr.bf16.mxu0 %v3922
        %4255 = vmatpush1.bf16.msra.mxu0 %v3921
        %4256 = vmatprep.subr.bf16.mxu0 %v3890
        %4257 = vmatpush1.bf16.msra.mxu0 %v3889
        %4258 = vmatprep.subr.bf16.mxu0 %v3858
        %4259 = vmatpush1.bf16.msra.mxu0 %v3857
        %4260 = vmatprep.subr.bf16.mxu0 0
        %4261 = vmatpush2.bf16.msra.mxu0 0
        %4262 = vmatprep.subr.bf16.mxu0 0
        %4263 = vmatpush2.bf16.msra.mxu0 0
        %4264 = vmatprep.subr.bf16.mxu0 0
        %4265 = vmatpush2.bf16.msra.mxu0 0
        %4266 = vmatprep.subr.bf16.mxu0 0
        %4267 = vmatpush2.bf16.msra.mxu0 0
        %4268 = vmatprep.subr.bf16.mxu0 0
        %4269 = vmatpush2.bf16.msra.mxu0 0
        %4270 = vmatprep.subr.bf16.mxu0 0
        %4271 = vmatpush2.bf16.msra.mxu0 0
        %4272 = vmatprep.subr.bf16.mxu0 0
        %4273 = vmatpush2.bf16.msra.mxu0 0
        %4274 = vmatprep.subr.bf16.mxu0 0
        %4275 = vmatpush2.bf16.msra.mxu0 0
        %4276 = vmatprep.mubr.bf16.mxu0 0
        %4277 = vmatmul.mubr.bf16.gmra.mxu0 %v1539
        %v4278 = vpop.f32.mrf.mxu0
        %v4279 = vadd.f32 0.0, %v4278
        %v4280 = vpop.f32.mrf.mxu0
        %v4281 = vadd.f32 0.0, %v4280
        %v4282 = vpop.f32.mrf.mxu0
        %v4283 = vpop.f32.mrf.mxu0
        %4284 = vdwg.mxu0
        %4285 = vmatprep.subr.bf16.mxu0 0
        %4286 = vmatpush1.bf16.msra.mxu0 0
        %4287 = vmatprep.subr.bf16.mxu0 0
        %4288 = vmatpush1.bf16.msra.mxu0 0
        %4289 = vmatprep.subr.bf16.mxu0 0
        %4290 = vmatpush1.bf16.msra.mxu0 0
        %4291 = vmatprep.subr.bf16.mxu0 0
        %4292 = vmatpush1.bf16.msra.mxu0 0
        %4293 = vmatprep.subr.bf16.mxu0 0
        %4294 = vmatpush1.bf16.msra.mxu0 0
        %4295 = vmatprep.subr.bf16.mxu0 %v3924
        %4296 = vmatpush1.bf16.msra.mxu0 %v3923
        %4297 = vmatprep.subr.bf16.mxu0 %v3892
        %4298 = vmatpush1.bf16.msra.mxu0 %v3891
        %4299 = vmatprep.subr.bf16.mxu0 %v3860
        %4300 = vmatpush1.bf16.msra.mxu0 %v3859
        %4301 = vmatprep.subr.bf16.mxu0 0
        %4302 = vmatpush2.bf16.msra.mxu0 0
        %4303 = vmatprep.subr.bf16.mxu0 0
        %4304 = vmatpush2.bf16.msra.mxu0 0
        %4305 = vmatprep.subr.bf16.mxu0 0
        %4306 = vmatpush2.bf16.msra.mxu0 0
        %4307 = vmatprep.subr.bf16.mxu0 0
        %4308 = vmatpush2.bf16.msra.mxu0 0
        %4309 = vmatprep.subr.bf16.mxu0 0
        %4310 = vmatpush2.bf16.msra.mxu0 0
        %4311 = vmatprep.subr.bf16.mxu0 0
        %4312 = vmatpush2.bf16.msra.mxu0 0
        %4313 = vmatprep.subr.bf16.mxu0 0
        %4314 = vmatpush2.bf16.msra.mxu0 0
        %4315 = vmatprep.subr.bf16.mxu0 0
        %4316 = vmatpush2.bf16.msra.mxu0 0
        %4317 = vmatprep.mubr.bf16.mxu0 0
        %4318 = vmatmul.mubr.bf16.gmra.mxu0 %v1539
        %v4319 = vpop.f32.mrf.mxu0
        %v4320 = vadd.f32 0.0, %v4319
        %v4321 = vpop.f32.mrf.mxu0
        %v4322 = vadd.f32 0.0, %v4321
        %v4323 = vpop.f32.mrf.mxu0
        %v4324 = vpop.f32.mrf.mxu0
        %4325 = vdwg.mxu0
        %4326 = vmatprep.subr.bf16.mxu0 0
        %4327 = vmatpush1.bf16.msra.mxu0 0
        %4328 = vmatprep.subr.bf16.mxu0 0
        %4329 = vmatpush1.bf16.msra.mxu0 0
        %4330 = vmatprep.subr.bf16.mxu0 0
        %4331 = vmatpush1.bf16.msra.mxu0 0
        %4332 = vmatprep.subr.bf16.mxu0 0
        %4333 = vmatpush1.bf16.msra.mxu0 0
        %4334 = vmatprep.subr.bf16.mxu0 0
        %4335 = vmatpush1.bf16.msra.mxu0 0
        %4336 = vmatprep.subr.bf16.mxu0 %v3926
        %4337 = vmatpush1.bf16.msra.mxu0 %v3925
        %4338 = vmatprep.subr.bf16.mxu0 %v3894
        %4339 = vmatpush1.bf16.msra.mxu0 %v3893
        %4340 = vmatprep.subr.bf16.mxu0 %v3862
        %4341 = vmatpush1.bf16.msra.mxu0 %v3861
        %4342 = vmatprep.subr.bf16.mxu0 0
        %4343 = vmatpush2.bf16.msra.mxu0 0
        %4344 = vmatprep.subr.bf16.mxu0 0
        %4345 = vmatpush2.bf16.msra.mxu0 0
        %4346 = vmatprep.subr.bf16.mxu0 0
        %4347 = vmatpush2.bf16.msra.mxu0 0
        %4348 = vmatprep.subr.bf16.mxu0 0
        %4349 = vmatpush2.bf16.msra.mxu0 0
        %4350 = vmatprep.subr.bf16.mxu0 0
        %4351 = vmatpush2.bf16.msra.mxu0 0
        %4352 = vmatprep.subr.bf16.mxu0 0
        %4353 = vmatpush2.bf16.msra.mxu0 0
        %4354 = vmatprep.subr.bf16.mxu0 0
        %4355 = vmatpush2.bf16.msra.mxu0 0
        %4356 = vmatprep.subr.bf16.mxu0 0
        %4357 = vmatpush2.bf16.msra.mxu0 0
        %4358 = vmatprep.mubr.bf16.mxu0 0
        %4359 = vmatmul.mubr.bf16.gmra.mxu0 %v1539
        %v4360 = vpop.f32.mrf.mxu0
        %v4361 = vadd.f32 0.0, %v4360
        %v4362 = vpop.f32.mrf.mxu0
        %v4363 = vadd.f32 0.0, %v4362
        %v4364 = vpop.f32.mrf.mxu0
        %v4365 = vpop.f32.mrf.mxu0
        %4366 = vdwg.mxu0
        %4367 = vmatprep.subr.bf16.mxu0 0
        %4368 = vmatpush1.bf16.msra.mxu0 0
        %4369 = vmatprep.subr.bf16.mxu0 0
        %4370 = vmatpush1.bf16.msra.mxu0 0
        %4371 = vmatprep.subr.bf16.mxu0 0
        %4372 = vmatpush1.bf16.msra.mxu0 0
        %4373 = vmatprep.subr.bf16.mxu0 0
        %4374 = vmatpush1.bf16.msra.mxu0 0
        %4375 = vmatprep.subr.bf16.mxu0 0
        %4376 = vmatpush1.bf16.msra.mxu0 0
        %4377 = vmatprep.subr.bf16.mxu0 %v3928
        %4378 = vmatpush1.bf16.msra.mxu0 %v3927
        %4379 = vmatprep.subr.bf16.mxu0 %v3896
        %4380 = vmatpush1.bf16.msra.mxu0 %v3895
        %4381 = vmatprep.subr.bf16.mxu0 %v3864
        %4382 = vmatpush1.bf16.msra.mxu0 %v3863
        %4383 = vmatprep.subr.bf16.mxu0 0
        %4384 = vmatpush2.bf16.msra.mxu0 0
        %4385 = vmatprep.subr.bf16.mxu0 0
        %4386 = vmatpush2.bf16.msra.mxu0 0
        %4387 = vmatprep.subr.bf16.mxu0 0
        %4388 = vmatpush2.bf16.msra.mxu0 0
        %4389 = vmatprep.subr.bf16.mxu0 0
        %4390 = vmatpush2.bf16.msra.mxu0 0
        %4391 = vmatprep.subr.bf16.mxu0 0
        %4392 = vmatpush2.bf16.msra.mxu0 0
        %4393 = vmatprep.subr.bf16.mxu0 0
        %4394 = vmatpush2.bf16.msra.mxu0 0
        %4395 = vmatprep.subr.bf16.mxu0 0
        %4396 = vmatpush2.bf16.msra.mxu0 0
        %4397 = vmatprep.subr.bf16.mxu0 0
        %4398 = vmatpush2.bf16.msra.mxu0 0
        %4399 = vmatprep.mubr.bf16.mxu0 0
        %4400 = vmatmul.mubr.bf16.gmra.mxu0 %v1539
        %v4401 = vpop.f32.mrf.mxu0
        %v4402 = vadd.f32 0.0, %v4401
        %v4403 = vpop.f32.mrf.mxu0
        %v4404 = vadd.f32 0.0, %v4403
        %v4405 = vpop.f32.mrf.mxu0
        %v4406 = vpop.f32.mrf.mxu0
        %4407 = vdwg.mxu0
        %4408 = vmatprep.subr.bf16.mxu0 0
        %4409 = vmatpush1.bf16.msra.mxu0 0
        %4410 = vmatprep.subr.bf16.mxu0 0
        %4411 = vmatpush1.bf16.msra.mxu0 0
        %4412 = vmatprep.subr.bf16.mxu0 0
        %4413 = vmatpush1.bf16.msra.mxu0 0
        %4414 = vmatprep.subr.bf16.mxu0 0
        %4415 = vmatpush1.bf16.msra.mxu0 0
        %4416 = vmatprep.subr.bf16.mxu0 0
        %4417 = vmatpush1.bf16.msra.mxu0 0
        %4418 = vmatprep.subr.bf16.mxu0 %v3930
        %4419 = vmatpush1.bf16.msra.mxu0 %v3929
        %4420 = vmatprep.subr.bf16.mxu0 %v3898
        %4421 = vmatpush1.bf16.msra.mxu0 %v3897
        %4422 = vmatprep.subr.bf16.mxu0 %v3866
        %4423 = vmatpush1.bf16.msra.mxu0 %v3865
        %4424 = vmatprep.subr.bf16.mxu0 0
        %4425 = vmatpush2.bf16.msra.mxu0 0
        %4426 = vmatprep.subr.bf16.mxu0 0
        %4427 = vmatpush2.bf16.msra.mxu0 0
        %4428 = vmatprep.subr.bf16.mxu0 0
        %4429 = vmatpush2.bf16.msra.mxu0 0
        %4430 = vmatprep.subr.bf16.mxu0 0
        %4431 = vmatpush2.bf16.msra.mxu0 0
        %4432 = vmatprep.subr.bf16.mxu0 0
        %4433 = vmatpush2.bf16.msra.mxu0 0
        %4434 = vmatprep.subr.bf16.mxu0 0
        %4435 = vmatpush2.bf16.msra.mxu0 0
        %4436 = vmatprep.subr.bf16.mxu0 0
        %4437 = vmatpush2.bf16.msra.mxu0 0
        %4438 = vmatprep.subr.bf16.mxu0 0
        %4439 = vmatpush2.bf16.msra.mxu0 0
        %4440 = vmatprep.mubr.bf16.mxu0 0
        %4441 = vmatmul.mubr.bf16.gmra.mxu0 %v1539
        %v4442 = vpop.f32.mrf.mxu0
        %v4443 = vadd.f32 0.0, %v4442
        %v4444 = vpop.f32.mrf.mxu0
        %v4445 = vadd.f32 0.0, %v4444
        %v4446 = vpop.f32.mrf.mxu0
        %v4447 = vpop.f32.mrf.mxu0
        %4448 = vdwg.mxu0
        %4449 = vmatprep.subr.bf16.mxu0 0
        %4450 = vmatpush1.bf16.msra.mxu0 0
        %4451 = vmatprep.subr.bf16.mxu0 0
        %4452 = vmatpush1.bf16.msra.mxu0 0
        %4453 = vmatprep.subr.bf16.mxu0 0
        %4454 = vmatpush1.bf16.msra.mxu0 0
        %4455 = vmatprep.subr.bf16.mxu0 0
        %4456 = vmatpush1.bf16.msra.mxu0 0
        %4457 = vmatprep.subr.bf16.mxu0 0
        %4458 = vmatpush1.bf16.msra.mxu0 0
        %4459 = vmatprep.subr.bf16.mxu0 %v3932
        %4460 = vmatpush1.bf16.msra.mxu0 %v3931
        %4461 = vmatprep.subr.bf16.mxu0 %v3900
        %4462 = vmatpush1.bf16.msra.mxu0 %v3899
        %4463 = vmatprep.subr.bf16.mxu0 %v3868
        %4464 = vmatpush1.bf16.msra.mxu0 %v3867
        %4465 = vmatprep.subr.bf16.mxu0 0
        %4466 = vmatpush2.bf16.msra.mxu0 0
        %4467 = vmatprep.subr.bf16.mxu0 0
        %4468 = vmatpush2.bf16.msra.mxu0 0
        %4469 = vmatprep.subr.bf16.mxu0 0
        %4470 = vmatpush2.bf16.msra.mxu0 0
        %4471 = vmatprep.subr.bf16.mxu0 0
        %4472 = vmatpush2.bf16.msra.mxu0 0
        %4473 = vmatprep.subr.bf16.mxu0 0
        %4474 = vmatpush2.bf16.msra.mxu0 0
        %4475 = vmatprep.subr.bf16.mxu0 0
        %4476 = vmatpush2.bf16.msra.mxu0 0
        %4477 = vmatprep.subr.bf16.mxu0 0
        %4478 = vmatpush2.bf16.msra.mxu0 0
        %4479 = vmatprep.subr.bf16.mxu0 0
        %4480 = vmatpush2.bf16.msra.mxu0 0
        %4481 = vmatprep.mubr.bf16.mxu0 0
        %4482 = vmatmul.mubr.bf16.gmra.mxu0 %v1539
        %v4483 = vpop.f32.mrf.mxu0
        %v4484 = vadd.f32 0.0, %v4483
        %v4485 = vpop.f32.mrf.mxu0
        %v4486 = vadd.f32 0.0, %v4485
        %v4487 = vpop.f32.mrf.mxu0
        %v4488 = vpop.f32.mrf.mxu0
        %4489 = vdwg.mxu0
        %4490 = vmatprep.subr.bf16.mxu0 0
        %4491 = vmatpush1.bf16.msra.mxu0 0
        %4492 = vmatprep.subr.bf16.mxu0 0
        %4493 = vmatpush1.bf16.msra.mxu0 0
        %4494 = vmatprep.subr.bf16.mxu0 0
        %4495 = vmatpush1.bf16.msra.mxu0 0
        %4496 = vmatprep.subr.bf16.mxu0 0
        %4497 = vmatpush1.bf16.msra.mxu0 0
        %4498 = vmatprep.subr.bf16.mxu0 0
        %4499 = vmatpush1.bf16.msra.mxu0 0
        %4500 = vmatprep.subr.bf16.mxu0 %v3934
        %4501 = vmatpush1.bf16.msra.mxu0 %v3933
        %4502 = vmatprep.subr.bf16.mxu0 %v3902
        %4503 = vmatpush1.bf16.msra.mxu0 %v3901
        %4504 = vmatprep.subr.bf16.mxu0 %v3870
        %4505 = vmatpush1.bf16.msra.mxu0 %v3869
        %4506 = vmatprep.subr.bf16.mxu0 0
        %4507 = vmatpush2.bf16.msra.mxu0 0
        %4508 = vmatprep.subr.bf16.mxu0 0
        %4509 = vmatpush2.bf16.msra.mxu0 0
        %4510 = vmatprep.subr.bf16.mxu0 0
        %4511 = vmatpush2.bf16.msra.mxu0 0
        %4512 = vmatprep.subr.bf16.mxu0 0
        %4513 = vmatpush2.bf16.msra.mxu0 0
        %4514 = vmatprep.subr.bf16.mxu0 0
        %4515 = vmatpush2.bf16.msra.mxu0 0
        %4516 = vmatprep.subr.bf16.mxu0 0
        %4517 = vmatpush2.bf16.msra.mxu0 0
        %4518 = vmatprep.subr.bf16.mxu0 0
        %4519 = vmatpush2.bf16.msra.mxu0 0
        %4520 = vmatprep.subr.bf16.mxu0 0
        %4521 = vmatpush2.bf16.msra.mxu0 0
        %4522 = vmatprep.mubr.bf16.mxu0 0
        %4523 = vmatmul.mubr.bf16.gmra.mxu0 %v1539
        %v4524 = vpop.f32.mrf.mxu0
        %v4525 = vadd.f32 0.0, %v4524
        %v4526 = vpop.f32.mrf.mxu0
        %v4527 = vadd.f32 0.0, %v4526
        %v4528 = vpop.f32.mrf.mxu0
        %v4529 = vpop.f32.mrf.mxu0
        %4530 = vdwg.mxu0
        %4531 = vmatprep.subr.bf16.mxu0 0
        %4532 = vmatpush1.bf16.msra.mxu0 0
        %4533 = vmatprep.subr.bf16.mxu0 0
        %4534 = vmatpush1.bf16.msra.mxu0 0
        %4535 = vmatprep.subr.bf16.mxu0 0
        %4536 = vmatpush1.bf16.msra.mxu0 0
        %4537 = vmatprep.subr.bf16.mxu0 0
        %4538 = vmatpush1.bf16.msra.mxu0 0
        %4539 = vmatprep.subr.bf16.mxu0 0
        %4540 = vmatpush1.bf16.msra.mxu0 0
        %4541 = vmatprep.subr.bf16.mxu0 %v3936
        %4542 = vmatpush1.bf16.msra.mxu0 %v3935
        %4543 = vmatprep.subr.bf16.mxu0 %v3904
        %4544 = vmatpush1.bf16.msra.mxu0 %v3903
        %4545 = vmatprep.subr.bf16.mxu0 %v3872
        %4546 = vmatpush1.bf16.msra.mxu0 %v3871
        %4547 = vmatprep.subr.bf16.mxu0 0
        %4548 = vmatpush2.bf16.msra.mxu0 0
        %4549 = vmatprep.subr.bf16.mxu0 0
        %4550 = vmatpush2.bf16.msra.mxu0 0
        %4551 = vmatprep.subr.bf16.mxu0 0
        %4552 = vmatpush2.bf16.msra.mxu0 0
        %4553 = vmatprep.subr.bf16.mxu0 0
        %4554 = vmatpush2.bf16.msra.mxu0 0
        %4555 = vmatprep.subr.bf16.mxu0 0
        %4556 = vmatpush2.bf16.msra.mxu0 0
        %4557 = vmatprep.subr.bf16.mxu0 0
        %4558 = vmatpush2.bf16.msra.mxu0 0
        %4559 = vmatprep.subr.bf16.mxu0 0
        %4560 = vmatpush2.bf16.msra.mxu0 0
        %4561 = vmatprep.subr.bf16.mxu0 0
        %4562 = vmatpush2.bf16.msra.mxu0 0
        %4563 = vmatprep.mubr.bf16.mxu0 0
        %4564 = vmatmul.mubr.bf16.gmra.mxu0 %v1539
        %v4565 = vpop.f32.mrf.mxu0
        %v4566 = vadd.f32 0.0, %v4565
        %v4567 = vpop.f32.mrf.mxu0
        %v4568 = vadd.f32 0.0, %v4567
        %v4569 = vpop.f32.mrf.mxu0
        %v4570 = vpop.f32.mrf.mxu0
        %4571 = vdwg.mxu0
        %4572 = vmatprep.subr.bf16.mxu0 0
        %4573 = vmatpush1.bf16.msra.mxu0 0
        %4574 = vmatprep.subr.bf16.mxu0 0
        %4575 = vmatpush1.bf16.msra.mxu0 0
        %4576 = vmatprep.subr.bf16.mxu0 0
        %4577 = vmatpush1.bf16.msra.mxu0 0
        %4578 = vmatprep.subr.bf16.mxu0 0
        %4579 = vmatpush1.bf16.msra.mxu0 0
        %4580 = vmatprep.subr.bf16.mxu0 0
        %4581 = vmatpush1.bf16.msra.mxu0 0
        %4582 = vmatprep.subr.bf16.mxu0 %v3938
        %4583 = vmatpush1.bf16.msra.mxu0 %v3937
        %4584 = vmatprep.subr.bf16.mxu0 %v3906
        %4585 = vmatpush1.bf16.msra.mxu0 %v3905
        %4586 = vmatprep.subr.bf16.mxu0 %v3874
        %4587 = vmatpush1.bf16.msra.mxu0 %v3873
        %4588 = vmatprep.subr.bf16.mxu0 0
        %4589 = vmatpush2.bf16.msra.mxu0 0
        %4590 = vmatprep.subr.bf16.mxu0 0
        %4591 = vmatpush2.bf16.msra.mxu0 0
        %4592 = vmatprep.subr.bf16.mxu0 0
        %4593 = vmatpush2.bf16.msra.mxu0 0
        %4594 = vmatprep.subr.bf16.mxu0 0
        %4595 = vmatpush2.bf16.msra.mxu0 0
        %4596 = vmatprep.subr.bf16.mxu0 0
        %4597 = vmatpush2.bf16.msra.mxu0 0
        %4598 = vmatprep.subr.bf16.mxu0 0
        %4599 = vmatpush2.bf16.msra.mxu0 0
        %4600 = vmatprep.subr.bf16.mxu0 0
        %4601 = vmatpush2.bf16.msra.mxu0 0
        %4602 = vmatprep.subr.bf16.mxu0 0
        %4603 = vmatpush2.bf16.msra.mxu0 0
        %4604 = vmatprep.mubr.bf16.mxu0 0
        %4605 = vmatmul.mubr.bf16.gmra.mxu0 %v1539
        %v4606 = vpop.f32.mrf.mxu0
        %v4607 = vadd.f32 0.0, %v4606
        %v4608 = vpop.f32.mrf.mxu0
        %v4609 = vadd.f32 0.0, %v4608
        %v4610 = vpop.f32.mrf.mxu0
        %v4611 = vpop.f32.mrf.mxu0
        %4612 = vdwg.mxu0
        %4613 = vmatprep.subr.bf16.mxu0 0
        %4614 = vmatpush1.bf16.msra.mxu0 0
        %4615 = vmatprep.subr.bf16.mxu0 0
        %4616 = vmatpush1.bf16.msra.mxu0 0
        %4617 = vmatprep.subr.bf16.mxu0 0
        %4618 = vmatpush1.bf16.msra.mxu0 0
        %4619 = vmatprep.subr.bf16.mxu0 0
        %4620 = vmatpush1.bf16.msra.mxu0 0
        %4621 = vmatprep.subr.bf16.mxu0 0
        %4622 = vmatpush1.bf16.msra.mxu0 0
        %4623 = vmatprep.subr.bf16.mxu0 %v3940
        %4624 = vmatpush1.bf16.msra.mxu0 %v3939
        %4625 = vmatprep.subr.bf16.mxu0 %v3908
        %4626 = vmatpush1.bf16.msra.mxu0 %v3907
        %4627 = vmatprep.subr.bf16.mxu0 %v3876
        %4628 = vmatpush1.bf16.msra.mxu0 %v3875
        %4629 = vmatprep.subr.bf16.mxu0 0
        %4630 = vmatpush2.bf16.msra.mxu0 0
        %4631 = vmatprep.subr.bf16.mxu0 0
        %4632 = vmatpush2.bf16.msra.mxu0 0
        %4633 = vmatprep.subr.bf16.mxu0 0
        %4634 = vmatpush2.bf16.msra.mxu0 0
        %4635 = vmatprep.subr.bf16.mxu0 0
        %4636 = vmatpush2.bf16.msra.mxu0 0
        %4637 = vmatprep.subr.bf16.mxu0 0
        %4638 = vmatpush2.bf16.msra.mxu0 0
        %4639 = vmatprep.subr.bf16.mxu0 0
        %4640 = vmatpush2.bf16.msra.mxu0 0
        %4641 = vmatprep.subr.bf16.mxu0 0
        %4642 = vmatpush2.bf16.msra.mxu0 0
        %4643 = vmatprep.subr.bf16.mxu0 0
        %4644 = vmatpush2.bf16.msra.mxu0 0
        %4645 = vmatprep.mubr.bf16.mxu0 0
        %4646 = vmatmul.mubr.bf16.gmra.mxu0 %v1539
        %v4647 = vpop.f32.mrf.mxu0
        %v4648 = vadd.f32 0.0, %v4647
        %v4649 = vpop.f32.mrf.mxu0
        %v4650 = vadd.f32 0.0, %v4649
        %v4651 = vpop.f32.mrf.mxu0
        %v4652 = vpop.f32.mrf.mxu0
        %4653 = vdwg.mxu0
        %4654 = vmatprep.subr.bf16.mxu0 0
        %4655 = vmatpush1.bf16.msra.mxu0 0
        %4656 = vmatprep.subr.bf16.mxu0 0
        %4657 = vmatpush1.bf16.msra.mxu0 0
        %4658 = vmatprep.subr.bf16.mxu0 0
        %4659 = vmatpush1.bf16.msra.mxu0 0
        %4660 = vmatprep.subr.bf16.mxu0 0
        %4661 = vmatpush1.bf16.msra.mxu0 0
        %4662 = vmatprep.subr.bf16.mxu0 0
        %4663 = vmatpush1.bf16.msra.mxu0 0
        %4664 = vmatprep.subr.bf16.mxu0 %v3942
        %4665 = vmatpush1.bf16.msra.mxu0 %v3941
        %4666 = vmatprep.subr.bf16.mxu0 %v3910
        %4667 = vmatpush1.bf16.msra.mxu0 %v3909
        %4668 = vmatprep.subr.bf16.mxu0 %v3878
        %4669 = vmatpush1.bf16.msra.mxu0 %v3877
        %4670 = vmatprep.subr.bf16.mxu0 0
        %4671 = vmatpush2.bf16.msra.mxu0 0
        %4672 = vmatprep.subr.bf16.mxu0 0
        %4673 = vmatpush2.bf16.msra.mxu0 0
        %4674 = vmatprep.subr.bf16.mxu0 0
        %4675 = vmatpush2.bf16.msra.mxu0 0
        %4676 = vmatprep.subr.bf16.mxu0 0
        %4677 = vmatpush2.bf16.msra.mxu0 0
        %4678 = vmatprep.subr.bf16.mxu0 0
        %4679 = vmatpush2.bf16.msra.mxu0 0
        %4680 = vmatprep.subr.bf16.mxu0 0
        %4681 = vmatpush2.bf16.msra.mxu0 0
        %4682 = vmatprep.subr.bf16.mxu0 0
        %4683 = vmatpush2.bf16.msra.mxu0 0
        %4684 = vmatprep.subr.bf16.mxu0 0
        %4685 = vmatpush2.bf16.msra.mxu0 0
        %4686 = vmatprep.mubr.bf16.mxu0 0
        %4687 = vmatmul.mubr.bf16.gmra.mxu0 %v1539
        %v4688 = vpop.f32.mrf.mxu0
        %v4689 = vadd.f32 0.0, %v4688
        %v4690 = vpop.f32.mrf.mxu0
        %v4691 = vadd.f32 0.0, %v4690
        %v4692 = vpop.f32.mrf.mxu0
        %v4693 = vpop.f32.mrf.mxu0
        %4694 = vdwg.mxu0
        %v4695 = vmax.f32 %v3430, %v4074
        %v4696 = vmax.f32 %v3431, %v4076
        %v4697 = vmax.f32 %v3432, %v4115
        %v4698 = vmax.f32 %v3433, %v4117
        %v4699 = vmax.f32 %v3434, %v4156
        %v4700 = vmax.f32 %v3435, %v4158
        %v4701 = vmax.f32 %v3436, %v4197
        %v4702 = vmax.f32 %v3437, %v4199
        %v4703 = vmax.f32 %v3438, %v4238
        %v4704 = vmax.f32 %v3439, %v4240
        %v4705 = vmax.f32 %v3440, %v4279
        %v4706 = vmax.f32 %v3441, %v4281
        %v4707 = vmax.f32 %v3442, %v4320
        %v4708 = vmax.f32 %v3443, %v4322
        %v4709 = vmax.f32 %v3444, %v4361
        %v4710 = vmax.f32 %v3445, %v4363
        %v4711 = vmax.f32 %v3446, %v4402
        %v4712 = vmax.f32 %v3447, %v4404
        %v4713 = vmax.f32 %v3448, %v4443
        %v4714 = vmax.f32 %v3449, %v4445
        %v4715 = vmax.f32 %v3450, %v4484
        %v4716 = vmax.f32 %v3451, %v4486
        %v4717 = vmax.f32 %v3452, %v4525
        %v4718 = vmax.f32 %v3453, %v4527
        %v4719 = vmax.f32 %v3454, %v4566
        %v4720 = vmax.f32 %v3455, %v4568
        %v4721 = vmax.f32 %v3456, %v4607
        %v4722 = vmax.f32 %v3457, %v4609
        %v4723 = vmax.f32 %v3458, %v4648
        %v4724 = vmax.f32 %v3459, %v4650
        %v4725 = vmax.f32 %v3460, %v4689
        %v4726 = vmax.f32 %v3461, %v4691
        %s4727 = scalar_lea.vmem %s931, 2304 [#allocation2]
        %v4728 = vld [vmem:[%s4727] sm:$0xff]
        %v4729 = vld [vmem:[%s4727 + $0x8] sm:$0xff]
        %v4730 = vld [vmem:[%s4727 + $0x10] sm:$0xff]
        %v4731 = vld [vmem:[%s4727 + $0x18] sm:$0xff]
        %v4732 = vld [vmem:[%s4727 + $0x20] sm:$0xff]
        %v4733 = vld [vmem:[%s4727 + $0x28] sm:$0xff]
        %v4734 = vld [vmem:[%s4727 + $0x30] sm:$0xff]
        %v4735 = vld [vmem:[%s4727 + $0x38] sm:$0xff]
        %v4736 = vld [vmem:[%s4727 + $0x40] sm:$0xff]
        %v4737 = vld [vmem:[%s4727 + $0x48] sm:$0xff]
        %v4738 = vld [vmem:[%s4727 + $0x50] sm:$0xff]
        %v4739 = vld [vmem:[%s4727 + $0x58] sm:$0xff]
        %v4740 = vld [vmem:[%s4727 + $0x60] sm:$0xff]
        %v4741 = vld [vmem:[%s4727 + $0x68] sm:$0xff]
        %v4742 = vld [vmem:[%s4727 + $0x70] sm:$0xff]
        %v4743 = vld [vmem:[%s4727 + $0x78] sm:$0xff]
        %v4744 = vld [vmem:[%s4727 + $0x80] sm:$0xff]
        %v4745 = vld [vmem:[%s4727 + $0x88] sm:$0xff]
        %v4746 = vld [vmem:[%s4727 + $0x90] sm:$0xff]
        %v4747 = vld [vmem:[%s4727 + $0x98] sm:$0xff]
        %v4748 = vld [vmem:[%s4727 + $0xa0] sm:$0xff]
        %v4749 = vld [vmem:[%s4727 + $0xa8] sm:$0xff]
        %v4750 = vld [vmem:[%s4727 + $0xb0] sm:$0xff]
        %v4751 = vld [vmem:[%s4727 + $0xb8] sm:$0xff]
        %v4752 = vld [vmem:[%s4727 + $0xc0] sm:$0xff]
        %v4753 = vld [vmem:[%s4727 + $0xc8] sm:$0xff]
        %v4754 = vld [vmem:[%s4727 + $0xd0] sm:$0xff]
        %v4755 = vld [vmem:[%s4727 + $0xd8] sm:$0xff]
        %v4756 = vld [vmem:[%s4727 + $0xe0] sm:$0xff]
        %v4757 = vld [vmem:[%s4727 + $0xe8] sm:$0xff]
        %v4758 = vld [vmem:[%s4727 + $0xf0] sm:$0xff]
        %v4759 = vld [vmem:[%s4727 + $0xf8] sm:$0xff]
        %v4760 = vld [vmem:[%s4727 + $0x100] sm:$0xff]
        %v4761 = vld [vmem:[%s4727 + $0x108] sm:$0xff]
        %v4762 = vld [vmem:[%s4727 + $0x110] sm:$0xff]
        %v4763 = vld [vmem:[%s4727 + $0x118] sm:$0xff]
        %v4764 = vld [vmem:[%s4727 + $0x120] sm:$0xff]
        %v4765 = vld [vmem:[%s4727 + $0x128] sm:$0xff]
        %v4766 = vld [vmem:[%s4727 + $0x130] sm:$0xff]
        %v4767 = vld [vmem:[%s4727 + $0x138] sm:$0xff]
        %v4768 = vld [vmem:[%s4727 + $0x140] sm:$0xff]
        %v4769 = vld [vmem:[%s4727 + $0x148] sm:$0xff]
        %v4770 = vld [vmem:[%s4727 + $0x150] sm:$0xff]
        %v4771 = vld [vmem:[%s4727 + $0x158] sm:$0xff]
        %v4772 = vld [vmem:[%s4727 + $0x160] sm:$0xff]
        %v4773 = vld [vmem:[%s4727 + $0x168] sm:$0xff]
        %v4774 = vld [vmem:[%s4727 + $0x170] sm:$0xff]
        %v4775 = vld [vmem:[%s4727 + $0x178] sm:$0xff]
        %v4776 = vld [vmem:[%s4727 + $0x180] sm:$0xff]
        %v4777 = vld [vmem:[%s4727 + $0x188] sm:$0xff]
        %v4778 = vld [vmem:[%s4727 + $0x190] sm:$0xff]
        %v4779 = vld [vmem:[%s4727 + $0x198] sm:$0xff]
        %v4780 = vld [vmem:[%s4727 + $0x1a0] sm:$0xff]
        %v4781 = vld [vmem:[%s4727 + $0x1a8] sm:$0xff]
        %v4782 = vld [vmem:[%s4727 + $0x1b0] sm:$0xff]
        %v4783 = vld [vmem:[%s4727 + $0x1b8] sm:$0xff]
        %v4784 = vld [vmem:[%s4727 + $0x1c0] sm:$0xff]
        %v4785 = vld [vmem:[%s4727 + $0x1c8] sm:$0xff]
        %v4786 = vld [vmem:[%s4727 + $0x1d0] sm:$0xff]
        %v4787 = vld [vmem:[%s4727 + $0x1d8] sm:$0xff]
        %v4788 = vld [vmem:[%s4727 + $0x1e0] sm:$0xff]
        %v4789 = vld [vmem:[%s4727 + $0x1e8] sm:$0xff]
        %v4790 = vld [vmem:[%s4727 + $0x1f0] sm:$0xff]
        %v4791 = vld [vmem:[%s4727 + $0x1f8] sm:$0xff]
        %v4792 = vld [vmem:[%s4727 + $0x200] sm:$0xff]
        %v4793 = vld [vmem:[%s4727 + $0x208] sm:$0xff]
        %v4794 = vld [vmem:[%s4727 + $0x210] sm:$0xff]
        %v4795 = vld [vmem:[%s4727 + $0x218] sm:$0xff]
        %v4796 = vld [vmem:[%s4727 + $0x220] sm:$0xff]
        %v4797 = vld [vmem:[%s4727 + $0x228] sm:$0xff]
        %v4798 = vld [vmem:[%s4727 + $0x230] sm:$0xff]
        %v4799 = vld [vmem:[%s4727 + $0x238] sm:$0xff]
        %v4800 = vld [vmem:[%s4727 + $0x240] sm:$0xff]
        %v4801 = vld [vmem:[%s4727 + $0x248] sm:$0xff]
        %v4802 = vld [vmem:[%s4727 + $0x250] sm:$0xff]
        %v4803 = vld [vmem:[%s4727 + $0x258] sm:$0xff]
        %v4804 = vld [vmem:[%s4727 + $0x260] sm:$0xff]
        %v4805 = vld [vmem:[%s4727 + $0x268] sm:$0xff]
        %v4806 = vld [vmem:[%s4727 + $0x270] sm:$0xff]
        %v4807 = vld [vmem:[%s4727 + $0x278] sm:$0xff]
        %v4808 = vld [vmem:[%s4727 + $0x280] sm:$0xff]
        %v4809 = vld [vmem:[%s4727 + $0x288] sm:$0xff]
        %v4810 = vld [vmem:[%s4727 + $0x290] sm:$0xff]
        %v4811 = vld [vmem:[%s4727 + $0x298] sm:$0xff]
        %v4812 = vld [vmem:[%s4727 + $0x2a0] sm:$0xff]
        %v4813 = vld [vmem:[%s4727 + $0x2a8] sm:$0xff]
        %v4814 = vld [vmem:[%s4727 + $0x2b0] sm:$0xff]
        %v4815 = vld [vmem:[%s4727 + $0x2b8] sm:$0xff]
        %v4816 = vld [vmem:[%s4727 + $0x2c0] sm:$0xff]
        %v4817 = vld [vmem:[%s4727 + $0x2c8] sm:$0xff]
        %v4818 = vld [vmem:[%s4727 + $0x2d0] sm:$0xff]
        %v4819 = vld [vmem:[%s4727 + $0x2d8] sm:$0xff]
        %v4820 = vld [vmem:[%s4727 + $0x2e0] sm:$0xff]
        %v4821 = vld [vmem:[%s4727 + $0x2e8] sm:$0xff]
        %v4822 = vld [vmem:[%s4727 + $0x2f0] sm:$0xff]
        %v4823 = vld [vmem:[%s4727 + $0x2f8] sm:$0xff]
        %v4920 = vunpack.c.l.b16 %v4728
        %v4921 = vunpack.c.h.b16 %v4728
        %v4922 = vunpack.c.l.b16 %v4729
        %v4923 = vunpack.c.h.b16 %v4729
        %v4924 = vunpack.c.l.b16 %v4730
        %v4925 = vunpack.c.h.b16 %v4730
        %v4926 = vunpack.c.l.b16 %v4731
        %v4927 = vunpack.c.h.b16 %v4731
        %v4928 = vunpack.c.l.b16 %v4732
        %v4929 = vunpack.c.h.b16 %v4732
        %v4930 = vunpack.c.l.b16 %v4733
        %v4931 = vunpack.c.h.b16 %v4733
        %v4932 = vunpack.c.l.b16 %v4734
        %v4933 = vunpack.c.h.b16 %v4734
        %v4934 = vunpack.c.l.b16 %v4735
        %v4935 = vunpack.c.h.b16 %v4735
        %v4936 = vunpack.c.l.b16 %v4736
        %v4937 = vunpack.c.h.b16 %v4736
        %v4938 = vunpack.c.l.b16 %v4737
        %v4939 = vunpack.c.h.b16 %v4737
        %v4940 = vunpack.c.l.b16 %v4738
        %v4941 = vunpack.c.h.b16 %v4738
        %v4942 = vunpack.c.l.b16 %v4739
        %v4943 = vunpack.c.h.b16 %v4739
        %v4944 = vunpack.c.l.b16 %v4740
        %v4945 = vunpack.c.h.b16 %v4740
        %v4946 = vunpack.c.l.b16 %v4741
        %v4947 = vunpack.c.h.b16 %v4741
        %v4948 = vunpack.c.l.b16 %v4742
        %v4949 = vunpack.c.h.b16 %v4742
        %v4950 = vunpack.c.l.b16 %v4743
        %v4951 = vunpack.c.h.b16 %v4743
        %v4952 = vunpack.c.l.b16 %v4744
        %v4953 = vunpack.c.h.b16 %v4744
        %v4954 = vunpack.c.l.b16 %v4745
        %v4955 = vunpack.c.h.b16 %v4745
        %v4956 = vunpack.c.l.b16 %v4746
        %v4957 = vunpack.c.h.b16 %v4746
        %v4958 = vunpack.c.l.b16 %v4747
        %v4959 = vunpack.c.h.b16 %v4747
        %v4960 = vunpack.c.l.b16 %v4748
        %v4961 = vunpack.c.h.b16 %v4748
        %v4962 = vunpack.c.l.b16 %v4749
        %v4963 = vunpack.c.h.b16 %v4749
        %v4964 = vunpack.c.l.b16 %v4750
        %v4965 = vunpack.c.h.b16 %v4750
        %v4966 = vunpack.c.l.b16 %v4751
        %v4967 = vunpack.c.h.b16 %v4751
        %v4968 = vunpack.c.l.b16 %v4752
        %v4969 = vunpack.c.h.b16 %v4752
        %v4970 = vunpack.c.l.b16 %v4753
        %v4971 = vunpack.c.h.b16 %v4753
        %v4972 = vunpack.c.l.b16 %v4754
        %v4973 = vunpack.c.h.b16 %v4754
        %v4974 = vunpack.c.l.b16 %v4755
        %v4975 = vunpack.c.h.b16 %v4755
        %v4976 = vunpack.c.l.b16 %v4756
        %v4977 = vunpack.c.h.b16 %v4756
        %v4978 = vunpack.c.l.b16 %v4757
        %v4979 = vunpack.c.h.b16 %v4757
        %v4980 = vunpack.c.l.b16 %v4758
        %v4981 = vunpack.c.h.b16 %v4758
        %v4982 = vunpack.c.l.b16 %v4759
        %v4983 = vunpack.c.h.b16 %v4759
        %v4984 = vunpack.c.l.b16 %v4760
        %v4985 = vunpack.c.h.b16 %v4760
        %v4986 = vunpack.c.l.b16 %v4761
        %v4987 = vunpack.c.h.b16 %v4761
        %v4988 = vunpack.c.l.b16 %v4762
        %v4989 = vunpack.c.h.b16 %v4762
        %v4990 = vunpack.c.l.b16 %v4763
        %v4991 = vunpack.c.h.b16 %v4763
        %v4992 = vunpack.c.l.b16 %v4764
        %v4993 = vunpack.c.h.b16 %v4764
        %v4994 = vunpack.c.l.b16 %v4765
        %v4995 = vunpack.c.h.b16 %v4765
        %v4996 = vunpack.c.l.b16 %v4766
        %v4997 = vunpack.c.h.b16 %v4766
        %v4998 = vunpack.c.l.b16 %v4767
        %v4999 = vunpack.c.h.b16 %v4767
        %v5000 = vunpack.c.l.b16 %v4768
        %v5001 = vunpack.c.h.b16 %v4768
        %v5002 = vunpack.c.l.b16 %v4769
        %v5003 = vunpack.c.h.b16 %v4769
        %v5004 = vunpack.c.l.b16 %v4770
        %v5005 = vunpack.c.h.b16 %v4770
        %v5006 = vunpack.c.l.b16 %v4771
        %v5007 = vunpack.c.h.b16 %v4771
        %v5008 = vunpack.c.l.b16 %v4772
        %v5009 = vunpack.c.h.b16 %v4772
        %v5010 = vunpack.c.l.b16 %v4773
        %v5011 = vunpack.c.h.b16 %v4773
        %v5012 = vunpack.c.l.b16 %v4774
        %v5013 = vunpack.c.h.b16 %v4774
        %v5014 = vunpack.c.l.b16 %v4775
        %v5015 = vunpack.c.h.b16 %v4775
        %v5016 = vunpack.c.l.b16 %v4776
        %v5017 = vunpack.c.h.b16 %v4776
        %v5018 = vunpack.c.l.b16 %v4777
        %v5019 = vunpack.c.h.b16 %v4777
        %v5020 = vunpack.c.l.b16 %v4778
        %v5021 = vunpack.c.h.b16 %v4778
        %v5022 = vunpack.c.l.b16 %v4779
        %v5023 = vunpack.c.h.b16 %v4779
        %v5024 = vunpack.c.l.b16 %v4780
        %v5025 = vunpack.c.h.b16 %v4780
        %v5026 = vunpack.c.l.b16 %v4781
        %v5027 = vunpack.c.h.b16 %v4781
        %v5028 = vunpack.c.l.b16 %v4782
        %v5029 = vunpack.c.h.b16 %v4782
        %v5030 = vunpack.c.l.b16 %v4783
        %v5031 = vunpack.c.h.b16 %v4783
        %v5032 = vunpack.c.l.b16 %v4784
        %v5033 = vunpack.c.h.b16 %v4784
        %v5034 = vunpack.c.l.b16 %v4785
        %v5035 = vunpack.c.h.b16 %v4785
        %v5036 = vunpack.c.l.b16 %v4786
        %v5037 = vunpack.c.h.b16 %v4786
        %v5038 = vunpack.c.l.b16 %v4787
        %v5039 = vunpack.c.h.b16 %v4787
        %v5040 = vunpack.c.l.b16 %v4788
        %v5041 = vunpack.c.h.b16 %v4788
        %v5042 = vunpack.c.l.b16 %v4789
        %v5043 = vunpack.c.h.b16 %v4789
        %v5044 = vunpack.c.l.b16 %v4790
        %v5045 = vunpack.c.h.b16 %v4790
        %v5046 = vunpack.c.l.b16 %v4791
        %v5047 = vunpack.c.h.b16 %v4791
        %v5048 = vunpack.c.l.b16 %v4792
        %v5049 = vunpack.c.h.b16 %v4792
        %v5050 = vunpack.c.l.b16 %v4793
        %v5051 = vunpack.c.h.b16 %v4793
        %v5052 = vunpack.c.l.b16 %v4794
        %v5053 = vunpack.c.h.b16 %v4794
        %v5054 = vunpack.c.l.b16 %v4795
        %v5055 = vunpack.c.h.b16 %v4795
        %v5056 = vunpack.c.l.b16 %v4796
        %v5057 = vunpack.c.h.b16 %v4796
        %v5058 = vunpack.c.l.b16 %v4797
        %v5059 = vunpack.c.h.b16 %v4797
        %v5060 = vunpack.c.l.b16 %v4798
        %v5061 = vunpack.c.h.b16 %v4798
        %v5062 = vunpack.c.l.b16 %v4799
        %v5063 = vunpack.c.h.b16 %v4799
        %v5064 = vunpack.c.l.b16 %v4800
        %v5065 = vunpack.c.h.b16 %v4800
        %v5066 = vunpack.c.l.b16 %v4801
        %v5067 = vunpack.c.h.b16 %v4801
        %v5068 = vunpack.c.l.b16 %v4802
        %v5069 = vunpack.c.h.b16 %v4802
        %v5070 = vunpack.c.l.b16 %v4803
        %v5071 = vunpack.c.h.b16 %v4803
        %v5072 = vunpack.c.l.b16 %v4804
        %v5073 = vunpack.c.h.b16 %v4804
        %v5074 = vunpack.c.l.b16 %v4805
        %v5075 = vunpack.c.h.b16 %v4805
        %v5076 = vunpack.c.l.b16 %v4806
        %v5077 = vunpack.c.h.b16 %v4806
        %v5078 = vunpack.c.l.b16 %v4807
        %v5079 = vunpack.c.h.b16 %v4807
        %v5080 = vunpack.c.l.b16 %v4808
        %v5081 = vunpack.c.h.b16 %v4808
        %v5082 = vunpack.c.l.b16 %v4809
        %v5083 = vunpack.c.h.b16 %v4809
        %v5084 = vunpack.c.l.b16 %v4810
        %v5085 = vunpack.c.h.b16 %v4810
        %v5086 = vunpack.c.l.b16 %v4811
        %v5087 = vunpack.c.h.b16 %v4811
        %v5088 = vunpack.c.l.b16 %v4812
        %v5089 = vunpack.c.h.b16 %v4812
        %v5090 = vunpack.c.l.b16 %v4813
        %v5091 = vunpack.c.h.b16 %v4813
        %v5092 = vunpack.c.l.b16 %v4814
        %v5093 = vunpack.c.h.b16 %v4814
        %v5094 = vunpack.c.l.b16 %v4815
        %v5095 = vunpack.c.h.b16 %v4815
        %v5096 = vunpack.c.l.b16 %v4816
        %v5097 = vunpack.c.h.b16 %v4816
        %v5098 = vunpack.c.l.b16 %v4817
        %v5099 = vunpack.c.h.b16 %v4817
        %v5100 = vunpack.c.l.b16 %v4818
        %v5101 = vunpack.c.h.b16 %v4818
        %v5102 = vunpack.c.l.b16 %v4819
        %v5103 = vunpack.c.h.b16 %v4819
        %v5104 = vunpack.c.l.b16 %v4820
        %v5105 = vunpack.c.h.b16 %v4820
        %v5106 = vunpack.c.l.b16 %v4821
        %v5107 = vunpack.c.h.b16 %v4821
        %v5108 = vunpack.c.l.b16 %v4822
        %v5109 = vunpack.c.h.b16 %v4822
        %v5110 = vunpack.c.l.b16 %v4823
        %v5111 = vunpack.c.h.b16 %v4823
        %v5112 = vpack.c.b16 %v4952, %v4920
        %v5113 = vpack.c.b16 %v4953, %v4921
        %v5114 = vpack.c.b16 %v4954, %v4922
        %v5115 = vpack.c.b16 %v4955, %v4923
        %v5116 = vpack.c.b16 %v4956, %v4924
        %v5117 = vpack.c.b16 %v4957, %v4925
        %v5118 = vpack.c.b16 %v4958, %v4926
        %v5119 = vpack.c.b16 %v4959, %v4927
        %v5120 = vpack.c.b16 %v4960, %v4928
        %v5121 = vpack.c.b16 %v4961, %v4929
        %v5122 = vpack.c.b16 %v4962, %v4930
        %v5123 = vpack.c.b16 %v4963, %v4931
        %v5124 = vpack.c.b16 %v4964, %v4932
        %v5125 = vpack.c.b16 %v4965, %v4933
        %v5126 = vpack.c.b16 %v4966, %v4934
        %v5127 = vpack.c.b16 %v4967, %v4935
        %v5128 = vpack.c.b16 %v4968, %v4936
        %v5129 = vpack.c.b16 %v4969, %v4937
        %v5130 = vpack.c.b16 %v4970, %v4938
        %v5131 = vpack.c.b16 %v4971, %v4939
        %v5132 = vpack.c.b16 %v4972, %v4940
        %v5133 = vpack.c.b16 %v4973, %v4941
        %v5134 = vpack.c.b16 %v4974, %v4942
        %v5135 = vpack.c.b16 %v4975, %v4943
        %v5136 = vpack.c.b16 %v4976, %v4944
        %v5137 = vpack.c.b16 %v4977, %v4945
        %v5138 = vpack.c.b16 %v4978, %v4946
        %v5139 = vpack.c.b16 %v4979, %v4947
        %v5140 = vpack.c.b16 %v4980, %v4948
        %v5141 = vpack.c.b16 %v4981, %v4949
        %v5142 = vpack.c.b16 %v4982, %v4950
        %v5143 = vpack.c.b16 %v4983, %v4951
        %v5144 = vpack.c.b16 %v5016, %v4984
        %v5145 = vpack.c.b16 %v5017, %v4985
        %v5146 = vpack.c.b16 %v5018, %v4986
        %v5147 = vpack.c.b16 %v5019, %v4987
        %v5148 = vpack.c.b16 %v5020, %v4988
        %v5149 = vpack.c.b16 %v5021, %v4989
        %v5150 = vpack.c.b16 %v5022, %v4990
        %v5151 = vpack.c.b16 %v5023, %v4991
        %v5152 = vpack.c.b16 %v5024, %v4992
        %v5153 = vpack.c.b16 %v5025, %v4993
        %v5154 = vpack.c.b16 %v5026, %v4994
        %v5155 = vpack.c.b16 %v5027, %v4995
        %v5156 = vpack.c.b16 %v5028, %v4996
        %v5157 = vpack.c.b16 %v5029, %v4997
        %v5158 = vpack.c.b16 %v5030, %v4998
        %v5159 = vpack.c.b16 %v5031, %v4999
        %v5160 = vpack.c.b16 %v5032, %v5000
        %v5161 = vpack.c.b16 %v5033, %v5001
        %v5162 = vpack.c.b16 %v5034, %v5002
        %v5163 = vpack.c.b16 %v5035, %v5003
        %v5164 = vpack.c.b16 %v5036, %v5004
        %v5165 = vpack.c.b16 %v5037, %v5005
        %v5166 = vpack.c.b16 %v5038, %v5006
        %v5167 = vpack.c.b16 %v5039, %v5007
        %v5168 = vpack.c.b16 %v5040, %v5008
        %v5169 = vpack.c.b16 %v5041, %v5009
        %v5170 = vpack.c.b16 %v5042, %v5010
        %v5171 = vpack.c.b16 %v5043, %v5011
        %v5172 = vpack.c.b16 %v5044, %v5012
        %v5173 = vpack.c.b16 %v5045, %v5013
        %v5174 = vpack.c.b16 %v5046, %v5014
        %v5175 = vpack.c.b16 %v5047, %v5015
        %v5176 = vpack.c.b16 %v5080, %v5048
        %v5177 = vpack.c.b16 %v5081, %v5049
        %v5178 = vpack.c.b16 %v5082, %v5050
        %v5179 = vpack.c.b16 %v5083, %v5051
        %v5180 = vpack.c.b16 %v5084, %v5052
        %v5181 = vpack.c.b16 %v5085, %v5053
        %v5182 = vpack.c.b16 %v5086, %v5054
        %v5183 = vpack.c.b16 %v5087, %v5055
        %v5184 = vpack.c.b16 %v5088, %v5056
        %v5185 = vpack.c.b16 %v5089, %v5057
        %v5186 = vpack.c.b16 %v5090, %v5058
        %v5187 = vpack.c.b16 %v5091, %v5059
        %v5188 = vpack.c.b16 %v5092, %v5060
        %v5189 = vpack.c.b16 %v5093, %v5061
        %v5190 = vpack.c.b16 %v5094, %v5062
        %v5191 = vpack.c.b16 %v5095, %v5063
        %v5192 = vpack.c.b16 %v5096, %v5064
        %v5193 = vpack.c.b16 %v5097, %v5065
        %v5194 = vpack.c.b16 %v5098, %v5066
        %v5195 = vpack.c.b16 %v5099, %v5067
        %v5196 = vpack.c.b16 %v5100, %v5068
        %v5197 = vpack.c.b16 %v5101, %v5069
        %v5198 = vpack.c.b16 %v5102, %v5070
        %v5199 = vpack.c.b16 %v5103, %v5071
        %v5200 = vpack.c.b16 %v5104, %v5072
        %v5201 = vpack.c.b16 %v5105, %v5073
        %v5202 = vpack.c.b16 %v5106, %v5074
        %v5203 = vpack.c.b16 %v5107, %v5075
        %v5204 = vpack.c.b16 %v5108, %v5076
        %v5205 = vpack.c.b16 %v5109, %v5077
        %v5206 = vpack.c.b16 %v5110, %v5078
        %v5207 = vpack.c.b16 %v5111, %v5079
        %5304 = vmatprep.subr.bf16.mxu0 0
        %5305 = vmatpush1.bf16.msra.mxu0 0
        %5306 = vmatprep.subr.bf16.mxu0 0
        %5307 = vmatpush1.bf16.msra.mxu0 0
        %5308 = vmatprep.subr.bf16.mxu0 0
        %5309 = vmatpush1.bf16.msra.mxu0 0
        %5310 = vmatprep.subr.bf16.mxu0 0
        %5311 = vmatpush1.bf16.msra.mxu0 0
        %5312 = vmatprep.subr.bf16.mxu0 0
        %5313 = vmatpush1.bf16.msra.mxu0 0
        %5314 = vmatprep.subr.bf16.mxu0 %v5177
        %5315 = vmatpush1.bf16.msra.mxu0 %v5176
        %5316 = vmatprep.subr.bf16.mxu0 %v5145
        %5317 = vmatpush1.bf16.msra.mxu0 %v5144
        %5318 = vmatprep.subr.bf16.mxu0 %v5113
        %5319 = vmatpush1.bf16.msra.mxu0 %v5112
        %5320 = vmatprep.subr.bf16.mxu0 0
        %5321 = vmatpush2.bf16.msra.mxu0 0
        %5322 = vmatprep.subr.bf16.mxu0 0
        %5323 = vmatpush2.bf16.msra.mxu0 0
        %5324 = vmatprep.subr.bf16.mxu0 0
        %5325 = vmatpush2.bf16.msra.mxu0 0
        %5326 = vmatprep.subr.bf16.mxu0 0
        %5327 = vmatpush2.bf16.msra.mxu0 0
        %5328 = vmatprep.subr.bf16.mxu0 0
        %5329 = vmatpush2.bf16.msra.mxu0 0
        %5330 = vmatprep.subr.bf16.mxu0 0
        %5331 = vmatpush2.bf16.msra.mxu0 0
        %5332 = vmatprep.subr.bf16.mxu0 0
        %5333 = vmatpush2.bf16.msra.mxu0 0
        %5334 = vmatprep.subr.bf16.mxu0 0
        %5335 = vmatpush2.bf16.msra.mxu0 0
        %5336 = vmatprep.mubr.bf16.mxu0 0
        %5337 = vmatmul.mubr.bf16.gmra.mxu0 %v1539
        %v5338 = vpop.f32.mrf.mxu0
        %v5339 = vadd.f32 0.0, %v5338
        %v5340 = vpop.f32.mrf.mxu0
        %v5341 = vadd.f32 0.0, %v5340
        %v5342 = vpop.f32.mrf.mxu0
        %v5343 = vpop.f32.mrf.mxu0
        %5344 = vdwg.mxu0
        %5345 = vmatprep.subr.bf16.mxu0 0
        %5346 = vmatpush1.bf16.msra.mxu0 0
        %5347 = vmatprep.subr.bf16.mxu0 0
        %5348 = vmatpush1.bf16.msra.mxu0 0
        %5349 = vmatprep.subr.bf16.mxu0 0
        %5350 = vmatpush1.bf16.msra.mxu0 0
        %5351 = vmatprep.subr.bf16.mxu0 0
        %5352 = vmatpush1.bf16.msra.mxu0 0
        %5353 = vmatprep.subr.bf16.mxu0 0
        %5354 = vmatpush1.bf16.msra.mxu0 0
        %5355 = vmatprep.subr.bf16.mxu0 %v5179
        %5356 = vmatpush1.bf16.msra.mxu0 %v5178
        %5357 = vmatprep.subr.bf16.mxu0 %v5147
        %5358 = vmatpush1.bf16.msra.mxu0 %v5146
        %5359 = vmatprep.subr.bf16.mxu0 %v5115
        %5360 = vmatpush1.bf16.msra.mxu0 %v5114
        %5361 = vmatprep.subr.bf16.mxu0 0
        %5362 = vmatpush2.bf16.msra.mxu0 0
        %5363 = vmatprep.subr.bf16.mxu0 0
        %5364 = vmatpush2.bf16.msra.mxu0 0
        %5365 = vmatprep.subr.bf16.mxu0 0
        %5366 = vmatpush2.bf16.msra.mxu0 0
        %5367 = vmatprep.subr.bf16.mxu0 0
        %5368 = vmatpush2.bf16.msra.mxu0 0
        %5369 = vmatprep.subr.bf16.mxu0 0
        %5370 = vmatpush2.bf16.msra.mxu0 0
        %5371 = vmatprep.subr.bf16.mxu0 0
        %5372 = vmatpush2.bf16.msra.mxu0 0
        %5373 = vmatprep.subr.bf16.mxu0 0
        %5374 = vmatpush2.bf16.msra.mxu0 0
        %5375 = vmatprep.subr.bf16.mxu0 0
        %5376 = vmatpush2.bf16.msra.mxu0 0
        %5377 = vmatprep.mubr.bf16.mxu0 0
        %5378 = vmatmul.mubr.bf16.gmra.mxu0 %v1539
        %v5379 = vpop.f32.mrf.mxu0
        %v5380 = vadd.f32 0.0, %v5379
        %v5381 = vpop.f32.mrf.mxu0
        %v5382 = vadd.f32 0.0, %v5381
        %v5383 = vpop.f32.mrf.mxu0
        %v5384 = vpop.f32.mrf.mxu0
        %5385 = vdwg.mxu0
        %5386 = vmatprep.subr.bf16.mxu0 0
        %5387 = vmatpush1.bf16.msra.mxu0 0
        %5388 = vmatprep.subr.bf16.mxu0 0
        %5389 = vmatpush1.bf16.msra.mxu0 0
        %5390 = vmatprep.subr.bf16.mxu0 0
        %5391 = vmatpush1.bf16.msra.mxu0 0
        %5392 = vmatprep.subr.bf16.mxu0 0
        %5393 = vmatpush1.bf16.msra.mxu0 0
        %5394 = vmatprep.subr.bf16.mxu0 0
        %5395 = vmatpush1.bf16.msra.mxu0 0
        %5396 = vmatprep.subr.bf16.mxu0 %v5181
        %5397 = vmatpush1.bf16.msra.mxu0 %v5180
        %5398 = vmatprep.subr.bf16.mxu0 %v5149
        %5399 = vmatpush1.bf16.msra.mxu0 %v5148
        %5400 = vmatprep.subr.bf16.mxu0 %v5117
        %5401 = vmatpush1.bf16.msra.mxu0 %v5116
        %5402 = vmatprep.subr.bf16.mxu0 0
        %5403 = vmatpush2.bf16.msra.mxu0 0
        %5404 = vmatprep.subr.bf16.mxu0 0
        %5405 = vmatpush2.bf16.msra.mxu0 0
        %5406 = vmatprep.subr.bf16.mxu0 0
        %5407 = vmatpush2.bf16.msra.mxu0 0
        %5408 = vmatprep.subr.bf16.mxu0 0
        %5409 = vmatpush2.bf16.msra.mxu0 0
        %5410 = vmatprep.subr.bf16.mxu0 0
        %5411 = vmatpush2.bf16.msra.mxu0 0
        %5412 = vmatprep.subr.bf16.mxu0 0
        %5413 = vmatpush2.bf16.msra.mxu0 0
        %5414 = vmatprep.subr.bf16.mxu0 0
        %5415 = vmatpush2.bf16.msra.mxu0 0
        %5416 = vmatprep.subr.bf16.mxu0 0
        %5417 = vmatpush2.bf16.msra.mxu0 0
        %5418 = vmatprep.mubr.bf16.mxu0 0
        %5419 = vmatmul.mubr.bf16.gmra.mxu0 %v1539
        %v5420 = vpop.f32.mrf.mxu0
        %v5421 = vadd.f32 0.0, %v5420
        %v5422 = vpop.f32.mrf.mxu0
        %v5423 = vadd.f32 0.0, %v5422
        %v5424 = vpop.f32.mrf.mxu0
        %v5425 = vpop.f32.mrf.mxu0
        %5426 = vdwg.mxu0
        %5427 = vmatprep.subr.bf16.mxu0 0
        %5428 = vmatpush1.bf16.msra.mxu0 0
        %5429 = vmatprep.subr.bf16.mxu0 0
        %5430 = vmatpush1.bf16.msra.mxu0 0
        %5431 = vmatprep.subr.bf16.mxu0 0
        %5432 = vmatpush1.bf16.msra.mxu0 0
        %5433 = vmatprep.subr.bf16.mxu0 0
        %5434 = vmatpush1.bf16.msra.mxu0 0
        %5435 = vmatprep.subr.bf16.mxu0 0
        %5436 = vmatpush1.bf16.msra.mxu0 0
        %5437 = vmatprep.subr.bf16.mxu0 %v5183
        %5438 = vmatpush1.bf16.msra.mxu0 %v5182
        %5439 = vmatprep.subr.bf16.mxu0 %v5151
        %5440 = vmatpush1.bf16.msra.mxu0 %v5150
        %5441 = vmatprep.subr.bf16.mxu0 %v5119
        %5442 = vmatpush1.bf16.msra.mxu0 %v5118
        %5443 = vmatprep.subr.bf16.mxu0 0
        %5444 = vmatpush2.bf16.msra.mxu0 0
        %5445 = vmatprep.subr.bf16.mxu0 0
        %5446 = vmatpush2.bf16.msra.mxu0 0
        %5447 = vmatprep.subr.bf16.mxu0 0
        %5448 = vmatpush2.bf16.msra.mxu0 0
        %5449 = vmatprep.subr.bf16.mxu0 0
        %5450 = vmatpush2.bf16.msra.mxu0 0
        %5451 = vmatprep.subr.bf16.mxu0 0
        %5452 = vmatpush2.bf16.msra.mxu0 0
        %5453 = vmatprep.subr.bf16.mxu0 0
        %5454 = vmatpush2.bf16.msra.mxu0 0
        %5455 = vmatprep.subr.bf16.mxu0 0
        %5456 = vmatpush2.bf16.msra.mxu0 0
        %5457 = vmatprep.subr.bf16.mxu0 0
        %5458 = vmatpush2.bf16.msra.mxu0 0
        %5459 = vmatprep.mubr.bf16.mxu0 0
        %5460 = vmatmul.mubr.bf16.gmra.mxu0 %v1539
        %v5461 = vpop.f32.mrf.mxu0
        %v5462 = vadd.f32 0.0, %v5461
        %v5463 = vpop.f32.mrf.mxu0
        %v5464 = vadd.f32 0.0, %v5463
        %v5465 = vpop.f32.mrf.mxu0
        %v5466 = vpop.f32.mrf.mxu0
        %5467 = vdwg.mxu0
        %5468 = vmatprep.subr.bf16.mxu0 0
        %5469 = vmatpush1.bf16.msra.mxu0 0
        %5470 = vmatprep.subr.bf16.mxu0 0
        %5471 = vmatpush1.bf16.msra.mxu0 0
        %5472 = vmatprep.subr.bf16.mxu0 0
        %5473 = vmatpush1.bf16.msra.mxu0 0
        %5474 = vmatprep.subr.bf16.mxu0 0
        %5475 = vmatpush1.bf16.msra.mxu0 0
        %5476 = vmatprep.subr.bf16.mxu0 0
        %5477 = vmatpush1.bf16.msra.mxu0 0
        %5478 = vmatprep.subr.bf16.mxu0 %v5185
        %5479 = vmatpush1.bf16.msra.mxu0 %v5184
        %5480 = vmatprep.subr.bf16.mxu0 %v5153
        %5481 = vmatpush1.bf16.msra.mxu0 %v5152
        %5482 = vmatprep.subr.bf16.mxu0 %v5121
        %5483 = vmatpush1.bf16.msra.mxu0 %v5120
        %5484 = vmatprep.subr.bf16.mxu0 0
        %5485 = vmatpush2.bf16.msra.mxu0 0
        %5486 = vmatprep.subr.bf16.mxu0 0
        %5487 = vmatpush2.bf16.msra.mxu0 0
        %5488 = vmatprep.subr.bf16.mxu0 0
        %5489 = vmatpush2.bf16.msra.mxu0 0
        %5490 = vmatprep.subr.bf16.mxu0 0
        %5491 = vmatpush2.bf16.msra.mxu0 0
        %5492 = vmatprep.subr.bf16.mxu0 0
        %5493 = vmatpush2.bf16.msra.mxu0 0
        %5494 = vmatprep.subr.bf16.mxu0 0
        %5495 = vmatpush2.bf16.msra.mxu0 0
        %5496 = vmatprep.subr.bf16.mxu0 0
        %5497 = vmatpush2.bf16.msra.mxu0 0
        %5498 = vmatprep.subr.bf16.mxu0 0
        %5499 = vmatpush2.bf16.msra.mxu0 0
        %5500 = vmatprep.mubr.bf16.mxu0 0
        %5501 = vmatmul.mubr.bf16.gmra.mxu0 %v1539
        %v5502 = vpop.f32.mrf.mxu0
        %v5503 = vadd.f32 0.0, %v5502
        %v5504 = vpop.f32.mrf.mxu0
        %v5505 = vadd.f32 0.0, %v5504
        %v5506 = vpop.f32.mrf.mxu0
        %v5507 = vpop.f32.mrf.mxu0
        %5508 = vdwg.mxu0
        %5509 = vmatprep.subr.bf16.mxu0 0
        %5510 = vmatpush1.bf16.msra.mxu0 0
        %5511 = vmatprep.subr.bf16.mxu0 0
        %5512 = vmatpush1.bf16.msra.mxu0 0
        %5513 = vmatprep.subr.bf16.mxu0 0
        %5514 = vmatpush1.bf16.msra.mxu0 0
        %5515 = vmatprep.subr.bf16.mxu0 0
        %5516 = vmatpush1.bf16.msra.mxu0 0
        %5517 = vmatprep.subr.bf16.mxu0 0
        %5518 = vmatpush1.bf16.msra.mxu0 0
        %5519 = vmatprep.subr.bf16.mxu0 %v5187
        %5520 = vmatpush1.bf16.msra.mxu0 %v5186
        %5521 = vmatprep.subr.bf16.mxu0 %v5155
        %5522 = vmatpush1.bf16.msra.mxu0 %v5154
        %5523 = vmatprep.subr.bf16.mxu0 %v5123
        %5524 = vmatpush1.bf16.msra.mxu0 %v5122
        %5525 = vmatprep.subr.bf16.mxu0 0
        %5526 = vmatpush2.bf16.msra.mxu0 0
        %5527 = vmatprep.subr.bf16.mxu0 0
        %5528 = vmatpush2.bf16.msra.mxu0 0
        %5529 = vmatprep.subr.bf16.mxu0 0
        %5530 = vmatpush2.bf16.msra.mxu0 0
        %5531 = vmatprep.subr.bf16.mxu0 0
        %5532 = vmatpush2.bf16.msra.mxu0 0
        %5533 = vmatprep.subr.bf16.mxu0 0
        %5534 = vmatpush2.bf16.msra.mxu0 0
        %5535 = vmatprep.subr.bf16.mxu0 0
        %5536 = vmatpush2.bf16.msra.mxu0 0
        %5537 = vmatprep.subr.bf16.mxu0 0
        %5538 = vmatpush2.bf16.msra.mxu0 0
        %5539 = vmatprep.subr.bf16.mxu0 0
        %5540 = vmatpush2.bf16.msra.mxu0 0
        %5541 = vmatprep.mubr.bf16.mxu0 0
        %5542 = vmatmul.mubr.bf16.gmra.mxu0 %v1539
        %v5543 = vpop.f32.mrf.mxu0
        %v5544 = vadd.f32 0.0, %v5543
        %v5545 = vpop.f32.mrf.mxu0
        %v5546 = vadd.f32 0.0, %v5545
        %v5547 = vpop.f32.mrf.mxu0
        %v5548 = vpop.f32.mrf.mxu0
        %5549 = vdwg.mxu0
        %5550 = vmatprep.subr.bf16.mxu0 0
        %5551 = vmatpush1.bf16.msra.mxu0 0
        %5552 = vmatprep.subr.bf16.mxu0 0
        %5553 = vmatpush1.bf16.msra.mxu0 0
        %5554 = vmatprep.subr.bf16.mxu0 0
        %5555 = vmatpush1.bf16.msra.mxu0 0
        %5556 = vmatprep.subr.bf16.mxu0 0
        %5557 = vmatpush1.bf16.msra.mxu0 0
        %5558 = vmatprep.subr.bf16.mxu0 0
        %5559 = vmatpush1.bf16.msra.mxu0 0
        %5560 = vmatprep.subr.bf16.mxu0 %v5189
        %5561 = vmatpush1.bf16.msra.mxu0 %v5188
        %5562 = vmatprep.subr.bf16.mxu0 %v5157
        %5563 = vmatpush1.bf16.msra.mxu0 %v5156
        %5564 = vmatprep.subr.bf16.mxu0 %v5125
        %5565 = vmatpush1.bf16.msra.mxu0 %v5124
        %5566 = vmatprep.subr.bf16.mxu0 0
        %5567 = vmatpush2.bf16.msra.mxu0 0
        %5568 = vmatprep.subr.bf16.mxu0 0
        %5569 = vmatpush2.bf16.msra.mxu0 0
        %5570 = vmatprep.subr.bf16.mxu0 0
        %5571 = vmatpush2.bf16.msra.mxu0 0
        %5572 = vmatprep.subr.bf16.mxu0 0
        %5573 = vmatpush2.bf16.msra.mxu0 0
        %5574 = vmatprep.subr.bf16.mxu0 0
        %5575 = vmatpush2.bf16.msra.mxu0 0
        %5576 = vmatprep.subr.bf16.mxu0 0
        %5577 = vmatpush2.bf16.msra.mxu0 0
        %5578 = vmatprep.subr.bf16.mxu0 0
        %5579 = vmatpush2.bf16.msra.mxu0 0
        %5580 = vmatprep.subr.bf16.mxu0 0
        %5581 = vmatpush2.bf16.msra.mxu0 0
        %5582 = vmatprep.mubr.bf16.mxu0 0
        %5583 = vmatmul.mubr.bf16.gmra.mxu0 %v1539
        %v5584 = vpop.f32.mrf.mxu0
        %v5585 = vadd.f32 0.0, %v5584
        %v5586 = vpop.f32.mrf.mxu0
        %v5587 = vadd.f32 0.0, %v5586
        %v5588 = vpop.f32.mrf.mxu0
        %v5589 = vpop.f32.mrf.mxu0
        %5590 = vdwg.mxu0
        %5591 = vmatprep.subr.bf16.mxu0 0
        %5592 = vmatpush1.bf16.msra.mxu0 0
        %5593 = vmatprep.subr.bf16.mxu0 0
        %5594 = vmatpush1.bf16.msra.mxu0 0
        %5595 = vmatprep.subr.bf16.mxu0 0
        %5596 = vmatpush1.bf16.msra.mxu0 0
        %5597 = vmatprep.subr.bf16.mxu0 0
        %5598 = vmatpush1.bf16.msra.mxu0 0
        %5599 = vmatprep.subr.bf16.mxu0 0
        %5600 = vmatpush1.bf16.msra.mxu0 0
        %5601 = vmatprep.subr.bf16.mxu0 %v5191
        %5602 = vmatpush1.bf16.msra.mxu0 %v5190
        %5603 = vmatprep.subr.bf16.mxu0 %v5159
        %5604 = vmatpush1.bf16.msra.mxu0 %v5158
        %5605 = vmatprep.subr.bf16.mxu0 %v5127
        %5606 = vmatpush1.bf16.msra.mxu0 %v5126
        %5607 = vmatprep.subr.bf16.mxu0 0
        %5608 = vmatpush2.bf16.msra.mxu0 0
        %5609 = vmatprep.subr.bf16.mxu0 0
        %5610 = vmatpush2.bf16.msra.mxu0 0
        %5611 = vmatprep.subr.bf16.mxu0 0
        %5612 = vmatpush2.bf16.msra.mxu0 0
        %5613 = vmatprep.subr.bf16.mxu0 0
        %5614 = vmatpush2.bf16.msra.mxu0 0
        %5615 = vmatprep.subr.bf16.mxu0 0
        %5616 = vmatpush2.bf16.msra.mxu0 0
        %5617 = vmatprep.subr.bf16.mxu0 0
        %5618 = vmatpush2.bf16.msra.mxu0 0
        %5619 = vmatprep.subr.bf16.mxu0 0
        %5620 = vmatpush2.bf16.msra.mxu0 0
        %5621 = vmatprep.subr.bf16.mxu0 0
        %5622 = vmatpush2.bf16.msra.mxu0 0
        %5623 = vmatprep.mubr.bf16.mxu0 0
        %5624 = vmatmul.mubr.bf16.gmra.mxu0 %v1539
        %v5625 = vpop.f32.mrf.mxu0
        %v5626 = vadd.f32 0.0, %v5625
        %v5627 = vpop.f32.mrf.mxu0
        %v5628 = vadd.f32 0.0, %v5627
        %v5629 = vpop.f32.mrf.mxu0
        %v5630 = vpop.f32.mrf.mxu0
        %5631 = vdwg.mxu0
        %5632 = vmatprep.subr.bf16.mxu0 0
        %5633 = vmatpush1.bf16.msra.mxu0 0
        %5634 = vmatprep.subr.bf16.mxu0 0
        %5635 = vmatpush1.bf16.msra.mxu0 0
        %5636 = vmatprep.subr.bf16.mxu0 0
        %5637 = vmatpush1.bf16.msra.mxu0 0
        %5638 = vmatprep.subr.bf16.mxu0 0
        %5639 = vmatpush1.bf16.msra.mxu0 0
        %5640 = vmatprep.subr.bf16.mxu0 0
        %5641 = vmatpush1.bf16.msra.mxu0 0
        %5642 = vmatprep.subr.bf16.mxu0 %v5193
        %5643 = vmatpush1.bf16.msra.mxu0 %v5192
        %5644 = vmatprep.subr.bf16.mxu0 %v5161
        %5645 = vmatpush1.bf16.msra.mxu0 %v5160
        %5646 = vmatprep.subr.bf16.mxu0 %v5129
        %5647 = vmatpush1.bf16.msra.mxu0 %v5128
        %5648 = vmatprep.subr.bf16.mxu0 0
        %5649 = vmatpush2.bf16.msra.mxu0 0
        %5650 = vmatprep.subr.bf16.mxu0 0
        %5651 = vmatpush2.bf16.msra.mxu0 0
        %5652 = vmatprep.subr.bf16.mxu0 0
        %5653 = vmatpush2.bf16.msra.mxu0 0
        %5654 = vmatprep.subr.bf16.mxu0 0
        %5655 = vmatpush2.bf16.msra.mxu0 0
        %5656 = vmatprep.subr.bf16.mxu0 0
        %5657 = vmatpush2.bf16.msra.mxu0 0
        %5658 = vmatprep.subr.bf16.mxu0 0
        %5659 = vmatpush2.bf16.msra.mxu0 0
        %5660 = vmatprep.subr.bf16.mxu0 0
        %5661 = vmatpush2.bf16.msra.mxu0 0
        %5662 = vmatprep.subr.bf16.mxu0 0
        %5663 = vmatpush2.bf16.msra.mxu0 0
        %5664 = vmatprep.mubr.bf16.mxu0 0
        %5665 = vmatmul.mubr.bf16.gmra.mxu0 %v1539
        %v5666 = vpop.f32.mrf.mxu0
        %v5667 = vadd.f32 0.0, %v5666
        %v5668 = vpop.f32.mrf.mxu0
        %v5669 = vadd.f32 0.0, %v5668
        %v5670 = vpop.f32.mrf.mxu0
        %v5671 = vpop.f32.mrf.mxu0
        %5672 = vdwg.mxu0
        %5673 = vmatprep.subr.bf16.mxu0 0
        %5674 = vmatpush1.bf16.msra.mxu0 0
        %5675 = vmatprep.subr.bf16.mxu0 0
        %5676 = vmatpush1.bf16.msra.mxu0 0
        %5677 = vmatprep.subr.bf16.mxu0 0
        %5678 = vmatpush1.bf16.msra.mxu0 0
        %5679 = vmatprep.subr.bf16.mxu0 0
        %5680 = vmatpush1.bf16.msra.mxu0 0
        %5681 = vmatprep.subr.bf16.mxu0 0
        %5682 = vmatpush1.bf16.msra.mxu0 0
        %5683 = vmatprep.subr.bf16.mxu0 %v5195
        %5684 = vmatpush1.bf16.msra.mxu0 %v5194
        %5685 = vmatprep.subr.bf16.mxu0 %v5163
        %5686 = vmatpush1.bf16.msra.mxu0 %v5162
        %5687 = vmatprep.subr.bf16.mxu0 %v5131
        %5688 = vmatpush1.bf16.msra.mxu0 %v5130
        %5689 = vmatprep.subr.bf16.mxu0 0
        %5690 = vmatpush2.bf16.msra.mxu0 0
        %5691 = vmatprep.subr.bf16.mxu0 0
        %5692 = vmatpush2.bf16.msra.mxu0 0
        %5693 = vmatprep.subr.bf16.mxu0 0
        %5694 = vmatpush2.bf16.msra.mxu0 0
        %5695 = vmatprep.subr.bf16.mxu0 0
        %5696 = vmatpush2.bf16.msra.mxu0 0
        %5697 = vmatprep.subr.bf16.mxu0 0
        %5698 = vmatpush2.bf16.msra.mxu0 0
        %5699 = vmatprep.subr.bf16.mxu0 0
        %5700 = vmatpush2.bf16.msra.mxu0 0
        %5701 = vmatprep.subr.bf16.mxu0 0
        %5702 = vmatpush2.bf16.msra.mxu0 0
        %5703 = vmatprep.subr.bf16.mxu0 0
        %5704 = vmatpush2.bf16.msra.mxu0 0
        %5705 = vmatprep.mubr.bf16.mxu0 0
        %5706 = vmatmul.mubr.bf16.gmra.mxu0 %v1539
        %v5707 = vpop.f32.mrf.mxu0
        %v5708 = vadd.f32 0.0, %v5707
        %v5709 = vpop.f32.mrf.mxu0
        %v5710 = vadd.f32 0.0, %v5709
        %v5711 = vpop.f32.mrf.mxu0
        %v5712 = vpop.f32.mrf.mxu0
        %5713 = vdwg.mxu0
        %5714 = vmatprep.subr.bf16.mxu0 0
        %5715 = vmatpush1.bf16.msra.mxu0 0
        %5716 = vmatprep.subr.bf16.mxu0 0
        %5717 = vmatpush1.bf16.msra.mxu0 0
        %5718 = vmatprep.subr.bf16.mxu0 0
        %5719 = vmatpush1.bf16.msra.mxu0 0
        %5720 = vmatprep.subr.bf16.mxu0 0
        %5721 = vmatpush1.bf16.msra.mxu0 0
        %5722 = vmatprep.subr.bf16.mxu0 0
        %5723 = vmatpush1.bf16.msra.mxu0 0
        %5724 = vmatprep.subr.bf16.mxu0 %v5197
        %5725 = vmatpush1.bf16.msra.mxu0 %v5196
        %5726 = vmatprep.subr.bf16.mxu0 %v5165
        %5727 = vmatpush1.bf16.msra.mxu0 %v5164
        %5728 = vmatprep.subr.bf16.mxu0 %v5133
        %5729 = vmatpush1.bf16.msra.mxu0 %v5132
        %5730 = vmatprep.subr.bf16.mxu0 0
        %5731 = vmatpush2.bf16.msra.mxu0 0
        %5732 = vmatprep.subr.bf16.mxu0 0
        %5733 = vmatpush2.bf16.msra.mxu0 0
        %5734 = vmatprep.subr.bf16.mxu0 0
        %5735 = vmatpush2.bf16.msra.mxu0 0
        %5736 = vmatprep.subr.bf16.mxu0 0
        %5737 = vmatpush2.bf16.msra.mxu0 0
        %5738 = vmatprep.subr.bf16.mxu0 0
        %5739 = vmatpush2.bf16.msra.mxu0 0
        %5740 = vmatprep.subr.bf16.mxu0 0
        %5741 = vmatpush2.bf16.msra.mxu0 0
        %5742 = vmatprep.subr.bf16.mxu0 0
        %5743 = vmatpush2.bf16.msra.mxu0 0
        %5744 = vmatprep.subr.bf16.mxu0 0
        %5745 = vmatpush2.bf16.msra.mxu0 0
        %5746 = vmatprep.mubr.bf16.mxu0 0
        %5747 = vmatmul.mubr.bf16.gmra.mxu0 %v1539
        %v5748 = vpop.f32.mrf.mxu0
        %v5749 = vadd.f32 0.0, %v5748
        %v5750 = vpop.f32.mrf.mxu0
        %v5751 = vadd.f32 0.0, %v5750
        %v5752 = vpop.f32.mrf.mxu0
        %v5753 = vpop.f32.mrf.mxu0
        %5754 = vdwg.mxu0
        %5755 = vmatprep.subr.bf16.mxu0 0
        %5756 = vmatpush1.bf16.msra.mxu0 0
        %5757 = vmatprep.subr.bf16.mxu0 0
        %5758 = vmatpush1.bf16.msra.mxu0 0
        %5759 = vmatprep.subr.bf16.mxu0 0
        %5760 = vmatpush1.bf16.msra.mxu0 0
        %5761 = vmatprep.subr.bf16.mxu0 0
        %5762 = vmatpush1.bf16.msra.mxu0 0
        %5763 = vmatprep.subr.bf16.mxu0 0
        %5764 = vmatpush1.bf16.msra.mxu0 0
        %5765 = vmatprep.subr.bf16.mxu0 %v5199
        %5766 = vmatpush1.bf16.msra.mxu0 %v5198
        %5767 = vmatprep.subr.bf16.mxu0 %v5167
        %5768 = vmatpush1.bf16.msra.mxu0 %v5166
        %5769 = vmatprep.subr.bf16.mxu0 %v5135
        %5770 = vmatpush1.bf16.msra.mxu0 %v5134
        %5771 = vmatprep.subr.bf16.mxu0 0
        %5772 = vmatpush2.bf16.msra.mxu0 0
        %5773 = vmatprep.subr.bf16.mxu0 0
        %5774 = vmatpush2.bf16.msra.mxu0 0
        %5775 = vmatprep.subr.bf16.mxu0 0
        %5776 = vmatpush2.bf16.msra.mxu0 0
        %5777 = vmatprep.subr.bf16.mxu0 0
        %5778 = vmatpush2.bf16.msra.mxu0 0
        %5779 = vmatprep.subr.bf16.mxu0 0
        %5780 = vmatpush2.bf16.msra.mxu0 0
        %5781 = vmatprep.subr.bf16.mxu0 0
        %5782 = vmatpush2.bf16.msra.mxu0 0
        %5783 = vmatprep.subr.bf16.mxu0 0
        %5784 = vmatpush2.bf16.msra.mxu0 0
        %5785 = vmatprep.subr.bf16.mxu0 0
        %5786 = vmatpush2.bf16.msra.mxu0 0
        %5787 = vmatprep.mubr.bf16.mxu0 0
        %5788 = vmatmul.mubr.bf16.gmra.mxu0 %v1539
        %v5789 = vpop.f32.mrf.mxu0
        %v5790 = vadd.f32 0.0, %v5789
        %v5791 = vpop.f32.mrf.mxu0
        %v5792 = vadd.f32 0.0, %v5791
        %v5793 = vpop.f32.mrf.mxu0
        %v5794 = vpop.f32.mrf.mxu0
        %5795 = vdwg.mxu0
        %5796 = vmatprep.subr.bf16.mxu0 0
        %5797 = vmatpush1.bf16.msra.mxu0 0
        %5798 = vmatprep.subr.bf16.mxu0 0
        %5799 = vmatpush1.bf16.msra.mxu0 0
        %5800 = vmatprep.subr.bf16.mxu0 0
        %5801 = vmatpush1.bf16.msra.mxu0 0
        %5802 = vmatprep.subr.bf16.mxu0 0
        %5803 = vmatpush1.bf16.msra.mxu0 0
        %5804 = vmatprep.subr.bf16.mxu0 0
        %5805 = vmatpush1.bf16.msra.mxu0 0
        %5806 = vmatprep.subr.bf16.mxu0 %v5201
        %5807 = vmatpush1.bf16.msra.mxu0 %v5200
        %5808 = vmatprep.subr.bf16.mxu0 %v5169
        %5809 = vmatpush1.bf16.msra.mxu0 %v5168
        %5810 = vmatprep.subr.bf16.mxu0 %v5137
        %5811 = vmatpush1.bf16.msra.mxu0 %v5136
        %5812 = vmatprep.subr.bf16.mxu0 0
        %5813 = vmatpush2.bf16.msra.mxu0 0
        %5814 = vmatprep.subr.bf16.mxu0 0
        %5815 = vmatpush2.bf16.msra.mxu0 0
        %5816 = vmatprep.subr.bf16.mxu0 0
        %5817 = vmatpush2.bf16.msra.mxu0 0
        %5818 = vmatprep.subr.bf16.mxu0 0
        %5819 = vmatpush2.bf16.msra.mxu0 0
        %5820 = vmatprep.subr.bf16.mxu0 0
        %5821 = vmatpush2.bf16.msra.mxu0 0
        %5822 = vmatprep.subr.bf16.mxu0 0
        %5823 = vmatpush2.bf16.msra.mxu0 0
        %5824 = vmatprep.subr.bf16.mxu0 0
        %5825 = vmatpush2.bf16.msra.mxu0 0
        %5826 = vmatprep.subr.bf16.mxu0 0
        %5827 = vmatpush2.bf16.msra.mxu0 0
        %5828 = vmatprep.mubr.bf16.mxu0 0
        %5829 = vmatmul.mubr.bf16.gmra.mxu0 %v1539
        %v5830 = vpop.f32.mrf.mxu0
        %v5831 = vadd.f32 0.0, %v5830
        %v5832 = vpop.f32.mrf.mxu0
        %v5833 = vadd.f32 0.0, %v5832
        %v5834 = vpop.f32.mrf.mxu0
        %v5835 = vpop.f32.mrf.mxu0
        %5836 = vdwg.mxu0
        %5837 = vmatprep.subr.bf16.mxu0 0
        %5838 = vmatpush1.bf16.msra.mxu0 0
        %5839 = vmatprep.subr.bf16.mxu0 0
        %5840 = vmatpush1.bf16.msra.mxu0 0
        %5841 = vmatprep.subr.bf16.mxu0 0
        %5842 = vmatpush1.bf16.msra.mxu0 0
        %5843 = vmatprep.subr.bf16.mxu0 0
        %5844 = vmatpush1.bf16.msra.mxu0 0
        %5845 = vmatprep.subr.bf16.mxu0 0
        %5846 = vmatpush1.bf16.msra.mxu0 0
        %5847 = vmatprep.subr.bf16.mxu0 %v5203
        %5848 = vmatpush1.bf16.msra.mxu0 %v5202
        %5849 = vmatprep.subr.bf16.mxu0 %v5171
        %5850 = vmatpush1.bf16.msra.mxu0 %v5170
        %5851 = vmatprep.subr.bf16.mxu0 %v5139
        %5852 = vmatpush1.bf16.msra.mxu0 %v5138
        %5853 = vmatprep.subr.bf16.mxu0 0
        %5854 = vmatpush2.bf16.msra.mxu0 0
        %5855 = vmatprep.subr.bf16.mxu0 0
        %5856 = vmatpush2.bf16.msra.mxu0 0
        %5857 = vmatprep.subr.bf16.mxu0 0
        %5858 = vmatpush2.bf16.msra.mxu0 0
        %5859 = vmatprep.subr.bf16.mxu0 0
        %5860 = vmatpush2.bf16.msra.mxu0 0
        %5861 = vmatprep.subr.bf16.mxu0 0
        %5862 = vmatpush2.bf16.msra.mxu0 0
        %5863 = vmatprep.subr.bf16.mxu0 0
        %5864 = vmatpush2.bf16.msra.mxu0 0
        %5865 = vmatprep.subr.bf16.mxu0 0
        %5866 = vmatpush2.bf16.msra.mxu0 0
        %5867 = vmatprep.subr.bf16.mxu0 0
        %5868 = vmatpush2.bf16.msra.mxu0 0
        %5869 = vmatprep.mubr.bf16.mxu0 0
        %5870 = vmatmul.mubr.bf16.gmra.mxu0 %v1539
        %v5871 = vpop.f32.mrf.mxu0
        %v5872 = vadd.f32 0.0, %v5871
        %v5873 = vpop.f32.mrf.mxu0
        %v5874 = vadd.f32 0.0, %v5873
        %v5875 = vpop.f32.mrf.mxu0
        %v5876 = vpop.f32.mrf.mxu0
        %5877 = vdwg.mxu0
        %5878 = vmatprep.subr.bf16.mxu0 0
        %5879 = vmatpush1.bf16.msra.mxu0 0
        %5880 = vmatprep.subr.bf16.mxu0 0
        %5881 = vmatpush1.bf16.msra.mxu0 0
        %5882 = vmatprep.subr.bf16.mxu0 0
        %5883 = vmatpush1.bf16.msra.mxu0 0
        %5884 = vmatprep.subr.bf16.mxu0 0
        %5885 = vmatpush1.bf16.msra.mxu0 0
        %5886 = vmatprep.subr.bf16.mxu0 0
        %5887 = vmatpush1.bf16.msra.mxu0 0
        %5888 = vmatprep.subr.bf16.mxu0 %v5205
        %5889 = vmatpush1.bf16.msra.mxu0 %v5204
        %5890 = vmatprep.subr.bf16.mxu0 %v5173
        %5891 = vmatpush1.bf16.msra.mxu0 %v5172
        %5892 = vmatprep.subr.bf16.mxu0 %v5141
        %5893 = vmatpush1.bf16.msra.mxu0 %v5140
        %5894 = vmatprep.subr.bf16.mxu0 0
        %5895 = vmatpush2.bf16.msra.mxu0 0
        %5896 = vmatprep.subr.bf16.mxu0 0
        %5897 = vmatpush2.bf16.msra.mxu0 0
        %5898 = vmatprep.subr.bf16.mxu0 0
        %5899 = vmatpush2.bf16.msra.mxu0 0
        %5900 = vmatprep.subr.bf16.mxu0 0
        %5901 = vmatpush2.bf16.msra.mxu0 0
        %5902 = vmatprep.subr.bf16.mxu0 0
        %5903 = vmatpush2.bf16.msra.mxu0 0
        %5904 = vmatprep.subr.bf16.mxu0 0
        %5905 = vmatpush2.bf16.msra.mxu0 0
        %5906 = vmatprep.subr.bf16.mxu0 0
        %5907 = vmatpush2.bf16.msra.mxu0 0
        %5908 = vmatprep.subr.bf16.mxu0 0
        %5909 = vmatpush2.bf16.msra.mxu0 0
        %5910 = vmatprep.mubr.bf16.mxu0 0
        %5911 = vmatmul.mubr.bf16.gmra.mxu0 %v1539
        %v5912 = vpop.f32.mrf.mxu0
        %v5913 = vadd.f32 0.0, %v5912
        %v5914 = vpop.f32.mrf.mxu0
        %v5915 = vadd.f32 0.0, %v5914
        %v5916 = vpop.f32.mrf.mxu0
        %v5917 = vpop.f32.mrf.mxu0
        %5918 = vdwg.mxu0
        %5919 = vmatprep.subr.bf16.mxu0 0
        %5920 = vmatpush1.bf16.msra.mxu0 0
        %5921 = vmatprep.subr.bf16.mxu0 0
        %5922 = vmatpush1.bf16.msra.mxu0 0
        %5923 = vmatprep.subr.bf16.mxu0 0
        %5924 = vmatpush1.bf16.msra.mxu0 0
        %5925 = vmatprep.subr.bf16.mxu0 0
        %5926 = vmatpush1.bf16.msra.mxu0 0
        %5927 = vmatprep.subr.bf16.mxu0 0
        %5928 = vmatpush1.bf16.msra.mxu0 0
        %5929 = vmatprep.subr.bf16.mxu0 %v5207
        %5930 = vmatpush1.bf16.msra.mxu0 %v5206
        %5931 = vmatprep.subr.bf16.mxu0 %v5175
        %5932 = vmatpush1.bf16.msra.mxu0 %v5174
        %5933 = vmatprep.subr.bf16.mxu0 %v5143
        %5934 = vmatpush1.bf16.msra.mxu0 %v5142
        %5935 = vmatprep.subr.bf16.mxu0 0
        %5936 = vmatpush2.bf16.msra.mxu0 0
        %5937 = vmatprep.subr.bf16.mxu0 0
        %5938 = vmatpush2.bf16.msra.mxu0 0
        %5939 = vmatprep.subr.bf16.mxu0 0
        %5940 = vmatpush2.bf16.msra.mxu0 0
        %5941 = vmatprep.subr.bf16.mxu0 0
        %5942 = vmatpush2.bf16.msra.mxu0 0
        %5943 = vmatprep.subr.bf16.mxu0 0
        %5944 = vmatpush2.bf16.msra.mxu0 0
        %5945 = vmatprep.subr.bf16.mxu0 0
        %5946 = vmatpush2.bf16.msra.mxu0 0
        %5947 = vmatprep.subr.bf16.mxu0 0
        %5948 = vmatpush2.bf16.msra.mxu0 0
        %5949 = vmatprep.subr.bf16.mxu0 0
        %5950 = vmatpush2.bf16.msra.mxu0 0
        %5951 = vmatprep.mubr.bf16.mxu0 0
        %5952 = vmatmul.mubr.bf16.gmra.mxu0 %v1539
        %v5953 = vpop.f32.mrf.mxu0
        %v5954 = vadd.f32 0.0, %v5953
        %v5955 = vpop.f32.mrf.mxu0
        %v5956 = vadd.f32 0.0, %v5955
        %v5957 = vpop.f32.mrf.mxu0
        %v5958 = vpop.f32.mrf.mxu0
        %5959 = vdwg.mxu0
        %v5960 = vmax.f32 %v4695, %v5339
        %v5961 = vmax.f32 %v4696, %v5341
        %v5962 = vmax.f32 %v4697, %v5380
        %v5963 = vmax.f32 %v4698, %v5382
        %v5964 = vmax.f32 %v4699, %v5421
        %v5965 = vmax.f32 %v4700, %v5423
        %v5966 = vmax.f32 %v4701, %v5462
        %v5967 = vmax.f32 %v4702, %v5464
        %v5968 = vmax.f32 %v4703, %v5503
        %v5969 = vmax.f32 %v4704, %v5505
        %v5970 = vmax.f32 %v4705, %v5544
        %v5971 = vmax.f32 %v4706, %v5546
        %v5972 = vmax.f32 %v4707, %v5585
        %v5973 = vmax.f32 %v4708, %v5587
        %v5974 = vmax.f32 %v4709, %v5626
        %v5975 = vmax.f32 %v4710, %v5628
        %v5976 = vmax.f32 %v4711, %v5667
        %v5977 = vmax.f32 %v4712, %v5669
        %v5978 = vmax.f32 %v4713, %v5708
        %v5979 = vmax.f32 %v4714, %v5710
        %v5980 = vmax.f32 %v4715, %v5749
        %v5981 = vmax.f32 %v4716, %v5751
        %v5982 = vmax.f32 %v4717, %v5790
        %v5983 = vmax.f32 %v4718, %v5792
        %v5984 = vmax.f32 %v4719, %v5831
        %v5985 = vmax.f32 %v4720, %v5833
        %v5986 = vmax.f32 %v4721, %v5872
        %v5987 = vmax.f32 %v4722, %v5874
        %v5988 = vmax.f32 %v4723, %v5913
        %v5989 = vmax.f32 %v4724, %v5915
        %v5990 = vmax.f32 %v4725, %v5954
        %v5991 = vmax.f32 %v4726, %v5956
        %v5992 = vld [vmem:[%s2] sm:$0xff]
        %5994 = vset.pattern.permute.xlu0 0
        %5995 = vperm.xlu0 %5994, %v5992
        %v5996 = vpop.permute.xlu0 %5995
        %v5998 = vadd.f32 %v5960, %v5996
        %v5999 = vadd.f32 %v5961, %v5996
        %v6000 = vadd.f32 %v5962, %v5996
        %v6001 = vadd.f32 %v5963, %v5996
        %v6002 = vadd.f32 %v5964, %v5996
        %v6003 = vadd.f32 %v5965, %v5996
        %v6004 = vadd.f32 %v5966, %v5996
        %v6005 = vadd.f32 %v5967, %v5996
        %v6006 = vadd.f32 %v5968, %v5996
        %v6007 = vadd.f32 %v5969, %v5996
        %v6008 = vadd.f32 %v5970, %v5996
        %v6009 = vadd.f32 %v5971, %v5996
        %v6010 = vadd.f32 %v5972, %v5996
        %v6011 = vadd.f32 %v5973, %v5996
        %v6012 = vadd.f32 %v5974, %v5996
        %v6013 = vadd.f32 %v5975, %v5996
        %v6014 = vadd.f32 %v5976, %v5996
        %v6015 = vadd.f32 %v5977, %v5996
        %v6016 = vadd.f32 %v5978, %v5996
        %v6017 = vadd.f32 %v5979, %v5996
        %v6018 = vadd.f32 %v5980, %v5996
        %v6019 = vadd.f32 %v5981, %v5996
        %v6020 = vadd.f32 %v5982, %v5996
        %v6021 = vadd.f32 %v5983, %v5996
        %v6022 = vadd.f32 %v5984, %v5996
        %v6023 = vadd.f32 %v5985, %v5996
        %v6024 = vadd.f32 %v5986, %v5996
        %v6025 = vadd.f32 %v5987, %v5996
        %v6026 = vadd.f32 %v5988, %v5996
        %v6027 = vadd.f32 %v5989, %v5996
        %v6028 = vadd.f32 %v5990, %v5996
        %v6029 = vadd.f32 %v5991, %v5996
        %v6030 = vmul.f32 %v5998, 0.2
        %v6031 = vmul.f32 %v5999, 0.2
        %v6032 = vmul.f32 %v6000, 0.2
        %v6033 = vmul.f32 %v6001, 0.2
        %v6034 = vmul.f32 %v6002, 0.2
        %v6035 = vmul.f32 %v6003, 0.2
        %v6036 = vmul.f32 %v6004, 0.2
        %v6037 = vmul.f32 %v6005, 0.2
        %v6038 = vmul.f32 %v6006, 0.2
        %v6039 = vmul.f32 %v6007, 0.2
        %v6040 = vmul.f32 %v6008, 0.2
        %v6041 = vmul.f32 %v6009, 0.2
        %v6042 = vmul.f32 %v6010, 0.2
        %v6043 = vmul.f32 %v6011, 0.2
        %v6044 = vmul.f32 %v6012, 0.2
        %v6045 = vmul.f32 %v6013, 0.2
        %v6046 = vmul.f32 %v6014, 0.2
        %v6047 = vmul.f32 %v6015, 0.2
        %v6048 = vmul.f32 %v6016, 0.2
        %v6049 = vmul.f32 %v6017, 0.2
        %v6050 = vmul.f32 %v6018, 0.2
        %v6051 = vmul.f32 %v6019, 0.2
        %v6052 = vmul.f32 %v6020, 0.2
        %v6053 = vmul.f32 %v6021, 0.2
        %v6054 = vmul.f32 %v6022, 0.2
        %v6055 = vmul.f32 %v6023, 0.2
        %v6056 = vmul.f32 %v6024, 0.2
        %v6057 = vmul.f32 %v6025, 0.2
        %v6058 = vmul.f32 %v6026, 0.2
        %v6059 = vmul.f32 %v6027, 0.2
        %v6060 = vmul.f32 %v6028, 0.2
        %v6061 = vmul.f32 %v6029, 0.2
        %v6062 = vmax.f32 %v5998, %v6030
        %v6063 = vmax.f32 %v5999, %v6031
        %v6064 = vmax.f32 %v6000, %v6032
        %v6065 = vmax.f32 %v6001, %v6033
        %v6066 = vmax.f32 %v6002, %v6034
        %v6067 = vmax.f32 %v6003, %v6035
        %v6068 = vmax.f32 %v6004, %v6036
        %v6069 = vmax.f32 %v6005, %v6037
        %v6070 = vmax.f32 %v6006, %v6038
        %v6071 = vmax.f32 %v6007, %v6039
        %v6072 = vmax.f32 %v6008, %v6040
        %v6073 = vmax.f32 %v6009, %v6041
        %v6074 = vmax.f32 %v6010, %v6042
        %v6075 = vmax.f32 %v6011, %v6043
        %v6076 = vmax.f32 %v6012, %v6044
        %v6077 = vmax.f32 %v6013, %v6045
        %v6078 = vmax.f32 %v6014, %v6046
        %v6079 = vmax.f32 %v6015, %v6047
        %v6080 = vmax.f32 %v6016, %v6048
        %v6081 = vmax.f32 %v6017, %v6049
        %v6082 = vmax.f32 %v6018, %v6050
        %v6083 = vmax.f32 %v6019, %v6051
        %v6084 = vmax.f32 %v6020, %v6052
        %v6085 = vmax.f32 %v6021, %v6053
        %v6086 = vmax.f32 %v6022, %v6054
        %v6087 = vmax.f32 %v6023, %v6055
        %v6088 = vmax.f32 %v6024, %v6056
        %v6089 = vmax.f32 %v6025, %v6057
        %v6090 = vmax.f32 %v6026, %v6058
        %v6091 = vmax.f32 %v6027, %v6059
        %v6092 = vmax.f32 %v6028, %v6060
        %v6093 = vmax.f32 %v6029, %v6061
        %v6094 = vpack.c.bf16 %v6062, %v6062
        %v6095 = vpack.c.bf16 %v6063, %v6063
        %v6096 = vpack.c.bf16 %v6064, %v6064
        %v6097 = vpack.c.bf16 %v6065, %v6065
        %v6098 = vpack.c.bf16 %v6066, %v6066
        %v6099 = vpack.c.bf16 %v6067, %v6067
        %v6100 = vpack.c.bf16 %v6068, %v6068
        %v6101 = vpack.c.bf16 %v6069, %v6069
        %v6102 = vpack.c.bf16 %v6070, %v6070
        %v6103 = vpack.c.bf16 %v6071, %v6071
        %v6104 = vpack.c.bf16 %v6072, %v6072
        %v6105 = vpack.c.bf16 %v6073, %v6073
        %v6106 = vpack.c.bf16 %v6074, %v6074
        %v6107 = vpack.c.bf16 %v6075, %v6075
        %v6108 = vpack.c.bf16 %v6076, %v6076
        %v6109 = vpack.c.bf16 %v6077, %v6077
        %v6110 = vpack.c.bf16 %v6078, %v6078
        %v6111 = vpack.c.bf16 %v6079, %v6079
        %v6112 = vpack.c.bf16 %v6080, %v6080
        %v6113 = vpack.c.bf16 %v6081, %v6081
        %v6114 = vpack.c.bf16 %v6082, %v6082
        %v6115 = vpack.c.bf16 %v6083, %v6083
        %v6116 = vpack.c.bf16 %v6084, %v6084
        %v6117 = vpack.c.bf16 %v6085, %v6085
        %v6118 = vpack.c.bf16 %v6086, %v6086
        %v6119 = vpack.c.bf16 %v6087, %v6087
        %v6120 = vpack.c.bf16 %v6088, %v6088
        %v6121 = vpack.c.bf16 %v6089, %v6089
        %v6122 = vpack.c.bf16 %v6090, %v6090
        %v6123 = vpack.c.bf16 %v6091, %v6091
        %v6124 = vpack.c.bf16 %v6092, %v6092
        %v6125 = vpack.c.bf16 %v6093, %v6093
        %v6158 = vunpack.c.l.b16 %v6094
        %v6159 = vunpack.c.l.b16 %v6095
        %v6160 = vunpack.c.l.b16 %v6096
        %v6161 = vunpack.c.l.b16 %v6097
        %v6162 = vunpack.c.l.b16 %v6098
        %v6163 = vunpack.c.l.b16 %v6099
        %v6164 = vunpack.c.l.b16 %v6100
        %v6165 = vunpack.c.l.b16 %v6101
        %v6166 = vunpack.c.l.b16 %v6102
        %v6167 = vunpack.c.l.b16 %v6103
        %v6168 = vunpack.c.l.b16 %v6104
        %v6169 = vunpack.c.l.b16 %v6105
        %v6170 = vunpack.c.l.b16 %v6106
        %v6171 = vunpack.c.l.b16 %v6107
        %v6172 = vunpack.c.l.b16 %v6108
        %v6173 = vunpack.c.l.b16 %v6109
        %v6174 = vunpack.c.l.b16 %v6110
        %v6175 = vunpack.c.l.b16 %v6111
        %v6176 = vunpack.c.l.b16 %v6112
        %v6177 = vunpack.c.l.b16 %v6113
        %v6178 = vunpack.c.l.b16 %v6114
        %v6179 = vunpack.c.l.b16 %v6115
        %v6180 = vunpack.c.l.b16 %v6116
        %v6181 = vunpack.c.l.b16 %v6117
        %v6182 = vunpack.c.l.b16 %v6118
        %v6183 = vunpack.c.l.b16 %v6119
        %v6184 = vunpack.c.l.b16 %v6120
        %v6185 = vunpack.c.l.b16 %v6121
        %v6186 = vunpack.c.l.b16 %v6122
        %v6187 = vunpack.c.l.b16 %v6123
        %v6188 = vunpack.c.l.b16 %v6124
        %v6189 = vunpack.c.l.b16 %v6125
        %v6190 = vpack.c.b16 %v6159, %v6158
        %v6191 = vpack.c.b16 %v6161, %v6160
        %v6192 = vpack.c.b16 %v6163, %v6162
        %v6193 = vpack.c.b16 %v6165, %v6164
        %v6194 = vpack.c.b16 %v6167, %v6166
        %v6195 = vpack.c.b16 %v6169, %v6168
        %v6196 = vpack.c.b16 %v6171, %v6170
        %v6197 = vpack.c.b16 %v6173, %v6172
        %v6198 = vpack.c.b16 %v6175, %v6174
        %v6199 = vpack.c.b16 %v6177, %v6176
        %v6200 = vpack.c.b16 %v6179, %v6178
        %v6201 = vpack.c.b16 %v6181, %v6180
        %v6202 = vpack.c.b16 %v6183, %v6182
        %v6203 = vpack.c.b16 %v6185, %v6184
        %v6204 = vpack.c.b16 %v6187, %v6186
        %v6205 = vpack.c.b16 %v6189, %v6188
        %6222 = vst [vmem:[%s957] sm:$0xff] %v6190
        %6223 = vst [vmem:[%s957 + $0x8] sm:$0xff] %v6191
        %6224 = vst [vmem:[%s957 + $0x10] sm:$0xff] %v6192
        %6225 = vst [vmem:[%s957 + $0x18] sm:$0xff] %v6193
        %6226 = vst [vmem:[%s957 + $0x20] sm:$0xff] %v6194
        %6227 = vst [vmem:[%s957 + $0x28] sm:$0xff] %v6195
        %6228 = vst [vmem:[%s957 + $0x30] sm:$0xff] %v6196
        %6229 = vst [vmem:[%s957 + $0x38] sm:$0xff] %v6197
        %6230 = vst [vmem:[%s957 + $0x40] sm:$0xff] %v6198
        %6231 = vst [vmem:[%s957 + $0x48] sm:$0xff] %v6199
        %6232 = vst [vmem:[%s957 + $0x50] sm:$0xff] %v6200
        %6233 = vst [vmem:[%s957 + $0x58] sm:$0xff] %v6201
        %6234 = vst [vmem:[%s957 + $0x60] sm:$0xff] %v6202
        %6235 = vst [vmem:[%s957 + $0x68] sm:$0xff] %v6203
        %6236 = vst [vmem:[%s957 + $0x70] sm:$0xff] %v6204
        %6237 = vst [vmem:[%s957 + $0x78] sm:$0xff] %v6205
        %s6238 = smul.u32 32, %s14
        %p6239 = scmp.lt.s32.totalorder %s6238, 63
        %s6240 = scalar_select %p6239, %s6238, 63
        %s6241 = smul.addr %s6240, 4
        %s6242 = scalar_lea.vmem %s3, %s6241
        // Predicated region
        $region56: #{_lambda_.4} parent=50 // pred_check
          %p6243 = pneg %p100
        $region57: #{_lambda_.4} parent=50 // pred_check_branch
          %6245 = sbr.rel (%p6243) target = $region59
        $region58: #{_lambda_.4} parent=50 // pred_region
          %s6246 = smul.u32 32, %s14
        $region59: #{_lambda_.4} parent=50 // pred_fallthru
          _
      $region51: #{_lambda_.4} parent=5 // pred_fallthru
        _
      %p6247 = scmp.le.s32.totalorder 2, %s9
      // Predicated region
      $region60: #{_lambda_.4} parent=5 // pred_check
        %p6248 = pneg %p6247
      $region61: #{_lambda_.4} parent=5 // pred_check_branch
        %6250 = sbr.rel (%p6248) target = $region63
      $region62: #{_lambda_.4} parent=5 // pred_region
        %s6251 = ssub.s32 %s9, 2
        // Predicated region
        $region64: #{_lambda_.4} parent=62 // pred_check
          %p6252 = pneg %p106
        $region65: #{_lambda_.4} parent=62 // pred_check_branch
          %6254 = sbr.rel (%p6252) target = $region67
        $region66: #{_lambda_.4} parent=62 // pred_region
          %s6255 = smul.u32 32, %s15
          %p6256 = scmp.lt.s32.totalorder %s6255, 63
          %s6257 = scalar_select %p6256, %s6255, 63
          %s6258 = smul.addr %s6257, 4
          %s6259 = scalar_lea.vmem %s3, %s6258
        $region67: #{_lambda_.4} parent=62 // pred_fallthru
          _
      $region63: #{_lambda_.4} parent=5 // pred_fallthru
        _
    $region6: #{_lambda_.4} parent=1 // loop_footer
      %s13 = sadd.s32 1, %s9
    $region7: #{_lambda_.4} parent=1 // loop_footer_branch
      %8 = sbr.rel target = $region3
    $region8: #{_lambda_.4} parent=1 // loop_exit
      _

// kernel: _lambda_.5
$region0: #{_lambda_.5}
  #allocation0 [shape = 'u32[]', space=smem, size = 0x4, offset = 0x4, fixed_abs, tag = 'smem constant byte address 0x4 - core index']
  #allocation1 [shape = 'u32[144,128]{1,0:T(1,128)}', space=vmem, size = 0x12000, scoped, tag = 'internal scratch']
  %s0 = inlined_call_operand.vmem [shape: bf16[4,128,512], index: 0, kind: input, shape index: {}]
  %s1 = inlined_call_operand.vmem [shape: bf16[16,128], index: 1, kind: input, shape index: {}]
  %s2 = inlined_call_operand.vmem [shape: f32[16,1], index: 2, kind: input, shape index: {}]
  %s3 = inlined_call_operand.vmem [shape: bf16[16,512], index: 3, kind: output, shape index: {}]
  %s4 = sld [smem:[#allocation0]]
  $region117: #{_lambda_.5} parent=0
    _
  %s6 = ssub.s32 1, %s4
  %s7 = scalar_select 0, %s6, %s4
  $region1: #{_lambda_.5} parent=0
    #allocation2 [shape = 'u8[524288]{0}', space=vmem, size = 0x80000, scoped, tag = 'input window, operand 0']
    #allocation3 [shape = 'u8[16384]{0}', space=vmem, size = 0x4000, scoped, tag = 'output window, operand 0']
    loop: start=0, step=1, limit=4
    $region2: #{_lambda_.5} parent=1 // loop_pre_header
      _
    $region3: #{_lambda_.5} parent=1 // loop_header
      %s9 = sphi 0, %s13
      %p10 = scmp.ge.s32.totalorder %s9, 4
      %s19 = sphi 0, %s21
      %s22 = sphi 0, %s19
      %s23 = sphi 0, %s22
      %s39 = sphi 0, %s23
      %s43 = sphi 0, %s43
      %s45 = sphi 0, %s43
      %s46 = sphi 0, %s45
      %s60 = sphi 0, %s46
      %s64 = sphi 0, %s64
      %s66 = sphi 0, %s64
      %s67 = sphi 0, %s66
      %s81 = sphi 0, %s67
      %s87 = sphi 0, %s89
      %s90 = sphi 0, %s87
      %s91 = sphi 0, %s90
      %s107 = sphi 0, %s91
    $region4: #{_lambda_.5} parent=1 // loop_header_branch
      %12 = sbr.rel (%p10) target = $region8
    $region5: #{_lambda_.5} parent=1 // loop_body
      %s14 = ssub.s32 %s9, 1
      %s15 = ssub.s32 %s9, 2
      %s16 = sadd.s32 %s9, 1
      %s17 = ssub.s32 %s9, %s16
      %p18 = scmp.eq.s32.totalorder %s17, 0
      %s20 = sadd.s32 %s19, 1
      %s21 = scalar_select %p18, %s19, %s20
      %p24 = pneg %p18
      %p25 = scmp.eq.s32.totalorder %s9, 1
      %p26 = por %p24, %p25
      %p27 = scmp.ne.s32.totalorder %s19, %s22
      %p28 = scmp.eq.s32.totalorder %s9, 0
      %p29 = por %p27, %p28
      %p30 = scmp.ne.s32.totalorder %s19, %s22
      %p31 = scmp.eq.s32.totalorder %s14, 1
      %p32 = por %p30, %p31
      %p33 = scmp.ne.s32.totalorder %s22, %s23
      %p34 = scmp.eq.s32.totalorder %s14, 0
      %p35 = por %p33, %p34
      %p36 = scmp.ne.s32.totalorder %s22, %s23
      %p37 = scmp.eq.s32.totalorder %s15, 1
      %p38 = por %p36, %p37
      %p40 = scmp.ne.s32.totalorder %s23, %s39
      %p41 = scmp.eq.s32.totalorder %s15, 0
      %p42 = por %p40, %p41
      %s44 = sadd.s32 %s43, 1
      %p47 = scmp.eq.s32.totalorder %s9, 1
      %p48 = scmp.ne.s32.totalorder %s43, %s45
      %p49 = scmp.eq.s32.totalorder %s9, 0
      %p50 = por %p48, %p49
      %p51 = scmp.ne.s32.totalorder %s43, %s45
      %p52 = scmp.eq.s32.totalorder %s14, 1
      %p53 = por %p51, %p52
      %p54 = scmp.ne.s32.totalorder %s45, %s46
      %p55 = scmp.eq.s32.totalorder %s14, 0
      %p56 = por %p54, %p55
      %p57 = scmp.ne.s32.totalorder %s45, %s46
      %p58 = scmp.eq.s32.totalorder %s15, 1
      %p59 = por %p57, %p58
      %p61 = scmp.ne.s32.totalorder %s46, %s60
      %p62 = scmp.eq.s32.totalorder %s15, 0
      %p63 = por %p61, %p62
      %s65 = sadd.s32 %s64, 1
      %p68 = scmp.eq.s32.totalorder %s9, 1
      %p69 = scmp.ne.s32.totalorder %s64, %s66
      %p70 = scmp.eq.s32.totalorder %s9, 0
      %p71 = por %p69, %p70
      %p72 = scmp.ne.s32.totalorder %s64, %s66
      %p73 = scmp.eq.s32.totalorder %s14, 1
      %p74 = por %p72, %p73
      %p75 = scmp.ne.s32.totalorder %s66, %s67
      %p76 = scmp.eq.s32.totalorder %s14, 0
      %p77 = por %p75, %p76
      %p78 = scmp.ne.s32.totalorder %s66, %s67
      %p79 = scmp.eq.s32.totalorder %s15, 1
      %p80 = por %p78, %p79
      %p82 = scmp.ne.s32.totalorder %s67, %s81
      %p83 = scmp.eq.s32.totalorder %s15, 0
      %p84 = por %p82, %p83
      %s85 = ssub.s32 %s9, %s16
      %p86 = scmp.eq.s32.totalorder %s85, 0
      %s88 = sadd.s32 %s87, 1
      %s89 = scalar_select %p86, %s87, %s88
      %p92 = pneg %p86
      %p93 = scmp.eq.s32.totalorder %s9, 1
      %p94 = por %p92, %p93
      %p95 = scmp.ne.s32.totalorder %s87, %s90
      %p96 = scmp.eq.s32.totalorder %s9, 0
      %p97 = por %p95, %p96
      %p98 = scmp.ne.s32.totalorder %s87, %s90
      %p99 = scmp.eq.s32.totalorder %s14, 1
      %p100 = por %p98, %p99
      %p101 = scmp.ne.s32.totalorder %s90, %s91
      %p102 = scmp.eq.s32.totalorder %s14, 0
      %p103 = por %p101, %p102
      %p104 = scmp.ne.s32.totalorder %s90, %s91
      %p105 = scmp.eq.s32.totalorder %s15, 1
      %p106 = por %p104, %p105
      %p108 = scmp.ne.s32.totalorder %s91, %s107
      %p109 = scmp.eq.s32.totalorder %s15, 0
      %p110 = por %p108, %p109
      %p111 = scmp.le.s32.totalorder 1, %s9
      %p112 = scmp.lt.s32.totalorder %s9, 3
      %p113 = pnand %p111, %p112
      %p114 = pneg %p113
      // Predicated region
      $region9: #{_lambda_.5} parent=5 // pred_check
        _
      $region10: #{_lambda_.5} parent=5 // pred_check_branch
        %116 = sbr.rel (%p113) target = $region12
      $region11: #{_lambda_.5} parent=5 // pred_region
        %s117 = ssub.s32 %s9, 1
        // Predicated region
        $region13: #{_lambda_.5} parent=11 // pred_check
          %p118 = pneg %p56
        $region14: #{_lambda_.5} parent=11 // pred_check_branch
          %120 = sbr.rel (%p118) target = $region16
        $region15: #{_lambda_.5} parent=11 // pred_region
          _
        $region16: #{_lambda_.5} parent=11 // pred_fallthru
          _
        // Predicated region
        $region17: #{_lambda_.5} parent=11 // pred_check
          %p121 = pneg %p77
        $region18: #{_lambda_.5} parent=11 // pred_check_branch
          %123 = sbr.rel (%p121) target = $region20
        $region19: #{_lambda_.5} parent=11 // pred_region
          _
        $region20: #{_lambda_.5} parent=11 // pred_fallthru
          _
      $region12: #{_lambda_.5} parent=5 // pred_fallthru
        _
      %p124 = scmp.lt.s32.totalorder %s9, 2
      // Predicated region
      $region21: #{_lambda_.5} parent=5 // pred_check
        %p125 = pneg %p124
      $region22: #{_lambda_.5} parent=5 // pred_check_branch
        %127 = sbr.rel (%p125) target = $region24
      $region23: #{_lambda_.5} parent=5 // pred_region
        // Predicated region
        $region25: #{_lambda_.5} parent=23 // pred_check
          %p128 = pneg %p29
        $region26: #{_lambda_.5} parent=23 // pred_check_branch
          %130 = sbr.rel (%p128) target = $region28
        $region27: #{_lambda_.5} parent=23 // pred_region
          %s131 = sand.u32 %s19, 1
          %s132 = sand.u32 %s19, 1
          %s133 = smul.addr %s132, 512
          %s134 = scalar_lea.vmem [#allocation2], %s133
          %s135 = smul.u32 2, %s9
          %s136 = smul.addr %s135, 4
          %s137 = scalar_lea.vmem %s0, %s136
          // Predicated region
          $region29: #{_lambda_.5} parent=27 // pred_check
            _
          $region30: #{_lambda_.5} parent=27 // pred_check_branch
            %139 = sbr.rel (0) target = $region32
          $region31: #{_lambda_.5} parent=27 // pred_region
            // Predicated region
            $region33: #{_lambda_.5} parent=31 // pred_check
              _
            $region34: #{_lambda_.5} parent=31 // pred_check_branch
              %141 = sbr.rel (0) target = $region36
            $region35: #{_lambda_.5} parent=31 // pred_region
              // Predicated region
              $region48: #{_lambda_.5} parent=35 // pred_check
                _
              $region49: #{_lambda_.5} parent=35 // pred_check_branch
                %283 = sbr.rel (0) target = $region51
              $region50: #{_lambda_.5} parent=35 // pred_region
                loop: start=0, step=1, limit=1
                $region52: #{_lambda_.5} parent=50 // loop_pre_header
                  _
                $region53: #{_lambda_.5} parent=50 // loop_header
                  %s285 = sphi 0, %s289
                  %p286 = scmp.ge.s32.totalorder %s285, 1
                  %s290 = sphi %s137, %s137
                  %s291 = sphi %s134, %s134
                $region54: #{_lambda_.5} parent=50 // loop_header_branch
                  %288 = sbr.rel (%p286) target = $region58
                $region55: #{_lambda_.5} parent=50 // loop_body
                  %v292 = vld [vmem:[%s290] sm:$0xff]
                  %293 = vst [vmem:[%s291] sm:$0xff] %v292
                  %v294 = vld [vmem:[%s290 + $0x10] sm:$0xff]
                  %295 = vst [vmem:[%s291 + $0x8] sm:$0xff] %v294
                  %v296 = vld [vmem:[%s290 + $0x20] sm:$0xff]
                  %297 = vst [vmem:[%s291 + $0x10] sm:$0xff] %v296
                  %v298 = vld [vmem:[%s290 + $0x30] sm:$0xff]
                  %299 = vst [vmem:[%s291 + $0x18] sm:$0xff] %v298
                  %v300 = vld [vmem:[%s290 + $0x40] sm:$0xff]
                  %301 = vst [vmem:[%s291 + $0x20] sm:$0xff] %v300
                  %v302 = vld [vmem:[%s290 + $0x50] sm:$0xff]
                  %303 = vst [vmem:[%s291 + $0x28] sm:$0xff] %v302
                  %v304 = vld [vmem:[%s290 + $0x60] sm:$0xff]
                  %305 = vst [vmem:[%s291 + $0x30] sm:$0xff] %v304
                  %v306 = vld [vmem:[%s290 + $0x70] sm:$0xff]
                  %307 = vst [vmem:[%s291 + $0x38] sm:$0xff] %v306
                  %v308 = vld [vmem:[%s290 + $0x80] sm:$0xff]
                  %309 = vst [vmem:[%s291 + $0x40] sm:$0xff] %v308
                  %v310 = vld [vmem:[%s290 + $0x90] sm:$0xff]
                  %311 = vst [vmem:[%s291 + $0x48] sm:$0xff] %v310
                  %v312 = vld [vmem:[%s290 + $0xa0] sm:$0xff]
                  %313 = vst [vmem:[%s291 + $0x50] sm:$0xff] %v312
                  %v314 = vld [vmem:[%s290 + $0xb0] sm:$0xff]
                  %315 = vst [vmem:[%s291 + $0x58] sm:$0xff] %v314
                  %v316 = vld [vmem:[%s290 + $0xc0] sm:$0xff]
                  %317 = vst [vmem:[%s291 + $0x60] sm:$0xff] %v316
                  %v318 = vld [vmem:[%s290 + $0xd0] sm:$0xff]
                  %319 = vst [vmem:[%s291 + $0x68] sm:$0xff] %v318
                  %v320 = vld [vmem:[%s290 + $0xe0] sm:$0xff]
                  %321 = vst [vmem:[%s291 + $0x70] sm:$0xff] %v320
                  %v322 = vld [vmem:[%s290 + $0xf0] sm:$0xff]
                  %323 = vst [vmem:[%s291 + $0x78] sm:$0xff] %v322
                  %v324 = vld [vmem:[%s290 + $0x100] sm:$0xff]
                  %325 = vst [vmem:[%s291 + $0x80] sm:$0xff] %v324
                  %v326 = vld [vmem:[%s290 + $0x110] sm:$0xff]
                  %327 = vst [vmem:[%s291 + $0x88] sm:$0xff] %v326
                  %v328 = vld [vmem:[%s290 + $0x120] sm:$0xff]
                  %329 = vst [vmem:[%s291 + $0x90] sm:$0xff] %v328
                  %v330 = vld [vmem:[%s290 + $0x130] sm:$0xff]
                  %331 = vst [vmem:[%s291 + $0x98] sm:$0xff] %v330
                  %v332 = vld [vmem:[%s290 + $0x140] sm:$0xff]
                  %333 = vst [vmem:[%s291 + $0xa0] sm:$0xff] %v332
                  %v334 = vld [vmem:[%s290 + $0x150] sm:$0xff]
                  %335 = vst [vmem:[%s291 + $0xa8] sm:$0xff] %v334
                  %v336 = vld [vmem:[%s290 + $0x160] sm:$0xff]
                  %337 = vst [vmem:[%s291 + $0xb0] sm:$0xff] %v336
                  %v338 = vld [vmem:[%s290 + $0x170] sm:$0xff]
                  %339 = vst [vmem:[%s291 + $0xb8] sm:$0xff] %v338
                  %v340 = vld [vmem:[%s290 + $0x180] sm:$0xff]
                  %341 = vst [vmem:[%s291 + $0xc0] sm:$0xff] %v340
                  %v342 = vld [vmem:[%s290 + $0x190] sm:$0xff]
                  %343 = vst [vmem:[%s291 + $0xc8] sm:$0xff] %v342
                  %v344 = vld [vmem:[%s290 + $0x1a0] sm:$0xff]
                  %345 = vst [vmem:[%s291 + $0xd0] sm:$0xff] %v344
                  %v346 = vld [vmem:[%s290 + $0x1b0] sm:$0xff]
                  %347 = vst [vmem:[%s291 + $0xd8] sm:$0xff] %v346
                  %v348 = vld [vmem:[%s290 + $0x1c0] sm:$0xff]
                  %349 = vst [vmem:[%s291 + $0xe0] sm:$0xff] %v348
                  %v350 = vld [vmem:[%s290 + $0x1d0] sm:$0xff]
                  %351 = vst [vmem:[%s291 + $0xe8] sm:$0xff] %v350
                  %v352 = vld [vmem:[%s290 + $0x1e0] sm:$0xff]
                  %353 = vst [vmem:[%s291 + $0xf0] sm:$0xff] %v352
                  %v354 = vld [vmem:[%s290 + $0x1f0] sm:$0xff]
                  %355 = vst [vmem:[%s291 + $0xf8] sm:$0xff] %v354
                  %v356 = vld [vmem:[%s290 + $0x200] sm:$0xff]
                  %357 = vst [vmem:[%s291 + $0x100] sm:$0xff] %v356
                  %v358 = vld [vmem:[%s290 + $0x210] sm:$0xff]
                  %359 = vst [vmem:[%s291 + $0x108] sm:$0xff] %v358
                  %v360 = vld [vmem:[%s290 + $0x220] sm:$0xff]
                  %361 = vst [vmem:[%s291 + $0x110] sm:$0xff] %v360
                  %v362 = vld [vmem:[%s290 + $0x230] sm:$0xff]
                  %363 = vst [vmem:[%s291 + $0x118] sm:$0xff] %v362
                  %v364 = vld [vmem:[%s290 + $0x240] sm:$0xff]
                  %365 = vst [vmem:[%s291 + $0x120] sm:$0xff] %v364
                  %v366 = vld [vmem:[%s290 + $0x250] sm:$0xff]
                  %367 = vst [vmem:[%s291 + $0x128] sm:$0xff] %v366
                  %v368 = vld [vmem:[%s290 + $0x260] sm:$0xff]
                  %369 = vst [vmem:[%s291 + $0x130] sm:$0xff] %v368
                  %v370 = vld [vmem:[%s290 + $0x270] sm:$0xff]
                  %371 = vst [vmem:[%s291 + $0x138] sm:$0xff] %v370
                  %v372 = vld [vmem:[%s290 + $0x280] sm:$0xff]
                  %373 = vst [vmem:[%s291 + $0x140] sm:$0xff] %v372
                  %v374 = vld [vmem:[%s290 + $0x290] sm:$0xff]
                  %375 = vst [vmem:[%s291 + $0x148] sm:$0xff] %v374
                  %v376 = vld [vmem:[%s290 + $0x2a0] sm:$0xff]
                  %377 = vst [vmem:[%s291 + $0x150] sm:$0xff] %v376
                  %v378 = vld [vmem:[%s290 + $0x2b0] sm:$0xff]
                  %379 = vst [vmem:[%s291 + $0x158] sm:$0xff] %v378
                  %v380 = vld [vmem:[%s290 + $0x2c0] sm:$0xff]
                  %381 = vst [vmem:[%s291 + $0x160] sm:$0xff] %v380
                  %v382 = vld [vmem:[%s290 + $0x2d0] sm:$0xff]
                  %383 = vst [vmem:[%s291 + $0x168] sm:$0xff] %v382
                  %v384 = vld [vmem:[%s290 + $0x2e0] sm:$0xff]
                  %385 = vst [vmem:[%s291 + $0x170] sm:$0xff] %v384
                  %v386 = vld [vmem:[%s290 + $0x2f0] sm:$0xff]
                  %387 = vst [vmem:[%s291 + $0x178] sm:$0xff] %v386
                  %v388 = vld [vmem:[%s290 + $0x300] sm:$0xff]
                  %389 = vst [vmem:[%s291 + $0x180] sm:$0xff] %v388
                  %v390 = vld [vmem:[%s290 + $0x310] sm:$0xff]
                  %391 = vst [vmem:[%s291 + $0x188] sm:$0xff] %v390
                  %v392 = vld [vmem:[%s290 + $0x320] sm:$0xff]
                  %393 = vst [vmem:[%s291 + $0x190] sm:$0xff] %v392
                  %v394 = vld [vmem:[%s290 + $0x330] sm:$0xff]
                  %395 = vst [vmem:[%s291 + $0x198] sm:$0xff] %v394
                  %v396 = vld [vmem:[%s290 + $0x340] sm:$0xff]
                  %397 = vst [vmem:[%s291 + $0x1a0] sm:$0xff] %v396
                  %v398 = vld [vmem:[%s290 + $0x350] sm:$0xff]
                  %399 = vst [vmem:[%s291 + $0x1a8] sm:$0xff] %v398
                  %v400 = vld [vmem:[%s290 + $0x360] sm:$0xff]
                  %401 = vst [vmem:[%s291 + $0x1b0] sm:$0xff] %v400
                  %v402 = vld [vmem:[%s290 + $0x370] sm:$0xff]
                  %403 = vst [vmem:[%s291 + $0x1b8] sm:$0xff] %v402
                  %v404 = vld [vmem:[%s290 + $0x380] sm:$0xff]
                  %405 = vst [vmem:[%s291 + $0x1c0] sm:$0xff] %v404
                  %v406 = vld [vmem:[%s290 + $0x390] sm:$0xff]
                  %407 = vst [vmem:[%s291 + $0x1c8] sm:$0xff] %v406
                  %v408 = vld [vmem:[%s290 + $0x3a0] sm:$0xff]
                  %409 = vst [vmem:[%s291 + $0x1d0] sm:$0xff] %v408
                  %v410 = vld [vmem:[%s290 + $0x3b0] sm:$0xff]
                  %411 = vst [vmem:[%s291 + $0x1d8] sm:$0xff] %v410
                  %v412 = vld [vmem:[%s290 + $0x3c0] sm:$0xff]
                  %413 = vst [vmem:[%s291 + $0x1e0] sm:$0xff] %v412
                  %v414 = vld [vmem:[%s290 + $0x3d0] sm:$0xff]
                  %415 = vst [vmem:[%s291 + $0x1e8] sm:$0xff] %v414
                  %v416 = vld [vmem:[%s290 + $0x3e0] sm:$0xff]
                  %417 = vst [vmem:[%s291 + $0x1f0] sm:$0xff] %v416
                  %v418 = vld [vmem:[%s290 + $0x3f0] sm:$0xff]
                  %419 = vst [vmem:[%s291 + $0x1f8] sm:$0xff] %v418
                $region56: #{_lambda_.5} parent=50 // loop_footer
                  %s289 = sadd.s32 1, %s285
                $region57: #{_lambda_.5} parent=50 // loop_footer_branch
                  %284 = sbr.rel target = $region53
                $region58: #{_lambda_.5} parent=50 // loop_exit
                  _
              $region51: #{_lambda_.5} parent=35 // pred_fallthru
                _
              // Predicated region
              $region59: #{_lambda_.5} parent=35 // pred_check
                _
              $region60: #{_lambda_.5} parent=35 // pred_check_branch
                %421 = sbr.rel target = $region62
              $region61: #{_lambda_.5} parent=35 // pred_region
                _
              $region62: #{_lambda_.5} parent=35 // pred_fallthru
                _
            $region36: #{_lambda_.5} parent=31 // pred_fallthru
              _
            // Predicated region
            $region37: #{_lambda_.5} parent=31 // pred_check
              _
            $region38: #{_lambda_.5} parent=31 // pred_check_branch
              %143 = sbr.rel target = $region40
            $region39: #{_lambda_.5} parent=31 // pred_region
              %s145 = ssub.s32 256, 1
              loop: start=0, step=1, limit=1
              $region41: #{_lambda_.5} parent=39 // loop_pre_header
                _
              $region42: #{_lambda_.5} parent=39 // loop_header
                %s147 = sphi 0, %s151
                %p148 = scmp.ge.s32.totalorder %s147, 1
                %s152 = sphi %s137, %s137
                %s153 = sphi %s134, %s134
              $region43: #{_lambda_.5} parent=39 // loop_header_branch
                %150 = sbr.rel (%p148) target = $region47
              $region44: #{_lambda_.5} parent=39 // loop_body
                %v154 = vld [vmem:[%s152] sm:%s145]
                %155 = vst [vmem:[%s153] sm:%s145] %v154
                %v156 = vld [vmem:[%s152 + $0x10] sm:%s145]
                %157 = vst [vmem:[%s153 + $0x8] sm:%s145] %v156
                %v158 = vld [vmem:[%s152 + $0x20] sm:%s145]
                %159 = vst [vmem:[%s153 + $0x10] sm:%s145] %v158
                %v160 = vld [vmem:[%s152 + $0x30] sm:%s145]
                %161 = vst [vmem:[%s153 + $0x18] sm:%s145] %v160
                %v162 = vld [vmem:[%s152 + $0x40] sm:%s145]
                %163 = vst [vmem:[%s153 + $0x20] sm:%s145] %v162
                %v164 = vld [vmem:[%s152 + $0x50] sm:%s145]
                %165 = vst [vmem:[%s153 + $0x28] sm:%s145] %v164
                %v166 = vld [vmem:[%s152 + $0x60] sm:%s145]
                %167 = vst [vmem:[%s153 + $0x30] sm:%s145] %v166
                %v168 = vld [vmem:[%s152 + $0x70] sm:%s145]
                %169 = vst [vmem:[%s153 + $0x38] sm:%s145] %v168
                %v170 = vld [vmem:[%s152 + $0x80] sm:%s145]
                %171 = vst [vmem:[%s153 + $0x40] sm:%s145] %v170
                %v172 = vld [vmem:[%s152 + $0x90] sm:%s145]
                %173 = vst [vmem:[%s153 + $0x48] sm:%s145] %v172
                %v174 = vld [vmem:[%s152 + $0xa0] sm:%s145]
                %175 = vst [vmem:[%s153 + $0x50] sm:%s145] %v174
                %v176 = vld [vmem:[%s152 + $0xb0] sm:%s145]
                %177 = vst [vmem:[%s153 + $0x58] sm:%s145] %v176
                %v178 = vld [vmem:[%s152 + $0xc0] sm:%s145]
                %179 = vst [vmem:[%s153 + $0x60] sm:%s145] %v178
                %v180 = vld [vmem:[%s152 + $0xd0] sm:%s145]
                %181 = vst [vmem:[%s153 + $0x68] sm:%s145] %v180
                %v182 = vld [vmem:[%s152 + $0xe0] sm:%s145]
                %183 = vst [vmem:[%s153 + $0x70] sm:%s145] %v182
                %v184 = vld [vmem:[%s152 + $0xf0] sm:%s145]
                %185 = vst [vmem:[%s153 + $0x78] sm:%s145] %v184
                %v186 = vld [vmem:[%s152 + $0x100] sm:%s145]
                %187 = vst [vmem:[%s153 + $0x80] sm:%s145] %v186
                %v188 = vld [vmem:[%s152 + $0x110] sm:%s145]
                %189 = vst [vmem:[%s153 + $0x88] sm:%s145] %v188
                %v190 = vld [vmem:[%s152 + $0x120] sm:%s145]
                %191 = vst [vmem:[%s153 + $0x90] sm:%s145] %v190
                %v192 = vld [vmem:[%s152 + $0x130] sm:%s145]
                %193 = vst [vmem:[%s153 + $0x98] sm:%s145] %v192
                %v194 = vld [vmem:[%s152 + $0x140] sm:%s145]
                %195 = vst [vmem:[%s153 + $0xa0] sm:%s145] %v194
                %v196 = vld [vmem:[%s152 + $0x150] sm:%s145]
                %197 = vst [vmem:[%s153 + $0xa8] sm:%s145] %v196
                %v198 = vld [vmem:[%s152 + $0x160] sm:%s145]
                %199 = vst [vmem:[%s153 + $0xb0] sm:%s145] %v198
                %v200 = vld [vmem:[%s152 + $0x170] sm:%s145]
                %201 = vst [vmem:[%s153 + $0xb8] sm:%s145] %v200
                %v202 = vld [vmem:[%s152 + $0x180] sm:%s145]
                %203 = vst [vmem:[%s153 + $0xc0] sm:%s145] %v202
                %v204 = vld [vmem:[%s152 + $0x190] sm:%s145]
                %205 = vst [vmem:[%s153 + $0xc8] sm:%s145] %v204
                %v206 = vld [vmem:[%s152 + $0x1a0] sm:%s145]
                %207 = vst [vmem:[%s153 + $0xd0] sm:%s145] %v206
                %v208 = vld [vmem:[%s152 + $0x1b0] sm:%s145]
                %209 = vst [vmem:[%s153 + $0xd8] sm:%s145] %v208
                %v210 = vld [vmem:[%s152 + $0x1c0] sm:%s145]
                %211 = vst [vmem:[%s153 + $0xe0] sm:%s145] %v210
                %v212 = vld [vmem:[%s152 + $0x1d0] sm:%s145]
                %213 = vst [vmem:[%s153 + $0xe8] sm:%s145] %v212
                %v214 = vld [vmem:[%s152 + $0x1e0] sm:%s145]
                %215 = vst [vmem:[%s153 + $0xf0] sm:%s145] %v214
                %v216 = vld [vmem:[%s152 + $0x1f0] sm:%s145]
                %217 = vst [vmem:[%s153 + $0xf8] sm:%s145] %v216
                %v218 = vld [vmem:[%s152 + $0x200] sm:%s145]
                %219 = vst [vmem:[%s153 + $0x100] sm:%s145] %v218
                %v220 = vld [vmem:[%s152 + $0x210] sm:%s145]
                %221 = vst [vmem:[%s153 + $0x108] sm:%s145] %v220
                %v222 = vld [vmem:[%s152 + $0x220] sm:%s145]
                %223 = vst [vmem:[%s153 + $0x110] sm:%s145] %v222
                %v224 = vld [vmem:[%s152 + $0x230] sm:%s145]
                %225 = vst [vmem:[%s153 + $0x118] sm:%s145] %v224
                %v226 = vld [vmem:[%s152 + $0x240] sm:%s145]
                %227 = vst [vmem:[%s153 + $0x120] sm:%s145] %v226
                %v228 = vld [vmem:[%s152 + $0x250] sm:%s145]
                %229 = vst [vmem:[%s153 + $0x128] sm:%s145] %v228
                %v230 = vld [vmem:[%s152 + $0x260] sm:%s145]
                %231 = vst [vmem:[%s153 + $0x130] sm:%s145] %v230
                %v232 = vld [vmem:[%s152 + $0x270] sm:%s145]
                %233 = vst [vmem:[%s153 + $0x138] sm:%s145] %v232
                %v234 = vld [vmem:[%s152 + $0x280] sm:%s145]
                %235 = vst [vmem:[%s153 + $0x140] sm:%s145] %v234
                %v236 = vld [vmem:[%s152 + $0x290] sm:%s145]
                %237 = vst [vmem:[%s153 + $0x148] sm:%s145] %v236
                %v238 = vld [vmem:[%s152 + $0x2a0] sm:%s145]
                %239 = vst [vmem:[%s153 + $0x150] sm:%s145] %v238
                %v240 = vld [vmem:[%s152 + $0x2b0] sm:%s145]
                %241 = vst [vmem:[%s153 + $0x158] sm:%s145] %v240
                %v242 = vld [vmem:[%s152 + $0x2c0] sm:%s145]
                %243 = vst [vmem:[%s153 + $0x160] sm:%s145] %v242
                %v244 = vld [vmem:[%s152 + $0x2d0] sm:%s145]
                %245 = vst [vmem:[%s153 + $0x168] sm:%s145] %v244
                %v246 = vld [vmem:[%s152 + $0x2e0] sm:%s145]
                %247 = vst [vmem:[%s153 + $0x170] sm:%s145] %v246
                %v248 = vld [vmem:[%s152 + $0x2f0] sm:%s145]
                %249 = vst [vmem:[%s153 + $0x178] sm:%s145] %v248
                %v250 = vld [vmem:[%s152 + $0x300] sm:%s145]
                %251 = vst [vmem:[%s153 + $0x180] sm:%s145] %v250
                %v252 = vld [vmem:[%s152 + $0x310] sm:%s145]
                %253 = vst [vmem:[%s153 + $0x188] sm:%s145] %v252
                %v254 = vld [vmem:[%s152 + $0x320] sm:%s145]
                %255 = vst [vmem:[%s153 + $0x190] sm:%s145] %v254
                %v256 = vld [vmem:[%s152 + $0x330] sm:%s145]
                %257 = vst [vmem:[%s153 + $0x198] sm:%s145] %v256
                %v258 = vld [vmem:[%s152 + $0x340] sm:%s145]
                %259 = vst [vmem:[%s153 + $0x1a0] sm:%s145] %v258
                %v260 = vld [vmem:[%s152 + $0x350] sm:%s145]
                %261 = vst [vmem:[%s153 + $0x1a8] sm:%s145] %v260
                %v262 = vld [vmem:[%s152 + $0x360] sm:%s145]
                %263 = vst [vmem:[%s153 + $0x1b0] sm:%s145] %v262
                %v264 = vld [vmem:[%s152 + $0x370] sm:%s145]
                %265 = vst [vmem:[%s153 + $0x1b8] sm:%s145] %v264
                %v266 = vld [vmem:[%s152 + $0x380] sm:%s145]
                %267 = vst [vmem:[%s153 + $0x1c0] sm:%s145] %v266
                %v268 = vld [vmem:[%s152 + $0x390] sm:%s145]
                %269 = vst [vmem:[%s153 + $0x1c8] sm:%s145] %v268
                %v270 = vld [vmem:[%s152 + $0x3a0] sm:%s145]
                %271 = vst [vmem:[%s153 + $0x1d0] sm:%s145] %v270
                %v272 = vld [vmem:[%s152 + $0x3b0] sm:%s145]
                %273 = vst [vmem:[%s153 + $0x1d8] sm:%s145] %v272
                %v274 = vld [vmem:[%s152 + $0x3c0] sm:%s145]
                %275 = vst [vmem:[%s153 + $0x1e0] sm:%s145] %v274
                %v276 = vld [vmem:[%s152 + $0x3d0] sm:%s145]
                %277 = vst [vmem:[%s153 + $0x1e8] sm:%s145] %v276
                %v278 = vld [vmem:[%s152 + $0x3e0] sm:%s145]
                %279 = vst [vmem:[%s153 + $0x1f0] sm:%s145] %v278
                %v280 = vld [vmem:[%s152 + $0x3f0] sm:%s145]
                %281 = vst [vmem:[%s153 + $0x1f8] sm:%s145] %v280
              $region45: #{_lambda_.5} parent=39 // loop_footer
                %s151 = sadd.s32 1, %s147
              $region46: #{_lambda_.5} parent=39 // loop_footer_branch
                %146 = sbr.rel target = $region42
              $region47: #{_lambda_.5} parent=39 // loop_exit
                _
            $region40: #{_lambda_.5} parent=31 // pred_fallthru
              _
          $region32: #{_lambda_.5} parent=27 // pred_fallthru
            _
          %422 = vnop
        $region28: #{_lambda_.5} parent=23 // pred_fallthru
          _
      $region24: #{_lambda_.5} parent=5 // pred_fallthru
        _
      %p423 = scmp.le.s32.totalorder 1, %s9
      %p424 = scmp.lt.s32.totalorder %s9, 3
      %p425 = pnand %p423, %p424
      %p426 = pneg %p425
      // Predicated region
      $region63: #{_lambda_.5} parent=5 // pred_check
        _
      $region64: #{_lambda_.5} parent=5 // pred_check_branch
        %428 = sbr.rel (%p425) target = $region66
      $region65: #{_lambda_.5} parent=5 // pred_region
        %s429 = ssub.s32 %s9, 1
        %s430 = sand.u32 %s22, 1
        %s431 = sand.u32 %s22, 1
        %s432 = smul.addr %s431, 512
        %s433 = scalar_lea.vmem [#allocation2], %s432
        // Predicated region
        $region67: #{_lambda_.5} parent=65 // pred_check
          %p434 = pneg %p35
        $region68: #{_lambda_.5} parent=65 // pred_check_branch
          %436 = sbr.rel (%p434) target = $region70
        $region69: #{_lambda_.5} parent=65 // pred_region
          _
        $region70: #{_lambda_.5} parent=65 // pred_fallthru
          _
        %s437 = sand.u32 %s22, 1
        %s438 = sand.u32 %s22, 1
        %s439 = smul.addr %s438, 512
        %s440 = scalar_lea.vmem [#allocation2], %s439
        %p441 = pneg %p35
        %p442 = pneg %p32
        %p443 = pneg %p56
        %p444 = pneg %p53
        %p445 = pneg %p77
        %p446 = pneg %p74
        %p447 = pneg %p103
        %p448 = pneg %p100
        %s449 = sand.u32 %s90, 1
        %s450 = sand.u32 %s90, 1
        %s451 = smul.addr %s450, 16
        %s452 = scalar_lea.vmem [#allocation3], %s451
        %s453 = smul.u32 2, %s14
        %s454 = smul.u32 2, %s14
        %v456 = vld [vmem:[%s1] sm:$0xf]
        %v457 = vld [vmem:[%s1 + $0x4] sm:$0xf]
        %v458 = vld [vmem:[%s433] sm:$0xff]
        %v459 = vld [vmem:[%s433 + $0x8] sm:$0xff]
        %v460 = vld [vmem:[%s433 + $0x10] sm:$0xff]
        %v461 = vld [vmem:[%s433 + $0x18] sm:$0xff]
        %v462 = vld [vmem:[%s433 + $0x20] sm:$0xff]
        %v463 = vld [vmem:[%s433 + $0x28] sm:$0xff]
        %v464 = vld [vmem:[%s433 + $0x30] sm:$0xff]
        %v465 = vld [vmem:[%s433 + $0x38] sm:$0xff]
        %v466 = vld [vmem:[%s433 + $0x40] sm:$0xff]
        %v467 = vld [vmem:[%s433 + $0x48] sm:$0xff]
        %v468 = vld [vmem:[%s433 + $0x50] sm:$0xff]
        %v469 = vld [vmem:[%s433 + $0x58] sm:$0xff]
        %v470 = vld [vmem:[%s433 + $0x60] sm:$0xff]
        %v471 = vld [vmem:[%s433 + $0x68] sm:$0xff]
        %v472 = vld [vmem:[%s433 + $0x70] sm:$0xff]
        %v473 = vld [vmem:[%s433 + $0x78] sm:$0xff]
        %v476 = vunpack.c.l.b16 %v456
        %v477 = vunpack.c.l.b16 %v457
        %v478 = vpack.c.b16 %v477, %v476
        %v496 = vunpack.c.l.b16 %v458
        %v497 = vunpack.c.h.b16 %v458
        %v498 = vunpack.c.l.b16 %v459
        %v499 = vunpack.c.h.b16 %v459
        %v500 = vunpack.c.l.b16 %v460
        %v501 = vunpack.c.h.b16 %v460
        %v502 = vunpack.c.l.b16 %v461
        %v503 = vunpack.c.h.b16 %v461
        %v504 = vunpack.c.l.b16 %v462
        %v505 = vunpack.c.h.b16 %v462
        %v506 = vunpack.c.l.b16 %v463
        %v507 = vunpack.c.h.b16 %v463
        %v508 = vunpack.c.l.b16 %v464
        %v509 = vunpack.c.h.b16 %v464
        %v510 = vunpack.c.l.b16 %v465
        %v511 = vunpack.c.h.b16 %v465
        %v512 = vunpack.c.l.b16 %v466
        %v513 = vunpack.c.h.b16 %v466
        %v514 = vunpack.c.l.b16 %v467
        %v515 = vunpack.c.h.b16 %v467
        %v516 = vunpack.c.l.b16 %v468
        %v517 = vunpack.c.h.b16 %v468
        %v518 = vunpack.c.l.b16 %v469
        %v519 = vunpack.c.h.b16 %v469
        %v520 = vunpack.c.l.b16 %v470
        %v521 = vunpack.c.h.b16 %v470
        %v522 = vunpack.c.l.b16 %v471
        %v523 = vunpack.c.h.b16 %v471
        %v524 = vunpack.c.l.b16 %v472
        %v525 = vunpack.c.h.b16 %v472
        %v526 = vunpack.c.l.b16 %v473
        %v527 = vunpack.c.h.b16 %v473
        %v528 = vpack.c.b16 %v498, %v496
        %v529 = vpack.c.b16 %v499, %v497
        %v530 = vpack.c.b16 %v502, %v500
        %v531 = vpack.c.b16 %v503, %v501
        %v532 = vpack.c.b16 %v506, %v504
        %v533 = vpack.c.b16 %v507, %v505
        %v534 = vpack.c.b16 %v510, %v508
        %v535 = vpack.c.b16 %v511, %v509
        %v536 = vpack.c.b16 %v514, %v512
        %v537 = vpack.c.b16 %v515, %v513
        %v538 = vpack.c.b16 %v518, %v516
        %v539 = vpack.c.b16 %v519, %v517
        %v540 = vpack.c.b16 %v522, %v520
        %v541 = vpack.c.b16 %v523, %v521
        %v542 = vpack.c.b16 %v526, %v524
        %v543 = vpack.c.b16 %v527, %v525
        %560 = vmatprep.subr.bf16.mxu0 %v543
        %561 = vmatpush1.bf16.msra.mxu0 %v542
        %562 = vmatprep.subr.bf16.mxu0 %v541
        %563 = vmatpush1.bf16.msra.mxu0 %v540
        %564 = vmatprep.subr.bf16.mxu0 %v539
        %565 = vmatpush1.bf16.msra.mxu0 %v538
        %566 = vmatprep.subr.bf16.mxu0 %v537
        %567 = vmatpush1.bf16.msra.mxu0 %v536
        %568 = vmatprep.subr.bf16.mxu0 %v535
        %569 = vmatpush1.bf16.msra.mxu0 %v534
        %570 = vmatprep.subr.bf16.mxu0 %v533
        %571 = vmatpush1.bf16.msra.mxu0 %v532
        %572 = vmatprep.subr.bf16.mxu0 %v531
        %573 = vmatpush1.bf16.msra.mxu0 %v530
        %574 = vmatprep.subr.bf16.mxu0 %v529
        %575 = vmatpush1.bf16.msra.mxu0 %v528
        %576 = vmatprep.subr.bf16.mxu0 0
        %577 = vmatpush2.bf16.msra.mxu0 0
        %578 = vmatprep.subr.bf16.mxu0 0
        %579 = vmatpush2.bf16.msra.mxu0 0
        %580 = vmatprep.subr.bf16.mxu0 0
        %581 = vmatpush2.bf16.msra.mxu0 0
        %582 = vmatprep.subr.bf16.mxu0 0
        %583 = vmatpush2.bf16.msra.mxu0 0
        %584 = vmatprep.subr.bf16.mxu0 0
        %585 = vmatpush2.bf16.msra.mxu0 0
        %586 = vmatprep.subr.bf16.mxu0 0
        %587 = vmatpush2.bf16.msra.mxu0 0
        %588 = vmatprep.subr.bf16.mxu0 0
        %589 = vmatpush2.bf16.msra.mxu0 0
        %590 = vmatprep.subr.bf16.mxu0 0
        %591 = vmatpush2.bf16.msra.mxu0 0
        %592 = vmatprep.mubr.bf16.mxu0 0
        %593 = vmatmul.mubr.bf16.gmra.mxu0 %v478
        %v594 = vpop.f32.mrf.mxu0
        %v595 = vadd.f32 0.0, %v594
        %v596 = vpop.f32.mrf.mxu0
        %v597 = vadd.f32 0.0, %v596
        %v598 = vpop.f32.mrf.mxu0
        %v599 = vadd.f32 0.0, %v598
        %v600 = vpop.f32.mrf.mxu0
        %v601 = vadd.f32 0.0, %v600
        %602 = vdwg.mxu0
        %s603 = scalar_lea.vmem %s433, 128 [#allocation2]
        %v604 = vld [vmem:[%s603] sm:$0xff]
        %v605 = vld [vmem:[%s603 + $0x8] sm:$0xff]
        %v606 = vld [vmem:[%s603 + $0x10] sm:$0xff]
        %v607 = vld [vmem:[%s603 + $0x18] sm:$0xff]
        %v608 = vld [vmem:[%s603 + $0x20] sm:$0xff]
        %v609 = vld [vmem:[%s603 + $0x28] sm:$0xff]
        %v610 = vld [vmem:[%s603 + $0x30] sm:$0xff]
        %v611 = vld [vmem:[%s603 + $0x38] sm:$0xff]
        %v612 = vld [vmem:[%s603 + $0x40] sm:$0xff]
        %v613 = vld [vmem:[%s603 + $0x48] sm:$0xff]
        %v614 = vld [vmem:[%s603 + $0x50] sm:$0xff]
        %v615 = vld [vmem:[%s603 + $0x58] sm:$0xff]
        %v616 = vld [vmem:[%s603 + $0x60] sm:$0xff]
        %v617 = vld [vmem:[%s603 + $0x68] sm:$0xff]
        %v618 = vld [vmem:[%s603 + $0x70] sm:$0xff]
        %v619 = vld [vmem:[%s603 + $0x78] sm:$0xff]
        %v636 = vunpack.c.l.b16 %v604
        %v637 = vunpack.c.h.b16 %v604
        %v638 = vunpack.c.l.b16 %v605
        %v639 = vunpack.c.h.b16 %v605
        %v640 = vunpack.c.l.b16 %v606
        %v641 = vunpack.c.h.b16 %v606
        %v642 = vunpack.c.l.b16 %v607
        %v643 = vunpack.c.h.b16 %v607
        %v644 = vunpack.c.l.b16 %v608
        %v645 = vunpack.c.h.b16 %v608
        %v646 = vunpack.c.l.b16 %v609
        %v647 = vunpack.c.h.b16 %v609
        %v648 = vunpack.c.l.b16 %v610
        %v649 = vunpack.c.h.b16 %v610
        %v650 = vunpack.c.l.b16 %v611
        %v651 = vunpack.c.h.b16 %v611
        %v652 = vunpack.c.l.b16 %v612
        %v653 = vunpack.c.h.b16 %v612
        %v654 = vunpack.c.l.b16 %v613
        %v655 = vunpack.c.h.b16 %v613
        %v656 = vunpack.c.l.b16 %v614
        %v657 = vunpack.c.h.b16 %v614
        %v658 = vunpack.c.l.b16 %v615
        %v659 = vunpack.c.h.b16 %v615
        %v660 = vunpack.c.l.b16 %v616
        %v661 = vunpack.c.h.b16 %v616
        %v662 = vunpack.c.l.b16 %v617
        %v663 = vunpack.c.h.b16 %v617
        %v664 = vunpack.c.l.b16 %v618
        %v665 = vunpack.c.h.b16 %v618
        %v666 = vunpack.c.l.b16 %v619
        %v667 = vunpack.c.h.b16 %v619
        %v668 = vpack.c.b16 %v638, %v636
        %v669 = vpack.c.b16 %v639, %v637
        %v670 = vpack.c.b16 %v642, %v640
        %v671 = vpack.c.b16 %v643, %v641
        %v672 = vpack.c.b16 %v646, %v644
        %v673 = vpack.c.b16 %v647, %v645
        %v674 = vpack.c.b16 %v650, %v648
        %v675 = vpack.c.b16 %v651, %v649
        %v676 = vpack.c.b16 %v654, %v652
        %v677 = vpack.c.b16 %v655, %v653
        %v678 = vpack.c.b16 %v658, %v656
        %v679 = vpack.c.b16 %v659, %v657
        %v680 = vpack.c.b16 %v662, %v660
        %v681 = vpack.c.b16 %v663, %v661
        %v682 = vpack.c.b16 %v666, %v664
        %v683 = vpack.c.b16 %v667, %v665
        %700 = vmatprep.subr.bf16.mxu0 %v683
        %701 = vmatpush1.bf16.msra.mxu0 %v682
        %702 = vmatprep.subr.bf16.mxu0 %v681
        %703 = vmatpush1.bf16.msra.mxu0 %v680
        %704 = vmatprep.subr.bf16.mxu0 %v679
        %705 = vmatpush1.bf16.msra.mxu0 %v678
        %706 = vmatprep.subr.bf16.mxu0 %v677
        %707 = vmatpush1.bf16.msra.mxu0 %v676
        %708 = vmatprep.subr.bf16.mxu0 %v675
        %709 = vmatpush1.bf16.msra.mxu0 %v674
        %710 = vmatprep.subr.bf16.mxu0 %v673
        %711 = vmatpush1.bf16.msra.mxu0 %v672
        %712 = vmatprep.subr.bf16.mxu0 %v671
        %713 = vmatpush1.bf16.msra.mxu0 %v670
        %714 = vmatprep.subr.bf16.mxu0 %v669
        %715 = vmatpush1.bf16.msra.mxu0 %v668
        %716 = vmatprep.subr.bf16.mxu0 0
        %717 = vmatpush2.bf16.msra.mxu0 0
        %718 = vmatprep.subr.bf16.mxu0 0
        %719 = vmatpush2.bf16.msra.mxu0 0
        %720 = vmatprep.subr.bf16.mxu0 0
        %721 = vmatpush2.bf16.msra.mxu0 0
        %722 = vmatprep.subr.bf16.mxu0 0
        %723 = vmatpush2.bf16.msra.mxu0 0
        %724 = vmatprep.subr.bf16.mxu0 0
        %725 = vmatpush2.bf16.msra.mxu0 0
        %726 = vmatprep.subr.bf16.mxu0 0
        %727 = vmatpush2.bf16.msra.mxu0 0
        %728 = vmatprep.subr.bf16.mxu0 0
        %729 = vmatpush2.bf16.msra.mxu0 0
        %730 = vmatprep.subr.bf16.mxu0 0
        %731 = vmatpush2.bf16.msra.mxu0 0
        %732 = vmatprep.mubr.bf16.mxu0 0
        %733 = vmatmul.mubr.bf16.gmra.mxu0 %v478
        %v734 = vpop.f32.mrf.mxu0
        %v735 = vadd.f32 0.0, %v734
        %v736 = vpop.f32.mrf.mxu0
        %v737 = vadd.f32 0.0, %v736
        %v738 = vpop.f32.mrf.mxu0
        %v739 = vadd.f32 0.0, %v738
        %v740 = vpop.f32.mrf.mxu0
        %v741 = vadd.f32 0.0, %v740
        %742 = vdwg.mxu0
        %v743 = vmax.f32 %v595, %v735
        %v744 = vmax.f32 %v597, %v737
        %v745 = vmax.f32 %v599, %v739
        %v746 = vmax.f32 %v601, %v741
        %s747 = scalar_lea.vmem %s433, 256 [#allocation2]
        %v748 = vld [vmem:[%s747] sm:$0xff]
        %v749 = vld [vmem:[%s747 + $0x8] sm:$0xff]
        %v750 = vld [vmem:[%s747 + $0x10] sm:$0xff]
        %v751 = vld [vmem:[%s747 + $0x18] sm:$0xff]
        %v752 = vld [vmem:[%s747 + $0x20] sm:$0xff]
        %v753 = vld [vmem:[%s747 + $0x28] sm:$0xff]
        %v754 = vld [vmem:[%s747 + $0x30] sm:$0xff]
        %v755 = vld [vmem:[%s747 + $0x38] sm:$0xff]
        %v756 = vld [vmem:[%s747 + $0x40] sm:$0xff]
        %v757 = vld [vmem:[%s747 + $0x48] sm:$0xff]
        %v758 = vld [vmem:[%s747 + $0x50] sm:$0xff]
        %v759 = vld [vmem:[%s747 + $0x58] sm:$0xff]
        %v760 = vld [vmem:[%s747 + $0x60] sm:$0xff]
        %v761 = vld [vmem:[%s747 + $0x68] sm:$0xff]
        %v762 = vld [vmem:[%s747 + $0x70] sm:$0xff]
        %v763 = vld [vmem:[%s747 + $0x78] sm:$0xff]
        %v780 = vunpack.c.l.b16 %v748
        %v781 = vunpack.c.h.b16 %v748
        %v782 = vunpack.c.l.b16 %v749
        %v783 = vunpack.c.h.b16 %v749
        %v784 = vunpack.c.l.b16 %v750
        %v785 = vunpack.c.h.b16 %v750
        %v786 = vunpack.c.l.b16 %v751
        %v787 = vunpack.c.h.b16 %v751
        %v788 = vunpack.c.l.b16 %v752
        %v789 = vunpack.c.h.b16 %v752
        %v790 = vunpack.c.l.b16 %v753
        %v791 = vunpack.c.h.b16 %v753
        %v792 = vunpack.c.l.b16 %v754
        %v793 = vunpack.c.h.b16 %v754
        %v794 = vunpack.c.l.b16 %v755
        %v795 = vunpack.c.h.b16 %v755
        %v796 = vunpack.c.l.b16 %v756
        %v797 = vunpack.c.h.b16 %v756
        %v798 = vunpack.c.l.b16 %v757
        %v799 = vunpack.c.h.b16 %v757
        %v800 = vunpack.c.l.b16 %v758
        %v801 = vunpack.c.h.b16 %v758
        %v802 = vunpack.c.l.b16 %v759
        %v803 = vunpack.c.h.b16 %v759
        %v804 = vunpack.c.l.b16 %v760
        %v805 = vunpack.c.h.b16 %v760
        %v806 = vunpack.c.l.b16 %v761
        %v807 = vunpack.c.h.b16 %v761
        %v808 = vunpack.c.l.b16 %v762
        %v809 = vunpack.c.h.b16 %v762
        %v810 = vunpack.c.l.b16 %v763
        %v811 = vunpack.c.h.b16 %v763
        %v812 = vpack.c.b16 %v782, %v780
        %v813 = vpack.c.b16 %v783, %v781
        %v814 = vpack.c.b16 %v786, %v784
        %v815 = vpack.c.b16 %v787, %v785
        %v816 = vpack.c.b16 %v790, %v788
        %v817 = vpack.c.b16 %v791, %v789
        %v818 = vpack.c.b16 %v794, %v792
        %v819 = vpack.c.b16 %v795, %v793
        %v820 = vpack.c.b16 %v798, %v796
        %v821 = vpack.c.b16 %v799, %v797
        %v822 = vpack.c.b16 %v802, %v800
        %v823 = vpack.c.b16 %v803, %v801
        %v824 = vpack.c.b16 %v806, %v804
        %v825 = vpack.c.b16 %v807, %v805
        %v826 = vpack.c.b16 %v810, %v808
        %v827 = vpack.c.b16 %v811, %v809
        %844 = vmatprep.subr.bf16.mxu0 %v827
        %845 = vmatpush1.bf16.msra.mxu0 %v826
        %846 = vmatprep.subr.bf16.mxu0 %v825
        %847 = vmatpush1.bf16.msra.mxu0 %v824
        %848 = vmatprep.subr.bf16.mxu0 %v823
        %849 = vmatpush1.bf16.msra.mxu0 %v822
        %850 = vmatprep.subr.bf16.mxu0 %v821
        %851 = vmatpush1.bf16.msra.mxu0 %v820
        %852 = vmatprep.subr.bf16.mxu0 %v819
        %853 = vmatpush1.bf16.msra.mxu0 %v818
        %854 = vmatprep.subr.bf16.mxu0 %v817
        %855 = vmatpush1.bf16.msra.mxu0 %v816
        %856 = vmatprep.subr.bf16.mxu0 %v815
        %857 = vmatpush1.bf16.msra.mxu0 %v814
        %858 = vmatprep.subr.bf16.mxu0 %v813
        %859 = vmatpush1.bf16.msra.mxu0 %v812
        %860 = vmatprep.subr.bf16.mxu0 0
        %861 = vmatpush2.bf16.msra.mxu0 0
        %862 = vmatprep.subr.bf16.mxu0 0
        %863 = vmatpush2.bf16.msra.mxu0 0
        %864 = vmatprep.subr.bf16.mxu0 0
        %865 = vmatpush2.bf16.msra.mxu0 0
        %866 = vmatprep.subr.bf16.mxu0 0
        %867 = vmatpush2.bf16.msra.mxu0 0
        %868 = vmatprep.subr.bf16.mxu0 0
        %869 = vmatpush2.bf16.msra.mxu0 0
        %870 = vmatprep.subr.bf16.mxu0 0
        %871 = vmatpush2.bf16.msra.mxu0 0
        %872 = vmatprep.subr.bf16.mxu0 0
        %873 = vmatpush2.bf16.msra.mxu0 0
        %874 = vmatprep.subr.bf16.mxu0 0
        %875 = vmatpush2.bf16.msra.mxu0 0
        %876 = vmatprep.mubr.bf16.mxu0 0
        %877 = vmatmul.mubr.bf16.gmra.mxu0 %v478
        %v878 = vpop.f32.mrf.mxu0
        %v879 = vadd.f32 0.0, %v878
        %v880 = vpop.f32.mrf.mxu0
        %v881 = vadd.f32 0.0, %v880
        %v882 = vpop.f32.mrf.mxu0
        %v883 = vadd.f32 0.0, %v882
        %v884 = vpop.f32.mrf.mxu0
        %v885 = vadd.f32 0.0, %v884
        %886 = vdwg.mxu0
        %v887 = vmax.f32 %v743, %v879
        %v888 = vmax.f32 %v744, %v881
        %v889 = vmax.f32 %v745, %v883
        %v890 = vmax.f32 %v746, %v885
        %s891 = scalar_lea.vmem %s433, 384 [#allocation2]
        %v892 = vld [vmem:[%s891] sm:$0xff]
        %v893 = vld [vmem:[%s891 + $0x8] sm:$0xff]
        %v894 = vld [vmem:[%s891 + $0x10] sm:$0xff]
        %v895 = vld [vmem:[%s891 + $0x18] sm:$0xff]
        %v896 = vld [vmem:[%s891 + $0x20] sm:$0xff]
        %v897 = vld [vmem:[%s891 + $0x28] sm:$0xff]
        %v898 = vld [vmem:[%s891 + $0x30] sm:$0xff]
        %v899 = vld [vmem:[%s891 + $0x38] sm:$0xff]
        %v900 = vld [vmem:[%s891 + $0x40] sm:$0xff]
        %v901 = vld [vmem:[%s891 + $0x48] sm:$0xff]
        %v902 = vld [vmem:[%s891 + $0x50] sm:$0xff]
        %v903 = vld [vmem:[%s891 + $0x58] sm:$0xff]
        %v904 = vld [vmem:[%s891 + $0x60] sm:$0xff]
        %v905 = vld [vmem:[%s891 + $0x68] sm:$0xff]
        %v906 = vld [vmem:[%s891 + $0x70] sm:$0xff]
        %v907 = vld [vmem:[%s891 + $0x78] sm:$0xff]
        %v924 = vunpack.c.l.b16 %v892
        %v925 = vunpack.c.h.b16 %v892
        %v926 = vunpack.c.l.b16 %v893
        %v927 = vunpack.c.h.b16 %v893
        %v928 = vunpack.c.l.b16 %v894
        %v929 = vunpack.c.h.b16 %v894
        %v930 = vunpack.c.l.b16 %v895
        %v931 = vunpack.c.h.b16 %v895
        %v932 = vunpack.c.l.b16 %v896
        %v933 = vunpack.c.h.b16 %v896
        %v934 = vunpack.c.l.b16 %v897
        %v935 = vunpack.c.h.b16 %v897
        %v936 = vunpack.c.l.b16 %v898
        %v937 = vunpack.c.h.b16 %v898
        %v938 = vunpack.c.l.b16 %v899
        %v939 = vunpack.c.h.b16 %v899
        %v940 = vunpack.c.l.b16 %v900
        %v941 = vunpack.c.h.b16 %v900
        %v942 = vunpack.c.l.b16 %v901
        %v943 = vunpack.c.h.b16 %v901
        %v944 = vunpack.c.l.b16 %v902
        %v945 = vunpack.c.h.b16 %v902
        %v946 = vunpack.c.l.b16 %v903
        %v947 = vunpack.c.h.b16 %v903
        %v948 = vunpack.c.l.b16 %v904
        %v949 = vunpack.c.h.b16 %v904
        %v950 = vunpack.c.l.b16 %v905
        %v951 = vunpack.c.h.b16 %v905
        %v952 = vunpack.c.l.b16 %v906
        %v953 = vunpack.c.h.b16 %v906
        %v954 = vunpack.c.l.b16 %v907
        %v955 = vunpack.c.h.b16 %v907
        %v956 = vpack.c.b16 %v926, %v924
        %v957 = vpack.c.b16 %v927, %v925
        %v958 = vpack.c.b16 %v930, %v928
        %v959 = vpack.c.b16 %v931, %v929
        %v960 = vpack.c.b16 %v934, %v932
        %v961 = vpack.c.b16 %v935, %v933
        %v962 = vpack.c.b16 %v938, %v936
        %v963 = vpack.c.b16 %v939, %v937
        %v964 = vpack.c.b16 %v942, %v940
        %v965 = vpack.c.b16 %v943, %v941
        %v966 = vpack.c.b16 %v946, %v944
        %v967 = vpack.c.b16 %v947, %v945
        %v968 = vpack.c.b16 %v950, %v948
        %v969 = vpack.c.b16 %v951, %v949
        %v970 = vpack.c.b16 %v954, %v952
        %v971 = vpack.c.b16 %v955, %v953
        %988 = vmatprep.subr.bf16.mxu0 %v971
        %989 = vmatpush1.bf16.msra.mxu0 %v970
        %990 = vmatprep.subr.bf16.mxu0 %v969
        %991 = vmatpush1.bf16.msra.mxu0 %v968
        %992 = vmatprep.subr.bf16.mxu0 %v967
        %993 = vmatpush1.bf16.msra.mxu0 %v966
        %994 = vmatprep.subr.bf16.mxu0 %v965
        %995 = vmatpush1.bf16.msra.mxu0 %v964
        %996 = vmatprep.subr.bf16.mxu0 %v963
        %997 = vmatpush1.bf16.msra.mxu0 %v962
        %998 = vmatprep.subr.bf16.mxu0 %v961
        %999 = vmatpush1.bf16.msra.mxu0 %v960
        %1000 = vmatprep.subr.bf16.mxu0 %v959
        %1001 = vmatpush1.bf16.msra.mxu0 %v958
        %1002 = vmatprep.subr.bf16.mxu0 %v957
        %1003 = vmatpush1.bf16.msra.mxu0 %v956
        %1004 = vmatprep.subr.bf16.mxu0 0
        %1005 = vmatpush2.bf16.msra.mxu0 0
        %1006 = vmatprep.subr.bf16.mxu0 0
        %1007 = vmatpush2.bf16.msra.mxu0 0
        %1008 = vmatprep.subr.bf16.mxu0 0
        %1009 = vmatpush2.bf16.msra.mxu0 0
        %1010 = vmatprep.subr.bf16.mxu0 0
        %1011 = vmatpush2.bf16.msra.mxu0 0
        %1012 = vmatprep.subr.bf16.mxu0 0
        %1013 = vmatpush2.bf16.msra.mxu0 0
        %1014 = vmatprep.subr.bf16.mxu0 0
        %1015 = vmatpush2.bf16.msra.mxu0 0
        %1016 = vmatprep.subr.bf16.mxu0 0
        %1017 = vmatpush2.bf16.msra.mxu0 0
        %1018 = vmatprep.subr.bf16.mxu0 0
        %1019 = vmatpush2.bf16.msra.mxu0 0
        %1020 = vmatprep.mubr.bf16.mxu0 0
        %1021 = vmatmul.mubr.bf16.gmra.mxu0 %v478
        %v1022 = vpop.f32.mrf.mxu0
        %v1023 = vadd.f32 0.0, %v1022
        %v1024 = vpop.f32.mrf.mxu0
        %v1025 = vadd.f32 0.0, %v1024
        %v1026 = vpop.f32.mrf.mxu0
        %v1027 = vadd.f32 0.0, %v1026
        %v1028 = vpop.f32.mrf.mxu0
        %v1029 = vadd.f32 0.0, %v1028
        %1030 = vdwg.mxu0
        %v1031 = vmax.f32 %v887, %v1023
        %v1032 = vmax.f32 %v888, %v1025
        %v1033 = vmax.f32 %v889, %v1027
        %v1034 = vmax.f32 %v890, %v1029
        %v1035 = vld [vmem:[%s2] sm:$0xff]
        %v1036 = vld [vmem:[%s2 + $0x8] sm:$0xff]
        %1038 = vset.pattern.permute.xlu0 0
        %1039 = vperm.xlu0 %1038, %v1035
        %v1040 = vpop.permute.xlu0 %1039
        %1043 = vset.pattern.permute.xlu0 0
        %1044 = vperm.xlu0 %1043, %v1036
        %v1045 = vpop.permute.xlu0 %1044
        %v1047 = vadd.f32 %v1031, %v1040
        %v1048 = vadd.f32 %v1032, %v1040
        %v1049 = vadd.f32 %v1033, %v1045
        %v1050 = vadd.f32 %v1034, %v1045
        %v1051 = vmul.f32 %v1047, 0.2
        %v1052 = vmul.f32 %v1048, 0.2
        %v1053 = vmul.f32 %v1049, 0.2
        %v1054 = vmul.f32 %v1050, 0.2
        %v1055 = vmax.f32 %v1047, %v1051
        %v1056 = vmax.f32 %v1048, %v1052
        %v1057 = vmax.f32 %v1049, %v1053
        %v1058 = vmax.f32 %v1050, %v1054
        %v1059 = vpack.c.bf16 %v1057, %v1055
        %v1060 = vpack.c.bf16 %v1058, %v1056
        %v1063 = vunpack.c.l.b16 %v1059
        %v1064 = vunpack.c.l.b16 %v1060
        %v1065 = vunpack.c.h.b16 %v1059
        %v1066 = vunpack.c.h.b16 %v1060
        %v1067 = vpack.c.b16 %v1064, %v1063
        %v1068 = vpack.c.b16 %v1066, %v1065
        %1071 = vst [vmem:[%s452] sm:$0xff] %v1067
        %1072 = vst [vmem:[%s452 + $0x8] sm:$0xff] %v1068
        %s1073 = sand.u32 %s90, 1
        %s1074 = sand.u32 %s90, 1
        %s1075 = smul.addr %s1074, 16
        %s1076 = scalar_lea.vmem [#allocation3], %s1075
        // Predicated region
        $region71: #{_lambda_.5} parent=65 // pred_check
          %p1077 = pneg %p100
        $region72: #{_lambda_.5} parent=65 // pred_check_branch
          %1079 = sbr.rel (%p1077) target = $region74
        $region73: #{_lambda_.5} parent=65 // pred_region
          %s1080 = smul.u32 2, %s14
          %s1081 = smul.addr %s1080, 4
          %s1082 = scalar_lea.vmem %s3, %s1081
          // Predicated region
          $region75: #{_lambda_.5} parent=73 // pred_check
            _
          $region76: #{_lambda_.5} parent=73 // pred_check_branch
            %1084 = sbr.rel (0) target = $region78
          $region77: #{_lambda_.5} parent=73 // pred_region
            // Predicated region
            $region79: #{_lambda_.5} parent=77 // pred_check
              _
            $region80: #{_lambda_.5} parent=77 // pred_check_branch
              %1086 = sbr.rel (0) target = $region82
            $region81: #{_lambda_.5} parent=77 // pred_region
              // Predicated region
              $region94: #{_lambda_.5} parent=81 // pred_check
                _
              $region95: #{_lambda_.5} parent=81 // pred_check_branch
                %1104 = sbr.rel (0) target = $region97
              $region96: #{_lambda_.5} parent=81 // pred_region
                loop: start=0, step=1, limit=1
                $region98: #{_lambda_.5} parent=96 // loop_pre_header
                  _
                $region99: #{_lambda_.5} parent=96 // loop_header
                  %s1106 = sphi 0, %s1110
                  %p1107 = scmp.ge.s32.totalorder %s1106, 1
                  %s1111 = sphi %s1076, %s1076
                  %s1112 = sphi %s1082, %s1082
                $region100: #{_lambda_.5} parent=96 // loop_header_branch
                  %1109 = sbr.rel (%p1107) target = $region104
                $region101: #{_lambda_.5} parent=96 // loop_body
                  %v1113 = vld [vmem:[%s1111] sm:$0xff]
                  %1114 = vst [vmem:[%s1112] sm:$0xff] %v1113
                  %v1115 = vld [vmem:[%s1111 + $0x8] sm:$0xff]
                  %1116 = vst [vmem:[%s1112 + $0x10] sm:$0xff] %v1115
                $region102: #{_lambda_.5} parent=96 // loop_footer
                  %s1110 = sadd.s32 1, %s1106
                $region103: #{_lambda_.5} parent=96 // loop_footer_branch
                  %1105 = sbr.rel target = $region99
                $region104: #{_lambda_.5} parent=96 // loop_exit
                  _
              $region97: #{_lambda_.5} parent=81 // pred_fallthru
                _
              // Predicated region
              $region105: #{_lambda_.5} parent=81 // pred_check
                _
              $region106: #{_lambda_.5} parent=81 // pred_check_branch
                %1118 = sbr.rel target = $region108
              $region107: #{_lambda_.5} parent=81 // pred_region
                _
              $region108: #{_lambda_.5} parent=81 // pred_fallthru
                _
            $region82: #{_lambda_.5} parent=77 // pred_fallthru
              _
            // Predicated region
            $region83: #{_lambda_.5} parent=77 // pred_check
              _
            $region84: #{_lambda_.5} parent=77 // pred_check_branch
              %1088 = sbr.rel target = $region86
            $region85: #{_lambda_.5} parent=77 // pred_region
              %s1090 = ssub.s32 256, 1
              loop: start=0, step=1, limit=1
              $region87: #{_lambda_.5} parent=85 // loop_pre_header
                _
              $region88: #{_lambda_.5} parent=85 // loop_header
                %s1092 = sphi 0, %s1096
                %p1093 = scmp.ge.s32.totalorder %s1092, 1
                %s1097 = sphi %s1076, %s1076
                %s1098 = sphi %s1082, %s1082
              $region89: #{_lambda_.5} parent=85 // loop_header_branch
                %1095 = sbr.rel (%p1093) target = $region93
              $region90: #{_lambda_.5} parent=85 // loop_body
                %v1099 = vld [vmem:[%s1097] sm:%s1090]
                %1100 = vst [vmem:[%s1098] sm:%s1090] %v1099
                %v1101 = vld [vmem:[%s1097 + $0x8] sm:%s1090]
                %1102 = vst [vmem:[%s1098 + $0x10] sm:%s1090] %v1101
              $region91: #{_lambda_.5} parent=85 // loop_footer
                %s1096 = sadd.s32 1, %s1092
              $region92: #{_lambda_.5} parent=85 // loop_footer_branch
                %1091 = sbr.rel target = $region88
              $region93: #{_lambda_.5} parent=85 // loop_exit
                _
            $region86: #{_lambda_.5} parent=77 // pred_fallthru
              _
          $region78: #{_lambda_.5} parent=73 // pred_fallthru
            _
          %1119 = vnop
        $region74: #{_lambda_.5} parent=65 // pred_fallthru
          _
      $region66: #{_lambda_.5} parent=5 // pred_fallthru
        _
      %p1120 = scmp.le.s32.totalorder 2, %s9
      // Predicated region
      $region109: #{_lambda_.5} parent=5 // pred_check
        %p1121 = pneg %p1120
      $region110: #{_lambda_.5} parent=5 // pred_check_branch
        %1123 = sbr.rel (%p1121) target = $region112
      $region111: #{_lambda_.5} parent=5 // pred_region
        %s1124 = ssub.s32 %s9, 2
        // Predicated region
        $region113: #{_lambda_.5} parent=111 // pred_check
          %p1125 = pneg %p106
        $region114: #{_lambda_.5} parent=111 // pred_check_branch
          %1127 = sbr.rel (%p1125) target = $region116
        $region115: #{_lambda_.5} parent=111 // pred_region
          %s1128 = sand.u32 %s91, 1
          %s1129 = sand.u32 %s91, 1
          %s1130 = smul.addr %s1129, 16
          %s1131 = scalar_lea.vmem [#allocation3], %s1130
        $region116: #{_lambda_.5} parent=111 // pred_fallthru
          _
      $region112: #{_lambda_.5} parent=5 // pred_fallthru
        _
    $region6: #{_lambda_.5} parent=1 // loop_footer
      %s13 = sadd.s32 1, %s9
    $region7: #{_lambda_.5} parent=1 // loop_footer_branch
      %8 = sbr.rel target = $region3
    $region8: #{_lambda_.5} parent=1 // loop_exit
      _

// kernel: _lambda_.6
$region0: #{_lambda_.6}
  #allocation0 [shape = 'u32[]', space=smem, size = 0x4, offset = 0x4, fixed_abs, tag = 'smem constant byte address 0x4 - core index']
  #allocation1 [shape = 'u32[144,128]{1,0:T(1,128)}', space=vmem, size = 0x12000, scoped, tag = 'internal scratch']
  %s0 = inlined_call_operand.vmem [shape: bf16[4,256,128], index: 0, kind: input, shape index: {}]
  %s1 = inlined_call_operand.vmem [shape: bf16[32,256], index: 1, kind: input, shape index: {}]
  %s2 = inlined_call_operand.vmem [shape: f32[32,1], index: 2, kind: input, shape index: {}]
  %s3 = inlined_call_operand.vmem [shape: bf16[32,128], index: 3, kind: output, shape index: {}]
  %s4 = sld [smem:[#allocation0]]
  $region22: #{_lambda_.6} parent=0
    _
  %s6 = ssub.s32 1, %s4
  %s7 = scalar_select 0, %s6, %s4
  // Predicated region
  $region2: #{_lambda_.6} parent=0 // pred_check
    _
  $region3: #{_lambda_.6} parent=0 // pred_check_branch
    %9 = sbr.rel (0) target = $region5
  $region4: #{_lambda_.6} parent=0 // pred_region
    _
  $region5: #{_lambda_.6} parent=0 // pred_fallthru
    _
  // Predicated region
  $region6: #{_lambda_.6} parent=0 // pred_check
    _
  $region7: #{_lambda_.6} parent=0 // pred_check_branch
    %11 = sbr.rel (0) target = $region9
  $region8: #{_lambda_.6} parent=0 // pred_region
    _
  $region9: #{_lambda_.6} parent=0 // pred_fallthru
    _
  // Predicated region
  $region10: #{_lambda_.6} parent=0 // pred_check
    _
  $region11: #{_lambda_.6} parent=0 // pred_check_branch
    %13 = sbr.rel (0) target = $region13
  $region12: #{_lambda_.6} parent=0 // pred_region
    _
  $region13: #{_lambda_.6} parent=0 // pred_fallthru
    _
  %v15 = vld [vmem:[%s1] sm:$0xff]
  %v16 = vld [vmem:[%s1 + $0x8] sm:$0xff]
  %v17 = vld [vmem:[%s1 + $0x10] sm:$0xff]
  %v18 = vld [vmem:[%s1 + $0x18] sm:$0xff]
  %v19 = vld [vmem:[%s0] sm:$0xf]
  %v20 = vld [vmem:[%s0 + $0x4] sm:$0xf]
  %v21 = vld [vmem:[%s0 + $0x8] sm:$0xf]
  %v22 = vld [vmem:[%s0 + $0xc] sm:$0xf]
  %v23 = vld [vmem:[%s0 + $0x10] sm:$0xf]
  %v24 = vld [vmem:[%s0 + $0x14] sm:$0xf]
  %v25 = vld [vmem:[%s0 + $0x18] sm:$0xf]
  %v26 = vld [vmem:[%s0 + $0x1c] sm:$0xf]
  %v27 = vld [vmem:[%s0 + $0x20] sm:$0xf]
  %v28 = vld [vmem:[%s0 + $0x24] sm:$0xf]
  %v29 = vld [vmem:[%s0 + $0x28] sm:$0xf]
  %v30 = vld [vmem:[%s0 + $0x2c] sm:$0xf]
  %v31 = vld [vmem:[%s0 + $0x30] sm:$0xf]
  %v32 = vld [vmem:[%s0 + $0x34] sm:$0xf]
  %v33 = vld [vmem:[%s0 + $0x38] sm:$0xf]
  %v34 = vld [vmem:[%s0 + $0x3c] sm:$0xf]
  %v35 = vld [vmem:[%s0 + $0x40] sm:$0xf]
  %v36 = vld [vmem:[%s0 + $0x44] sm:$0xf]
  %v37 = vld [vmem:[%s0 + $0x48] sm:$0xf]
  %v38 = vld [vmem:[%s0 + $0x4c] sm:$0xf]
  %v39 = vld [vmem:[%s0 + $0x50] sm:$0xf]
  %v40 = vld [vmem:[%s0 + $0x54] sm:$0xf]
  %v41 = vld [vmem:[%s0 + $0x58] sm:$0xf]
  %v42 = vld [vmem:[%s0 + $0x5c] sm:$0xf]
  %v43 = vld [vmem:[%s0 + $0x60] sm:$0xf]
  %v44 = vld [vmem:[%s0 + $0x64] sm:$0xf]
  %v45 = vld [vmem:[%s0 + $0x68] sm:$0xf]
  %v46 = vld [vmem:[%s0 + $0x6c] sm:$0xf]
  %v47 = vld [vmem:[%s0 + $0x70] sm:$0xf]
  %v48 = vld [vmem:[%s0 + $0x74] sm:$0xf]
  %v49 = vld [vmem:[%s0 + $0x78] sm:$0xf]
  %v50 = vld [vmem:[%s0 + $0x7c] sm:$0xf]
  %v55 = vunpack.c.l.b16 %v15
  %v56 = vunpack.c.h.b16 %v15
  %v57 = vunpack.c.l.b16 %v16
  %v58 = vunpack.c.h.b16 %v16
  %v59 = vunpack.c.l.b16 %v17
  %v60 = vunpack.c.h.b16 %v17
  %v61 = vunpack.c.l.b16 %v18
  %v62 = vunpack.c.h.b16 %v18
  %v63 = vpack.c.b16 %v57, %v55
  %v64 = vpack.c.b16 %v58, %v56
  %v65 = vpack.c.b16 %v61, %v59
  %v66 = vpack.c.b16 %v62, %v60
  %v103 = vunpack.c.l.b16 %v19
  %v104 = vunpack.c.l.b16 %v20
  %v105 = vunpack.c.l.b16 %v21
  %v106 = vunpack.c.l.b16 %v22
  %v107 = vunpack.c.l.b16 %v23
  %v108 = vunpack.c.l.b16 %v24
  %v109 = vunpack.c.l.b16 %v25
  %v110 = vunpack.c.l.b16 %v26
  %v111 = vunpack.c.l.b16 %v27
  %v112 = vunpack.c.l.b16 %v28
  %v113 = vunpack.c.l.b16 %v29
  %v114 = vunpack.c.l.b16 %v30
  %v115 = vunpack.c.l.b16 %v31
  %v116 = vunpack.c.l.b16 %v32
  %v117 = vunpack.c.l.b16 %v33
  %v118 = vunpack.c.l.b16 %v34
  %v119 = vunpack.c.l.b16 %v35
  %v120 = vunpack.c.l.b16 %v36
  %v121 = vunpack.c.l.b16 %v37
  %v122 = vunpack.c.l.b16 %v38
  %v123 = vunpack.c.l.b16 %v39
  %v124 = vunpack.c.l.b16 %v40
  %v125 = vunpack.c.l.b16 %v41
  %v126 = vunpack.c.l.b16 %v42
  %v127 = vunpack.c.l.b16 %v43
  %v128 = vunpack.c.l.b16 %v44
  %v129 = vunpack.c.l.b16 %v45
  %v130 = vunpack.c.l.b16 %v46
  %v131 = vunpack.c.l.b16 %v47
  %v132 = vunpack.c.l.b16 %v48
  %v133 = vunpack.c.l.b16 %v49
  %v134 = vunpack.c.l.b16 %v50
  %v135 = vpack.c.b16 %v104, %v103
  %v136 = vpack.c.b16 %v106, %v105
  %v137 = vpack.c.b16 %v108, %v107
  %v138 = vpack.c.b16 %v110, %v109
  %v139 = vpack.c.b16 %v112, %v111
  %v140 = vpack.c.b16 %v114, %v113
  %v141 = vpack.c.b16 %v116, %v115
  %v142 = vpack.c.b16 %v118, %v117
  %v143 = vpack.c.b16 %v120, %v119
  %v144 = vpack.c.b16 %v122, %v121
  %v145 = vpack.c.b16 %v124, %v123
  %v146 = vpack.c.b16 %v126, %v125
  %v147 = vpack.c.b16 %v128, %v127
  %v148 = vpack.c.b16 %v130, %v129
  %v149 = vpack.c.b16 %v132, %v131
  %v150 = vpack.c.b16 %v134, %v133
  %167 = vmatprep.subr.bf16.mxu0 0
  %168 = vmatpush1.bf16.msra.mxu0 %v142
  %169 = vmatprep.subr.bf16.mxu0 0
  %170 = vmatpush1.bf16.msra.mxu0 %v141
  %171 = vmatprep.subr.bf16.mxu0 0
  %172 = vmatpush1.bf16.msra.mxu0 %v140
  %173 = vmatprep.subr.bf16.mxu0 0
  %174 = vmatpush1.bf16.msra.mxu0 %v139
  %175 = vmatprep.subr.bf16.mxu0 0
  %176 = vmatpush1.bf16.msra.mxu0 %v138
  %177 = vmatprep.subr.bf16.mxu0 0
  %178 = vmatpush1.bf16.msra.mxu0 %v137
  %179 = vmatprep.subr.bf16.mxu0 0
  %180 = vmatpush1.bf16.msra.mxu0 %v136
  %181 = vmatprep.subr.bf16.mxu0 0
  %182 = vmatpush1.bf16.msra.mxu0 %v135
  %183 = vmatprep.subr.bf16.mxu0 0
  %184 = vmatpush2.bf16.msra.mxu0 %v150
  %185 = vmatprep.subr.bf16.mxu0 0
  %186 = vmatpush2.bf16.msra.mxu0 %v149
  %187 = vmatprep.subr.bf16.mxu0 0
  %188 = vmatpush2.bf16.msra.mxu0 %v148
  %189 = vmatprep.subr.bf16.mxu0 0
  %190 = vmatpush2.bf16.msra.mxu0 %v147
  %191 = vmatprep.subr.bf16.mxu0 0
  %192 = vmatpush2.bf16.msra.mxu0 %v146
  %193 = vmatprep.subr.bf16.mxu0 0
  %194 = vmatpush2.bf16.msra.mxu0 %v145
  %195 = vmatprep.subr.bf16.mxu0 0
  %196 = vmatpush2.bf16.msra.mxu0 %v144
  %197 = vmatprep.subr.bf16.mxu0 0
  %198 = vmatpush2.bf16.msra.mxu0 %v143
  %199 = vmatprep.mubr.bf16.mxu0 %v64
  %200 = vmatmul.mubr.bf16.gmra.mxu0 %v63
  %v201 = vpop.f32.mrf.mxu0
  %v202 = vadd.f32 0.0, %v201
  %v203 = vpop.f32.mrf.mxu0
  %v204 = vpop.f32.mrf.mxu0
  %v205 = vadd.f32 0.0, %v204
  %v206 = vpop.f32.mrf.mxu0
  %207 = vmatprep.mubr.bf16.mxu0 %v66
  %208 = vmatmul.mubr.bf16.gmra.mxu0 %v65
  %v209 = vpop.f32.mrf.mxu0
  %v210 = vadd.f32 0.0, %v209
  %v211 = vpop.f32.mrf.mxu0
  %v212 = vpop.f32.mrf.mxu0
  %v213 = vadd.f32 0.0, %v212
  %v214 = vpop.f32.mrf.mxu0
  %215 = vdwg.mxu0
  %s216 = scalar_lea.vmem %s0, 128
  %v217 = vld [vmem:[%s216] sm:$0xf]
  %v218 = vld [vmem:[%s216 + $0x4] sm:$0xf]
  %v219 = vld [vmem:[%s216 + $0x8] sm:$0xf]
  %v220 = vld [vmem:[%s216 + $0xc] sm:$0xf]
  %v221 = vld [vmem:[%s216 + $0x10] sm:$0xf]
  %v222 = vld [vmem:[%s216 + $0x14] sm:$0xf]
  %v223 = vld [vmem:[%s216 + $0x18] sm:$0xf]
  %v224 = vld [vmem:[%s216 + $0x1c] sm:$0xf]
  %v225 = vld [vmem:[%s216 + $0x20] sm:$0xf]
  %v226 = vld [vmem:[%s216 + $0x24] sm:$0xf]
  %v227 = vld [vmem:[%s216 + $0x28] sm:$0xf]
  %v228 = vld [vmem:[%s216 + $0x2c] sm:$0xf]
  %v229 = vld [vmem:[%s216 + $0x30] sm:$0xf]
  %v230 = vld [vmem:[%s216 + $0x34] sm:$0xf]
  %v231 = vld [vmem:[%s216 + $0x38] sm:$0xf]
  %v232 = vld [vmem:[%s216 + $0x3c] sm:$0xf]
  %v233 = vld [vmem:[%s216 + $0x40] sm:$0xf]
  %v234 = vld [vmem:[%s216 + $0x44] sm:$0xf]
  %v235 = vld [vmem:[%s216 + $0x48] sm:$0xf]
  %v236 = vld [vmem:[%s216 + $0x4c] sm:$0xf]
  %v237 = vld [vmem:[%s216 + $0x50] sm:$0xf]
  %v238 = vld [vmem:[%s216 + $0x54] sm:$0xf]
  %v239 = vld [vmem:[%s216 + $0x58] sm:$0xf]
  %v240 = vld [vmem:[%s216 + $0x5c] sm:$0xf]
  %v241 = vld [vmem:[%s216 + $0x60] sm:$0xf]
  %v242 = vld [vmem:[%s216 + $0x64] sm:$0xf]
  %v243 = vld [vmem:[%s216 + $0x68] sm:$0xf]
  %v244 = vld [vmem:[%s216 + $0x6c] sm:$0xf]
  %v245 = vld [vmem:[%s216 + $0x70] sm:$0xf]
  %v246 = vld [vmem:[%s216 + $0x74] sm:$0xf]
  %v247 = vld [vmem:[%s216 + $0x78] sm:$0xf]
  %v248 = vld [vmem:[%s216 + $0x7c] sm:$0xf]
  %v281 = vunpack.c.l.b16 %v217
  %v282 = vunpack.c.l.b16 %v218
  %v283 = vunpack.c.l.b16 %v219
  %v284 = vunpack.c.l.b16 %v220
  %v285 = vunpack.c.l.b16 %v221
  %v286 = vunpack.c.l.b16 %v222
  %v287 = vunpack.c.l.b16 %v223
  %v288 = vunpack.c.l.b16 %v224
  %v289 = vunpack.c.l.b16 %v225
  %v290 = vunpack.c.l.b16 %v226
  %v291 = vunpack.c.l.b16 %v227
  %v292 = vunpack.c.l.b16 %v228
  %v293 = vunpack.c.l.b16 %v229
  %v294 = vunpack.c.l.b16 %v230
  %v295 = vunpack.c.l.b16 %v231
  %v296 = vunpack.c.l.b16 %v232
  %v297 = vunpack.c.l.b16 %v233
  %v298 = vunpack.c.l.b16 %v234
  %v299 = vunpack.c.l.b16 %v235
  %v300 = vunpack.c.l.b16 %v236
  %v301 = vunpack.c.l.b16 %v237
  %v302 = vunpack.c.l.b16 %v238
  %v303 = vunpack.c.l.b16 %v239
  %v304 = vunpack.c.l.b16 %v240
  %v305 = vunpack.c.l.b16 %v241
  %v306 = vunpack.c.l.b16 %v242
  %v307 = vunpack.c.l.b16 %v243
  %v308 = vunpack.c.l.b16 %v244
  %v309 = vunpack.c.l.b16 %v245
  %v310 = vunpack.c.l.b16 %v246
  %v311 = vunpack.c.l.b16 %v247
  %v312 = vunpack.c.l.b16 %v248
  %v313 = vpack.c.b16 %v282, %v281
  %v314 = vpack.c.b16 %v284, %v283
  %v315 = vpack.c.b16 %v286, %v285
  %v316 = vpack.c.b16 %v288, %v287
  %v317 = vpack.c.b16 %v290, %v289
  %v318 = vpack.c.b16 %v292, %v291
  %v319 = vpack.c.b16 %v294, %v293
  %v320 = vpack.c.b16 %v296, %v295
  %v321 = vpack.c.b16 %v298, %v297
  %v322 = vpack.c.b16 %v300, %v299
  %v323 = vpack.c.b16 %v302, %v301
  %v324 = vpack.c.b16 %v304, %v303
  %v325 = vpack.c.b16 %v306, %v305
  %v326 = vpack.c.b16 %v308, %v307
  %v327 = vpack.c.b16 %v310, %v309
  %v328 = vpack.c.b16 %v312, %v311
  %345 = vmatprep.subr.bf16.mxu0 0
  %346 = vmatpush1.bf16.msra.mxu0 %v320
  %347 = vmatprep.subr.bf16.mxu0 0
  %348 = vmatpush1.bf16.msra.mxu0 %v319
  %349 = vmatprep.subr.bf16.mxu0 0
  %350 = vmatpush1.bf16.msra.mxu0 %v318
  %351 = vmatprep.subr.bf16.mxu0 0
  %352 = vmatpush1.bf16.msra.mxu0 %v317
  %353 = vmatprep.subr.bf16.mxu0 0
  %354 = vmatpush1.bf16.msra.mxu0 %v316
  %355 = vmatprep.subr.bf16.mxu0 0
  %356 = vmatpush1.bf16.msra.mxu0 %v315
  %357 = vmatprep.subr.bf16.mxu0 0
  %358 = vmatpush1.bf16.msra.mxu0 %v314
  %359 = vmatprep.subr.bf16.mxu0 0
  %360 = vmatpush1.bf16.msra.mxu0 %v313
  %361 = vmatprep.subr.bf16.mxu0 0
  %362 = vmatpush2.bf16.msra.mxu0 %v328
  %363 = vmatprep.subr.bf16.mxu0 0
  %364 = vmatpush2.bf16.msra.mxu0 %v327
  %365 = vmatprep.subr.bf16.mxu0 0
  %366 = vmatpush2.bf16.msra.mxu0 %v326
  %367 = vmatprep.subr.bf16.mxu0 0
  %368 = vmatpush2.bf16.msra.mxu0 %v325
  %369 = vmatprep.subr.bf16.mxu0 0
  %370 = vmatpush2.bf16.msra.mxu0 %v324
  %371 = vmatprep.subr.bf16.mxu0 0
  %372 = vmatpush2.bf16.msra.mxu0 %v323
  %373 = vmatprep.subr.bf16.mxu0 0
  %374 = vmatpush2.bf16.msra.mxu0 %v322
  %375 = vmatprep.subr.bf16.mxu0 0
  %376 = vmatpush2.bf16.msra.mxu0 %v321
  %377 = vmatprep.mubr.bf16.mxu0 %v64
  %378 = vmatmul.mubr.bf16.gmra.mxu0 %v63
  %v379 = vpop.f32.mrf.mxu0
  %v380 = vadd.f32 0.0, %v379
  %v381 = vpop.f32.mrf.mxu0
  %v382 = vpop.f32.mrf.mxu0
  %v383 = vadd.f32 0.0, %v382
  %v384 = vpop.f32.mrf.mxu0
  %385 = vmatprep.mubr.bf16.mxu0 %v66
  %386 = vmatmul.mubr.bf16.gmra.mxu0 %v65
  %v387 = vpop.f32.mrf.mxu0
  %v388 = vadd.f32 0.0, %v387
  %v389 = vpop.f32.mrf.mxu0
  %v390 = vpop.f32.mrf.mxu0
  %v391 = vadd.f32 0.0, %v390
  %v392 = vpop.f32.mrf.mxu0
  %393 = vdwg.mxu0
  %v394 = vmax.f32 %v202, %v380
  %v395 = vmax.f32 %v205, %v383
  %v396 = vmax.f32 %v210, %v388
  %v397 = vmax.f32 %v213, %v391
  %s398 = scalar_lea.vmem %s0, 256
  %v399 = vld [vmem:[%s398] sm:$0xf]
  %v400 = vld [vmem:[%s398 + $0x4] sm:$0xf]
  %v401 = vld [vmem:[%s398 + $0x8] sm:$0xf]
  %v402 = vld [vmem:[%s398 + $0xc] sm:$0xf]
  %v403 = vld [vmem:[%s398 + $0x10] sm:$0xf]
  %v404 = vld [vmem:[%s398 + $0x14] sm:$0xf]
  %v405 = vld [vmem:[%s398 + $0x18] sm:$0xf]
  %v406 = vld [vmem:[%s398 + $0x1c] sm:$0xf]
  %v407 = vld [vmem:[%s398 + $0x20] sm:$0xf]
  %v408 = vld [vmem:[%s398 + $0x24] sm:$0xf]
  %v409 = vld [vmem:[%s398 + $0x28] sm:$0xf]
  %v410 = vld [vmem:[%s398 + $0x2c] sm:$0xf]
  %v411 = vld [vmem:[%s398 + $0x30] sm:$0xf]
  %v412 = vld [vmem:[%s398 + $0x34] sm:$0xf]
  %v413 = vld [vmem:[%s398 + $0x38] sm:$0xf]
  %v414 = vld [vmem:[%s398 + $0x3c] sm:$0xf]
  %v415 = vld [vmem:[%s398 + $0x40] sm:$0xf]
  %v416 = vld [vmem:[%s398 + $0x44] sm:$0xf]
  %v417 = vld [vmem:[%s398 + $0x48] sm:$0xf]
  %v418 = vld [vmem:[%s398 + $0x4c] sm:$0xf]
  %v419 = vld [vmem:[%s398 + $0x50] sm:$0xf]
  %v420 = vld [vmem:[%s398 + $0x54] sm:$0xf]
  %v421 = vld [vmem:[%s398 + $0x58] sm:$0xf]
  %v422 = vld [vmem:[%s398 + $0x5c] sm:$0xf]
  %v423 = vld [vmem:[%s398 + $0x60] sm:$0xf]
  %v424 = vld [vmem:[%s398 + $0x64] sm:$0xf]
  %v425 = vld [vmem:[%s398 + $0x68] sm:$0xf]
  %v426 = vld [vmem:[%s398 + $0x6c] sm:$0xf]
  %v427 = vld [vmem:[%s398 + $0x70] sm:$0xf]
  %v428 = vld [vmem:[%s398 + $0x74] sm:$0xf]
  %v429 = vld [vmem:[%s398 + $0x78] sm:$0xf]
  %v430 = vld [vmem:[%s398 + $0x7c] sm:$0xf]
  %v463 = vunpack.c.l.b16 %v399
  %v464 = vunpack.c.l.b16 %v400
  %v465 = vunpack.c.l.b16 %v401
  %v466 = vunpack.c.l.b16 %v402
  %v467 = vunpack.c.l.b16 %v403
  %v468 = vunpack.c.l.b16 %v404
  %v469 = vunpack.c.l.b16 %v405
  %v470 = vunpack.c.l.b16 %v406
  %v471 = vunpack.c.l.b16 %v407
  %v472 = vunpack.c.l.b16 %v408
  %v473 = vunpack.c.l.b16 %v409
  %v474 = vunpack.c.l.b16 %v410
  %v475 = vunpack.c.l.b16 %v411
  %v476 = vunpack.c.l.b16 %v412
  %v477 = vunpack.c.l.b16 %v413
  %v478 = vunpack.c.l.b16 %v414
  %v479 = vunpack.c.l.b16 %v415
  %v480 = vunpack.c.l.b16 %v416
  %v481 = vunpack.c.l.b16 %v417
  %v482 = vunpack.c.l.b16 %v418
  %v483 = vunpack.c.l.b16 %v419
  %v484 = vunpack.c.l.b16 %v420
  %v485 = vunpack.c.l.b16 %v421
  %v486 = vunpack.c.l.b16 %v422
  %v487 = vunpack.c.l.b16 %v423
  %v488 = vunpack.c.l.b16 %v424
  %v489 = vunpack.c.l.b16 %v425
  %v490 = vunpack.c.l.b16 %v426
  %v491 = vunpack.c.l.b16 %v427
  %v492 = vunpack.c.l.b16 %v428
  %v493 = vunpack.c.l.b16 %v429
  %v494 = vunpack.c.l.b16 %v430
  %v495 = vpack.c.b16 %v464, %v463
  %v496 = vpack.c.b16 %v466, %v465
  %v497 = vpack.c.b16 %v468, %v467
  %v498 = vpack.c.b16 %v470, %v469
  %v499 = vpack.c.b16 %v472, %v471
  %v500 = vpack.c.b16 %v474, %v473
  %v501 = vpack.c.b16 %v476, %v475
  %v502 = vpack.c.b16 %v478, %v477
  %v503 = vpack.c.b16 %v480, %v479
  %v504 = vpack.c.b16 %v482, %v481
  %v505 = vpack.c.b16 %v484, %v483
  %v506 = vpack.c.b16 %v486, %v485
  %v507 = vpack.c.b16 %v488, %v487
  %v508 = vpack.c.b16 %v490, %v489
  %v509 = vpack.c.b16 %v492, %v491
  %v510 = vpack.c.b16 %v494, %v493
  %527 = vmatprep.subr.bf16.mxu0 0
  %528 = vmatpush1.bf16.msra.mxu0 %v502
  %529 = vmatprep.subr.bf16.mxu0 0
  %530 = vmatpush1.bf16.msra.mxu0 %v501
  %531 = vmatprep.subr.bf16.mxu0 0
  %532 = vmatpush1.bf16.msra.mxu0 %v500
  %533 = vmatprep.subr.bf16.mxu0 0
  %534 = vmatpush1.bf16.msra.mxu0 %v499
  %535 = vmatprep.subr.bf16.mxu0 0
  %536 = vmatpush1.bf16.msra.mxu0 %v498
  %537 = vmatprep.subr.bf16.mxu0 0
  %538 = vmatpush1.bf16.msra.mxu0 %v497
  %539 = vmatprep.subr.bf16.mxu0 0
  %540 = vmatpush1.bf16.msra.mxu0 %v496
  %541 = vmatprep.subr.bf16.mxu0 0
  %542 = vmatpush1.bf16.msra.mxu0 %v495
  %543 = vmatprep.subr.bf16.mxu0 0
  %544 = vmatpush2.bf16.msra.mxu0 %v510
  %545 = vmatprep.subr.bf16.mxu0 0
  %546 = vmatpush2.bf16.msra.mxu0 %v509
  %547 = vmatprep.subr.bf16.mxu0 0
  %548 = vmatpush2.bf16.msra.mxu0 %v508
  %549 = vmatprep.subr.bf16.mxu0 0
  %550 = vmatpush2.bf16.msra.mxu0 %v507
  %551 = vmatprep.subr.bf16.mxu0 0
  %552 = vmatpush2.bf16.msra.mxu0 %v506
  %553 = vmatprep.subr.bf16.mxu0 0
  %554 = vmatpush2.bf16.msra.mxu0 %v505
  %555 = vmatprep.subr.bf16.mxu0 0
  %556 = vmatpush2.bf16.msra.mxu0 %v504
  %557 = vmatprep.subr.bf16.mxu0 0
  %558 = vmatpush2.bf16.msra.mxu0 %v503
  %559 = vmatprep.mubr.bf16.mxu0 %v64
  %560 = vmatmul.mubr.bf16.gmra.mxu0 %v63
  %v561 = vpop.f32.mrf.mxu0
  %v562 = vadd.f32 0.0, %v561
  %v563 = vpop.f32.mrf.mxu0
  %v564 = vpop.f32.mrf.mxu0
  %v565 = vadd.f32 0.0, %v564
  %v566 = vpop.f32.mrf.mxu0
  %567 = vmatprep.mubr.bf16.mxu0 %v66
  %568 = vmatmul.mubr.bf16.gmra.mxu0 %v65
  %v569 = vpop.f32.mrf.mxu0
  %v570 = vadd.f32 0.0, %v569
  %v571 = vpop.f32.mrf.mxu0
  %v572 = vpop.f32.mrf.mxu0
  %v573 = vadd.f32 0.0, %v572
  %v574 = vpop.f32.mrf.mxu0
  %575 = vdwg.mxu0
  %v576 = vmax.f32 %v394, %v562
  %v577 = vmax.f32 %v395, %v565
  %v578 = vmax.f32 %v396, %v570
  %v579 = vmax.f32 %v397, %v573
  %s580 = scalar_lea.vmem %s0, 384
  %v581 = vld [vmem:[%s580] sm:$0xf]
  %v582 = vld [vmem:[%s580 + $0x4] sm:$0xf]
  %v583 = vld [vmem:[%s580 + $0x8] sm:$0xf]
  %v584 = vld [vmem:[%s580 + $0xc] sm:$0xf]
  %v585 = vld [vmem:[%s580 + $0x10] sm:$0xf]
  %v586 = vld [vmem:[%s580 + $0x14] sm:$0xf]
  %v587 = vld [vmem:[%s580 + $0x18] sm:$0xf]
  %v588 = vld [vmem:[%s580 + $0x1c] sm:$0xf]
  %v589 = vld [vmem:[%s580 + $0x20] sm:$0xf]
  %v590 = vld [vmem:[%s580 + $0x24] sm:$0xf]
  %v591 = vld [vmem:[%s580 + $0x28] sm:$0xf]
  %v592 = vld [vmem:[%s580 + $0x2c] sm:$0xf]
  %v593 = vld [vmem:[%s580 + $0x30] sm:$0xf]
  %v594 = vld [vmem:[%s580 + $0x34] sm:$0xf]
  %v595 = vld [vmem:[%s580 + $0x38] sm:$0xf]
  %v596 = vld [vmem:[%s580 + $0x3c] sm:$0xf]
  %v597 = vld [vmem:[%s580 + $0x40] sm:$0xf]
  %v598 = vld [vmem:[%s580 + $0x44] sm:$0xf]
  %v599 = vld [vmem:[%s580 + $0x48] sm:$0xf]
  %v600 = vld [vmem:[%s580 + $0x4c] sm:$0xf]
  %v601 = vld [vmem:[%s580 + $0x50] sm:$0xf]
  %v602 = vld [vmem:[%s580 + $0x54] sm:$0xf]
  %v603 = vld [vmem:[%s580 + $0x58] sm:$0xf]
  %v604 = vld [vmem:[%s580 + $0x5c] sm:$0xf]
  %v605 = vld [vmem:[%s580 + $0x60] sm:$0xf]
  %v606 = vld [vmem:[%s580 + $0x64] sm:$0xf]
  %v607 = vld [vmem:[%s580 + $0x68] sm:$0xf]
  %v608 = vld [vmem:[%s580 + $0x6c] sm:$0xf]
  %v609 = vld [vmem:[%s580 + $0x70] sm:$0xf]
  %v610 = vld [vmem:[%s580 + $0x74] sm:$0xf]
  %v611 = vld [vmem:[%s580 + $0x78] sm:$0xf]
  %v612 = vld [vmem:[%s580 + $0x7c] sm:$0xf]
  %v645 = vunpack.c.l.b16 %v581
  %v646 = vunpack.c.l.b16 %v582
  %v647 = vunpack.c.l.b16 %v583
  %v648 = vunpack.c.l.b16 %v584
  %v649 = vunpack.c.l.b16 %v585
  %v650 = vunpack.c.l.b16 %v586
  %v651 = vunpack.c.l.b16 %v587
  %v652 = vunpack.c.l.b16 %v588
  %v653 = vunpack.c.l.b16 %v589
  %v654 = vunpack.c.l.b16 %v590
  %v655 = vunpack.c.l.b16 %v591
  %v656 = vunpack.c.l.b16 %v592
  %v657 = vunpack.c.l.b16 %v593
  %v658 = vunpack.c.l.b16 %v594
  %v659 = vunpack.c.l.b16 %v595
  %v660 = vunpack.c.l.b16 %v596
  %v661 = vunpack.c.l.b16 %v597
  %v662 = vunpack.c.l.b16 %v598
  %v663 = vunpack.c.l.b16 %v599
  %v664 = vunpack.c.l.b16 %v600
  %v665 = vunpack.c.l.b16 %v601
  %v666 = vunpack.c.l.b16 %v602
  %v667 = vunpack.c.l.b16 %v603
  %v668 = vunpack.c.l.b16 %v604
  %v669 = vunpack.c.l.b16 %v605
  %v670 = vunpack.c.l.b16 %v606
  %v671 = vunpack.c.l.b16 %v607
  %v672 = vunpack.c.l.b16 %v608
  %v673 = vunpack.c.l.b16 %v609
  %v674 = vunpack.c.l.b16 %v610
  %v675 = vunpack.c.l.b16 %v611
  %v676 = vunpack.c.l.b16 %v612
  %v677 = vpack.c.b16 %v646, %v645
  %v678 = vpack.c.b16 %v648, %v647
  %v679 = vpack.c.b16 %v650, %v649
  %v680 = vpack.c.b16 %v652, %v651
  %v681 = vpack.c.b16 %v654, %v653
  %v682 = vpack.c.b16 %v656, %v655
  %v683 = vpack.c.b16 %v658, %v657
  %v684 = vpack.c.b16 %v660, %v659
  %v685 = vpack.c.b16 %v662, %v661
  %v686 = vpack.c.b16 %v664, %v663
  %v687 = vpack.c.b16 %v666, %v665
  %v688 = vpack.c.b16 %v668, %v667
  %v689 = vpack.c.b16 %v670, %v669
  %v690 = vpack.c.b16 %v672, %v671
  %v691 = vpack.c.b16 %v674, %v673
  %v692 = vpack.c.b16 %v676, %v675
  %709 = vmatprep.subr.bf16.mxu0 0
  %710 = vmatpush1.bf16.msra.mxu0 %v684
  %711 = vmatprep.subr.bf16.mxu0 0
  %712 = vmatpush1.bf16.msra.mxu0 %v683
  %713 = vmatprep.subr.bf16.mxu0 0
  %714 = vmatpush1.bf16.msra.mxu0 %v682
  %715 = vmatprep.subr.bf16.mxu0 0
  %716 = vmatpush1.bf16.msra.mxu0 %v681
  %717 = vmatprep.subr.bf16.mxu0 0
  %718 = vmatpush1.bf16.msra.mxu0 %v680
  %719 = vmatprep.subr.bf16.mxu0 0
  %720 = vmatpush1.bf16.msra.mxu0 %v679
  %721 = vmatprep.subr.bf16.mxu0 0
  %722 = vmatpush1.bf16.msra.mxu0 %v678
  %723 = vmatprep.subr.bf16.mxu0 0
  %724 = vmatpush1.bf16.msra.mxu0 %v677
  %725 = vmatprep.subr.bf16.mxu0 0
  %726 = vmatpush2.bf16.msra.mxu0 %v692
  %727 = vmatprep.subr.bf16.mxu0 0
  %728 = vmatpush2.bf16.msra.mxu0 %v691
  %729 = vmatprep.subr.bf16.mxu0 0
  %730 = vmatpush2.bf16.msra.mxu0 %v690
  %731 = vmatprep.subr.bf16.mxu0 0
  %732 = vmatpush2.bf16.msra.mxu0 %v689
  %733 = vmatprep.subr.bf16.mxu0 0
  %734 = vmatpush2.bf16.msra.mxu0 %v688
  %735 = vmatprep.subr.bf16.mxu0 0
  %736 = vmatpush2.bf16.msra.mxu0 %v687
  %737 = vmatprep.subr.bf16.mxu0 0
  %738 = vmatpush2.bf16.msra.mxu0 %v686
  %739 = vmatprep.subr.bf16.mxu0 0
  %740 = vmatpush2.bf16.msra.mxu0 %v685
  %741 = vmatprep.mubr.bf16.mxu0 %v64
  %742 = vmatmul.mubr.bf16.gmra.mxu0 %v63
  %v743 = vpop.f32.mrf.mxu0
  %v744 = vadd.f32 0.0, %v743
  %v745 = vpop.f32.mrf.mxu0
  %v746 = vpop.f32.mrf.mxu0
  %v747 = vadd.f32 0.0, %v746
  %v748 = vpop.f32.mrf.mxu0
  %749 = vmatprep.mubr.bf16.mxu0 %v66
  %750 = vmatmul.mubr.bf16.gmra.mxu0 %v65
  %v751 = vpop.f32.mrf.mxu0
  %v752 = vadd.f32 0.0, %v751
  %v753 = vpop.f32.mrf.mxu0
  %v754 = vpop.f32.mrf.mxu0
  %v755 = vadd.f32 0.0, %v754
  %v756 = vpop.f32.mrf.mxu0
  %757 = vdwg.mxu0
  %v758 = vmax.f32 %v576, %v744
  %v759 = vmax.f32 %v577, %v747
  %v760 = vmax.f32 %v578, %v752
  %v761 = vmax.f32 %v579, %v755
  %v762 = vld [vmem:[%s2] sm:$0xff]
  %v763 = vld [vmem:[%s2 + $0x8] sm:$0xff]
  %v764 = vld [vmem:[%s2 + $0x10] sm:$0xff]
  %v765 = vld [vmem:[%s2 + $0x18] sm:$0xff]
  %767 = vset.pattern.permute.xlu0 0
  %768 = vperm.xlu0 %767, %v762
  %v769 = vpop.permute.xlu0 %768
  %772 = vset.pattern.permute.xlu0 0
  %773 = vperm.xlu0 %772, %v763
  %v774 = vpop.permute.xlu0 %773
  %777 = vset.pattern.permute.xlu0 0
  %778 = vperm.xlu0 %777, %v764
  %v779 = vpop.permute.xlu0 %778
  %782 = vset.pattern.permute.xlu0 0
  %783 = vperm.xlu0 %782, %v765
  %v784 = vpop.permute.xlu0 %783
  %v786 = vadd.f32 %v758, %v769
  %v787 = vadd.f32 %v759, %v774
  %v788 = vadd.f32 %v760, %v779
  %v789 = vadd.f32 %v761, %v784
  %v790 = vmul.f32 %v786, 0.2
  %v791 = vmul.f32 %v787, 0.2
  %v792 = vmul.f32 %v788, 0.2
  %v793 = vmul.f32 %v789, 0.2
  %v794 = vmax.f32 %v786, %v790
  %v795 = vmax.f32 %v787, %v791
  %v796 = vmax.f32 %v788, %v792
  %v797 = vmax.f32 %v789, %v793
  %v798 = vpack.c.bf16 %v795, %v794
  %v799 = vpack.c.bf16 %v797, %v796
  %v802 = vunpack.c.l.b16 %v798
  %v803 = vunpack.c.h.b16 %v798
  %v804 = vunpack.c.l.b16 %v799
  %v805 = vunpack.c.h.b16 %v799
  %v806 = vpack.c.b16 %v802, %v802
  %v807 = vpack.c.b16 %v803, %v803
  %v808 = vpack.c.b16 %v804, %v804
  %v809 = vpack.c.b16 %v805, %v805
  %814 = vst [vmem:[%s3] sm:$0xf] %v806
  %815 = vst [vmem:[%s3 + $0x4] sm:$0xf] %v807
  %816 = vst [vmem:[%s3 + $0x8] sm:$0xf] %v808
  %817 = vst [vmem:[%s3 + $0xc] sm:$0xf] %v809
  // Predicated region
  $region14: #{_lambda_.6} parent=0 // pred_check
    _
  $region15: #{_lambda_.6} parent=0 // pred_check_branch
    %819 = sbr.rel (0) target = $region17
  $region16: #{_lambda_.6} parent=0 // pred_region
    _
  $region17: #{_lambda_.6} parent=0 // pred_fallthru
    _
  // Predicated region
  $region18: #{_lambda_.6} parent=0 // pred_check
    _
  $region19: #{_lambda_.6} parent=0 // pred_check_branch
    %821 = sbr.rel (0) target = $region21
  $region20: #{_lambda_.6} parent=0 // pred_region
    _
  $region21: #{_lambda_.6} parent=0 // pred_fallthru
    _

// kernel: _lambda_.7
$region0: #{_lambda_.7}
  #allocation0 [shape = 'u32[]', space=smem, size = 0x4, offset = 0x4, fixed_abs, tag = 'smem constant byte address 0x4 - core index']
  #allocation1 [shape = 'u32[144,128]{1,0:T(1,128)}', space=vmem, size = 0x12000, scoped, tag = 'internal scratch']
  %s0 = inlined_call_operand.vmem [shape: bf16[512,8], index: 0, kind: input, shape index: {}]
  %s1 = inlined_call_operand.vmem [shape: bf16[64,512], index: 1, kind: input, shape index: {}]
  %s2 = inlined_call_operand.vmem [shape: f32[64,1], index: 2, kind: input, shape index: {}]
  %s3 = inlined_call_operand.vmem [shape: f32[16,64], index: 3, kind: input, shape index: {}]
  %s4 = inlined_call_operand.vmem [shape: f32[16,1], index: 4, kind: input, shape index: {}]
  %s5 = inlined_call_operand.vmem [shape: f32[8,16], index: 5, kind: input, shape index: {}]
  %s6 = inlined_call_operand.vmem [shape: f32[8,1], index: 6, kind: input, shape index: {}]
  %s7 = inlined_call_operand.vmem [shape: f32[8,2], index: 7, kind: output, shape index: {}]
  %s8 = sld [smem:[#allocation0]]
  $region38: #{_lambda_.7} parent=0
    _
  %s10 = ssub.s32 1, %s8
  %s11 = scalar_select 0, %s10, %s8
  // Predicated region
  $region2: #{_lambda_.7} parent=0 // pred_check
    _
  $region3: #{_lambda_.7} parent=0 // pred_check_branch
    %13 = sbr.rel (0) target = $region5
  $region4: #{_lambda_.7} parent=0 // pred_region
    _
  $region5: #{_lambda_.7} parent=0 // pred_fallthru
    _
  // Predicated region
  $region6: #{_lambda_.7} parent=0 // pred_check
    _
  $region7: #{_lambda_.7} parent=0 // pred_check_branch
    %15 = sbr.rel (0) target = $region9
  $region8: #{_lambda_.7} parent=0 // pred_region
    _
  $region9: #{_lambda_.7} parent=0 // pred_fallthru
    _
  // Predicated region
  $region10: #{_lambda_.7} parent=0 // pred_check
    _
  $region11: #{_lambda_.7} parent=0 // pred_check_branch
    %17 = sbr.rel (0) target = $region13
  $region12: #{_lambda_.7} parent=0 // pred_region
    _
  $region13: #{_lambda_.7} parent=0 // pred_fallthru
    _
  // Predicated region
  $region14: #{_lambda_.7} parent=0 // pred_check
    _
  $region15: #{_lambda_.7} parent=0 // pred_check_branch
    %19 = sbr.rel (0) target = $region17
  $region16: #{_lambda_.7} parent=0 // pred_region
    _
  $region17: #{_lambda_.7} parent=0 // pred_fallthru
    _
  // Predicated region
  $region18: #{_lambda_.7} parent=0 // pred_check
    _
  $region19: #{_lambda_.7} parent=0 // pred_check_branch
    %21 = sbr.rel (0) target = $region21
  $region20: #{_lambda_.7} parent=0 // pred_region
    _
  $region21: #{_lambda_.7} parent=0 // pred_fallthru
    _
  // Predicated region
  $region22: #{_lambda_.7} parent=0 // pred_check
    _
  $region23: #{_lambda_.7} parent=0 // pred_check_branch
    %23 = sbr.rel (0) target = $region25
  $region24: #{_lambda_.7} parent=0 // pred_region
    _
  $region25: #{_lambda_.7} parent=0 // pred_fallthru
    _
  // Predicated region
  $region26: #{_lambda_.7} parent=0 // pred_check
    _
  $region27: #{_lambda_.7} parent=0 // pred_check_branch
    %25 = sbr.rel (0) target = $region29
  $region28: #{_lambda_.7} parent=0 // pred_region
    _
  $region29: #{_lambda_.7} parent=0 // pred_fallthru
    _
  %v27 = vld [vmem:[%s1] sm:$0xff]
  %v28 = vld [vmem:[%s1 + $0x8] sm:$0xff]
  %v29 = vld [vmem:[%s1 + $0x10] sm:$0xff]
  %v30 = vld [vmem:[%s1 + $0x18] sm:$0xff]
  %v31 = vld [vmem:[%s1 + $0x20] sm:$0xff]
  %v32 = vld [vmem:[%s1 + $0x28] sm:$0xff]
  %v33 = vld [vmem:[%s1 + $0x30] sm:$0xff]
  %v34 = vld [vmem:[%s1 + $0x38] sm:$0xff]
  %v35 = vld [vmem:[%s1 + $0x40] sm:$0xff]
  %v36 = vld [vmem:[%s1 + $0x48] sm:$0xff]
  %v37 = vld [vmem:[%s1 + $0x50] sm:$0xff]
  %v38 = vld [vmem:[%s1 + $0x58] sm:$0xff]
  %v39 = vld [vmem:[%s1 + $0x60] sm:$0xff]
  %v40 = vld [vmem:[%s1 + $0x68] sm:$0xff]
  %v41 = vld [vmem:[%s1 + $0x70] sm:$0xff]
  %v42 = vld [vmem:[%s1 + $0x78] sm:$0xff]
  %v43 = vld [vmem:[%s0] sm:$0xf]
  %v44 = vld [vmem:[%s0 + $0x4] sm:$0xf]
  %v45 = vld [vmem:[%s0 + $0x8] sm:$0xf]
  %v46 = vld [vmem:[%s0 + $0xc] sm:$0xf]
  %v47 = vld [vmem:[%s0 + $0x10] sm:$0xf]
  %v48 = vld [vmem:[%s0 + $0x14] sm:$0xf]
  %v49 = vld [vmem:[%s0 + $0x18] sm:$0xf]
  %v50 = vld [vmem:[%s0 + $0x1c] sm:$0xf]
  %v51 = vld [vmem:[%s0 + $0x20] sm:$0xf]
  %v52 = vld [vmem:[%s0 + $0x24] sm:$0xf]
  %v53 = vld [vmem:[%s0 + $0x28] sm:$0xf]
  %v54 = vld [vmem:[%s0 + $0x2c] sm:$0xf]
  %v55 = vld [vmem:[%s0 + $0x30] sm:$0xf]
  %v56 = vld [vmem:[%s0 + $0x34] sm:$0xf]
  %v57 = vld [vmem:[%s0 + $0x38] sm:$0xf]
  %v58 = vld [vmem:[%s0 + $0x3c] sm:$0xf]
  %v59 = vld [vmem:[%s0 + $0x40] sm:$0xf]
  %v60 = vld [vmem:[%s0 + $0x44] sm:$0xf]
  %v61 = vld [vmem:[%s0 + $0x48] sm:$0xf]
  %v62 = vld [vmem:[%s0 + $0x4c] sm:$0xf]
  %v63 = vld [vmem:[%s0 + $0x50] sm:$0xf]
  %v64 = vld [vmem:[%s0 + $0x54] sm:$0xf]
  %v65 = vld [vmem:[%s0 + $0x58] sm:$0xf]
  %v66 = vld [vmem:[%s0 + $0x5c] sm:$0xf]
  %v67 = vld [vmem:[%s0 + $0x60] sm:$0xf]
  %v68 = vld [vmem:[%s0 + $0x64] sm:$0xf]
  %v69 = vld [vmem:[%s0 + $0x68] sm:$0xf]
  %v70 = vld [vmem:[%s0 + $0x6c] sm:$0xf]
  %v71 = vld [vmem:[%s0 + $0x70] sm:$0xf]
  %v72 = vld [vmem:[%s0 + $0x74] sm:$0xf]
  %v73 = vld [vmem:[%s0 + $0x78] sm:$0xf]
  %v74 = vld [vmem:[%s0 + $0x7c] sm:$0xf]
  %v75 = vld [vmem:[%s0 + $0x80] sm:$0xf]
  %v76 = vld [vmem:[%s0 + $0x84] sm:$0xf]
  %v77 = vld [vmem:[%s0 + $0x88] sm:$0xf]
  %v78 = vld [vmem:[%s0 + $0x8c] sm:$0xf]
  %v79 = vld [vmem:[%s0 + $0x90] sm:$0xf]
  %v80 = vld [vmem:[%s0 + $0x94] sm:$0xf]
  %v81 = vld [vmem:[%s0 + $0x98] sm:$0xf]
  %v82 = vld [vmem:[%s0 + $0x9c] sm:$0xf]
  %v83 = vld [vmem:[%s0 + $0xa0] sm:$0xf]
  %v84 = vld [vmem:[%s0 + $0xa4] sm:$0xf]
  %v85 = vld [vmem:[%s0 + $0xa8] sm:$0xf]
  %v86 = vld [vmem:[%s0 + $0xac] sm:$0xf]
  %v87 = vld [vmem:[%s0 + $0xb0] sm:$0xf]
  %v88 = vld [vmem:[%s0 + $0xb4] sm:$0xf]
  %v89 = vld [vmem:[%s0 + $0xb8] sm:$0xf]
  %v90 = vld [vmem:[%s0 + $0xbc] sm:$0xf]
  %v91 = vld [vmem:[%s0 + $0xc0] sm:$0xf]
  %v92 = vld [vmem:[%s0 + $0xc4] sm:$0xf]
  %v93 = vld [vmem:[%s0 + $0xc8] sm:$0xf]
  %v94 = vld [vmem:[%s0 + $0xcc] sm:$0xf]
  %v95 = vld [vmem:[%s0 + $0xd0] sm:$0xf]
  %v96 = vld [vmem:[%s0 + $0xd4] sm:$0xf]
  %v97 = vld [vmem:[%s0 + $0xd8] sm:$0xf]
  %v98 = vld [vmem:[%s0 + $0xdc] sm:$0xf]
  %v99 = vld [vmem:[%s0 + $0xe0] sm:$0xf]
  %v100 = vld [vmem:[%s0 + $0xe4] sm:$0xf]
  %v101 = vld [vmem:[%s0 + $0xe8] sm:$0xf]
  %v102 = vld [vmem:[%s0 + $0xec] sm:$0xf]
  %v103 = vld [vmem:[%s0 + $0xf0] sm:$0xf]
  %v104 = vld [vmem:[%s0 + $0xf4] sm:$0xf]
  %v105 = vld [vmem:[%s0 + $0xf8] sm:$0xf]
  %v106 = vld [vmem:[%s0 + $0xfc] sm:$0xf]
  %v123 = vunpack.c.l.b16 %v27
  %v124 = vunpack.c.h.b16 %v27
  %v125 = vunpack.c.l.b16 %v28
  %v126 = vunpack.c.h.b16 %v28
  %v127 = vunpack.c.l.b16 %v29
  %v128 = vunpack.c.h.b16 %v29
  %v129 = vunpack.c.l.b16 %v30
  %v130 = vunpack.c.h.b16 %v30
  %v131 = vunpack.c.l.b16 %v31
  %v132 = vunpack.c.h.b16 %v31
  %v133 = vunpack.c.l.b16 %v32
  %v134 = vunpack.c.h.b16 %v32
  %v135 = vunpack.c.l.b16 %v33
  %v136 = vunpack.c.h.b16 %v33
  %v137 = vunpack.c.l.b16 %v34
  %v138 = vunpack.c.h.b16 %v34
  %v139 = vunpack.c.l.b16 %v35
  %v140 = vunpack.c.h.b16 %v35
  %v141 = vunpack.c.l.b16 %v36
  %v142 = vunpack.c.h.b16 %v36
  %v143 = vunpack.c.l.b16 %v37
  %v144 = vunpack.c.h.b16 %v37
  %v145 = vunpack.c.l.b16 %v38
  %v146 = vunpack.c.h.b16 %v38
  %v147 = vunpack.c.l.b16 %v39
  %v148 = vunpack.c.h.b16 %v39
  %v149 = vunpack.c.l.b16 %v40
  %v150 = vunpack.c.h.b16 %v40
  %v151 = vunpack.c.l.b16 %v41
  %v152 = vunpack.c.h.b16 %v41
  %v153 = vunpack.c.l.b16 %v42
  %v154 = vunpack.c.h.b16 %v42
  %v155 = vpack.c.b16 %v127, %v123
  %v156 = vpack.c.b16 %v128, %v124
  %v157 = vpack.c.b16 %v129, %v125
  %v158 = vpack.c.b16 %v130, %v126
  %v159 = vpack.c.b16 %v135, %v131
  %v160 = vpack.c.b16 %v136, %v132
  %v161 = vpack.c.b16 %v137, %v133
  %v162 = vpack.c.b16 %v138, %v134
  %v163 = vpack.c.b16 %v143, %v139
  %v164 = vpack.c.b16 %v144, %v140
  %v165 = vpack.c.b16 %v145, %v141
  %v166 = vpack.c.b16 %v146, %v142
  %v167 = vpack.c.b16 %v151, %v147
  %v168 = vpack.c.b16 %v152, %v148
  %v169 = vpack.c.b16 %v153, %v149
  %v170 = vpack.c.b16 %v154, %v150
  %v251 = vunpack.c.l.b16 %v43
  %v252 = vunpack.c.l.b16 %v44
  %v253 = vunpack.c.l.b16 %v45
  %v254 = vunpack.c.l.b16 %v46
  %v255 = vunpack.c.l.b16 %v47
  %v256 = vunpack.c.l.b16 %v48
  %v257 = vunpack.c.l.b16 %v49
  %v258 = vunpack.c.l.b16 %v50
  %v259 = vunpack.c.l.b16 %v51
  %v260 = vunpack.c.l.b16 %v52
  %v261 = vunpack.c.l.b16 %v53
  %v262 = vunpack.c.l.b16 %v54
  %v263 = vunpack.c.l.b16 %v55
  %v264 = vunpack.c.l.b16 %v56
  %v265 = vunpack.c.l.b16 %v57
  %v266 = vunpack.c.l.b16 %v58
  %v267 = vunpack.c.l.b16 %v59
  %v268 = vunpack.c.l.b16 %v60
  %v269 = vunpack.c.l.b16 %v61
  %v270 = vunpack.c.l.b16 %v62
  %v271 = vunpack.c.l.b16 %v63
  %v272 = vunpack.c.l.b16 %v64
  %v273 = vunpack.c.l.b16 %v65
  %v274 = vunpack.c.l.b16 %v66
  %v275 = vunpack.c.l.b16 %v67
  %v276 = vunpack.c.l.b16 %v68
  %v277 = vunpack.c.l.b16 %v69
  %v278 = vunpack.c.l.b16 %v70
  %v279 = vunpack.c.l.b16 %v71
  %v280 = vunpack.c.l.b16 %v72
  %v281 = vunpack.c.l.b16 %v73
  %v282 = vunpack.c.l.b16 %v74
  %v283 = vunpack.c.l.b16 %v75
  %v284 = vunpack.c.l.b16 %v76
  %v285 = vunpack.c.l.b16 %v77
  %v286 = vunpack.c.l.b16 %v78
  %v287 = vunpack.c.l.b16 %v79
  %v288 = vunpack.c.l.b16 %v80
  %v289 = vunpack.c.l.b16 %v81
  %v290 = vunpack.c.l.b16 %v82
  %v291 = vunpack.c.l.b16 %v83
  %v292 = vunpack.c.l.b16 %v84
  %v293 = vunpack.c.l.b16 %v85
  %v294 = vunpack.c.l.b16 %v86
  %v295 = vunpack.c.l.b16 %v87
  %v296 = vunpack.c.l.b16 %v88
  %v297 = vunpack.c.l.b16 %v89
  %v298 = vunpack.c.l.b16 %v90
  %v299 = vunpack.c.l.b16 %v91
  %v300 = vunpack.c.l.b16 %v92
  %v301 = vunpack.c.l.b16 %v93
  %v302 = vunpack.c.l.b16 %v94
  %v303 = vunpack.c.l.b16 %v95
  %v304 = vunpack.c.l.b16 %v96
  %v305 = vunpack.c.l.b16 %v97
  %v306 = vunpack.c.l.b16 %v98
  %v307 = vunpack.c.l.b16 %v99
  %v308 = vunpack.c.l.b16 %v100
  %v309 = vunpack.c.l.b16 %v101
  %v310 = vunpack.c.l.b16 %v102
  %v311 = vunpack.c.l.b16 %v103
  %v312 = vunpack.c.l.b16 %v104
  %v313 = vunpack.c.l.b16 %v105
  %v314 = vunpack.c.l.b16 %v106
  %v315 = vpack.c.b16 %v252, %v251
  %v316 = vpack.c.b16 %v254, %v253
  %v317 = vpack.c.b16 %v256, %v255
  %v318 = vpack.c.b16 %v258, %v257
  %v319 = vpack.c.b16 %v260, %v259
  %v320 = vpack.c.b16 %v262, %v261
  %v321 = vpack.c.b16 %v264, %v263
  %v322 = vpack.c.b16 %v266, %v265
  %v323 = vpack.c.b16 %v268, %v267
  %v324 = vpack.c.b16 %v270, %v269
  %v325 = vpack.c.b16 %v272, %v271
  %v326 = vpack.c.b16 %v274, %v273
  %v327 = vpack.c.b16 %v276, %v275
  %v328 = vpack.c.b16 %v278, %v277
  %v329 = vpack.c.b16 %v280, %v279
  %v330 = vpack.c.b16 %v282, %v281
  %v331 = vpack.c.b16 %v284, %v283
  %v332 = vpack.c.b16 %v286, %v285
  %v333 = vpack.c.b16 %v288, %v287
  %v334 = vpack.c.b16 %v290, %v289
  %v335 = vpack.c.b16 %v292, %v291
  %v336 = vpack.c.b16 %v294, %v293
  %v337 = vpack.c.b16 %v296, %v295
  %v338 = vpack.c.b16 %v298, %v297
  %v339 = vpack.c.b16 %v300, %v299
  %v340 = vpack.c.b16 %v302, %v301
  %v341 = vpack.c.b16 %v304, %v303
  %v342 = vpack.c.b16 %v306, %v305
  %v343 = vpack.c.b16 %v308, %v307
  %v344 = vpack.c.b16 %v310, %v309
  %v345 = vpack.c.b16 %v312, %v311
  %v346 = vpack.c.b16 %v314, %v313
  %379 = vmatprep.subr.bf16.mxu0 0
  %380 = vmatpush1.bf16.msra.mxu0 %v322
  %381 = vmatprep.subr.bf16.mxu0 0
  %382 = vmatpush1.bf16.msra.mxu0 %v321
  %383 = vmatprep.subr.bf16.mxu0 0
  %384 = vmatpush1.bf16.msra.mxu0 %v320
  %385 = vmatprep.subr.bf16.mxu0 0
  %386 = vmatpush1.bf16.msra.mxu0 %v319
  %387 = vmatprep.subr.bf16.mxu0 0
  %388 = vmatpush1.bf16.msra.mxu0 %v318
  %389 = vmatprep.subr.bf16.mxu0 0
  %390 = vmatpush1.bf16.msra.mxu0 %v317
  %391 = vmatprep.subr.bf16.mxu0 0
  %392 = vmatpush1.bf16.msra.mxu0 %v316
  %393 = vmatprep.subr.bf16.mxu0 0
  %394 = vmatpush1.bf16.msra.mxu0 %v315
  %395 = vmatprep.subr.bf16.mxu0 0
  %396 = vmatpush2.bf16.msra.mxu0 %v330
  %397 = vmatprep.subr.bf16.mxu0 0
  %398 = vmatpush2.bf16.msra.mxu0 %v329
  %399 = vmatprep.subr.bf16.mxu0 0
  %400 = vmatpush2.bf16.msra.mxu0 %v328
  %401 = vmatprep.subr.bf16.mxu0 0
  %402 = vmatpush2.bf16.msra.mxu0 %v327
  %403 = vmatprep.subr.bf16.mxu0 0
  %404 = vmatpush2.bf16.msra.mxu0 %v326
  %405 = vmatprep.subr.bf16.mxu0 0
  %406 = vmatpush2.bf16.msra.mxu0 %v325
  %407 = vmatprep.subr.bf16.mxu0 0
  %408 = vmatpush2.bf16.msra.mxu0 %v324
  %409 = vmatprep.subr.bf16.mxu0 0
  %410 = vmatpush2.bf16.msra.mxu0 %v323
  %411 = vmatprep.mubr.bf16.mxu0 %v156
  %412 = vmatmul.mubr.bf16.gmra.mxu0 %v155
  %v413 = vpop.f32.mrf.mxu0
  %v414 = vadd.f32 0.0, %v413
  %v415 = vpop.f32.mrf.mxu0
  %v416 = vpop.f32.mrf.mxu0
  %v417 = vadd.f32 0.0, %v416
  %v418 = vpop.f32.mrf.mxu0
  %419 = vmatprep.mubr.bf16.mxu0 %v160
  %420 = vmatmul.mubr.bf16.gmra.mxu0 %v159
  %v421 = vpop.f32.mrf.mxu0
  %v422 = vadd.f32 0.0, %v421
  %v423 = vpop.f32.mrf.mxu0
  %v424 = vpop.f32.mrf.mxu0
  %v425 = vadd.f32 0.0, %v424
  %v426 = vpop.f32.mrf.mxu0
  %427 = vmatprep.mubr.bf16.mxu0 %v164
  %428 = vmatmul.mubr.bf16.gmra.mxu0 %v163
  %v429 = vpop.f32.mrf.mxu0
  %v430 = vadd.f32 0.0, %v429
  %v431 = vpop.f32.mrf.mxu0
  %v432 = vpop.f32.mrf.mxu0
  %v433 = vadd.f32 0.0, %v432
  %v434 = vpop.f32.mrf.mxu0
  %435 = vmatprep.mubr.bf16.mxu0 %v168
  %436 = vmatmul.mubr.bf16.gmra.mxu0 %v167
  %v437 = vpop.f32.mrf.mxu0
  %v438 = vadd.f32 0.0, %v437
  %v439 = vpop.f32.mrf.mxu0
  %v440 = vpop.f32.mrf.mxu0
  %v441 = vadd.f32 0.0, %v440
  %v442 = vpop.f32.mrf.mxu0
  %443 = vdwg.mxu0
  %444 = vmatprep.subr.bf16.mxu0 0
  %445 = vmatpush1.bf16.msra.mxu0 %v338
  %446 = vmatprep.subr.bf16.mxu0 0
  %447 = vmatpush1.bf16.msra.mxu0 %v337
  %448 = vmatprep.subr.bf16.mxu0 0
  %449 = vmatpush1.bf16.msra.mxu0 %v336
  %450 = vmatprep.subr.bf16.mxu0 0
  %451 = vmatpush1.bf16.msra.mxu0 %v335
  %452 = vmatprep.subr.bf16.mxu0 0
  %453 = vmatpush1.bf16.msra.mxu0 %v334
  %454 = vmatprep.subr.bf16.mxu0 0
  %455 = vmatpush1.bf16.msra.mxu0 %v333
  %456 = vmatprep.subr.bf16.mxu0 0
  %457 = vmatpush1.bf16.msra.mxu0 %v332
  %458 = vmatprep.subr.bf16.mxu0 0
  %459 = vmatpush1.bf16.msra.mxu0 %v331
  %460 = vmatprep.subr.bf16.mxu0 0
  %461 = vmatpush2.bf16.msra.mxu0 %v346
  %462 = vmatprep.subr.bf16.mxu0 0
  %463 = vmatpush2.bf16.msra.mxu0 %v345
  %464 = vmatprep.subr.bf16.mxu0 0
  %465 = vmatpush2.bf16.msra.mxu0 %v344
  %466 = vmatprep.subr.bf16.mxu0 0
  %467 = vmatpush2.bf16.msra.mxu0 %v343
  %468 = vmatprep.subr.bf16.mxu0 0
  %469 = vmatpush2.bf16.msra.mxu0 %v342
  %470 = vmatprep.subr.bf16.mxu0 0
  %471 = vmatpush2.bf16.msra.mxu0 %v341
  %472 = vmatprep.subr.bf16.mxu0 0
  %473 = vmatpush2.bf16.msra.mxu0 %v340
  %474 = vmatprep.subr.bf16.mxu0 0
  %475 = vmatpush2.bf16.msra.mxu0 %v339
  %476 = vmatprep.mubr.bf16.mxu0 %v158
  %477 = vmatmul.mubr.bf16.gmra.mxu0 %v157
  %v478 = vpop.f32.mrf.mxu0
  %v479 = vadd.f32 %v414, %v478
  %v480 = vpop.f32.mrf.mxu0
  %v481 = vpop.f32.mrf.mxu0
  %v482 = vadd.f32 %v417, %v481
  %v483 = vpop.f32.mrf.mxu0
  %484 = vmatprep.mubr.bf16.mxu0 %v162
  %485 = vmatmul.mubr.bf16.gmra.mxu0 %v161
  %v486 = vpop.f32.mrf.mxu0
  %v487 = vadd.f32 %v422, %v486
  %v488 = vpop.f32.mrf.mxu0
  %v489 = vpop.f32.mrf.mxu0
  %v490 = vadd.f32 %v425, %v489
  %v491 = vpop.f32.mrf.mxu0
  %492 = vmatprep.mubr.bf16.mxu0 %v166
  %493 = vmatmul.mubr.bf16.gmra.mxu0 %v165
  %v494 = vpop.f32.mrf.mxu0
  %v495 = vadd.f32 %v430, %v494
  %v496 = vpop.f32.mrf.mxu0
  %v497 = vpop.f32.mrf.mxu0
  %v498 = vadd.f32 %v433, %v497
  %v499 = vpop.f32.mrf.mxu0
  %500 = vmatprep.mubr.bf16.mxu0 %v170
  %501 = vmatmul.mubr.bf16.gmra.mxu0 %v169
  %v502 = vpop.f32.mrf.mxu0
  %v503 = vadd.f32 %v438, %v502
  %v504 = vpop.f32.mrf.mxu0
  %v505 = vpop.f32.mrf.mxu0
  %v506 = vadd.f32 %v441, %v505
  %v507 = vpop.f32.mrf.mxu0
  %508 = vdwg.mxu0
  %517 = vrot.lane.b32.xlu0 %v479, 126
  %v518 = vpop.permute.xlu0 %517
  %519 = vrot.lane.b32.xlu0 %v482, 126
  %v520 = vpop.permute.xlu0 %519
  %521 = vrot.lane.b32.xlu0 %v487, 126
  %v522 = vpop.permute.xlu0 %521
  %523 = vrot.lane.b32.xlu0 %v490, 126
  %v524 = vpop.permute.xlu0 %523
  %525 = vrot.lane.b32.xlu0 %v495, 126
  %v526 = vpop.permute.xlu0 %525
  %527 = vrot.lane.b32.xlu0 %v498, 126
  %v528 = vpop.permute.xlu0 %527
  %529 = vrot.lane.b32.xlu0 %v503, 126
  %v530 = vpop.permute.xlu0 %529
  %531 = vrot.lane.b32.xlu0 %v506, 126
  %v532 = vpop.permute.xlu0 %531
  %v541 = vmax.f32 %v479, %v518
  %v542 = vmax.f32 %v482, %v520
  %v543 = vmax.f32 %v487, %v522
  %v544 = vmax.f32 %v490, %v524
  %v545 = vmax.f32 %v495, %v526
  %v546 = vmax.f32 %v498, %v528
  %v547 = vmax.f32 %v503, %v530
  %v548 = vmax.f32 %v506, %v532
  %557 = vrot.lane.b32.xlu0 %v541, 124
  %v558 = vpop.permute.xlu0 %557
  %559 = vrot.lane.b32.xlu0 %v542, 124
  %v560 = vpop.permute.xlu0 %559
  %561 = vrot.lane.b32.xlu0 %v543, 124
  %v562 = vpop.permute.xlu0 %561
  %563 = vrot.lane.b32.xlu0 %v544, 124
  %v564 = vpop.permute.xlu0 %563
  %565 = vrot.lane.b32.xlu0 %v545, 124
  %v566 = vpop.permute.xlu0 %565
  %567 = vrot.lane.b32.xlu0 %v546, 124
  %v568 = vpop.permute.xlu0 %567
  %569 = vrot.lane.b32.xlu0 %v547, 124
  %v570 = vpop.permute.xlu0 %569
  %571 = vrot.lane.b32.xlu0 %v548, 124
  %v572 = vpop.permute.xlu0 %571
  %v581 = vmax.f32 %v541, %v558
  %v582 = vmax.f32 %v542, %v560
  %v583 = vmax.f32 %v543, %v562
  %v584 = vmax.f32 %v544, %v564
  %v585 = vmax.f32 %v545, %v566
  %v586 = vmax.f32 %v546, %v568
  %v587 = vmax.f32 %v547, %v570
  %v588 = vmax.f32 %v548, %v572
  %v589 = vld [vmem:[%s2] sm:$0xff]
  %v590 = vld [vmem:[%s2 + $0x8] sm:$0xff]
  %v591 = vld [vmem:[%s2 + $0x10] sm:$0xff]
  %v592 = vld [vmem:[%s2 + $0x18] sm:$0xff]
  %v593 = vld [vmem:[%s2 + $0x20] sm:$0xff]
  %v594 = vld [vmem:[%s2 + $0x28] sm:$0xff]
  %v595 = vld [vmem:[%s2 + $0x30] sm:$0xff]
  %v596 = vld [vmem:[%s2 + $0x38] sm:$0xff]
  %598 = vset.pattern.permute.xlu0 0
  %599 = vperm.xlu0 %598, %v589
  %v600 = vpop.permute.xlu0 %599
  %603 = vset.pattern.permute.xlu0 0
  %604 = vperm.xlu0 %603, %v590
  %v605 = vpop.permute.xlu0 %604
  %608 = vset.pattern.permute.xlu0 0
  %609 = vperm.xlu0 %608, %v591
  %v610 = vpop.permute.xlu0 %609
  %613 = vset.pattern.permute.xlu0 0
  %614 = vperm.xlu0 %613, %v592
  %v615 = vpop.permute.xlu0 %614
  %618 = vset.pattern.permute.xlu0 0
  %619 = vperm.xlu0 %618, %v593
  %v620 = vpop.permute.xlu0 %619
  %623 = vset.pattern.permute.xlu0 0
  %624 = vperm.xlu0 %623, %v594
  %v625 = vpop.permute.xlu0 %624
  %628 = vset.pattern.permute.xlu0 0
  %629 = vperm.xlu0 %628, %v595
  %v630 = vpop.permute.xlu0 %629
  %633 = vset.pattern.permute.xlu0 0
  %634 = vperm.xlu0 %633, %v596
  %v635 = vpop.permute.xlu0 %634
  %v637 = vadd.f32 %v581, %v600
  %v638 = vadd.f32 %v582, %v605
  %v639 = vadd.f32 %v583, %v610
  %v640 = vadd.f32 %v584, %v615
  %v641 = vadd.f32 %v585, %v620
  %v642 = vadd.f32 %v586, %v625
  %v643 = vadd.f32 %v587, %v630
  %v644 = vadd.f32 %v588, %v635
  %v645 = vmul.f32 %v637, 0.2
  %v646 = vmul.f32 %v638, 0.2
  %v647 = vmul.f32 %v639, 0.2
  %v648 = vmul.f32 %v640, 0.2
  %v649 = vmul.f32 %v641, 0.2
  %v650 = vmul.f32 %v642, 0.2
  %v651 = vmul.f32 %v643, 0.2
  %v652 = vmul.f32 %v644, 0.2
  %v653 = vmax.f32 %v637, %v645
  %v654 = vmax.f32 %v638, %v646
  %v655 = vmax.f32 %v639, %v647
  %v656 = vmax.f32 %v640, %v648
  %v657 = vmax.f32 %v641, %v649
  %v658 = vmax.f32 %v642, %v650
  %v659 = vmax.f32 %v643, %v651
  %v660 = vmax.f32 %v644, %v652
  %v661 = vld [vmem:[%s3] sm:$0xff]
  %v662 = vld [vmem:[%s3 + $0x8] sm:$0xff]
  %v663 = vld [vmem:[%s4] sm:$0xff]
  %v664 = vld [vmem:[%s4 + $0x8] sm:$0xff]
  %666 = vset.pattern.permute.xlu0 0
  %667 = vperm.xlu0 %666, %v663
  %v668 = vpop.permute.xlu0 %667
  %671 = vset.pattern.permute.xlu0 0
  %672 = vperm.xlu0 %671, %v664
  %v673 = vpop.permute.xlu0 %672
  %vm675 = vcmask 523264
  %v677 = vsel %vm675, %v661, 0
  %v680 = vsel %vm675, %v662, 0
  %682 = vmatprep.subr.mxu0 0.0
  %683 = vmatpush1.msra.mxu0 0.0
  %684 = vmatprep.subr.mxu0 0.0
  %685 = vmatpush1.msra.mxu0 0.0
  %686 = vmatprep.subr.mxu0 0.0
  %687 = vmatpush1.msra.mxu0 0.0
  %688 = vmatprep.subr.mxu0 0.0
  %689 = vmatpush1.msra.mxu0 0.0
  %690 = vmatprep.subr.mxu0 0.0
  %691 = vmatpush1.msra.mxu0 0.0
  %692 = vmatprep.subr.mxu0 0.0
  %693 = vmatpush1.msra.mxu0 0.0
  %694 = vmatprep.subr.mxu0 0.0
  %695 = vmatpush1.msra.mxu0 0.0
  %696 = vmatprep.subr.mxu0 0.0
  %697 = vmatpush1.msra.mxu0 0.0
  %698 = vmatprep.subr.mxu0 0.0
  %699 = vmatpush1.msra.mxu0 %v660
  %700 = vmatprep.subr.mxu0 0.0
  %701 = vmatpush1.msra.mxu0 %v659
  %702 = vmatprep.subr.mxu0 0.0
  %703 = vmatpush1.msra.mxu0 %v658
  %704 = vmatprep.subr.mxu0 0.0
  %705 = vmatpush1.msra.mxu0 %v657
  %706 = vmatprep.subr.mxu0 0.0
  %707 = vmatpush1.msra.mxu0 %v656
  %708 = vmatprep.subr.mxu0 0.0
  %709 = vmatpush1.msra.mxu0 %v655
  %710 = vmatprep.subr.mxu0 0.0
  %711 = vmatpush1.msra.mxu0 %v654
  %712 = vmatprep.subr.mxu0 0.0
  %713 = vmatpush1.msra.mxu0 %v653
  %714 = vmatprep.subr.mxu0 0.0
  %715 = vmatpush2.msra.mxu0 0.0
  %716 = vmatprep.subr.mxu0 0.0
  %717 = vmatpush2.msra.mxu0 0.0
  %718 = vmatprep.subr.mxu0 0.0
  %719 = vmatpush2.msra.mxu0 0.0
  %720 = vmatprep.subr.mxu0 0.0
  %721 = vmatpush2.msra.mxu0 0.0
  %722 = vmatprep.subr.mxu0 0.0
  %723 = vmatpush2.msra.mxu0 0.0
  %724 = vmatprep.subr.mxu0 0.0
  %725 = vmatpush2.msra.mxu0 0.0
  %726 = vmatprep.subr.mxu0 0.0
  %727 = vmatpush2.msra.mxu0 0.0
  %728 = vmatprep.subr.mxu0 0.0
  %729 = vmatpush2.msra.mxu0 0.0
  %730 = vmatprep.subr.mxu0 0.0
  %731 = vmatpush2.msra.mxu0 0.0
  %732 = vmatprep.subr.mxu0 0.0
  %733 = vmatpush2.msra.mxu0 0.0
  %734 = vmatprep.subr.mxu0 0.0
  %735 = vmatpush2.msra.mxu0 0.0
  %736 = vmatprep.subr.mxu0 0.0
  %737 = vmatpush2.msra.mxu0 0.0
  %738 = vmatprep.subr.mxu0 0.0
  %739 = vmatpush2.msra.mxu0 0.0
  %740 = vmatprep.subr.mxu0 0.0
  %741 = vmatpush2.msra.mxu0 0.0
  %742 = vmatprep.subr.mxu0 0.0
  %743 = vmatpush2.msra.mxu0 0.0
  %744 = vmatprep.subr.mxu0 0.0
  %745 = vmatpush2.msra.mxu0 0.0
  %746 = vmatprep.mubr.f32.mxu0 0.0
  %747 = vmatmul.mubr.f32.gmra.mxu0 %v677
  %v748 = vpop.f32.mrf.mxu0
  %v749 = vadd.f32 %v668, %v748
  %v750 = vpop.f32.mrf.mxu0
  %751 = vmatprep.mubr.f32.mxu0 0.0
  %752 = vmatmul.mubr.f32.gmra.mxu0 %v680
  %v753 = vpop.f32.mrf.mxu0
  %v754 = vadd.f32 %v673, %v753
  %v755 = vpop.f32.mrf.mxu0
  %756 = vdwg.mxu0
  %v757 = vmul.f32 %v749, 0.2
  %v758 = vmul.f32 %v754, 0.2
  %v759 = vmax.f32 %v749, %v757
  %v760 = vmax.f32 %v754, %v758
  %v761 = vld [vmem:[%s5] sm:$0xff]
  %v762 = vld [vmem:[%s6] sm:$0xff]
  %764 = vset.pattern.permute.xlu0 0
  %765 = vperm.xlu0 %764, %v762
  %v766 = vpop.permute.xlu0 %765
  %vm768 = vcmask 130048
  %v770 = vsel %vm768, %v761, 0
  %772 = vmatprep.subr.mxu0 0.0
  %773 = vmatpush1.msra.mxu0 0.0
  %774 = vmatprep.subr.mxu0 0.0
  %775 = vmatpush1.msra.mxu0 0.0
  %776 = vmatprep.subr.mxu0 0.0
  %777 = vmatpush1.msra.mxu0 0.0
  %778 = vmatprep.subr.mxu0 0.0
  %779 = vmatpush1.msra.mxu0 0.0
  %780 = vmatprep.subr.mxu0 0.0
  %781 = vmatpush1.msra.mxu0 0.0
  %782 = vmatprep.subr.mxu0 0.0
  %783 = vmatpush1.msra.mxu0 0.0
  %784 = vmatprep.subr.mxu0 0.0
  %785 = vmatpush1.msra.mxu0 0.0
  %786 = vmatprep.subr.mxu0 0.0
  %787 = vmatpush1.msra.mxu0 0.0
  %788 = vmatprep.subr.mxu0 0.0
  %789 = vmatpush1.msra.mxu0 0.0
  %790 = vmatprep.subr.mxu0 0.0
  %791 = vmatpush1.msra.mxu0 0.0
  %792 = vmatprep.subr.mxu0 0.0
  %793 = vmatpush1.msra.mxu0 0.0
  %794 = vmatprep.subr.mxu0 0.0
  %795 = vmatpush1.msra.mxu0 0.0
  %796 = vmatprep.subr.mxu0 0.0
  %797 = vmatpush1.msra.mxu0 0.0
  %798 = vmatprep.subr.mxu0 0.0
  %799 = vmatpush1.msra.mxu0 0.0
  %800 = vmatprep.subr.mxu0 0.0
  %801 = vmatpush1.msra.mxu0 %v760
  %802 = vmatprep.subr.mxu0 0.0
  %803 = vmatpush1.msra.mxu0 %v759
  %804 = vmatprep.subr.mxu0 0.0
  %805 = vmatpush2.msra.mxu0 0.0
  %806 = vmatprep.subr.mxu0 0.0
  %807 = vmatpush2.msra.mxu0 0.0
  %808 = vmatprep.subr.mxu0 0.0
  %809 = vmatpush2.msra.mxu0 0.0
  %810 = vmatprep.subr.mxu0 0.0
  %811 = vmatpush2.msra.mxu0 0.0
  %812 = vmatprep.subr.mxu0 0.0
  %813 = vmatpush2.msra.mxu0 0.0
  %814 = vmatprep.subr.mxu0 0.0
  %815 = vmatpush2.msra.mxu0 0.0
  %816 = vmatprep.subr.mxu0 0.0
  %817 = vmatpush2.msra.mxu0 0.0
  %818 = vmatprep.subr.mxu0 0.0
  %819 = vmatpush2.msra.mxu0 0.0
  %820 = vmatprep.subr.mxu0 0.0
  %821 = vmatpush2.msra.mxu0 0.0
  %822 = vmatprep.subr.mxu0 0.0
  %823 = vmatpush2.msra.mxu0 0.0
  %824 = vmatprep.subr.mxu0 0.0
  %825 = vmatpush2.msra.mxu0 0.0
  %826 = vmatprep.subr.mxu0 0.0
  %827 = vmatpush2.msra.mxu0 0.0
  %828 = vmatprep.subr.mxu0 0.0
  %829 = vmatpush2.msra.mxu0 0.0
  %830 = vmatprep.subr.mxu0 0.0
  %831 = vmatpush2.msra.mxu0 0.0
  %832 = vmatprep.subr.mxu0 0.0
  %833 = vmatpush2.msra.mxu0 0.0
  %834 = vmatprep.subr.mxu0 0.0
  %835 = vmatpush2.msra.mxu0 0.0
  %836 = vmatprep.mubr.f32.mxu0 0.0
  %837 = vmatmul.mubr.f32.gmra.mxu0 %v770
  %v838 = vpop.f32.mrf.mxu0
  %v839 = vadd.f32 %v766, %v838
  %v840 = vpop.f32.mrf.mxu0
  %841 = vdwg.mxu0
  %vm842 = vcmask 15360
  %843 = vst.msk [vmem:[%s7] sm:$0xff] %vm842, %v839
  // Predicated region
  $region30: #{_lambda_.7} parent=0 // pred_check
    _
  $region31: #{_lambda_.7} parent=0 // pred_check_branch
    %845 = sbr.rel (0) target = $region33
  $region32: #{_lambda_.7} parent=0 // pred_region
    _
  $region33: #{_lambda_.7} parent=0 // pred_fallthru
    _
  // Predicated region
  $region34: #{_lambda_.7} parent=0 // pred_check
    _
  $region35: #{_lambda_.7} parent=0 // pred_check_branch
    %847 = sbr.rel (0) target = $region37
  $region36: #{_lambda_.7} parent=0 // pred_region
    _
  $region37: #{_lambda_.7} parent=0 // pred_fallthru
    _

</llo_original>
